<compile_context>
chip_gen: v7x
topology: tpu7x:2x2x1
jax: 0.10.0
libtpu: 0.0.40
codegen_flags: <defaults>
</compile_context>

<pallas_src>
import jax
import jax.numpy as jnp
import numpy as np
from jax import lax
from jax.experimental import pallas as pl
from jax.experimental.pallas import tpu as pltpu

# --- model hyper-parameters (consistent with the module's __init__) ----------
H = 8             # hidden_channels
LH = 32           # lstm_hidden_channels
G4 = 4 * LH       # LSTM gate width (i|f|g|o) = 128 lanes
OUT = 1           # out_channels
NUM_LAYERS = 2    # LSTM num_layers
N = 16            # number of graph nodes
E = 24            # number of edges (== LSTM sequence length)
EPS = 1e-5        # BatchNorm1d eps

# --- packed-parameter layout: one (PACK_ROWS, 128) f32 array, 8-row blocks ---
ROW_MISC  = 0                  # rows 0..6: w1f, b1f, b2f, bg0, bg1, bl1, bl2
ROW_W2    = 8                  # (H, H)      folded conv2 weight
ROW_WIH0S = 16                 # (H, 4LH)    layer-0 W_ih, sender block
ROW_WIH0R = 24                 # (H, 4LH)    layer-0 W_ih, receiver block
ROW_WIH0E = 32                 # (2, 4LH)    layer-0 W_ih, edge_attr block
ROW_WHH0  = 40                 # (LH, 4LH)
ROW_WIH1  = ROW_WHH0 + LH      # (LH, 4LH)
ROW_WHH1  = ROW_WIH1 + LH      # (LH, 4LH)
ROW_WL1   = ROW_WHH1 + LH      # (LH, LH//2)
ROW_WL2   = ROW_WL1 + LH       # (LH//2, OUT)
PACK_ROWS = ROW_WL2 + LH // 2  # 184


# ----------------------------- Pallas kernel ---------------------------------
def edge_gcn_lstm_kernel(x_ref, a_ref, sr_ref, ea_ref, p_ref, out_ref,
                         gx0s, h1seq):
    f32 = jnp.float32
    n_edges = ea_ref.shape[0]

    def dot(a, b):
        return jnp.dot(a, b, preferred_element_type=f32)

    # ---- carve the packed parameter block (static, tile-aligned slices) ----
    w1f    = p_ref[0:1, 0:H]                        # folded conv1 weight (1,H)
    b1f    = p_ref[1:2, 0:H]                        # folded conv1 bias   (1,H)
    b2f    = p_ref[2:3, 0:H]                        # folded conv2 bias   (1,H)
    bg0    = p_ref[3:4, :]                          # layer-0 gate bias   (1,4LH)
    bg1    = p_ref[4:5, :]                          # layer-1 gate bias   (1,4LH)
    bl1    = p_ref[5:6, 0:LH // 2]                  # lin1 bias           (1,LH/2)
    bl2    = p_ref[6:7, 0:OUT]                      # lin2 bias           (1,OUT)
    w2f    = p_ref[ROW_W2:ROW_W2 + H, 0:H]
    wih0_s = p_ref[ROW_WIH0S:ROW_WIH0S + H, :]
    wih0_r = p_ref[ROW_WIH0R:ROW_WIH0R + H, :]
    wih0_e = p_ref[ROW_WIH0E:ROW_WIH0E + 2, :]
    whh0   = p_ref[ROW_WHH0:ROW_WHH0 + LH, :]
    wih1   = p_ref[ROW_WIH1:ROW_WIH1 + LH, :]
    whh1   = p_ref[ROW_WHH1:ROW_WHH1 + LH, :]
    wl1    = p_ref[ROW_WL1:ROW_WL1 + LH, 0:LH // 2]
    wl2    = p_ref[ROW_WL2:ROW_WL2 + LH // 2, 0:OUT]

    # ---- GCNConv1 (+folded BN) -> ReLU ;  x@W1 with K=1 as a VPU broadcast --
    a_hat = a_ref[...]                                           # (N, N)
    h = jnp.maximum(dot(a_hat, x_ref[...] * w1f) + b1f, 0.0)     # (N, H)
    # ---- GCNConv2 (+folded BN) -> ReLU
    h = jnp.maximum(dot(a_hat, dot(h, w2f)) + b2f, 0.0)          # (N, H)

    # ---- LSTM layer-0 input projection for ALL steps in one MXU pass:
    #   gx0 = [s_oh | r_oh] @ [h@Wih_s ; h@Wih_r] + edge_attr @ Wih_e + bg0
    hw = jnp.concatenate([dot(h, wih0_s), dot(h, wih0_r)], axis=0)   # (2N, 4LH)
    gx0s[...] = dot(sr_ref[...], hw) + dot(ea_ref[...], wih0_e) + bg0

    # ---- fused 2-layer LSTM: layer 1 runs one step behind layer 0 -----------
    def cell(gates, c_prev):
        sig = jax.nn.sigmoid(gates)            # one EUP pass over all 4 gates
        tnh = jnp.tanh(gates)                  # one EUP pass over all 4 gates
        c = sig[:, LH:2 * LH] * c_prev + sig[:, 0:LH] * tnh[:, 2 * LH:3 * LH]
        hn = sig[:, 3 * LH:4 * LH] * jnp.tanh(c)
        return hn, c

    z0 = jnp.zeros((1, LH), f32)
    h0, c0, h1, c1 = z0, z0, z0, z0
    gx1 = None  # layer-1 pre-activation pipeline register (first set at t == 0)

    # Fully unrolled wavefront loop (static trip count E + 1).
    for t in range(n_edges + 1):
        if t >= 1:                              # layer-1 step t-1 (uses gx1 of t-1)
            h1, c1 = cell(gx1 + dot(h1, whh1), c1)
            h1seq[t - 1:t, :] = h1
        if t < n_edges:                         # layer-0 step t
            h0, c0 = cell(gx0s[t:t + 1, :] + dot(h0, whh0), c0)
            gx1 = dot(h0, wih1) + bg1           # feeds layer 1 next iteration
    # TODO(synk): pin whh0/whh1 in MXU weight registers via
    # pltpu.matmul_push_rhs/matmul_acc_lhs/matmul_pop to avoid re-pushing the
    # RHS every step; skipped here to keep the kernel portable and robust.

    # ---- MLP head: relu(lin1) -> lin2 ---------------------------------------
    z = jnp.maximum(dot(h1seq[...], wl1) + bl1, 0.0)             # (E, LH//2)
    out_ref[...] = dot(z, wl2) + bl2                             # (E, OUT)


# ----------------------------- wrapper (glue) ---------------------------------
def _gcn_dense_adj(edge_index, num_nodes):
    """PyG gcn_norm (add_self_loops=True) materialized as a dense matrix so the
    aggregation becomes a matmul: out = A_hat @ x_lin."""
    row, col = edge_index[0], edge_index[1]
    loop = jnp.arange(num_nodes, dtype=edge_index.dtype)
    rr = jnp.concatenate([row, loop])
    cc = jnp.concatenate([col, loop])
    w = jnp.ones(rr.shape[0], jnp.float32)
    deg = jnp.zeros((num_nodes,), jnp.float32).at[cc].add(w)
    dinv = jnp.where(deg > 0, deg ** -0.5, 0.0)
    norm = dinv[rr] * w * dinv[cc]
    return jnp.zeros((num_nodes, num_nodes), jnp.float32).at[cc, rr].add(norm)


def _fold_and_pack_params(p):
    """Fold BatchNorm1d(eval) into the GCN weights and pack every parameter
    tensor into a single (PACK_ROWS, 4*LH) f32 array (one DMA instead of ~29)."""
    k1 = p['g1'] * lax.rsqrt(p['v1'] + EPS)
    k2 = p['g2'] * lax.rsqrt(p['v2'] + EPS)
    w1f = p['w1'] * k1
    b1f = (p['b1'] - p['m1']) * k1 + p['be1']
    w2f = p['w2'] * k2                      # per-output-column scale
    b2f = (p['b2'] - p['m2']) * k2 + p['be2']

    buf = jnp.zeros((PACK_ROWS, G4), jnp.float32)
    for row, arr in (
        (0, w1f), (1, b1f), (2, b2f), (3, p['bg0']), (4, p['bg1']),
        (5, p['bl1']), (6, p['bl2']),
        (ROW_W2, w2f),
        (ROW_WIH0S, p['wih0_s']), (ROW_WIH0R, p['wih0_r']), (ROW_WIH0E, p['wih0_e']),
        (ROW_WHH0, p['whh0']), (ROW_WIH1, p['wih1']), (ROW_WHH1, p['whh1']),
        (ROW_WL1, p['wl1']), (ROW_WL2, p['wl2']),
    ):
        r, c = arr.shape
        buf = buf.at[row:row + r, 0:c].set(arr)
    return buf


def edge_gcn_lstm_forward(x, edge_index, edge_attr, p):
    n_nodes = x.shape[0]
    n_edges = edge_attr.shape[0]

    a_hat = _gcn_dense_adj(edge_index, n_nodes)                       # (N, N)
    s_oh = jax.nn.one_hot(edge_index[0], n_nodes, dtype=jnp.float32)  # (E, N)
    r_oh = jax.nn.one_hot(edge_index[1], n_nodes, dtype=jnp.float32)  # (E, N)
    sr_oh = jnp.concatenate([s_oh, r_oh], axis=1)                     # (E, 2N)
    packed = _fold_and_pack_params(p)                                 # (184, 128)

    vmem = pl.BlockSpec(memory_space=pltpu.MemorySpace.VMEM)
    out = pl.pallas_call(
        edge_gcn_lstm_kernel,
        out_shape=jax.ShapeDtypeStruct((n_edges, OUT), jnp.float32),
        in_specs=[vmem] * 5,
        out_specs=vmem,
        scratch_shapes=[
            pltpu.VMEM((n_edges, G4), jnp.float32),   # layer-0 gate pre-acts
            pltpu.VMEM((n_edges, LH), jnp.float32),   # layer-1 hidden sequence
        ],
    )(x, a_hat, sr_oh, edge_attr, packed)
    return out.reshape(-1)                            # matches out.view(-1)


# ------------------------ deterministic parameter init ------------------------
def init_params(key):
    keys = jax.random.split(key, 24)

    def rnd(k, shape, scale=0.2):
        return scale * jax.random.normal(k, shape, jnp.float32)

    isz = 2 * H + 2
    # GCNConv linear weights (PyTorch stores (out,in); kept as (in,out) for x@W)
    w1, b1 = rnd(keys[0], (1, H)), rnd(keys[1], (1, H))
    w2, b2 = rnd(keys[2], (H, H)), rnd(keys[3], (1, H))
    # BatchNorm1d (eval): affine + running stats
    g1 = 1.0 + 0.1 * jax.random.normal(keys[4], (1, H), jnp.float32)
    be1, m1 = rnd(keys[5], (1, H)), rnd(keys[6], (1, H))
    v1 = jax.random.uniform(keys[7], (1, H), jnp.float32, 0.5, 1.5)
    g2 = 1.0 + 0.1 * jax.random.normal(keys[8], (1, H), jnp.float32)
    be2, m2 = rnd(keys[9], (1, H)), rnd(keys[10], (1, H))
    v2 = jax.random.uniform(keys[11], (1, H), jnp.float32, 0.5, 1.5)
    # LSTM layer 0 / 1 (PyTorch shapes: weight_ih (4LH,in), weight_hh (4LH,LH))
    wih0, whh0 = rnd(keys[12], (4 * LH, isz)), rnd(keys[13], (4 * LH, LH))
    bih0, bhh0 = rnd(keys[14], (4 * LH,)), rnd(keys[15], (4 * LH,))
    wih1, whh1 = rnd(keys[16], (4 * LH, LH)), rnd(keys[17], (4 * LH, LH))
    bih1, bhh1 = rnd(keys[18], (4 * LH,)), rnd(keys[19], (4 * LH,))
    # MLP head
    wl1, bl1 = rnd(keys[20], (LH // 2, LH)), rnd(keys[21], (LH // 2,))
    wl2, bl2 = rnd(keys[22], (OUT, LH // 2)), rnd(keys[23], (OUT,))

    wih0_t = wih0.T  # (2H+2, 4LH) split by input block: sender | receiver | edge_attr
    return dict(
        w1=w1, b1=b1, g1=g1, be1=be1, m1=m1, v1=v1,
        w2=w2, b2=b2, g2=g2, be2=be2, m2=m2, v2=v2,
        wih0_s=wih0_t[0:H, :], wih0_r=wih0_t[H:2 * H, :], wih0_e=wih0_t[2 * H:, :],
        whh0=whh0.T, bg0=(bih0 + bhh0).reshape(1, -1),
        wih1=wih1.T, whh1=whh1.T, bg1=(bih1 + bhh1).reshape(1, -1),
        wl1=wl1.T, bl1=bl1.reshape(1, -1), wl2=wl2.T, bl2=bl2.reshape(1, -1),
    )


# --------------------------- pure-JAX reference --------------------------------
def reference_forward(x, edge_index, edge_attr, p):
    a_hat = _gcn_dense_adj(edge_index, x.shape[0])

    def bn(h, g, be, m, v):
        return (h - m) * lax.rsqrt(v + EPS) * g + be

    h = jnp.maximum(bn(a_hat @ (x @ p['w1']) + p['b1'], p['g1'], p['be1'], p['m1'], p['v1']), 0.0)
    h = jnp.maximum(bn(a_hat @ (h @ p['w2']) + p['b2'], p['g2'], p['be2'], p['m2'], p['v2']), 0.0)
    sender, receiver = h[edge_index[0]], h[edge_index[1]]
    gx0 = sender @ p['wih0_s'] + receiver @ p['wih0_r'] + edge_attr @ p['wih0_e'] + p['bg0']

    def run_layer(gx, whh):
        def step(carry, g_t):
            hp, cp = carry
            gates = g_t + hp @ whh
            i = jax.nn.sigmoid(gates[0:LH]); f = jax.nn.sigmoid(gates[LH:2 * LH])
            g = jnp.tanh(gates[2 * LH:3 * LH]); o = jax.nn.sigmoid(gates[3 * LH:4 * LH])
            c = f * cp + i * g
            hn = o * jnp.tanh(c)
            return (hn, c), hn
        z = jnp.zeros((LH,), jnp.float32)
        _, seq = lax.scan(step, (z, z), gx)
        return seq

    seq0 = run_layer(gx0, p['whh0'])
    seq1 = run_layer(seq0 @ p['wih1'] + p['bg1'], p['whh1'])
    z = jnp.maximum(seq1 @ p['wl1'] + p['bl1'], 0.0)
    return (z @ p['wl2'] + p['bl2']).reshape(-1)


# ------------------------------------ main -------------------------------------
if __name__ == "__main__":
    key = jax.random.PRNGKey(0)
    kx, ke, ka, kp = jax.random.split(key, 4)
    x = jax.random.normal(kx, (N, 1), jnp.float32)                  # node features
    edge_index = jax.random.randint(ke, (2, E), 0, N, dtype=jnp.int32)
    edge_attr = jax.random.normal(ka, (E, 2), jnp.float32)          # 2 edge features
    params = init_params(kp)

    out = jax.jit(edge_gcn_lstm_forward)(x, edge_index, edge_attr, params)
    out = jax.block_until_ready(out)

    ref = jax.jit(reference_forward)(x, edge_index, edge_attr, params)
    ref = jax.block_until_ready(ref)
    np.testing.assert_allclose(np.asarray(out), np.asarray(ref), rtol=1e-3, atol=1e-4)
    print("KERNEL_OK")
</pallas_src>

<mosaic_0001>
module attributes {stable_mosaic.version = 11 : i64} {
  func.func @edge_gcn_lstm_kernel(%arg0: memref<16x1xf32, #tpu.memory_space<vmem>>, %arg1: memref<16x16xf32, #tpu.memory_space<vmem>>, %arg2: memref<24x32xf32, #tpu.memory_space<vmem>>, %arg3: memref<24x2xf32, #tpu.memory_space<vmem>>, %arg4: memref<184x128xf32, #tpu.memory_space<vmem>>, %arg5: memref<24x1xf32, #tpu.memory_space<vmem>>, %arg6: memref<24x128xf32, #tpu.memory_space<vmem>>, %arg7: memref<24x32xf32, #tpu.memory_space<vmem>>) attributes {dimension_semantics = [], scalar_prefetch = 0 : i64, scratch_operands = 2 : i64, tpu.core_type = #tpu.core_type<tc>} {
    %c0 = arith.constant 0 : index
    %c0_0 = arith.constant 0 : index
    %0 = vector.load %arg4[%c0, %c0_0] : memref<184x128xf32, #tpu.memory_space<vmem>>, vector<1x8xf32>
    %c1 = arith.constant 1 : index
    %c0_1 = arith.constant 0 : index
    %1 = vector.load %arg4[%c1, %c0_1] : memref<184x128xf32, #tpu.memory_space<vmem>>, vector<1x8xf32>
    %c2 = arith.constant 2 : index
    %c0_2 = arith.constant 0 : index
    %2 = vector.load %arg4[%c2, %c0_2] : memref<184x128xf32, #tpu.memory_space<vmem>>, vector<1x8xf32>
    %c3 = arith.constant 3 : index
    %c0_3 = arith.constant 0 : index
    %3 = vector.load %arg4[%c3, %c0_3] : memref<184x128xf32, #tpu.memory_space<vmem>>, vector<1x128xf32>
    %c4 = arith.constant 4 : index
    %c0_4 = arith.constant 0 : index
    %4 = vector.load %arg4[%c4, %c0_4] : memref<184x128xf32, #tpu.memory_space<vmem>>, vector<1x128xf32>
    %c5 = arith.constant 5 : index
    %c0_5 = arith.constant 0 : index
    %5 = vector.load %arg4[%c5, %c0_5] : memref<184x128xf32, #tpu.memory_space<vmem>>, vector<1x16xf32>
    %c6 = arith.constant 6 : index
    %c0_6 = arith.constant 0 : index
    %6 = vector.load %arg4[%c6, %c0_6] : memref<184x128xf32, #tpu.memory_space<vmem>>, vector<1x1xf32>
    %c8 = arith.constant 8 : index
    %c0_7 = arith.constant 0 : index
    %7 = vector.load %arg4[%c8, %c0_7] : memref<184x128xf32, #tpu.memory_space<vmem>>, vector<8x8xf32>
    %c16 = arith.constant 16 : index
    %c0_8 = arith.constant 0 : index
    %8 = vector.load %arg4[%c16, %c0_8] : memref<184x128xf32, #tpu.memory_space<vmem>>, vector<8x128xf32>
    %c24 = arith.constant 24 : index
    %c0_9 = arith.constant 0 : index
    %9 = vector.load %arg4[%c24, %c0_9] : memref<184x128xf32, #tpu.memory_space<vmem>>, vector<8x128xf32>
    %c32 = arith.constant 32 : index
    %c0_10 = arith.constant 0 : index
    %10 = vector.load %arg4[%c32, %c0_10] : memref<184x128xf32, #tpu.memory_space<vmem>>, vector<2x128xf32>
    %c40 = arith.constant 40 : index
    %c0_11 = arith.constant 0 : index
    %11 = vector.load %arg4[%c40, %c0_11] : memref<184x128xf32, #tpu.memory_space<vmem>>, vector<32x128xf32>
    %c72 = arith.constant 72 : index
    %c0_12 = arith.constant 0 : index
    %12 = vector.load %arg4[%c72, %c0_12] : memref<184x128xf32, #tpu.memory_space<vmem>>, vector<32x128xf32>
    %c104 = arith.constant 104 : index
    %c0_13 = arith.constant 0 : index
    %13 = vector.load %arg4[%c104, %c0_13] : memref<184x128xf32, #tpu.memory_space<vmem>>, vector<32x128xf32>
    %c136 = arith.constant 136 : index
    %c0_14 = arith.constant 0 : index
    %14 = vector.load %arg4[%c136, %c0_14] : memref<184x128xf32, #tpu.memory_space<vmem>>, vector<32x16xf32>
    %c168 = arith.constant 168 : index
    %c0_15 = arith.constant 0 : index
    %15 = vector.load %arg4[%c168, %c0_15] : memref<184x128xf32, #tpu.memory_space<vmem>>, vector<16x1xf32>
    %c0_16 = arith.constant 0 : index
    %c0_17 = arith.constant 0 : index
    %16 = vector.load %arg1[%c0_16, %c0_17] : memref<16x16xf32, #tpu.memory_space<vmem>>, vector<16x16xf32>
    %c0_18 = arith.constant 0 : index
    %c0_19 = arith.constant 0 : index
    %17 = vector.load %arg0[%c0_18, %c0_19] : memref<16x1xf32, #tpu.memory_space<vmem>>, vector<16x1xf32>
    %18 = vector.broadcast %17 : vector<16x1xf32> to vector<16x8xf32>
    %19 = vector.broadcast %0 : vector<1x8xf32> to vector<16x8xf32>
    %20 = arith.mulf %18, %19 : vector<16x8xf32>
    %cst = arith.constant dense<0.000000e+00> : vector<16x8xf32>
    %21 = tpu.matmul %16, %20, %cst {dimension_numbers = #tpu.dot_dimension_numbers<[1], [0], [0], [1], [0, 0, 1, 1], [], []>} : vector<16x16xf32>, vector<16x8xf32>, vector<16x8xf32> -> vector<16x8xf32>
    %22 = vector.broadcast %1 : vector<1x8xf32> to vector<16x8xf32>
    %23 = arith.addf %21, %22 : vector<16x8xf32>
    %cst_20 = arith.constant 0.000000e+00 : f32
    %24 = vector.broadcast %cst_20 : f32 to vector<16x8xf32>
    %25 = arith.maximumf %23, %24 : vector<16x8xf32>
    %cst_21 = arith.constant dense<0.000000e+00> : vector<16x8xf32>
    %26 = tpu.matmul %25, %7, %cst_21 {dimension_numbers = #tpu.dot_dimension_numbers<[1], [0], [0], [1], [0, 0, 1, 1], [], []>} : vector<16x8xf32>, vector<8x8xf32>, vector<16x8xf32> -> vector<16x8xf32>
    %cst_22 = arith.constant dense<0.000000e+00> : vector<16x8xf32>
    %27 = tpu.matmul %16, %26, %cst_22 {dimension_numbers = #tpu.dot_dimension_numbers<[1], [0], [0], [1], [0, 0, 1, 1], [], []>} : vector<16x16xf32>, vector<16x8xf32>, vector<16x8xf32> -> vector<16x8xf32>
    %28 = vector.broadcast %2 : vector<1x8xf32> to vector<16x8xf32>
    %29 = arith.addf %27, %28 : vector<16x8xf32>
    %cst_23 = arith.constant 0.000000e+00 : f32
    %30 = vector.broadcast %cst_23 : f32 to vector<16x8xf32>
    %31 = arith.maximumf %29, %30 : vector<16x8xf32>
    %cst_24 = arith.constant dense<0.000000e+00> : vector<16x128xf32>
    %32 = tpu.matmul %31, %8, %cst_24 {dimension_numbers = #tpu.dot_dimension_numbers<[1], [0], [0], [1], [0, 0, 1, 1], [], []>} : vector<16x8xf32>, vector<8x128xf32>, vector<16x128xf32> -> vector<16x128xf32>
    %cst_25 = arith.constant dense<0.000000e+00> : vector<16x128xf32>
    %33 = tpu.matmul %31, %9, %cst_25 {dimension_numbers = #tpu.dot_dimension_numbers<[1], [0], [0], [1], [0, 0, 1, 1], [], []>} : vector<16x8xf32>, vector<8x128xf32>, vector<16x128xf32> -> vector<16x128xf32>
    %34 = tpu.concatenate %32, %33 in 0 : vector<16x128xf32>, vector<16x128xf32> -> vector<32x128xf32>
    %c0_26 = arith.constant 0 : index
    %c0_27 = arith.constant 0 : index
    %35 = vector.load %arg2[%c0_26, %c0_27] : memref<24x32xf32, #tpu.memory_space<vmem>>, vector<24x32xf32>
    %cst_28 = arith.constant dense<0.000000e+00> : vector<24x128xf32>
    %36 = tpu.matmul %35, %34, %cst_28 {dimension_numbers = #tpu.dot_dimension_numbers<[1], [0], [0], [1], [0, 0, 1, 1], [], []>} : vector<24x32xf32>, vector<32x128xf32>, vector<24x128xf32> -> vector<24x128xf32>
    %c0_29 = arith.constant 0 : index
    %c0_30 = arith.constant 0 : index
    %37 = vector.load %arg3[%c0_29, %c0_30] : memref<24x2xf32, #tpu.memory_space<vmem>>, vector<24x2xf32>
    %cst_31 = arith.constant dense<0.000000e+00> : vector<24x128xf32>
    %38 = tpu.matmul %37, %10, %cst_31 {dimension_numbers = #tpu.dot_dimension_numbers<[1], [0], [0], [1], [0, 0, 1, 1], [], []>} : vector<24x2xf32>, vector<2x128xf32>, vector<24x128xf32> -> vector<24x128xf32>
    %39 = arith.addf %36, %38 : vector<24x128xf32>
    %40 = vector.broadcast %3 : vector<1x128xf32> to vector<24x128xf32>
    %41 = arith.addf %39, %40 : vector<24x128xf32>
    %c0_32 = arith.constant 0 : index
    %c0_33 = arith.constant 0 : index
    %42 = vector.load %arg6[%c0_32, %c0_33] : memref<24x128xf32, #tpu.memory_space<vmem>>, vector<24x128xf32>
    tpu.vector_store %arg6[%c0_32, %c0_33], %41 {strides = array<i32>} : memref<24x128xf32, #tpu.memory_space<vmem>>, vector<24x128xf32>,
    %cst_34 = arith.constant 0.000000e+00 : f32
    %43 = vector.broadcast %cst_34 : f32 to vector<1x32xf32>
    %c0_35 = arith.constant 0 : index
    %c0_36 = arith.constant 0 : index
    %44 = vector.load %arg6[%c0_35, %c0_36] : memref<24x128xf32, #tpu.memory_space<vmem>>, vector<1x128xf32>
    %cst_37 = arith.constant dense<0.000000e+00> : vector<1x128xf32>
    %45 = tpu.matmul %43, %11, %cst_37 {dimension_numbers = #tpu.dot_dimension_numbers<[1], [0], [0], [1], [0, 0, 1, 1], [], []>} : vector<1x32xf32>, vector<32x128xf32>, vector<1x128xf32> -> vector<1x128xf32>
    %46 = arith.addf %44, %45 : vector<1x128xf32>
    %47 = arith.negf %46 : vector<1x128xf32>
    %48 = math.exp %47 : vector<1x128xf32>
    %cst_38 = arith.constant 1.000000e+00 : f32
    %49 = vector.broadcast %cst_38 : f32 to vector<1x128xf32>
    %50 = arith.addf %49, %48 : vector<1x128xf32>
    %51 = arith.divf %49, %50 : vector<1x128xf32>
    %52 = math.tanh %46 : vector<1x128xf32>
    %53 = vector.extract_strided_slice %51 {offsets = [0, 32], sizes = [1, 32], strides = [1, 1]} : vector<1x128xf32> to vector<1x32xf32>
    %54 = arith.mulf %53, %43 : vector<1x32xf32>
    %55 = vector.extract_strided_slice %51 {offsets = [0, 0], sizes = [1, 32], strides = [1, 1]} : vector<1x128xf32> to vector<1x32xf32>
    %56 = vector.extract_strided_slice %52 {offsets = [0, 64], sizes = [1, 32], strides = [1, 1]} : vector<1x128xf32> to vector<1x32xf32>
    %57 = arith.mulf %55, %56 : vector<1x32xf32>
    %58 = arith.addf %54, %57 : vector<1x32xf32>
    %59 = vector.extract_strided_slice %51 {offsets = [0, 96], sizes = [1, 32], strides = [1, 1]} : vector<1x128xf32> to vector<1x32xf32>
    %60 = math.tanh %58 : vector<1x32xf32>
    %61 = arith.mulf %59, %60 : vector<1x32xf32>
    %cst_39 = arith.constant dense<0.000000e+00> : vector<1x128xf32>
    %62 = tpu.matmul %61, %12, %cst_39 {dimension_numbers = #tpu.dot_dimension_numbers<[1], [0], [0], [1], [0, 0, 1, 1], [], []>} : vector<1x32xf32>, vector<32x128xf32>, vector<1x128xf32> -> vector<1x128xf32>
    %63 = arith.addf %62, %4 : vector<1x128xf32>
    %cst_40 = arith.constant dense<0.000000e+00> : vector<1x128xf32>
    %64 = tpu.matmul %43, %13, %cst_40 {dimension_numbers = #tpu.dot_dimension_numbers<[1], [0], [0], [1], [0, 0, 1, 1], [], []>} : vector<1x32xf32>, vector<32x128xf32>, vector<1x128xf32> -> vector<1x128xf32>
    %65 = arith.addf %63, %64 : vector<1x128xf32>
    %66 = arith.negf %65 : vector<1x128xf32>
    %67 = math.exp %66 : vector<1x128xf32>
    %cst_41 = arith.constant 1.000000e+00 : f32
    %68 = vector.broadcast %cst_41 : f32 to vector<1x128xf32>
    %69 = arith.addf %68, %67 : vector<1x128xf32>
    %70 = arith.divf %68, %69 : vector<1x128xf32>
    %71 = math.tanh %65 : vector<1x128xf32>
    %72 = vector.extract_strided_slice %70 {offsets = [0, 32], sizes = [1, 32], strides = [1, 1]} : vector<1x128xf32> to vector<1x32xf32>
    %73 = arith.mulf %72, %43 : vector<1x32xf32>
    %74 = vector.extract_strided_slice %70 {offsets = [0, 0], sizes = [1, 32], strides = [1, 1]} : vector<1x128xf32> to vector<1x32xf32>
    %75 = vector.extract_strided_slice %71 {offsets = [0, 64], sizes = [1, 32], strides = [1, 1]} : vector<1x128xf32> to vector<1x32xf32>
    %76 = arith.mulf %74, %75 : vector<1x32xf32>
    %77 = arith.addf %73, %76 : vector<1x32xf32>
    %78 = vector.extract_strided_slice %70 {offsets = [0, 96], sizes = [1, 32], strides = [1, 1]} : vector<1x128xf32> to vector<1x32xf32>
    %79 = math.tanh %77 : vector<1x32xf32>
    %80 = arith.mulf %78, %79 : vector<1x32xf32>
    %c0_42 = arith.constant 0 : index
    %c0_43 = arith.constant 0 : index
    %81 = vector.load %arg7[%c0_42, %c0_43] : memref<24x32xf32, #tpu.memory_space<vmem>>, vector<1x32xf32>
    tpu.vector_store %arg7[%c0_42, %c0_43], %80 {strides = array<i32>} : memref<24x32xf32, #tpu.memory_space<vmem>>, vector<1x32xf32>,
    %c1_44 = arith.constant 1 : index
    %c0_45 = arith.constant 0 : index
    %82 = vector.load %arg6[%c1_44, %c0_45] : memref<24x128xf32, #tpu.memory_space<vmem>>, vector<1x128xf32>
    %cst_46 = arith.constant dense<0.000000e+00> : vector<1x128xf32>
    %83 = tpu.matmul %61, %11, %cst_46 {dimension_numbers = #tpu.dot_dimension_numbers<[1], [0], [0], [1], [0, 0, 1, 1], [], []>} : vector<1x32xf32>, vector<32x128xf32>, vector<1x128xf32> -> vector<1x128xf32>
    %84 = arith.addf %82, %83 : vector<1x128xf32>
    %85 = arith.negf %84 : vector<1x128xf32>
    %86 = math.exp %85 : vector<1x128xf32>
    %cst_47 = arith.constant 1.000000e+00 : f32
    %87 = vector.broadcast %cst_47 : f32 to vector<1x128xf32>
    %88 = arith.addf %87, %86 : vector<1x128xf32>
    %89 = arith.divf %87, %88 : vector<1x128xf32>
    %90 = math.tanh %84 : vector<1x128xf32>
    %91 = vector.extract_strided_slice %89 {offsets = [0, 32], sizes = [1, 32], strides = [1, 1]} : vector<1x128xf32> to vector<1x32xf32>
    %92 = arith.mulf %91, %58 : vector<1x32xf32>
    %93 = vector.extract_strided_slice %89 {offsets = [0, 0], sizes = [1, 32], strides = [1, 1]} : vector<1x128xf32> to vector<1x32xf32>
    %94 = vector.extract_strided_slice %90 {offsets = [0, 64], sizes = [1, 32], strides = [1, 1]} : vector<1x128xf32> to vector<1x32xf32>
    %95 = arith.mulf %93, %94 : vector<1x32xf32>
    %96 = arith.addf %92, %95 : vector<1x32xf32>
    %97 = vector.extract_strided_slice %89 {offsets = [0, 96], sizes = [1, 32], strides = [1, 1]} : vector<1x128xf32> to vector<1x32xf32>
    %98 = math.tanh %96 : vector<1x32xf32>
    %99 = arith.mulf %97, %98 : vector<1x32xf32>
    %cst_48 = arith.constant dense<0.000000e+00> : vector<1x128xf32>
    %100 = tpu.matmul %99, %12, %cst_48 {dimension_numbers = #tpu.dot_dimension_numbers<[1], [0], [0], [1], [0, 0, 1, 1], [], []>} : vector<1x32xf32>, vector<32x128xf32>, vector<1x128xf32> -> vector<1x128xf32>
    %101 = arith.addf %100, %4 : vector<1x128xf32>
    %cst_49 = arith.constant dense<0.000000e+00> : vector<1x128xf32>
    %102 = tpu.matmul %80, %13, %cst_49 {dimension_numbers = #tpu.dot_dimension_numbers<[1], [0], [0], [1], [0, 0, 1, 1], [], []>} : vector<1x32xf32>, vector<32x128xf32>, vector<1x128xf32> -> vector<1x128xf32>
    %103 = arith.addf %101, %102 : vector<1x128xf32>
    %104 = arith.negf %103 : vector<1x128xf32>
    %105 = math.exp %104 : vector<1x128xf32>
    %cst_50 = arith.constant 1.000000e+00 : f32
    %106 = vector.broadcast %cst_50 : f32 to vector<1x128xf32>
    %107 = arith.addf %106, %105 : vector<1x128xf32>
    %108 = arith.divf %106, %107 : vector<1x128xf32>
    %109 = math.tanh %103 : vector<1x128xf32>
    %110 = vector.extract_strided_slice %108 {offsets = [0, 32], sizes = [1, 32], strides = [1, 1]} : vector<1x128xf32> to vector<1x32xf32>
    %111 = arith.mulf %110, %77 : vector<1x32xf32>
    %112 = vector.extract_strided_slice %108 {offsets = [0, 0], sizes = [1, 32], strides = [1, 1]} : vector<1x128xf32> to vector<1x32xf32>
    %113 = vector.extract_strided_slice %109 {offsets = [0, 64], sizes = [1, 32], strides = [1, 1]} : vector<1x128xf32> to vector<1x32xf32>
    %114 = arith.mulf %112, %113 : vector<1x32xf32>
    %115 = arith.addf %111, %114 : vector<1x32xf32>
    %116 = vector.extract_strided_slice %108 {offsets = [0, 96], sizes = [1, 32], strides = [1, 1]} : vector<1x128xf32> to vector<1x32xf32>
    %117 = math.tanh %115 : vector<1x32xf32>
    %118 = arith.mulf %116, %117 : vector<1x32xf32>
    %c1_51 = arith.constant 1 : index
    %c0_52 = arith.constant 0 : index
    %119 = vector.load %arg7[%c1_51, %c0_52] : memref<24x32xf32, #tpu.memory_space<vmem>>, vector<1x32xf32>
    tpu.vector_store %arg7[%c1_51, %c0_52], %118 {strides = array<i32>} : memref<24x32xf32, #tpu.memory_space<vmem>>, vector<1x32xf32>,
    %c2_53 = arith.constant 2 : index
    %c0_54 = arith.constant 0 : index
    %120 = vector.load %arg6[%c2_53, %c0_54] : memref<24x128xf32, #tpu.memory_space<vmem>>, vector<1x128xf32>
    %cst_55 = arith.constant dense<0.000000e+00> : vector<1x128xf32>
    %121 = tpu.matmul %99, %11, %cst_55 {dimension_numbers = #tpu.dot_dimension_numbers<[1], [0], [0], [1], [0, 0, 1, 1], [], []>} : vector<1x32xf32>, vector<32x128xf32>, vector<1x128xf32> -> vector<1x128xf32>
    %122 = arith.addf %120, %121 : vector<1x128xf32>
    %123 = arith.negf %122 : vector<1x128xf32>
    %124 = math.exp %123 : vector<1x128xf32>
    %cst_56 = arith.constant 1.000000e+00 : f32
    %125 = vector.broadcast %cst_56 : f32 to vector<1x128xf32>
    %126 = arith.addf %125, %124 : vector<1x128xf32>
    %127 = arith.divf %125, %126 : vector<1x128xf32>
    %128 = math.tanh %122 : vector<1x128xf32>
    %129 = vector.extract_strided_slice %127 {offsets = [0, 32], sizes = [1, 32], strides = [1, 1]} : vector<1x128xf32> to vector<1x32xf32>
    %130 = arith.mulf %129, %96 : vector<1x32xf32>
    %131 = vector.extract_strided_slice %127 {offsets = [0, 0], sizes = [1, 32], strides = [1, 1]} : vector<1x128xf32> to vector<1x32xf32>
    %132 = vector.extract_strided_slice %128 {offsets = [0, 64], sizes = [1, 32], strides = [1, 1]} : vector<1x128xf32> to vector<1x32xf32>
    %133 = arith.mulf %131, %132 : vector<1x32xf32>
    %134 = arith.addf %130, %133 : vector<1x32xf32>
    %135 = vector.extract_strided_slice %127 {offsets = [0, 96], sizes = [1, 32], strides = [1, 1]} : vector<1x128xf32> to vector<1x32xf32>
    %136 = math.tanh %134 : vector<1x32xf32>
    %137 = arith.mulf %135, %136 : vector<1x32xf32>
    %cst_57 = arith.constant dense<0.000000e+00> : vector<1x128xf32>
    %138 = tpu.matmul %137, %12, %cst_57 {dimension_numbers = #tpu.dot_dimension_numbers<[1], [0], [0], [1], [0, 0, 1, 1], [], []>} : vector<1x32xf32>, vector<32x128xf32>, vector<1x128xf32> -> vector<1x128xf32>
    %139 = arith.addf %138, %4 : vector<1x128xf32>
    %cst_58 = arith.constant dense<0.000000e+00> : vector<1x128xf32>
    %140 = tpu.matmul %118, %13, %cst_58 {dimension_numbers = #tpu.dot_dimension_numbers<[1], [0], [0], [1], [0, 0, 1, 1], [], []>} : vector<1x32xf32>, vector<32x128xf32>, vector<1x128xf32> -> vector<1x128xf32>
    %141 = arith.addf %139, %140 : vector<1x128xf32>
    %142 = arith.negf %141 : vector<1x128xf32>
    %143 = math.exp %142 : vector<1x128xf32>
    %cst_59 = arith.constant 1.000000e+00 : f32
    %144 = vector.broadcast %cst_59 : f32 to vector<1x128xf32>
    %145 = arith.addf %144, %143 : vector<1x128xf32>
    %146 = arith.divf %144, %145 : vector<1x128xf32>
    %147 = math.tanh %141 : vector<1x128xf32>
    %148 = vector.extract_strided_slice %146 {offsets = [0, 32], sizes = [1, 32], strides = [1, 1]} : vector<1x128xf32> to vector<1x32xf32>
    %149 = arith.mulf %148, %115 : vector<1x32xf32>
    %150 = vector.extract_strided_slice %146 {offsets = [0, 0], sizes = [1, 32], strides = [1, 1]} : vector<1x128xf32> to vector<1x32xf32>
    %151 = vector.extract_strided_slice %147 {offsets = [0, 64], sizes = [1, 32], strides = [1, 1]} : vector<1x128xf32> to vector<1x32xf32>
    %152 = arith.mulf %150, %151 : vector<1x32xf32>
    %153 = arith.addf %149, %152 : vector<1x32xf32>
    %154 = vector.extract_strided_slice %146 {offsets = [0, 96], sizes = [1, 32], strides = [1, 1]} : vector<1x128xf32> to vector<1x32xf32>
    %155 = math.tanh %153 : vector<1x32xf32>
    %156 = arith.mulf %154, %155 : vector<1x32xf32>
    %c2_60 = arith.constant 2 : index
    %c0_61 = arith.constant 0 : index
    %157 = vector.load %arg7[%c2_60, %c0_61] : memref<24x32xf32, #tpu.memory_space<vmem>>, vector<1x32xf32>
    tpu.vector_store %arg7[%c2_60, %c0_61], %156 {strides = array<i32>} : memref<24x32xf32, #tpu.memory_space<vmem>>, vector<1x32xf32>,
    %c3_62 = arith.constant 3 : index
    %c0_63 = arith.constant 0 : index
    %158 = vector.load %arg6[%c3_62, %c0_63] : memref<24x128xf32, #tpu.memory_space<vmem>>, vector<1x128xf32>
    %cst_64 = arith.constant dense<0.000000e+00> : vector<1x128xf32>
    %159 = tpu.matmul %137, %11, %cst_64 {dimension_numbers = #tpu.dot_dimension_numbers<[1], [0], [0], [1], [0, 0, 1, 1], [], []>} : vector<1x32xf32>, vector<32x128xf32>, vector<1x128xf32> -> vector<1x128xf32>
    %160 = arith.addf %158, %159 : vector<1x128xf32>
    %161 = arith.negf %160 : vector<1x128xf32>
    %162 = math.exp %161 : vector<1x128xf32>
    %cst_65 = arith.constant 1.000000e+00 : f32
    %163 = vector.broadcast %cst_65 : f32 to vector<1x128xf32>
    %164 = arith.addf %163, %162 : vector<1x128xf32>
    %165 = arith.divf %163, %164 : vector<1x128xf32>
    %166 = math.tanh %160 : vector<1x128xf32>
    %167 = vector.extract_strided_slice %165 {offsets = [0, 32], sizes = [1, 32], strides = [1, 1]} : vector<1x128xf32> to vector<1x32xf32>
    %168 = arith.mulf %167, %134 : vector<1x32xf32>
    %169 = vector.extract_strided_slice %165 {offsets = [0, 0], sizes = [1, 32], strides = [1, 1]} : vector<1x128xf32> to vector<1x32xf32>
    %170 = vector.extract_strided_slice %166 {offsets = [0, 64], sizes = [1, 32], strides = [1, 1]} : vector<1x128xf32> to vector<1x32xf32>
    %171 = arith.mulf %169, %170 : vector<1x32xf32>
    %172 = arith.addf %168, %171 : vector<1x32xf32>
    %173 = vector.extract_strided_slice %165 {offsets = [0, 96], sizes = [1, 32], strides = [1, 1]} : vector<1x128xf32> to vector<1x32xf32>
    %174 = math.tanh %172 : vector<1x32xf32>
    %175 = arith.mulf %173, %174 : vector<1x32xf32>
    %cst_66 = arith.constant dense<0.000000e+00> : vector<1x128xf32>
    %176 = tpu.matmul %175, %12, %cst_66 {dimension_numbers = #tpu.dot_dimension_numbers<[1], [0], [0], [1], [0, 0, 1, 1], [], []>} : vector<1x32xf32>, vector<32x128xf32>, vector<1x128xf32> -> vector<1x128xf32>
    %177 = arith.addf %176, %4 : vector<1x128xf32>
    %cst_67 = arith.constant dense<0.000000e+00> : vector<1x128xf32>
    %178 = tpu.matmul %156, %13, %cst_67 {dimension_numbers = #tpu.dot_dimension_numbers<[1], [0], [0], [1], [0, 0, 1, 1], [], []>} : vector<1x32xf32>, vector<32x128xf32>, vector<1x128xf32> -> vector<1x128xf32>
    %179 = arith.addf %177, %178 : vector<1x128xf32>
    %180 = arith.negf %179 : vector<1x128xf32>
    %181 = math.exp %180 : vector<1x128xf32>
    %cst_68 = arith.constant 1.000000e+00 : f32
    %182 = vector.broadcast %cst_68 : f32 to vector<1x128xf32>
    %183 = arith.addf %182, %181 : vector<1x128xf32>
    %184 = arith.divf %182, %183 : vector<1x128xf32>
    %185 = math.tanh %179 : vector<1x128xf32>
    %186 = vector.extract_strided_slice %184 {offsets = [0, 32], sizes = [1, 32], strides = [1, 1]} : vector<1x128xf32> to vector<1x32xf32>
    %187 = arith.mulf %186, %153 : vector<1x32xf32>
    %188 = vector.extract_strided_slice %184 {offsets = [0, 0], sizes = [1, 32], strides = [1, 1]} : vector<1x128xf32> to vector<1x32xf32>
    %189 = vector.extract_strided_slice %185 {offsets = [0, 64], sizes = [1, 32], strides = [1, 1]} : vector<1x128xf32> to vector<1x32xf32>
    %190 = arith.mulf %188, %189 : vector<1x32xf32>
    %191 = arith.addf %187, %190 : vector<1x32xf32>
    %192 = vector.extract_strided_slice %184 {offsets = [0, 96], sizes = [1, 32], strides = [1, 1]} : vector<1x128xf32> to vector<1x32xf32>
    %193 = math.tanh %191 : vector<1x32xf32>
    %194 = arith.mulf %192, %193 : vector<1x32xf32>
    %c3_69 = arith.constant 3 : index
    %c0_70 = arith.constant 0 : index
    %195 = vector.load %arg7[%c3_69, %c0_70] : memref<24x32xf32, #tpu.memory_space<vmem>>, vector<1x32xf32>
    tpu.vector_store %arg7[%c3_69, %c0_70], %194 {strides = array<i32>} : memref<24x32xf32, #tpu.memory_space<vmem>>, vector<1x32xf32>,
    %c4_71 = arith.constant 4 : index
    %c0_72 = arith.constant 0 : index
    %196 = vector.load %arg6[%c4_71, %c0_72] : memref<24x128xf32, #tpu.memory_space<vmem>>, vector<1x128xf32>
    %cst_73 = arith.constant dense<0.000000e+00> : vector<1x128xf32>
    %197 = tpu.matmul %175, %11, %cst_73 {dimension_numbers = #tpu.dot_dimension_numbers<[1], [0], [0], [1], [0, 0, 1, 1], [], []>} : vector<1x32xf32>, vector<32x128xf32>, vector<1x128xf32> -> vector<1x128xf32>
    %198 = arith.addf %196, %197 : vector<1x128xf32>
    %199 = arith.negf %198 : vector<1x128xf32>
    %200 = math.exp %199 : vector<1x128xf32>
    %cst_74 = arith.constant 1.000000e+00 : f32
    %201 = vector.broadcast %cst_74 : f32 to vector<1x128xf32>
    %202 = arith.addf %201, %200 : vector<1x128xf32>
    %203 = arith.divf %201, %202 : vector<1x128xf32>
    %204 = math.tanh %198 : vector<1x128xf32>
    %205 = vector.extract_strided_slice %203 {offsets = [0, 32], sizes = [1, 32], strides = [1, 1]} : vector<1x128xf32> to vector<1x32xf32>
    %206 = arith.mulf %205, %172 : vector<1x32xf32>
    %207 = vector.extract_strided_slice %203 {offsets = [0, 0], sizes = [1, 32], strides = [1, 1]} : vector<1x128xf32> to vector<1x32xf32>
    %208 = vector.extract_strided_slice %204 {offsets = [0, 64], sizes = [1, 32], strides = [1, 1]} : vector<1x128xf32> to vector<1x32xf32>
    %209 = arith.mulf %207, %208 : vector<1x32xf32>
    %210 = arith.addf %206, %209 : vector<1x32xf32>
    %211 = vector.extract_strided_slice %203 {offsets = [0, 96], sizes = [1, 32], strides = [1, 1]} : vector<1x128xf32> to vector<1x32xf32>
    %212 = math.tanh %210 : vector<1x32xf32>
    %213 = arith.mulf %211, %212 : vector<1x32xf32>
    %cst_75 = arith.constant dense<0.000000e+00> : vector<1x128xf32>
    %214 = tpu.matmul %213, %12, %cst_75 {dimension_numbers = #tpu.dot_dimension_numbers<[1], [0], [0], [1], [0, 0, 1, 1], [], []>} : vector<1x32xf32>, vector<32x128xf32>, vector<1x128xf32> -> vector<1x128xf32>
    %215 = arith.addf %214, %4 : vector<1x128xf32>
    %cst_76 = arith.constant dense<0.000000e+00> : vector<1x128xf32>
    %216 = tpu.matmul %194, %13, %cst_76 {dimension_numbers = #tpu.dot_dimension_numbers<[1], [0], [0], [1], [0, 0, 1, 1], [], []>} : vector<1x32xf32>, vector<32x128xf32>, vector<1x128xf32> -> vector<1x128xf32>
    %217 = arith.addf %215, %216 : vector<1x128xf32>
    %218 = arith.negf %217 : vector<1x128xf32>
    %219 = math.exp %218 : vector<1x128xf32>
    %cst_77 = arith.constant 1.000000e+00 : f32
    %220 = vector.broadcast %cst_77 : f32 to vector<1x128xf32>
    %221 = arith.addf %220, %219 : vector<1x128xf32>
    %222 = arith.divf %220, %221 : vector<1x128xf32>
    %223 = math.tanh %217 : vector<1x128xf32>
    %224 = vector.extract_strided_slice %222 {offsets = [0, 32], sizes = [1, 32], strides = [1, 1]} : vector<1x128xf32> to vector<1x32xf32>
    %225 = arith.mulf %224, %191 : vector<1x32xf32>
    %226 = vector.extract_strided_slice %222 {offsets = [0, 0], sizes = [1, 32], strides = [1, 1]} : vector<1x128xf32> to vector<1x32xf32>
    %227 = vector.extract_strided_slice %223 {offsets = [0, 64], sizes = [1, 32], strides = [1, 1]} : vector<1x128xf32> to vector<1x32xf32>
    %228 = arith.mulf %226, %227 : vector<1x32xf32>
    %229 = arith.addf %225, %228 : vector<1x32xf32>
    %230 = vector.extract_strided_slice %222 {offsets = [0, 96], sizes = [1, 32], strides = [1, 1]} : vector<1x128xf32> to vector<1x32xf32>
    %231 = math.tanh %229 : vector<1x32xf32>
    %232 = arith.mulf %230, %231 : vector<1x32xf32>
    %c4_78 = arith.constant 4 : index
    %c0_79 = arith.constant 0 : index
    %233 = vector.load %arg7[%c4_78, %c0_79] : memref<24x32xf32, #tpu.memory_space<vmem>>, vector<1x32xf32>
    tpu.vector_store %arg7[%c4_78, %c0_79], %232 {strides = array<i32>} : memref<24x32xf32, #tpu.memory_space<vmem>>, vector<1x32xf32>,
    %c5_80 = arith.constant 5 : index
    %c0_81 = arith.constant 0 : index
    %234 = vector.load %arg6[%c5_80, %c0_81] : memref<24x128xf32, #tpu.memory_space<vmem>>, vector<1x128xf32>
    %cst_82 = arith.constant dense<0.000000e+00> : vector<1x128xf32>
    %235 = tpu.matmul %213, %11, %cst_82 {dimension_numbers = #tpu.dot_dimension_numbers<[1], [0], [0], [1], [0, 0, 1, 1], [], []>} : vector<1x32xf32>, vector<32x128xf32>, vector<1x128xf32> -> vector<1x128xf32>
    %236 = arith.addf %234, %235 : vector<1x128xf32>
    %237 = arith.negf %236 : vector<1x128xf32>
    %238 = math.exp %237 : vector<1x128xf32>
    %cst_83 = arith.constant 1.000000e+00 : f32
    %239 = vector.broadcast %cst_83 : f32 to vector<1x128xf32>
    %240 = arith.addf %239, %238 : vector<1x128xf32>
    %241 = arith.divf %239, %240 : vector<1x128xf32>
    %242 = math.tanh %236 : vector<1x128xf32>
    %243 = vector.extract_strided_slice %241 {offsets = [0, 32], sizes = [1, 32], strides = [1, 1]} : vector<1x128xf32> to vector<1x32xf32>
    %244 = arith.mulf %243, %210 : vector<1x32xf32>
    %245 = vector.extract_strided_slice %241 {offsets = [0, 0], sizes = [1, 32], strides = [1, 1]} : vector<1x128xf32> to vector<1x32xf32>
    %246 = vector.extract_strided_slice %242 {offsets = [0, 64], sizes = [1, 32], strides = [1, 1]} : vector<1x128xf32> to vector<1x32xf32>
    %247 = arith.mulf %245, %246 : vector<1x32xf32>
    %248 = arith.addf %244, %247 : vector<1x32xf32>
    %249 = vector.extract_strided_slice %241 {offsets = [0, 96], sizes = [1, 32], strides = [1, 1]} : vector<1x128xf32> to vector<1x32xf32>
    %250 = math.tanh %248 : vector<1x32xf32>
    %251 = arith.mulf %249, %250 : vector<1x32xf32>
    %cst_84 = arith.constant dense<0.000000e+00> : vector<1x128xf32>
    %252 = tpu.matmul %251, %12, %cst_84 {dimension_numbers = #tpu.dot_dimension_numbers<[1], [0], [0], [1], [0, 0, 1, 1], [], []>} : vector<1x32xf32>, vector<32x128xf32>, vector<1x128xf32> -> vector<1x128xf32>
    %253 = arith.addf %252, %4 : vector<1x128xf32>
    %cst_85 = arith.constant dense<0.000000e+00> : vector<1x128xf32>
    %254 = tpu.matmul %232, %13, %cst_85 {dimension_numbers = #tpu.dot_dimension_numbers<[1], [0], [0], [1], [0, 0, 1, 1], [], []>} : vector<1x32xf32>, vector<32x128xf32>, vector<1x128xf32> -> vector<1x128xf32>
    %255 = arith.addf %253, %254 : vector<1x128xf32>
    %256 = arith.negf %255 : vector<1x128xf32>
    %257 = math.exp %256 : vector<1x128xf32>
    %cst_86 = arith.constant 1.000000e+00 : f32
    %258 = vector.broadcast %cst_86 : f32 to vector<1x128xf32>
    %259 = arith.addf %258, %257 : vector<1x128xf32>
    %260 = arith.divf %258, %259 : vector<1x128xf32>
    %261 = math.tanh %255 : vector<1x128xf32>
    %262 = vector.extract_strided_slice %260 {offsets = [0, 32], sizes = [1, 32], strides = [1, 1]} : vector<1x128xf32> to vector<1x32xf32>
    %263 = arith.mulf %262, %229 : vector<1x32xf32>
    %264 = vector.extract_strided_slice %260 {offsets = [0, 0], sizes = [1, 32], strides = [1, 1]} : vector<1x128xf32> to vector<1x32xf32>
    %265 = vector.extract_strided_slice %261 {offsets = [0, 64], sizes = [1, 32], strides = [1, 1]} : vector<1x128xf32> to vector<1x32xf32>
    %266 = arith.mulf %264, %265 : vector<1x32xf32>
    %267 = arith.addf %263, %266 : vector<1x32xf32>
    %268 = vector.extract_strided_slice %260 {offsets = [0, 96], sizes = [1, 32], strides = [1, 1]} : vector<1x128xf32> to vector<1x32xf32>
    %269 = math.tanh %267 : vector<1x32xf32>
    %270 = arith.mulf %268, %269 : vector<1x32xf32>
    %c5_87 = arith.constant 5 : index
    %c0_88 = arith.constant 0 : index
    %271 = vector.load %arg7[%c5_87, %c0_88] : memref<24x32xf32, #tpu.memory_space<vmem>>, vector<1x32xf32>
    tpu.vector_store %arg7[%c5_87, %c0_88], %270 {strides = array<i32>} : memref<24x32xf32, #tpu.memory_space<vmem>>, vector<1x32xf32>,
    %c6_89 = arith.constant 6 : index
    %c0_90 = arith.constant 0 : index
    %272 = vector.load %arg6[%c6_89, %c0_90] : memref<24x128xf32, #tpu.memory_space<vmem>>, vector<1x128xf32>
    %cst_91 = arith.constant dense<0.000000e+00> : vector<1x128xf32>
    %273 = tpu.matmul %251, %11, %cst_91 {dimension_numbers = #tpu.dot_dimension_numbers<[1], [0], [0], [1], [0, 0, 1, 1], [], []>} : vector<1x32xf32>, vector<32x128xf32>, vector<1x128xf32> -> vector<1x128xf32>
    %274 = arith.addf %272, %273 : vector<1x128xf32>
    %275 = arith.negf %274 : vector<1x128xf32>
    %276 = math.exp %275 : vector<1x128xf32>
    %cst_92 = arith.constant 1.000000e+00 : f32
    %277 = vector.broadcast %cst_92 : f32 to vector<1x128xf32>
    %278 = arith.addf %277, %276 : vector<1x128xf32>
    %279 = arith.divf %277, %278 : vector<1x128xf32>
    %280 = math.tanh %274 : vector<1x128xf32>
    %281 = vector.extract_strided_slice %279 {offsets = [0, 32], sizes = [1, 32], strides = [1, 1]} : vector<1x128xf32> to vector<1x32xf32>
    %282 = arith.mulf %281, %248 : vector<1x32xf32>
    %283 = vector.extract_strided_slice %279 {offsets = [0, 0], sizes = [1, 32], strides = [1, 1]} : vector<1x128xf32> to vector<1x32xf32>
    %284 = vector.extract_strided_slice %280 {offsets = [0, 64], sizes = [1, 32], strides = [1, 1]} : vector<1x128xf32> to vector<1x32xf32>
    %285 = arith.mulf %283, %284 : vector<1x32xf32>
    %286 = arith.addf %282, %285 : vector<1x32xf32>
    %287 = vector.extract_strided_slice %279 {offsets = [0, 96], sizes = [1, 32], strides = [1, 1]} : vector<1x128xf32> to vector<1x32xf32>
    %288 = math.tanh %286 : vector<1x32xf32>
    %289 = arith.mulf %287, %288 : vector<1x32xf32>
    %cst_93 = arith.constant dense<0.000000e+00> : vector<1x128xf32>
    %290 = tpu.matmul %289, %12, %cst_93 {dimension_numbers = #tpu.dot_dimension_numbers<[1], [0], [0], [1], [0, 0, 1, 1], [], []>} : vector<1x32xf32>, vector<32x128xf32>, vector<1x128xf32> -> vector<1x128xf32>
    %291 = arith.addf %290, %4 : vector<1x128xf32>
    %cst_94 = arith.constant dense<0.000000e+00> : vector<1x128xf32>
    %292 = tpu.matmul %270, %13, %cst_94 {dimension_numbers = #tpu.dot_dimension_numbers<[1], [0], [0], [1], [0, 0, 1, 1], [], []>} : vector<1x32xf32>, vector<32x128xf32>, vector<1x128xf32> -> vector<1x128xf32>
    %293 = arith.addf %291, %292 : vector<1x128xf32>
    %294 = arith.negf %293 : vector<1x128xf32>
    %295 = math.exp %294 : vector<1x128xf32>
    %cst_95 = arith.constant 1.000000e+00 : f32
    %296 = vector.broadcast %cst_95 : f32 to vector<1x128xf32>
    %297 = arith.addf %296, %295 : vector<1x128xf32>
    %298 = arith.divf %296, %297 : vector<1x128xf32>
    %299 = math.tanh %293 : vector<1x128xf32>
    %300 = vector.extract_strided_slice %298 {offsets = [0, 32], sizes = [1, 32], strides = [1, 1]} : vector<1x128xf32> to vector<1x32xf32>
    %301 = arith.mulf %300, %267 : vector<1x32xf32>
    %302 = vector.extract_strided_slice %298 {offsets = [0, 0], sizes = [1, 32], strides = [1, 1]} : vector<1x128xf32> to vector<1x32xf32>
    %303 = vector.extract_strided_slice %299 {offsets = [0, 64], sizes = [1, 32], strides = [1, 1]} : vector<1x128xf32> to vector<1x32xf32>
    %304 = arith.mulf %302, %303 : vector<1x32xf32>
    %305 = arith.addf %301, %304 : vector<1x32xf32>
    %306 = vector.extract_strided_slice %298 {offsets = [0, 96], sizes = [1, 32], strides = [1, 1]} : vector<1x128xf32> to vector<1x32xf32>
    %307 = math.tanh %305 : vector<1x32xf32>
    %308 = arith.mulf %306, %307 : vector<1x32xf32>
    %c6_96 = arith.constant 6 : index
    %c0_97 = arith.constant 0 : index
    %309 = vector.load %arg7[%c6_96, %c0_97] : memref<24x32xf32, #tpu.memory_space<vmem>>, vector<1x32xf32>
    tpu.vector_store %arg7[%c6_96, %c0_97], %308 {strides = array<i32>} : memref<24x32xf32, #tpu.memory_space<vmem>>, vector<1x32xf32>,
    %c7 = arith.constant 7 : index
    %c0_98 = arith.constant 0 : index
    %310 = vector.load %arg6[%c7, %c0_98] : memref<24x128xf32, #tpu.memory_space<vmem>>, vector<1x128xf32>
    %cst_99 = arith.constant dense<0.000000e+00> : vector<1x128xf32>
    %311 = tpu.matmul %289, %11, %cst_99 {dimension_numbers = #tpu.dot_dimension_numbers<[1], [0], [0], [1], [0, 0, 1, 1], [], []>} : vector<1x32xf32>, vector<32x128xf32>, vector<1x128xf32> -> vector<1x128xf32>
    %312 = arith.addf %310, %311 : vector<1x128xf32>
    %313 = arith.negf %312 : vector<1x128xf32>
    %314 = math.exp %313 : vector<1x128xf32>
    %cst_100 = arith.constant 1.000000e+00 : f32
    %315 = vector.broadcast %cst_100 : f32 to vector<1x128xf32>
    %316 = arith.addf %315, %314 : vector<1x128xf32>
    %317 = arith.divf %315, %316 : vector<1x128xf32>
    %318 = math.tanh %312 : vector<1x128xf32>
    %319 = vector.extract_strided_slice %317 {offsets = [0, 32], sizes = [1, 32], strides = [1, 1]} : vector<1x128xf32> to vector<1x32xf32>
    %320 = arith.mulf %319, %286 : vector<1x32xf32>
    %321 = vector.extract_strided_slice %317 {offsets = [0, 0], sizes = [1, 32], strides = [1, 1]} : vector<1x128xf32> to vector<1x32xf32>
    %322 = vector.extract_strided_slice %318 {offsets = [0, 64], sizes = [1, 32], strides = [1, 1]} : vector<1x128xf32> to vector<1x32xf32>
    %323 = arith.mulf %321, %322 : vector<1x32xf32>
    %324 = arith.addf %320, %323 : vector<1x32xf32>
    %325 = vector.extract_strided_slice %317 {offsets = [0, 96], sizes = [1, 32], strides = [1, 1]} : vector<1x128xf32> to vector<1x32xf32>
    %326 = math.tanh %324 : vector<1x32xf32>
    %327 = arith.mulf %325, %326 : vector<1x32xf32>
    %cst_101 = arith.constant dense<0.000000e+00> : vector<1x128xf32>
    %328 = tpu.matmul %327, %12, %cst_101 {dimension_numbers = #tpu.dot_dimension_numbers<[1], [0], [0], [1], [0, 0, 1, 1], [], []>} : vector<1x32xf32>, vector<32x128xf32>, vector<1x128xf32> -> vector<1x128xf32>
    %329 = arith.addf %328, %4 : vector<1x128xf32>
    %cst_102 = arith.constant dense<0.000000e+00> : vector<1x128xf32>
    %330 = tpu.matmul %308, %13, %cst_102 {dimension_numbers = #tpu.dot_dimension_numbers<[1], [0], [0], [1], [0, 0, 1, 1], [], []>} : vector<1x32xf32>, vector<32x128xf32>, vector<1x128xf32> -> vector<1x128xf32>
    %331 = arith.addf %329, %330 : vector<1x128xf32>
    %332 = arith.negf %331 : vector<1x128xf32>
    %333 = math.exp %332 : vector<1x128xf32>
    %cst_103 = arith.constant 1.000000e+00 : f32
    %334 = vector.broadcast %cst_103 : f32 to vector<1x128xf32>
    %335 = arith.addf %334, %333 : vector<1x128xf32>
    %336 = arith.divf %334, %335 : vector<1x128xf32>
    %337 = math.tanh %331 : vector<1x128xf32>
    %338 = vector.extract_strided_slice %336 {offsets = [0, 32], sizes = [1, 32], strides = [1, 1]} : vector<1x128xf32> to vector<1x32xf32>
    %339 = arith.mulf %338, %305 : vector<1x32xf32>
    %340 = vector.extract_strided_slice %336 {offsets = [0, 0], sizes = [1, 32], strides = [1, 1]} : vector<1x128xf32> to vector<1x32xf32>
    %341 = vector.extract_strided_slice %337 {offsets = [0, 64], sizes = [1, 32], strides = [1, 1]} : vector<1x128xf32> to vector<1x32xf32>
    %342 = arith.mulf %340, %341 : vector<1x32xf32>
    %343 = arith.addf %339, %342 : vector<1x32xf32>
    %344 = vector.extract_strided_slice %336 {offsets = [0, 96], sizes = [1, 32], strides = [1, 1]} : vector<1x128xf32> to vector<1x32xf32>
    %345 = math.tanh %343 : vector<1x32xf32>
    %346 = arith.mulf %344, %345 : vector<1x32xf32>
    %c7_104 = arith.constant 7 : index
    %c0_105 = arith.constant 0 : index
    %347 = vector.load %arg7[%c7_104, %c0_105] : memref<24x32xf32, #tpu.memory_space<vmem>>, vector<1x32xf32>
    tpu.vector_store %arg7[%c7_104, %c0_105], %346 {strides = array<i32>} : memref<24x32xf32, #tpu.memory_space<vmem>>, vector<1x32xf32>,
    %c8_106 = arith.constant 8 : index
    %c0_107 = arith.constant 0 : index
    %348 = vector.load %arg6[%c8_106, %c0_107] : memref<24x128xf32, #tpu.memory_space<vmem>>, vector<1x128xf32>
    %cst_108 = arith.constant dense<0.000000e+00> : vector<1x128xf32>
    %349 = tpu.matmul %327, %11, %cst_108 {dimension_numbers = #tpu.dot_dimension_numbers<[1], [0], [0], [1], [0, 0, 1, 1], [], []>} : vector<1x32xf32>, vector<32x128xf32>, vector<1x128xf32> -> vector<1x128xf32>
    %350 = arith.addf %348, %349 : vector<1x128xf32>
    %351 = arith.negf %350 : vector<1x128xf32>
    %352 = math.exp %351 : vector<1x128xf32>
    %cst_109 = arith.constant 1.000000e+00 : f32
    %353 = vector.broadcast %cst_109 : f32 to vector<1x128xf32>
    %354 = arith.addf %353, %352 : vector<1x128xf32>
    %355 = arith.divf %353, %354 : vector<1x128xf32>
    %356 = math.tanh %350 : vector<1x128xf32>
    %357 = vector.extract_strided_slice %355 {offsets = [0, 32], sizes = [1, 32], strides = [1, 1]} : vector<1x128xf32> to vector<1x32xf32>
    %358 = arith.mulf %357, %324 : vector<1x32xf32>
    %359 = vector.extract_strided_slice %355 {offsets = [0, 0], sizes = [1, 32], strides = [1, 1]} : vector<1x128xf32> to vector<1x32xf32>
    %360 = vector.extract_strided_slice %356 {offsets = [0, 64], sizes = [1, 32], strides = [1, 1]} : vector<1x128xf32> to vector<1x32xf32>
    %361 = arith.mulf %359, %360 : vector<1x32xf32>
    %362 = arith.addf %358, %361 : vector<1x32xf32>
    %363 = vector.extract_strided_slice %355 {offsets = [0, 96], sizes = [1, 32], strides = [1, 1]} : vector<1x128xf32> to vector<1x32xf32>
    %364 = math.tanh %362 : vector<1x32xf32>
    %365 = arith.mulf %363, %364 : vector<1x32xf32>
    %cst_110 = arith.constant dense<0.000000e+00> : vector<1x128xf32>
    %366 = tpu.matmul %365, %12, %cst_110 {dimension_numbers = #tpu.dot_dimension_numbers<[1], [0], [0], [1], [0, 0, 1, 1], [], []>} : vector<1x32xf32>, vector<32x128xf32>, vector<1x128xf32> -> vector<1x128xf32>
    %367 = arith.addf %366, %4 : vector<1x128xf32>
    %cst_111 = arith.constant dense<0.000000e+00> : vector<1x128xf32>
    %368 = tpu.matmul %346, %13, %cst_111 {dimension_numbers = #tpu.dot_dimension_numbers<[1], [0], [0], [1], [0, 0, 1, 1], [], []>} : vector<1x32xf32>, vector<32x128xf32>, vector<1x128xf32> -> vector<1x128xf32>
    %369 = arith.addf %367, %368 : vector<1x128xf32>
    %370 = arith.negf %369 : vector<1x128xf32>
    %371 = math.exp %370 : vector<1x128xf32>
    %cst_112 = arith.constant 1.000000e+00 : f32
    %372 = vector.broadcast %cst_112 : f32 to vector<1x128xf32>
    %373 = arith.addf %372, %371 : vector<1x128xf32>
    %374 = arith.divf %372, %373 : vector<1x128xf32>
    %375 = math.tanh %369 : vector<1x128xf32>
    %376 = vector.extract_strided_slice %374 {offsets = [0, 32], sizes = [1, 32], strides = [1, 1]} : vector<1x128xf32> to vector<1x32xf32>
    %377 = arith.mulf %376, %343 : vector<1x32xf32>
    %378 = vector.extract_strided_slice %374 {offsets = [0, 0], sizes = [1, 32], strides = [1, 1]} : vector<1x128xf32> to vector<1x32xf32>
    %379 = vector.extract_strided_slice %375 {offsets = [0, 64], sizes = [1, 32], strides = [1, 1]} : vector<1x128xf32> to vector<1x32xf32>
    %380 = arith.mulf %378, %379 : vector<1x32xf32>
    %381 = arith.addf %377, %380 : vector<1x32xf32>
    %382 = vector.extract_strided_slice %374 {offsets = [0, 96], sizes = [1, 32], strides = [1, 1]} : vector<1x128xf32> to vector<1x32xf32>
    %383 = math.tanh %381 : vector<1x32xf32>
    %384 = arith.mulf %382, %383 : vector<1x32xf32>
    %c8_113 = arith.constant 8 : index
    %c0_114 = arith.constant 0 : index
    %385 = vector.load %arg7[%c8_113, %c0_114] : memref<24x32xf32, #tpu.memory_space<vmem>>, vector<1x32xf32>
    tpu.vector_store %arg7[%c8_113, %c0_114], %384 {strides = array<i32>} : memref<24x32xf32, #tpu.memory_space<vmem>>, vector<1x32xf32>,
    %c9 = arith.constant 9 : index
    %c0_115 = arith.constant 0 : index
    %386 = vector.load %arg6[%c9, %c0_115] : memref<24x128xf32, #tpu.memory_space<vmem>>, vector<1x128xf32>
    %cst_116 = arith.constant dense<0.000000e+00> : vector<1x128xf32>
    %387 = tpu.matmul %365, %11, %cst_116 {dimension_numbers = #tpu.dot_dimension_numbers<[1], [0], [0], [1], [0, 0, 1, 1], [], []>} : vector<1x32xf32>, vector<32x128xf32>, vector<1x128xf32> -> vector<1x128xf32>
    %388 = arith.addf %386, %387 : vector<1x128xf32>
    %389 = arith.negf %388 : vector<1x128xf32>
    %390 = math.exp %389 : vector<1x128xf32>
    %cst_117 = arith.constant 1.000000e+00 : f32
    %391 = vector.broadcast %cst_117 : f32 to vector<1x128xf32>
    %392 = arith.addf %391, %390 : vector<1x128xf32>
    %393 = arith.divf %391, %392 : vector<1x128xf32>
    %394 = math.tanh %388 : vector<1x128xf32>
    %395 = vector.extract_strided_slice %393 {offsets = [0, 32], sizes = [1, 32], strides = [1, 1]} : vector<1x128xf32> to vector<1x32xf32>
    %396 = arith.mulf %395, %362 : vector<1x32xf32>
    %397 = vector.extract_strided_slice %393 {offsets = [0, 0], sizes = [1, 32], strides = [1, 1]} : vector<1x128xf32> to vector<1x32xf32>
    %398 = vector.extract_strided_slice %394 {offsets = [0, 64], sizes = [1, 32], strides = [1, 1]} : vector<1x128xf32> to vector<1x32xf32>
    %399 = arith.mulf %397, %398 : vector<1x32xf32>
    %400 = arith.addf %396, %399 : vector<1x32xf32>
    %401 = vector.extract_strided_slice %393 {offsets = [0, 96], sizes = [1, 32], strides = [1, 1]} : vector<1x128xf32> to vector<1x32xf32>
    %402 = math.tanh %400 : vector<1x32xf32>
    %403 = arith.mulf %401, %402 : vector<1x32xf32>
    %cst_118 = arith.constant dense<0.000000e+00> : vector<1x128xf32>
    %404 = tpu.matmul %403, %12, %cst_118 {dimension_numbers = #tpu.dot_dimension_numbers<[1], [0], [0], [1], [0, 0, 1, 1], [], []>} : vector<1x32xf32>, vector<32x128xf32>, vector<1x128xf32> -> vector<1x128xf32>
    %405 = arith.addf %404, %4 : vector<1x128xf32>
    %cst_119 = arith.constant dense<0.000000e+00> : vector<1x128xf32>
    %406 = tpu.matmul %384, %13, %cst_119 {dimension_numbers = #tpu.dot_dimension_numbers<[1], [0], [0], [1], [0, 0, 1, 1], [], []>} : vector<1x32xf32>, vector<32x128xf32>, vector<1x128xf32> -> vector<1x128xf32>
    %407 = arith.addf %405, %406 : vector<1x128xf32>
    %408 = arith.negf %407 : vector<1x128xf32>
    %409 = math.exp %408 : vector<1x128xf32>
    %cst_120 = arith.constant 1.000000e+00 : f32
    %410 = vector.broadcast %cst_120 : f32 to vector<1x128xf32>
    %411 = arith.addf %410, %409 : vector<1x128xf32>
    %412 = arith.divf %410, %411 : vector<1x128xf32>
    %413 = math.tanh %407 : vector<1x128xf32>
    %414 = vector.extract_strided_slice %412 {offsets = [0, 32], sizes = [1, 32], strides = [1, 1]} : vector<1x128xf32> to vector<1x32xf32>
    %415 = arith.mulf %414, %381 : vector<1x32xf32>
    %416 = vector.extract_strided_slice %412 {offsets = [0, 0], sizes = [1, 32], strides = [1, 1]} : vector<1x128xf32> to vector<1x32xf32>
    %417 = vector.extract_strided_slice %413 {offsets = [0, 64], sizes = [1, 32], strides = [1, 1]} : vector<1x128xf32> to vector<1x32xf32>
    %418 = arith.mulf %416, %417 : vector<1x32xf32>
    %419 = arith.addf %415, %418 : vector<1x32xf32>
    %420 = vector.extract_strided_slice %412 {offsets = [0, 96], sizes = [1, 32], strides = [1, 1]} : vector<1x128xf32> to vector<1x32xf32>
    %421 = math.tanh %419 : vector<1x32xf32>
    %422 = arith.mulf %420, %421 : vector<1x32xf32>
    %c9_121 = arith.constant 9 : index
    %c0_122 = arith.constant 0 : index
    %423 = vector.load %arg7[%c9_121, %c0_122] : memref<24x32xf32, #tpu.memory_space<vmem>>, vector<1x32xf32>
    tpu.vector_store %arg7[%c9_121, %c0_122], %422 {strides = array<i32>} : memref<24x32xf32, #tpu.memory_space<vmem>>, vector<1x32xf32>,
    %c10 = arith.constant 10 : index
    %c0_123 = arith.constant 0 : index
    %424 = vector.load %arg6[%c10, %c0_123] : memref<24x128xf32, #tpu.memory_space<vmem>>, vector<1x128xf32>
    %cst_124 = arith.constant dense<0.000000e+00> : vector<1x128xf32>
    %425 = tpu.matmul %403, %11, %cst_124 {dimension_numbers = #tpu.dot_dimension_numbers<[1], [0], [0], [1], [0, 0, 1, 1], [], []>} : vector<1x32xf32>, vector<32x128xf32>, vector<1x128xf32> -> vector<1x128xf32>
    %426 = arith.addf %424, %425 : vector<1x128xf32>
    %427 = arith.negf %426 : vector<1x128xf32>
    %428 = math.exp %427 : vector<1x128xf32>
    %cst_125 = arith.constant 1.000000e+00 : f32
    %429 = vector.broadcast %cst_125 : f32 to vector<1x128xf32>
    %430 = arith.addf %429, %428 : vector<1x128xf32>
    %431 = arith.divf %429, %430 : vector<1x128xf32>
    %432 = math.tanh %426 : vector<1x128xf32>
    %433 = vector.extract_strided_slice %431 {offsets = [0, 32], sizes = [1, 32], strides = [1, 1]} : vector<1x128xf32> to vector<1x32xf32>
    %434 = arith.mulf %433, %400 : vector<1x32xf32>
    %435 = vector.extract_strided_slice %431 {offsets = [0, 0], sizes = [1, 32], strides = [1, 1]} : vector<1x128xf32> to vector<1x32xf32>
    %436 = vector.extract_strided_slice %432 {offsets = [0, 64], sizes = [1, 32], strides = [1, 1]} : vector<1x128xf32> to vector<1x32xf32>
    %437 = arith.mulf %435, %436 : vector<1x32xf32>
    %438 = arith.addf %434, %437 : vector<1x32xf32>
    %439 = vector.extract_strided_slice %431 {offsets = [0, 96], sizes = [1, 32], strides = [1, 1]} : vector<1x128xf32> to vector<1x32xf32>
    %440 = math.tanh %438 : vector<1x32xf32>
    %441 = arith.mulf %439, %440 : vector<1x32xf32>
    %cst_126 = arith.constant dense<0.000000e+00> : vector<1x128xf32>
    %442 = tpu.matmul %441, %12, %cst_126 {dimension_numbers = #tpu.dot_dimension_numbers<[1], [0], [0], [1], [0, 0, 1, 1], [], []>} : vector<1x32xf32>, vector<32x128xf32>, vector<1x128xf32> -> vector<1x128xf32>
    %443 = arith.addf %442, %4 : vector<1x128xf32>
    %cst_127 = arith.constant dense<0.000000e+00> : vector<1x128xf32>
    %444 = tpu.matmul %422, %13, %cst_127 {dimension_numbers = #tpu.dot_dimension_numbers<[1], [0], [0], [1], [0, 0, 1, 1], [], []>} : vector<1x32xf32>, vector<32x128xf32>, vector<1x128xf32> -> vector<1x128xf32>
    %445 = arith.addf %443, %444 : vector<1x128xf32>
    %446 = arith.negf %445 : vector<1x128xf32>
    %447 = math.exp %446 : vector<1x128xf32>
    %cst_128 = arith.constant 1.000000e+00 : f32
    %448 = vector.broadcast %cst_128 : f32 to vector<1x128xf32>
    %449 = arith.addf %448, %447 : vector<1x128xf32>
    %450 = arith.divf %448, %449 : vector<1x128xf32>
    %451 = math.tanh %445 : vector<1x128xf32>
    %452 = vector.extract_strided_slice %450 {offsets = [0, 32], sizes = [1, 32], strides = [1, 1]} : vector<1x128xf32> to vector<1x32xf32>
    %453 = arith.mulf %452, %419 : vector<1x32xf32>
    %454 = vector.extract_strided_slice %450 {offsets = [0, 0], sizes = [1, 32], strides = [1, 1]} : vector<1x128xf32> to vector<1x32xf32>
    %455 = vector.extract_strided_slice %451 {offsets = [0, 64], sizes = [1, 32], strides = [1, 1]} : vector<1x128xf32> to vector<1x32xf32>
    %456 = arith.mulf %454, %455 : vector<1x32xf32>
    %457 = arith.addf %453, %456 : vector<1x32xf32>
    %458 = vector.extract_strided_slice %450 {offsets = [0, 96], sizes = [1, 32], strides = [1, 1]} : vector<1x128xf32> to vector<1x32xf32>
    %459 = math.tanh %457 : vector<1x32xf32>
    %460 = arith.mulf %458, %459 : vector<1x32xf32>
    %c10_129 = arith.constant 10 : index
    %c0_130 = arith.constant 0 : index
    %461 = vector.load %arg7[%c10_129, %c0_130] : memref<24x32xf32, #tpu.memory_space<vmem>>, vector<1x32xf32>
    tpu.vector_store %arg7[%c10_129, %c0_130], %460 {strides = array<i32>} : memref<24x32xf32, #tpu.memory_space<vmem>>, vector<1x32xf32>,
    %c11 = arith.constant 11 : index
    %c0_131 = arith.constant 0 : index
    %462 = vector.load %arg6[%c11, %c0_131] : memref<24x128xf32, #tpu.memory_space<vmem>>, vector<1x128xf32>
    %cst_132 = arith.constant dense<0.000000e+00> : vector<1x128xf32>
    %463 = tpu.matmul %441, %11, %cst_132 {dimension_numbers = #tpu.dot_dimension_numbers<[1], [0], [0], [1], [0, 0, 1, 1], [], []>} : vector<1x32xf32>, vector<32x128xf32>, vector<1x128xf32> -> vector<1x128xf32>
    %464 = arith.addf %462, %463 : vector<1x128xf32>
    %465 = arith.negf %464 : vector<1x128xf32>
    %466 = math.exp %465 : vector<1x128xf32>
    %cst_133 = arith.constant 1.000000e+00 : f32
    %467 = vector.broadcast %cst_133 : f32 to vector<1x128xf32>
    %468 = arith.addf %467, %466 : vector<1x128xf32>
    %469 = arith.divf %467, %468 : vector<1x128xf32>
    %470 = math.tanh %464 : vector<1x128xf32>
    %471 = vector.extract_strided_slice %469 {offsets = [0, 32], sizes = [1, 32], strides = [1, 1]} : vector<1x128xf32> to vector<1x32xf32>
    %472 = arith.mulf %471, %438 : vector<1x32xf32>
    %473 = vector.extract_strided_slice %469 {offsets = [0, 0], sizes = [1, 32], strides = [1, 1]} : vector<1x128xf32> to vector<1x32xf32>
    %474 = vector.extract_strided_slice %470 {offsets = [0, 64], sizes = [1, 32], strides = [1, 1]} : vector<1x128xf32> to vector<1x32xf32>
    %475 = arith.mulf %473, %474 : vector<1x32xf32>
    %476 = arith.addf %472, %475 : vector<1x32xf32>
    %477 = vector.extract_strided_slice %469 {offsets = [0, 96], sizes = [1, 32], strides = [1, 1]} : vector<1x128xf32> to vector<1x32xf32>
    %478 = math.tanh %476 : vector<1x32xf32>
    %479 = arith.mulf %477, %478 : vector<1x32xf32>
    %cst_134 = arith.constant dense<0.000000e+00> : vector<1x128xf32>
    %480 = tpu.matmul %479, %12, %cst_134 {dimension_numbers = #tpu.dot_dimension_numbers<[1], [0], [0], [1], [0, 0, 1, 1], [], []>} : vector<1x32xf32>, vector<32x128xf32>, vector<1x128xf32> -> vector<1x128xf32>
    %481 = arith.addf %480, %4 : vector<1x128xf32>
    %cst_135 = arith.constant dense<0.000000e+00> : vector<1x128xf32>
    %482 = tpu.matmul %460, %13, %cst_135 {dimension_numbers = #tpu.dot_dimension_numbers<[1], [0], [0], [1], [0, 0, 1, 1], [], []>} : vector<1x32xf32>, vector<32x128xf32>, vector<1x128xf32> -> vector<1x128xf32>
    %483 = arith.addf %481, %482 : vector<1x128xf32>
    %484 = arith.negf %483 : vector<1x128xf32>
    %485 = math.exp %484 : vector<1x128xf32>
    %cst_136 = arith.constant 1.000000e+00 : f32
    %486 = vector.broadcast %cst_136 : f32 to vector<1x128xf32>
    %487 = arith.addf %486, %485 : vector<1x128xf32>
    %488 = arith.divf %486, %487 : vector<1x128xf32>
    %489 = math.tanh %483 : vector<1x128xf32>
    %490 = vector.extract_strided_slice %488 {offsets = [0, 32], sizes = [1, 32], strides = [1, 1]} : vector<1x128xf32> to vector<1x32xf32>
    %491 = arith.mulf %490, %457 : vector<1x32xf32>
    %492 = vector.extract_strided_slice %488 {offsets = [0, 0], sizes = [1, 32], strides = [1, 1]} : vector<1x128xf32> to vector<1x32xf32>
    %493 = vector.extract_strided_slice %489 {offsets = [0, 64], sizes = [1, 32], strides = [1, 1]} : vector<1x128xf32> to vector<1x32xf32>
    %494 = arith.mulf %492, %493 : vector<1x32xf32>
    %495 = arith.addf %491, %494 : vector<1x32xf32>
    %496 = vector.extract_strided_slice %488 {offsets = [0, 96], sizes = [1, 32], strides = [1, 1]} : vector<1x128xf32> to vector<1x32xf32>
    %497 = math.tanh %495 : vector<1x32xf32>
    %498 = arith.mulf %496, %497 : vector<1x32xf32>
    %c11_137 = arith.constant 11 : index
    %c0_138 = arith.constant 0 : index
    %499 = vector.load %arg7[%c11_137, %c0_138] : memref<24x32xf32, #tpu.memory_space<vmem>>, vector<1x32xf32>
    tpu.vector_store %arg7[%c11_137, %c0_138], %498 {strides = array<i32>} : memref<24x32xf32, #tpu.memory_space<vmem>>, vector<1x32xf32>,
    %c12 = arith.constant 12 : index
    %c0_139 = arith.constant 0 : index
    %500 = vector.load %arg6[%c12, %c0_139] : memref<24x128xf32, #tpu.memory_space<vmem>>, vector<1x128xf32>
    %cst_140 = arith.constant dense<0.000000e+00> : vector<1x128xf32>
    %501 = tpu.matmul %479, %11, %cst_140 {dimension_numbers = #tpu.dot_dimension_numbers<[1], [0], [0], [1], [0, 0, 1, 1], [], []>} : vector<1x32xf32>, vector<32x128xf32>, vector<1x128xf32> -> vector<1x128xf32>
    %502 = arith.addf %500, %501 : vector<1x128xf32>
    %503 = arith.negf %502 : vector<1x128xf32>
    %504 = math.exp %503 : vector<1x128xf32>
    %cst_141 = arith.constant 1.000000e+00 : f32
    %505 = vector.broadcast %cst_141 : f32 to vector<1x128xf32>
    %506 = arith.addf %505, %504 : vector<1x128xf32>
    %507 = arith.divf %505, %506 : vector<1x128xf32>
    %508 = math.tanh %502 : vector<1x128xf32>
    %509 = vector.extract_strided_slice %507 {offsets = [0, 32], sizes = [1, 32], strides = [1, 1]} : vector<1x128xf32> to vector<1x32xf32>
    %510 = arith.mulf %509, %476 : vector<1x32xf32>
    %511 = vector.extract_strided_slice %507 {offsets = [0, 0], sizes = [1, 32], strides = [1, 1]} : vector<1x128xf32> to vector<1x32xf32>
    %512 = vector.extract_strided_slice %508 {offsets = [0, 64], sizes = [1, 32], strides = [1, 1]} : vector<1x128xf32> to vector<1x32xf32>
    %513 = arith.mulf %511, %512 : vector<1x32xf32>
    %514 = arith.addf %510, %513 : vector<1x32xf32>
    %515 = vector.extract_strided_slice %507 {offsets = [0, 96], sizes = [1, 32], strides = [1, 1]} : vector<1x128xf32> to vector<1x32xf32>
    %516 = math.tanh %514 : vector<1x32xf32>
    %517 = arith.mulf %515, %516 : vector<1x32xf32>
    %cst_142 = arith.constant dense<0.000000e+00> : vector<1x128xf32>
    %518 = tpu.matmul %517, %12, %cst_142 {dimension_numbers = #tpu.dot_dimension_numbers<[1], [0], [0], [1], [0, 0, 1, 1], [], []>} : vector<1x32xf32>, vector<32x128xf32>, vector<1x128xf32> -> vector<1x128xf32>
    %519 = arith.addf %518, %4 : vector<1x128xf32>
    %cst_143 = arith.constant dense<0.000000e+00> : vector<1x128xf32>
    %520 = tpu.matmul %498, %13, %cst_143 {dimension_numbers = #tpu.dot_dimension_numbers<[1], [0], [0], [1], [0, 0, 1, 1], [], []>} : vector<1x32xf32>, vector<32x128xf32>, vector<1x128xf32> -> vector<1x128xf32>
    %521 = arith.addf %519, %520 : vector<1x128xf32>
    %522 = arith.negf %521 : vector<1x128xf32>
    %523 = math.exp %522 : vector<1x128xf32>
    %cst_144 = arith.constant 1.000000e+00 : f32
    %524 = vector.broadcast %cst_144 : f32 to vector<1x128xf32>
    %525 = arith.addf %524, %523 : vector<1x128xf32>
    %526 = arith.divf %524, %525 : vector<1x128xf32>
    %527 = math.tanh %521 : vector<1x128xf32>
    %528 = vector.extract_strided_slice %526 {offsets = [0, 32], sizes = [1, 32], strides = [1, 1]} : vector<1x128xf32> to vector<1x32xf32>
    %529 = arith.mulf %528, %495 : vector<1x32xf32>
    %530 = vector.extract_strided_slice %526 {offsets = [0, 0], sizes = [1, 32], strides = [1, 1]} : vector<1x128xf32> to vector<1x32xf32>
    %531 = vector.extract_strided_slice %527 {offsets = [0, 64], sizes = [1, 32], strides = [1, 1]} : vector<1x128xf32> to vector<1x32xf32>
    %532 = arith.mulf %530, %531 : vector<1x32xf32>
    %533 = arith.addf %529, %532 : vector<1x32xf32>
    %534 = vector.extract_strided_slice %526 {offsets = [0, 96], sizes = [1, 32], strides = [1, 1]} : vector<1x128xf32> to vector<1x32xf32>
    %535 = math.tanh %533 : vector<1x32xf32>
    %536 = arith.mulf %534, %535 : vector<1x32xf32>
    %c12_145 = arith.constant 12 : index
    %c0_146 = arith.constant 0 : index
    %537 = vector.load %arg7[%c12_145, %c0_146] : memref<24x32xf32, #tpu.memory_space<vmem>>, vector<1x32xf32>
    tpu.vector_store %arg7[%c12_145, %c0_146], %536 {strides = array<i32>} : memref<24x32xf32, #tpu.memory_space<vmem>>, vector<1x32xf32>,
    %c13 = arith.constant 13 : index
    %c0_147 = arith.constant 0 : index
    %538 = vector.load %arg6[%c13, %c0_147] : memref<24x128xf32, #tpu.memory_space<vmem>>, vector<1x128xf32>
    %cst_148 = arith.constant dense<0.000000e+00> : vector<1x128xf32>
    %539 = tpu.matmul %517, %11, %cst_148 {dimension_numbers = #tpu.dot_dimension_numbers<[1], [0], [0], [1], [0, 0, 1, 1], [], []>} : vector<1x32xf32>, vector<32x128xf32>, vector<1x128xf32> -> vector<1x128xf32>
    %540 = arith.addf %538, %539 : vector<1x128xf32>
    %541 = arith.negf %540 : vector<1x128xf32>
    %542 = math.exp %541 : vector<1x128xf32>
    %cst_149 = arith.constant 1.000000e+00 : f32
    %543 = vector.broadcast %cst_149 : f32 to vector<1x128xf32>
    %544 = arith.addf %543, %542 : vector<1x128xf32>
    %545 = arith.divf %543, %544 : vector<1x128xf32>
    %546 = math.tanh %540 : vector<1x128xf32>
    %547 = vector.extract_strided_slice %545 {offsets = [0, 32], sizes = [1, 32], strides = [1, 1]} : vector<1x128xf32> to vector<1x32xf32>
    %548 = arith.mulf %547, %514 : vector<1x32xf32>
    %549 = vector.extract_strided_slice %545 {offsets = [0, 0], sizes = [1, 32], strides = [1, 1]} : vector<1x128xf32> to vector<1x32xf32>
    %550 = vector.extract_strided_slice %546 {offsets = [0, 64], sizes = [1, 32], strides = [1, 1]} : vector<1x128xf32> to vector<1x32xf32>
    %551 = arith.mulf %549, %550 : vector<1x32xf32>
    %552 = arith.addf %548, %551 : vector<1x32xf32>
    %553 = vector.extract_strided_slice %545 {offsets = [0, 96], sizes = [1, 32], strides = [1, 1]} : vector<1x128xf32> to vector<1x32xf32>
    %554 = math.tanh %552 : vector<1x32xf32>
    %555 = arith.mulf %553, %554 : vector<1x32xf32>
    %cst_150 = arith.constant dense<0.000000e+00> : vector<1x128xf32>
    %556 = tpu.matmul %555, %12, %cst_150 {dimension_numbers = #tpu.dot_dimension_numbers<[1], [0], [0], [1], [0, 0, 1, 1], [], []>} : vector<1x32xf32>, vector<32x128xf32>, vector<1x128xf32> -> vector<1x128xf32>
    %557 = arith.addf %556, %4 : vector<1x128xf32>
    %cst_151 = arith.constant dense<0.000000e+00> : vector<1x128xf32>
    %558 = tpu.matmul %536, %13, %cst_151 {dimension_numbers = #tpu.dot_dimension_numbers<[1], [0], [0], [1], [0, 0, 1, 1], [], []>} : vector<1x32xf32>, vector<32x128xf32>, vector<1x128xf32> -> vector<1x128xf32>
    %559 = arith.addf %557, %558 : vector<1x128xf32>
    %560 = arith.negf %559 : vector<1x128xf32>
    %561 = math.exp %560 : vector<1x128xf32>
    %cst_152 = arith.constant 1.000000e+00 : f32
    %562 = vector.broadcast %cst_152 : f32 to vector<1x128xf32>
    %563 = arith.addf %562, %561 : vector<1x128xf32>
    %564 = arith.divf %562, %563 : vector<1x128xf32>
    %565 = math.tanh %559 : vector<1x128xf32>
    %566 = vector.extract_strided_slice %564 {offsets = [0, 32], sizes = [1, 32], strides = [1, 1]} : vector<1x128xf32> to vector<1x32xf32>
    %567 = arith.mulf %566, %533 : vector<1x32xf32>
    %568 = vector.extract_strided_slice %564 {offsets = [0, 0], sizes = [1, 32], strides = [1, 1]} : vector<1x128xf32> to vector<1x32xf32>
    %569 = vector.extract_strided_slice %565 {offsets = [0, 64], sizes = [1, 32], strides = [1, 1]} : vector<1x128xf32> to vector<1x32xf32>
    %570 = arith.mulf %568, %569 : vector<1x32xf32>
    %571 = arith.addf %567, %570 : vector<1x32xf32>
    %572 = vector.extract_strided_slice %564 {offsets = [0, 96], sizes = [1, 32], strides = [1, 1]} : vector<1x128xf32> to vector<1x32xf32>
    %573 = math.tanh %571 : vector<1x32xf32>
    %574 = arith.mulf %572, %573 : vector<1x32xf32>
    %c13_153 = arith.constant 13 : index
    %c0_154 = arith.constant 0 : index
    %575 = vector.load %arg7[%c13_153, %c0_154] : memref<24x32xf32, #tpu.memory_space<vmem>>, vector<1x32xf32>
    tpu.vector_store %arg7[%c13_153, %c0_154], %574 {strides = array<i32>} : memref<24x32xf32, #tpu.memory_space<vmem>>, vector<1x32xf32>,
    %c14 = arith.constant 14 : index
    %c0_155 = arith.constant 0 : index
    %576 = vector.load %arg6[%c14, %c0_155] : memref<24x128xf32, #tpu.memory_space<vmem>>, vector<1x128xf32>
    %cst_156 = arith.constant dense<0.000000e+00> : vector<1x128xf32>
    %577 = tpu.matmul %555, %11, %cst_156 {dimension_numbers = #tpu.dot_dimension_numbers<[1], [0], [0], [1], [0, 0, 1, 1], [], []>} : vector<1x32xf32>, vector<32x128xf32>, vector<1x128xf32> -> vector<1x128xf32>
    %578 = arith.addf %576, %577 : vector<1x128xf32>
    %579 = arith.negf %578 : vector<1x128xf32>
    %580 = math.exp %579 : vector<1x128xf32>
    %cst_157 = arith.constant 1.000000e+00 : f32
    %581 = vector.broadcast %cst_157 : f32 to vector<1x128xf32>
    %582 = arith.addf %581, %580 : vector<1x128xf32>
    %583 = arith.divf %581, %582 : vector<1x128xf32>
    %584 = math.tanh %578 : vector<1x128xf32>
    %585 = vector.extract_strided_slice %583 {offsets = [0, 32], sizes = [1, 32], strides = [1, 1]} : vector<1x128xf32> to vector<1x32xf32>
    %586 = arith.mulf %585, %552 : vector<1x32xf32>
    %587 = vector.extract_strided_slice %583 {offsets = [0, 0], sizes = [1, 32], strides = [1, 1]} : vector<1x128xf32> to vector<1x32xf32>
    %588 = vector.extract_strided_slice %584 {offsets = [0, 64], sizes = [1, 32], strides = [1, 1]} : vector<1x128xf32> to vector<1x32xf32>
    %589 = arith.mulf %587, %588 : vector<1x32xf32>
    %590 = arith.addf %586, %589 : vector<1x32xf32>
    %591 = vector.extract_strided_slice %583 {offsets = [0, 96], sizes = [1, 32], strides = [1, 1]} : vector<1x128xf32> to vector<1x32xf32>
    %592 = math.tanh %590 : vector<1x32xf32>
    %593 = arith.mulf %591, %592 : vector<1x32xf32>
    %cst_158 = arith.constant dense<0.000000e+00> : vector<1x128xf32>
    %594 = tpu.matmul %593, %12, %cst_158 {dimension_numbers = #tpu.dot_dimension_numbers<[1], [0], [0], [1], [0, 0, 1, 1], [], []>} : vector<1x32xf32>, vector<32x128xf32>, vector<1x128xf32> -> vector<1x128xf32>
    %595 = arith.addf %594, %4 : vector<1x128xf32>
    %cst_159 = arith.constant dense<0.000000e+00> : vector<1x128xf32>
    %596 = tpu.matmul %574, %13, %cst_159 {dimension_numbers = #tpu.dot_dimension_numbers<[1], [0], [0], [1], [0, 0, 1, 1], [], []>} : vector<1x32xf32>, vector<32x128xf32>, vector<1x128xf32> -> vector<1x128xf32>
    %597 = arith.addf %595, %596 : vector<1x128xf32>
    %598 = arith.negf %597 : vector<1x128xf32>
    %599 = math.exp %598 : vector<1x128xf32>
    %cst_160 = arith.constant 1.000000e+00 : f32
    %600 = vector.broadcast %cst_160 : f32 to vector<1x128xf32>
    %601 = arith.addf %600, %599 : vector<1x128xf32>
    %602 = arith.divf %600, %601 : vector<1x128xf32>
    %603 = math.tanh %597 : vector<1x128xf32>
    %604 = vector.extract_strided_slice %602 {offsets = [0, 32], sizes = [1, 32], strides = [1, 1]} : vector<1x128xf32> to vector<1x32xf32>
    %605 = arith.mulf %604, %571 : vector<1x32xf32>
    %606 = vector.extract_strided_slice %602 {offsets = [0, 0], sizes = [1, 32], strides = [1, 1]} : vector<1x128xf32> to vector<1x32xf32>
    %607 = vector.extract_strided_slice %603 {offsets = [0, 64], sizes = [1, 32], strides = [1, 1]} : vector<1x128xf32> to vector<1x32xf32>
    %608 = arith.mulf %606, %607 : vector<1x32xf32>
    %609 = arith.addf %605, %608 : vector<1x32xf32>
    %610 = vector.extract_strided_slice %602 {offsets = [0, 96], sizes = [1, 32], strides = [1, 1]} : vector<1x128xf32> to vector<1x32xf32>
    %611 = math.tanh %609 : vector<1x32xf32>
    %612 = arith.mulf %610, %611 : vector<1x32xf32>
    %c14_161 = arith.constant 14 : index
    %c0_162 = arith.constant 0 : index
    %613 = vector.load %arg7[%c14_161, %c0_162] : memref<24x32xf32, #tpu.memory_space<vmem>>, vector<1x32xf32>
    tpu.vector_store %arg7[%c14_161, %c0_162], %612 {strides = array<i32>} : memref<24x32xf32, #tpu.memory_space<vmem>>, vector<1x32xf32>,
    %c15 = arith.constant 15 : index
    %c0_163 = arith.constant 0 : index
    %614 = vector.load %arg6[%c15, %c0_163] : memref<24x128xf32, #tpu.memory_space<vmem>>, vector<1x128xf32>
    %cst_164 = arith.constant dense<0.000000e+00> : vector<1x128xf32>
    %615 = tpu.matmul %593, %11, %cst_164 {dimension_numbers = #tpu.dot_dimension_numbers<[1], [0], [0], [1], [0, 0, 1, 1], [], []>} : vector<1x32xf32>, vector<32x128xf32>, vector<1x128xf32> -> vector<1x128xf32>
    %616 = arith.addf %614, %615 : vector<1x128xf32>
    %617 = arith.negf %616 : vector<1x128xf32>
    %618 = math.exp %617 : vector<1x128xf32>
    %cst_165 = arith.constant 1.000000e+00 : f32
    %619 = vector.broadcast %cst_165 : f32 to vector<1x128xf32>
    %620 = arith.addf %619, %618 : vector<1x128xf32>
    %621 = arith.divf %619, %620 : vector<1x128xf32>
    %622 = math.tanh %616 : vector<1x128xf32>
    %623 = vector.extract_strided_slice %621 {offsets = [0, 32], sizes = [1, 32], strides = [1, 1]} : vector<1x128xf32> to vector<1x32xf32>
    %624 = arith.mulf %623, %590 : vector<1x32xf32>
    %625 = vector.extract_strided_slice %621 {offsets = [0, 0], sizes = [1, 32], strides = [1, 1]} : vector<1x128xf32> to vector<1x32xf32>
    %626 = vector.extract_strided_slice %622 {offsets = [0, 64], sizes = [1, 32], strides = [1, 1]} : vector<1x128xf32> to vector<1x32xf32>
    %627 = arith.mulf %625, %626 : vector<1x32xf32>
    %628 = arith.addf %624, %627 : vector<1x32xf32>
    %629 = vector.extract_strided_slice %621 {offsets = [0, 96], sizes = [1, 32], strides = [1, 1]} : vector<1x128xf32> to vector<1x32xf32>
    %630 = math.tanh %628 : vector<1x32xf32>
    %631 = arith.mulf %629, %630 : vector<1x32xf32>
    %cst_166 = arith.constant dense<0.000000e+00> : vector<1x128xf32>
    %632 = tpu.matmul %631, %12, %cst_166 {dimension_numbers = #tpu.dot_dimension_numbers<[1], [0], [0], [1], [0, 0, 1, 1], [], []>} : vector<1x32xf32>, vector<32x128xf32>, vector<1x128xf32> -> vector<1x128xf32>
    %633 = arith.addf %632, %4 : vector<1x128xf32>
    %cst_167 = arith.constant dense<0.000000e+00> : vector<1x128xf32>
    %634 = tpu.matmul %612, %13, %cst_167 {dimension_numbers = #tpu.dot_dimension_numbers<[1], [0], [0], [1], [0, 0, 1, 1], [], []>} : vector<1x32xf32>, vector<32x128xf32>, vector<1x128xf32> -> vector<1x128xf32>
    %635 = arith.addf %633, %634 : vector<1x128xf32>
    %636 = arith.negf %635 : vector<1x128xf32>
    %637 = math.exp %636 : vector<1x128xf32>
    %cst_168 = arith.constant 1.000000e+00 : f32
    %638 = vector.broadcast %cst_168 : f32 to vector<1x128xf32>
    %639 = arith.addf %638, %637 : vector<1x128xf32>
    %640 = arith.divf %638, %639 : vector<1x128xf32>
    %641 = math.tanh %635 : vector<1x128xf32>
    %642 = vector.extract_strided_slice %640 {offsets = [0, 32], sizes = [1, 32], strides = [1, 1]} : vector<1x128xf32> to vector<1x32xf32>
    %643 = arith.mulf %642, %609 : vector<1x32xf32>
    %644 = vector.extract_strided_slice %640 {offsets = [0, 0], sizes = [1, 32], strides = [1, 1]} : vector<1x128xf32> to vector<1x32xf32>
    %645 = vector.extract_strided_slice %641 {offsets = [0, 64], sizes = [1, 32], strides = [1, 1]} : vector<1x128xf32> to vector<1x32xf32>
    %646 = arith.mulf %644, %645 : vector<1x32xf32>
    %647 = arith.addf %643, %646 : vector<1x32xf32>
    %648 = vector.extract_strided_slice %640 {offsets = [0, 96], sizes = [1, 32], strides = [1, 1]} : vector<1x128xf32> to vector<1x32xf32>
    %649 = math.tanh %647 : vector<1x32xf32>
    %650 = arith.mulf %648, %649 : vector<1x32xf32>
    %c15_169 = arith.constant 15 : index
    %c0_170 = arith.constant 0 : index
    %651 = vector.load %arg7[%c15_169, %c0_170] : memref<24x32xf32, #tpu.memory_space<vmem>>, vector<1x32xf32>
    tpu.vector_store %arg7[%c15_169, %c0_170], %650 {strides = array<i32>} : memref<24x32xf32, #tpu.memory_space<vmem>>, vector<1x32xf32>,
    %c16_171 = arith.constant 16 : index
    %c0_172 = arith.constant 0 : index
    %652 = vector.load %arg6[%c16_171, %c0_172] : memref<24x128xf32, #tpu.memory_space<vmem>>, vector<1x128xf32>
    %cst_173 = arith.constant dense<0.000000e+00> : vector<1x128xf32>
    %653 = tpu.matmul %631, %11, %cst_173 {dimension_numbers = #tpu.dot_dimension_numbers<[1], [0], [0], [1], [0, 0, 1, 1], [], []>} : vector<1x32xf32>, vector<32x128xf32>, vector<1x128xf32> -> vector<1x128xf32>
    %654 = arith.addf %652, %653 : vector<1x128xf32>
    %655 = arith.negf %654 : vector<1x128xf32>
    %656 = math.exp %655 : vector<1x128xf32>
    %cst_174 = arith.constant 1.000000e+00 : f32
    %657 = vector.broadcast %cst_174 : f32 to vector<1x128xf32>
    %658 = arith.addf %657, %656 : vector<1x128xf32>
    %659 = arith.divf %657, %658 : vector<1x128xf32>
    %660 = math.tanh %654 : vector<1x128xf32>
    %661 = vector.extract_strided_slice %659 {offsets = [0, 32], sizes = [1, 32], strides = [1, 1]} : vector<1x128xf32> to vector<1x32xf32>
    %662 = arith.mulf %661, %628 : vector<1x32xf32>
    %663 = vector.extract_strided_slice %659 {offsets = [0, 0], sizes = [1, 32], strides = [1, 1]} : vector<1x128xf32> to vector<1x32xf32>
    %664 = vector.extract_strided_slice %660 {offsets = [0, 64], sizes = [1, 32], strides = [1, 1]} : vector<1x128xf32> to vector<1x32xf32>
    %665 = arith.mulf %663, %664 : vector<1x32xf32>
    %666 = arith.addf %662, %665 : vector<1x32xf32>
    %667 = vector.extract_strided_slice %659 {offsets = [0, 96], sizes = [1, 32], strides = [1, 1]} : vector<1x128xf32> to vector<1x32xf32>
    %668 = math.tanh %666 : vector<1x32xf32>
    %669 = arith.mulf %667, %668 : vector<1x32xf32>
    %cst_175 = arith.constant dense<0.000000e+00> : vector<1x128xf32>
    %670 = tpu.matmul %669, %12, %cst_175 {dimension_numbers = #tpu.dot_dimension_numbers<[1], [0], [0], [1], [0, 0, 1, 1], [], []>} : vector<1x32xf32>, vector<32x128xf32>, vector<1x128xf32> -> vector<1x128xf32>
    %671 = arith.addf %670, %4 : vector<1x128xf32>
    %cst_176 = arith.constant dense<0.000000e+00> : vector<1x128xf32>
    %672 = tpu.matmul %650, %13, %cst_176 {dimension_numbers = #tpu.dot_dimension_numbers<[1], [0], [0], [1], [0, 0, 1, 1], [], []>} : vector<1x32xf32>, vector<32x128xf32>, vector<1x128xf32> -> vector<1x128xf32>
    %673 = arith.addf %671, %672 : vector<1x128xf32>
    %674 = arith.negf %673 : vector<1x128xf32>
    %675 = math.exp %674 : vector<1x128xf32>
    %cst_177 = arith.constant 1.000000e+00 : f32
    %676 = vector.broadcast %cst_177 : f32 to vector<1x128xf32>
    %677 = arith.addf %676, %675 : vector<1x128xf32>
    %678 = arith.divf %676, %677 : vector<1x128xf32>
    %679 = math.tanh %673 : vector<1x128xf32>
    %680 = vector.extract_strided_slice %678 {offsets = [0, 32], sizes = [1, 32], strides = [1, 1]} : vector<1x128xf32> to vector<1x32xf32>
    %681 = arith.mulf %680, %647 : vector<1x32xf32>
    %682 = vector.extract_strided_slice %678 {offsets = [0, 0], sizes = [1, 32], strides = [1, 1]} : vector<1x128xf32> to vector<1x32xf32>
    %683 = vector.extract_strided_slice %679 {offsets = [0, 64], sizes = [1, 32], strides = [1, 1]} : vector<1x128xf32> to vector<1x32xf32>
    %684 = arith.mulf %682, %683 : vector<1x32xf32>
    %685 = arith.addf %681, %684 : vector<1x32xf32>
    %686 = vector.extract_strided_slice %678 {offsets = [0, 96], sizes = [1, 32], strides = [1, 1]} : vector<1x128xf32> to vector<1x32xf32>
    %687 = math.tanh %685 : vector<1x32xf32>
    %688 = arith.mulf %686, %687 : vector<1x32xf32>
    %c16_178 = arith.constant 16 : index
    %c0_179 = arith.constant 0 : index
    %689 = vector.load %arg7[%c16_178, %c0_179] : memref<24x32xf32, #tpu.memory_space<vmem>>, vector<1x32xf32>
    tpu.vector_store %arg7[%c16_178, %c0_179], %688 {strides = array<i32>} : memref<24x32xf32, #tpu.memory_space<vmem>>, vector<1x32xf32>,
    %c17 = arith.constant 17 : index
    %c0_180 = arith.constant 0 : index
    %690 = vector.load %arg6[%c17, %c0_180] : memref<24x128xf32, #tpu.memory_space<vmem>>, vector<1x128xf32>
    %cst_181 = arith.constant dense<0.000000e+00> : vector<1x128xf32>
    %691 = tpu.matmul %669, %11, %cst_181 {dimension_numbers = #tpu.dot_dimension_numbers<[1], [0], [0], [1], [0, 0, 1, 1], [], []>} : vector<1x32xf32>, vector<32x128xf32>, vector<1x128xf32> -> vector<1x128xf32>
    %692 = arith.addf %690, %691 : vector<1x128xf32>
    %693 = arith.negf %692 : vector<1x128xf32>
    %694 = math.exp %693 : vector<1x128xf32>
    %cst_182 = arith.constant 1.000000e+00 : f32
    %695 = vector.broadcast %cst_182 : f32 to vector<1x128xf32>
    %696 = arith.addf %695, %694 : vector<1x128xf32>
    %697 = arith.divf %695, %696 : vector<1x128xf32>
    %698 = math.tanh %692 : vector<1x128xf32>
    %699 = vector.extract_strided_slice %697 {offsets = [0, 32], sizes = [1, 32], strides = [1, 1]} : vector<1x128xf32> to vector<1x32xf32>
    %700 = arith.mulf %699, %666 : vector<1x32xf32>
    %701 = vector.extract_strided_slice %697 {offsets = [0, 0], sizes = [1, 32], strides = [1, 1]} : vector<1x128xf32> to vector<1x32xf32>
    %702 = vector.extract_strided_slice %698 {offsets = [0, 64], sizes = [1, 32], strides = [1, 1]} : vector<1x128xf32> to vector<1x32xf32>
    %703 = arith.mulf %701, %702 : vector<1x32xf32>
    %704 = arith.addf %700, %703 : vector<1x32xf32>
    %705 = vector.extract_strided_slice %697 {offsets = [0, 96], sizes = [1, 32], strides = [1, 1]} : vector<1x128xf32> to vector<1x32xf32>
    %706 = math.tanh %704 : vector<1x32xf32>
    %707 = arith.mulf %705, %706 : vector<1x32xf32>
    %cst_183 = arith.constant dense<0.000000e+00> : vector<1x128xf32>
    %708 = tpu.matmul %707, %12, %cst_183 {dimension_numbers = #tpu.dot_dimension_numbers<[1], [0], [0], [1], [0, 0, 1, 1], [], []>} : vector<1x32xf32>, vector<32x128xf32>, vector<1x128xf32> -> vector<1x128xf32>
    %709 = arith.addf %708, %4 : vector<1x128xf32>
    %cst_184 = arith.constant dense<0.000000e+00> : vector<1x128xf32>
    %710 = tpu.matmul %688, %13, %cst_184 {dimension_numbers = #tpu.dot_dimension_numbers<[1], [0], [0], [1], [0, 0, 1, 1], [], []>} : vector<1x32xf32>, vector<32x128xf32>, vector<1x128xf32> -> vector<1x128xf32>
    %711 = arith.addf %709, %710 : vector<1x128xf32>
    %712 = arith.negf %711 : vector<1x128xf32>
    %713 = math.exp %712 : vector<1x128xf32>
    %cst_185 = arith.constant 1.000000e+00 : f32
    %714 = vector.broadcast %cst_185 : f32 to vector<1x128xf32>
    %715 = arith.addf %714, %713 : vector<1x128xf32>
    %716 = arith.divf %714, %715 : vector<1x128xf32>
    %717 = math.tanh %711 : vector<1x128xf32>
    %718 = vector.extract_strided_slice %716 {offsets = [0, 32], sizes = [1, 32], strides = [1, 1]} : vector<1x128xf32> to vector<1x32xf32>
    %719 = arith.mulf %718, %685 : vector<1x32xf32>
    %720 = vector.extract_strided_slice %716 {offsets = [0, 0], sizes = [1, 32], strides = [1, 1]} : vector<1x128xf32> to vector<1x32xf32>
    %721 = vector.extract_strided_slice %717 {offsets = [0, 64], sizes = [1, 32], strides = [1, 1]} : vector<1x128xf32> to vector<1x32xf32>
    %722 = arith.mulf %720, %721 : vector<1x32xf32>
    %723 = arith.addf %719, %722 : vector<1x32xf32>
    %724 = vector.extract_strided_slice %716 {offsets = [0, 96], sizes = [1, 32], strides = [1, 1]} : vector<1x128xf32> to vector<1x32xf32>
    %725 = math.tanh %723 : vector<1x32xf32>
    %726 = arith.mulf %724, %725 : vector<1x32xf32>
    %c17_186 = arith.constant 17 : index
    %c0_187 = arith.constant 0 : index
    %727 = vector.load %arg7[%c17_186, %c0_187] : memref<24x32xf32, #tpu.memory_space<vmem>>, vector<1x32xf32>
    tpu.vector_store %arg7[%c17_186, %c0_187], %726 {strides = array<i32>} : memref<24x32xf32, #tpu.memory_space<vmem>>, vector<1x32xf32>,
    %c18 = arith.constant 18 : index
    %c0_188 = arith.constant 0 : index
    %728 = vector.load %arg6[%c18, %c0_188] : memref<24x128xf32, #tpu.memory_space<vmem>>, vector<1x128xf32>
    %cst_189 = arith.constant dense<0.000000e+00> : vector<1x128xf32>
    %729 = tpu.matmul %707, %11, %cst_189 {dimension_numbers = #tpu.dot_dimension_numbers<[1], [0], [0], [1], [0, 0, 1, 1], [], []>} : vector<1x32xf32>, vector<32x128xf32>, vector<1x128xf32> -> vector<1x128xf32>
    %730 = arith.addf %728, %729 : vector<1x128xf32>
    %731 = arith.negf %730 : vector<1x128xf32>
    %732 = math.exp %731 : vector<1x128xf32>
    %cst_190 = arith.constant 1.000000e+00 : f32
    %733 = vector.broadcast %cst_190 : f32 to vector<1x128xf32>
    %734 = arith.addf %733, %732 : vector<1x128xf32>
    %735 = arith.divf %733, %734 : vector<1x128xf32>
    %736 = math.tanh %730 : vector<1x128xf32>
    %737 = vector.extract_strided_slice %735 {offsets = [0, 32], sizes = [1, 32], strides = [1, 1]} : vector<1x128xf32> to vector<1x32xf32>
    %738 = arith.mulf %737, %704 : vector<1x32xf32>
    %739 = vector.extract_strided_slice %735 {offsets = [0, 0], sizes = [1, 32], strides = [1, 1]} : vector<1x128xf32> to vector<1x32xf32>
    %740 = vector.extract_strided_slice %736 {offsets = [0, 64], sizes = [1, 32], strides = [1, 1]} : vector<1x128xf32> to vector<1x32xf32>
    %741 = arith.mulf %739, %740 : vector<1x32xf32>
    %742 = arith.addf %738, %741 : vector<1x32xf32>
    %743 = vector.extract_strided_slice %735 {offsets = [0, 96], sizes = [1, 32], strides = [1, 1]} : vector<1x128xf32> to vector<1x32xf32>
    %744 = math.tanh %742 : vector<1x32xf32>
    %745 = arith.mulf %743, %744 : vector<1x32xf32>
    %cst_191 = arith.constant dense<0.000000e+00> : vector<1x128xf32>
    %746 = tpu.matmul %745, %12, %cst_191 {dimension_numbers = #tpu.dot_dimension_numbers<[1], [0], [0], [1], [0, 0, 1, 1], [], []>} : vector<1x32xf32>, vector<32x128xf32>, vector<1x128xf32> -> vector<1x128xf32>
    %747 = arith.addf %746, %4 : vector<1x128xf32>
    %cst_192 = arith.constant dense<0.000000e+00> : vector<1x128xf32>
    %748 = tpu.matmul %726, %13, %cst_192 {dimension_numbers = #tpu.dot_dimension_numbers<[1], [0], [0], [1], [0, 0, 1, 1], [], []>} : vector<1x32xf32>, vector<32x128xf32>, vector<1x128xf32> -> vector<1x128xf32>
    %749 = arith.addf %747, %748 : vector<1x128xf32>
    %750 = arith.negf %749 : vector<1x128xf32>
    %751 = math.exp %750 : vector<1x128xf32>
    %cst_193 = arith.constant 1.000000e+00 : f32
    %752 = vector.broadcast %cst_193 : f32 to vector<1x128xf32>
    %753 = arith.addf %752, %751 : vector<1x128xf32>
    %754 = arith.divf %752, %753 : vector<1x128xf32>
    %755 = math.tanh %749 : vector<1x128xf32>
    %756 = vector.extract_strided_slice %754 {offsets = [0, 32], sizes = [1, 32], strides = [1, 1]} : vector<1x128xf32> to vector<1x32xf32>
    %757 = arith.mulf %756, %723 : vector<1x32xf32>
    %758 = vector.extract_strided_slice %754 {offsets = [0, 0], sizes = [1, 32], strides = [1, 1]} : vector<1x128xf32> to vector<1x32xf32>
    %759 = vector.extract_strided_slice %755 {offsets = [0, 64], sizes = [1, 32], strides = [1, 1]} : vector<1x128xf32> to vector<1x32xf32>
    %760 = arith.mulf %758, %759 : vector<1x32xf32>
    %761 = arith.addf %757, %760 : vector<1x32xf32>
    %762 = vector.extract_strided_slice %754 {offsets = [0, 96], sizes = [1, 32], strides = [1, 1]} : vector<1x128xf32> to vector<1x32xf32>
    %763 = math.tanh %761 : vector<1x32xf32>
    %764 = arith.mulf %762, %763 : vector<1x32xf32>
    %c18_194 = arith.constant 18 : index
    %c0_195 = arith.constant 0 : index
    %765 = vector.load %arg7[%c18_194, %c0_195] : memref<24x32xf32, #tpu.memory_space<vmem>>, vector<1x32xf32>
    tpu.vector_store %arg7[%c18_194, %c0_195], %764 {strides = array<i32>} : memref<24x32xf32, #tpu.memory_space<vmem>>, vector<1x32xf32>,
    %c19 = arith.constant 19 : index
    %c0_196 = arith.constant 0 : index
    %766 = vector.load %arg6[%c19, %c0_196] : memref<24x128xf32, #tpu.memory_space<vmem>>, vector<1x128xf32>
    %cst_197 = arith.constant dense<0.000000e+00> : vector<1x128xf32>
    %767 = tpu.matmul %745, %11, %cst_197 {dimension_numbers = #tpu.dot_dimension_numbers<[1], [0], [0], [1], [0, 0, 1, 1], [], []>} : vector<1x32xf32>, vector<32x128xf32>, vector<1x128xf32> -> vector<1x128xf32>
    %768 = arith.addf %766, %767 : vector<1x128xf32>
    %769 = arith.negf %768 : vector<1x128xf32>
    %770 = math.exp %769 : vector<1x128xf32>
    %cst_198 = arith.constant 1.000000e+00 : f32
    %771 = vector.broadcast %cst_198 : f32 to vector<1x128xf32>
    %772 = arith.addf %771, %770 : vector<1x128xf32>
    %773 = arith.divf %771, %772 : vector<1x128xf32>
    %774 = math.tanh %768 : vector<1x128xf32>
    %775 = vector.extract_strided_slice %773 {offsets = [0, 32], sizes = [1, 32], strides = [1, 1]} : vector<1x128xf32> to vector<1x32xf32>
    %776 = arith.mulf %775, %742 : vector<1x32xf32>
    %777 = vector.extract_strided_slice %773 {offsets = [0, 0], sizes = [1, 32], strides = [1, 1]} : vector<1x128xf32> to vector<1x32xf32>
    %778 = vector.extract_strided_slice %774 {offsets = [0, 64], sizes = [1, 32], strides = [1, 1]} : vector<1x128xf32> to vector<1x32xf32>
    %779 = arith.mulf %777, %778 : vector<1x32xf32>
    %780 = arith.addf %776, %779 : vector<1x32xf32>
    %781 = vector.extract_strided_slice %773 {offsets = [0, 96], sizes = [1, 32], strides = [1, 1]} : vector<1x128xf32> to vector<1x32xf32>
    %782 = math.tanh %780 : vector<1x32xf32>
    %783 = arith.mulf %781, %782 : vector<1x32xf32>
    %cst_199 = arith.constant dense<0.000000e+00> : vector<1x128xf32>
    %784 = tpu.matmul %783, %12, %cst_199 {dimension_numbers = #tpu.dot_dimension_numbers<[1], [0], [0], [1], [0, 0, 1, 1], [], []>} : vector<1x32xf32>, vector<32x128xf32>, vector<1x128xf32> -> vector<1x128xf32>
    %785 = arith.addf %784, %4 : vector<1x128xf32>
    %cst_200 = arith.constant dense<0.000000e+00> : vector<1x128xf32>
    %786 = tpu.matmul %764, %13, %cst_200 {dimension_numbers = #tpu.dot_dimension_numbers<[1], [0], [0], [1], [0, 0, 1, 1], [], []>} : vector<1x32xf32>, vector<32x128xf32>, vector<1x128xf32> -> vector<1x128xf32>
    %787 = arith.addf %785, %786 : vector<1x128xf32>
    %788 = arith.negf %787 : vector<1x128xf32>
    %789 = math.exp %788 : vector<1x128xf32>
    %cst_201 = arith.constant 1.000000e+00 : f32
    %790 = vector.broadcast %cst_201 : f32 to vector<1x128xf32>
    %791 = arith.addf %790, %789 : vector<1x128xf32>
    %792 = arith.divf %790, %791 : vector<1x128xf32>
    %793 = math.tanh %787 : vector<1x128xf32>
    %794 = vector.extract_strided_slice %792 {offsets = [0, 32], sizes = [1, 32], strides = [1, 1]} : vector<1x128xf32> to vector<1x32xf32>
    %795 = arith.mulf %794, %761 : vector<1x32xf32>
    %796 = vector.extract_strided_slice %792 {offsets = [0, 0], sizes = [1, 32], strides = [1, 1]} : vector<1x128xf32> to vector<1x32xf32>
    %797 = vector.extract_strided_slice %793 {offsets = [0, 64], sizes = [1, 32], strides = [1, 1]} : vector<1x128xf32> to vector<1x32xf32>
    %798 = arith.mulf %796, %797 : vector<1x32xf32>
    %799 = arith.addf %795, %798 : vector<1x32xf32>
    %800 = vector.extract_strided_slice %792 {offsets = [0, 96], sizes = [1, 32], strides = [1, 1]} : vector<1x128xf32> to vector<1x32xf32>
    %801 = math.tanh %799 : vector<1x32xf32>
    %802 = arith.mulf %800, %801 : vector<1x32xf32>
    %c19_202 = arith.constant 19 : index
    %c0_203 = arith.constant 0 : index
    %803 = vector.load %arg7[%c19_202, %c0_203] : memref<24x32xf32, #tpu.memory_space<vmem>>, vector<1x32xf32>
    tpu.vector_store %arg7[%c19_202, %c0_203], %802 {strides = array<i32>} : memref<24x32xf32, #tpu.memory_space<vmem>>, vector<1x32xf32>,
    %c20 = arith.constant 20 : index
    %c0_204 = arith.constant 0 : index
    %804 = vector.load %arg6[%c20, %c0_204] : memref<24x128xf32, #tpu.memory_space<vmem>>, vector<1x128xf32>
    %cst_205 = arith.constant dense<0.000000e+00> : vector<1x128xf32>
    %805 = tpu.matmul %783, %11, %cst_205 {dimension_numbers = #tpu.dot_dimension_numbers<[1], [0], [0], [1], [0, 0, 1, 1], [], []>} : vector<1x32xf32>, vector<32x128xf32>, vector<1x128xf32> -> vector<1x128xf32>
    %806 = arith.addf %804, %805 : vector<1x128xf32>
    %807 = arith.negf %806 : vector<1x128xf32>
    %808 = math.exp %807 : vector<1x128xf32>
    %cst_206 = arith.constant 1.000000e+00 : f32
    %809 = vector.broadcast %cst_206 : f32 to vector<1x128xf32>
    %810 = arith.addf %809, %808 : vector<1x128xf32>
    %811 = arith.divf %809, %810 : vector<1x128xf32>
    %812 = math.tanh %806 : vector<1x128xf32>
    %813 = vector.extract_strided_slice %811 {offsets = [0, 32], sizes = [1, 32], strides = [1, 1]} : vector<1x128xf32> to vector<1x32xf32>
    %814 = arith.mulf %813, %780 : vector<1x32xf32>
    %815 = vector.extract_strided_slice %811 {offsets = [0, 0], sizes = [1, 32], strides = [1, 1]} : vector<1x128xf32> to vector<1x32xf32>
    %816 = vector.extract_strided_slice %812 {offsets = [0, 64], sizes = [1, 32], strides = [1, 1]} : vector<1x128xf32> to vector<1x32xf32>
    %817 = arith.mulf %815, %816 : vector<1x32xf32>
    %818 = arith.addf %814, %817 : vector<1x32xf32>
    %819 = vector.extract_strided_slice %811 {offsets = [0, 96], sizes = [1, 32], strides = [1, 1]} : vector<1x128xf32> to vector<1x32xf32>
    %820 = math.tanh %818 : vector<1x32xf32>
    %821 = arith.mulf %819, %820 : vector<1x32xf32>
    %cst_207 = arith.constant dense<0.000000e+00> : vector<1x128xf32>
    %822 = tpu.matmul %821, %12, %cst_207 {dimension_numbers = #tpu.dot_dimension_numbers<[1], [0], [0], [1], [0, 0, 1, 1], [], []>} : vector<1x32xf32>, vector<32x128xf32>, vector<1x128xf32> -> vector<1x128xf32>
    %823 = arith.addf %822, %4 : vector<1x128xf32>
    %cst_208 = arith.constant dense<0.000000e+00> : vector<1x128xf32>
    %824 = tpu.matmul %802, %13, %cst_208 {dimension_numbers = #tpu.dot_dimension_numbers<[1], [0], [0], [1], [0, 0, 1, 1], [], []>} : vector<1x32xf32>, vector<32x128xf32>, vector<1x128xf32> -> vector<1x128xf32>
    %825 = arith.addf %823, %824 : vector<1x128xf32>
    %826 = arith.negf %825 : vector<1x128xf32>
    %827 = math.exp %826 : vector<1x128xf32>
    %cst_209 = arith.constant 1.000000e+00 : f32
    %828 = vector.broadcast %cst_209 : f32 to vector<1x128xf32>
    %829 = arith.addf %828, %827 : vector<1x128xf32>
    %830 = arith.divf %828, %829 : vector<1x128xf32>
    %831 = math.tanh %825 : vector<1x128xf32>
    %832 = vector.extract_strided_slice %830 {offsets = [0, 32], sizes = [1, 32], strides = [1, 1]} : vector<1x128xf32> to vector<1x32xf32>
    %833 = arith.mulf %832, %799 : vector<1x32xf32>
    %834 = vector.extract_strided_slice %830 {offsets = [0, 0], sizes = [1, 32], strides = [1, 1]} : vector<1x128xf32> to vector<1x32xf32>
    %835 = vector.extract_strided_slice %831 {offsets = [0, 64], sizes = [1, 32], strides = [1, 1]} : vector<1x128xf32> to vector<1x32xf32>
    %836 = arith.mulf %834, %835 : vector<1x32xf32>
    %837 = arith.addf %833, %836 : vector<1x32xf32>
    %838 = vector.extract_strided_slice %830 {offsets = [0, 96], sizes = [1, 32], strides = [1, 1]} : vector<1x128xf32> to vector<1x32xf32>
    %839 = math.tanh %837 : vector<1x32xf32>
    %840 = arith.mulf %838, %839 : vector<1x32xf32>
    %c20_210 = arith.constant 20 : index
    %c0_211 = arith.constant 0 : index
    %841 = vector.load %arg7[%c20_210, %c0_211] : memref<24x32xf32, #tpu.memory_space<vmem>>, vector<1x32xf32>
    tpu.vector_store %arg7[%c20_210, %c0_211], %840 {strides = array<i32>} : memref<24x32xf32, #tpu.memory_space<vmem>>, vector<1x32xf32>,
    %c21 = arith.constant 21 : index
    %c0_212 = arith.constant 0 : index
    %842 = vector.load %arg6[%c21, %c0_212] : memref<24x128xf32, #tpu.memory_space<vmem>>, vector<1x128xf32>
    %cst_213 = arith.constant dense<0.000000e+00> : vector<1x128xf32>
    %843 = tpu.matmul %821, %11, %cst_213 {dimension_numbers = #tpu.dot_dimension_numbers<[1], [0], [0], [1], [0, 0, 1, 1], [], []>} : vector<1x32xf32>, vector<32x128xf32>, vector<1x128xf32> -> vector<1x128xf32>
    %844 = arith.addf %842, %843 : vector<1x128xf32>
    %845 = arith.negf %844 : vector<1x128xf32>
    %846 = math.exp %845 : vector<1x128xf32>
    %cst_214 = arith.constant 1.000000e+00 : f32
    %847 = vector.broadcast %cst_214 : f32 to vector<1x128xf32>
    %848 = arith.addf %847, %846 : vector<1x128xf32>
    %849 = arith.divf %847, %848 : vector<1x128xf32>
    %850 = math.tanh %844 : vector<1x128xf32>
    %851 = vector.extract_strided_slice %849 {offsets = [0, 32], sizes = [1, 32], strides = [1, 1]} : vector<1x128xf32> to vector<1x32xf32>
    %852 = arith.mulf %851, %818 : vector<1x32xf32>
    %853 = vector.extract_strided_slice %849 {offsets = [0, 0], sizes = [1, 32], strides = [1, 1]} : vector<1x128xf32> to vector<1x32xf32>
    %854 = vector.extract_strided_slice %850 {offsets = [0, 64], sizes = [1, 32], strides = [1, 1]} : vector<1x128xf32> to vector<1x32xf32>
    %855 = arith.mulf %853, %854 : vector<1x32xf32>
    %856 = arith.addf %852, %855 : vector<1x32xf32>
    %857 = vector.extract_strided_slice %849 {offsets = [0, 96], sizes = [1, 32], strides = [1, 1]} : vector<1x128xf32> to vector<1x32xf32>
    %858 = math.tanh %856 : vector<1x32xf32>
    %859 = arith.mulf %857, %858 : vector<1x32xf32>
    %cst_215 = arith.constant dense<0.000000e+00> : vector<1x128xf32>
    %860 = tpu.matmul %859, %12, %cst_215 {dimension_numbers = #tpu.dot_dimension_numbers<[1], [0], [0], [1], [0, 0, 1, 1], [], []>} : vector<1x32xf32>, vector<32x128xf32>, vector<1x128xf32> -> vector<1x128xf32>
    %861 = arith.addf %860, %4 : vector<1x128xf32>
    %cst_216 = arith.constant dense<0.000000e+00> : vector<1x128xf32>
    %862 = tpu.matmul %840, %13, %cst_216 {dimension_numbers = #tpu.dot_dimension_numbers<[1], [0], [0], [1], [0, 0, 1, 1], [], []>} : vector<1x32xf32>, vector<32x128xf32>, vector<1x128xf32> -> vector<1x128xf32>
    %863 = arith.addf %861, %862 : vector<1x128xf32>
    %864 = arith.negf %863 : vector<1x128xf32>
    %865 = math.exp %864 : vector<1x128xf32>
    %cst_217 = arith.constant 1.000000e+00 : f32
    %866 = vector.broadcast %cst_217 : f32 to vector<1x128xf32>
    %867 = arith.addf %866, %865 : vector<1x128xf32>
    %868 = arith.divf %866, %867 : vector<1x128xf32>
    %869 = math.tanh %863 : vector<1x128xf32>
    %870 = vector.extract_strided_slice %868 {offsets = [0, 32], sizes = [1, 32], strides = [1, 1]} : vector<1x128xf32> to vector<1x32xf32>
    %871 = arith.mulf %870, %837 : vector<1x32xf32>
    %872 = vector.extract_strided_slice %868 {offsets = [0, 0], sizes = [1, 32], strides = [1, 1]} : vector<1x128xf32> to vector<1x32xf32>
    %873 = vector.extract_strided_slice %869 {offsets = [0, 64], sizes = [1, 32], strides = [1, 1]} : vector<1x128xf32> to vector<1x32xf32>
    %874 = arith.mulf %872, %873 : vector<1x32xf32>
    %875 = arith.addf %871, %874 : vector<1x32xf32>
    %876 = vector.extract_strided_slice %868 {offsets = [0, 96], sizes = [1, 32], strides = [1, 1]} : vector<1x128xf32> to vector<1x32xf32>
    %877 = math.tanh %875 : vector<1x32xf32>
    %878 = arith.mulf %876, %877 : vector<1x32xf32>
    %c21_218 = arith.constant 21 : index
    %c0_219 = arith.constant 0 : index
    %879 = vector.load %arg7[%c21_218, %c0_219] : memref<24x32xf32, #tpu.memory_space<vmem>>, vector<1x32xf32>
    tpu.vector_store %arg7[%c21_218, %c0_219], %878 {strides = array<i32>} : memref<24x32xf32, #tpu.memory_space<vmem>>, vector<1x32xf32>,
    %c22 = arith.constant 22 : index
    %c0_220 = arith.constant 0 : index
    %880 = vector.load %arg6[%c22, %c0_220] : memref<24x128xf32, #tpu.memory_space<vmem>>, vector<1x128xf32>
    %cst_221 = arith.constant dense<0.000000e+00> : vector<1x128xf32>
    %881 = tpu.matmul %859, %11, %cst_221 {dimension_numbers = #tpu.dot_dimension_numbers<[1], [0], [0], [1], [0, 0, 1, 1], [], []>} : vector<1x32xf32>, vector<32x128xf32>, vector<1x128xf32> -> vector<1x128xf32>
    %882 = arith.addf %880, %881 : vector<1x128xf32>
    %883 = arith.negf %882 : vector<1x128xf32>
    %884 = math.exp %883 : vector<1x128xf32>
    %cst_222 = arith.constant 1.000000e+00 : f32
    %885 = vector.broadcast %cst_222 : f32 to vector<1x128xf32>
    %886 = arith.addf %885, %884 : vector<1x128xf32>
    %887 = arith.divf %885, %886 : vector<1x128xf32>
    %888 = math.tanh %882 : vector<1x128xf32>
    %889 = vector.extract_strided_slice %887 {offsets = [0, 32], sizes = [1, 32], strides = [1, 1]} : vector<1x128xf32> to vector<1x32xf32>
    %890 = arith.mulf %889, %856 : vector<1x32xf32>
    %891 = vector.extract_strided_slice %887 {offsets = [0, 0], sizes = [1, 32], strides = [1, 1]} : vector<1x128xf32> to vector<1x32xf32>
    %892 = vector.extract_strided_slice %888 {offsets = [0, 64], sizes = [1, 32], strides = [1, 1]} : vector<1x128xf32> to vector<1x32xf32>
    %893 = arith.mulf %891, %892 : vector<1x32xf32>
    %894 = arith.addf %890, %893 : vector<1x32xf32>
    %895 = vector.extract_strided_slice %887 {offsets = [0, 96], sizes = [1, 32], strides = [1, 1]} : vector<1x128xf32> to vector<1x32xf32>
    %896 = math.tanh %894 : vector<1x32xf32>
    %897 = arith.mulf %895, %896 : vector<1x32xf32>
    %cst_223 = arith.constant dense<0.000000e+00> : vector<1x128xf32>
    %898 = tpu.matmul %897, %12, %cst_223 {dimension_numbers = #tpu.dot_dimension_numbers<[1], [0], [0], [1], [0, 0, 1, 1], [], []>} : vector<1x32xf32>, vector<32x128xf32>, vector<1x128xf32> -> vector<1x128xf32>
    %899 = arith.addf %898, %4 : vector<1x128xf32>
    %cst_224 = arith.constant dense<0.000000e+00> : vector<1x128xf32>
    %900 = tpu.matmul %878, %13, %cst_224 {dimension_numbers = #tpu.dot_dimension_numbers<[1], [0], [0], [1], [0, 0, 1, 1], [], []>} : vector<1x32xf32>, vector<32x128xf32>, vector<1x128xf32> -> vector<1x128xf32>
    %901 = arith.addf %899, %900 : vector<1x128xf32>
    %902 = arith.negf %901 : vector<1x128xf32>
    %903 = math.exp %902 : vector<1x128xf32>
    %cst_225 = arith.constant 1.000000e+00 : f32
    %904 = vector.broadcast %cst_225 : f32 to vector<1x128xf32>
    %905 = arith.addf %904, %903 : vector<1x128xf32>
    %906 = arith.divf %904, %905 : vector<1x128xf32>
    %907 = math.tanh %901 : vector<1x128xf32>
    %908 = vector.extract_strided_slice %906 {offsets = [0, 32], sizes = [1, 32], strides = [1, 1]} : vector<1x128xf32> to vector<1x32xf32>
    %909 = arith.mulf %908, %875 : vector<1x32xf32>
    %910 = vector.extract_strided_slice %906 {offsets = [0, 0], sizes = [1, 32], strides = [1, 1]} : vector<1x128xf32> to vector<1x32xf32>
    %911 = vector.extract_strided_slice %907 {offsets = [0, 64], sizes = [1, 32], strides = [1, 1]} : vector<1x128xf32> to vector<1x32xf32>
    %912 = arith.mulf %910, %911 : vector<1x32xf32>
    %913 = arith.addf %909, %912 : vector<1x32xf32>
    %914 = vector.extract_strided_slice %906 {offsets = [0, 96], sizes = [1, 32], strides = [1, 1]} : vector<1x128xf32> to vector<1x32xf32>
    %915 = math.tanh %913 : vector<1x32xf32>
    %916 = arith.mulf %914, %915 : vector<1x32xf32>
    %c22_226 = arith.constant 22 : index
    %c0_227 = arith.constant 0 : index
    %917 = vector.load %arg7[%c22_226, %c0_227] : memref<24x32xf32, #tpu.memory_space<vmem>>, vector<1x32xf32>
    tpu.vector_store %arg7[%c22_226, %c0_227], %916 {strides = array<i32>} : memref<24x32xf32, #tpu.memory_space<vmem>>, vector<1x32xf32>,
    %c23 = arith.constant 23 : index
    %c0_228 = arith.constant 0 : index
    %918 = vector.load %arg6[%c23, %c0_228] : memref<24x128xf32, #tpu.memory_space<vmem>>, vector<1x128xf32>
    %cst_229 = arith.constant dense<0.000000e+00> : vector<1x128xf32>
    %919 = tpu.matmul %897, %11, %cst_229 {dimension_numbers = #tpu.dot_dimension_numbers<[1], [0], [0], [1], [0, 0, 1, 1], [], []>} : vector<1x32xf32>, vector<32x128xf32>, vector<1x128xf32> -> vector<1x128xf32>
    %920 = arith.addf %918, %919 : vector<1x128xf32>
    %921 = arith.negf %920 : vector<1x128xf32>
    %922 = math.exp %921 : vector<1x128xf32>
    %cst_230 = arith.constant 1.000000e+00 : f32
    %923 = vector.broadcast %cst_230 : f32 to vector<1x128xf32>
    %924 = arith.addf %923, %922 : vector<1x128xf32>
    %925 = arith.divf %923, %924 : vector<1x128xf32>
    %926 = math.tanh %920 : vector<1x128xf32>
    %927 = vector.extract_strided_slice %925 {offsets = [0, 32], sizes = [1, 32], strides = [1, 1]} : vector<1x128xf32> to vector<1x32xf32>
    %928 = arith.mulf %927, %894 : vector<1x32xf32>
    %929 = vector.extract_strided_slice %925 {offsets = [0, 0], sizes = [1, 32], strides = [1, 1]} : vector<1x128xf32> to vector<1x32xf32>
    %930 = vector.extract_strided_slice %926 {offsets = [0, 64], sizes = [1, 32], strides = [1, 1]} : vector<1x128xf32> to vector<1x32xf32>
    %931 = arith.mulf %929, %930 : vector<1x32xf32>
    %932 = arith.addf %928, %931 : vector<1x32xf32>
    %933 = vector.extract_strided_slice %925 {offsets = [0, 96], sizes = [1, 32], strides = [1, 1]} : vector<1x128xf32> to vector<1x32xf32>
    %934 = math.tanh %932 : vector<1x32xf32>
    %935 = arith.mulf %933, %934 : vector<1x32xf32>
    %cst_231 = arith.constant dense<0.000000e+00> : vector<1x128xf32>
    %936 = tpu.matmul %935, %12, %cst_231 {dimension_numbers = #tpu.dot_dimension_numbers<[1], [0], [0], [1], [0, 0, 1, 1], [], []>} : vector<1x32xf32>, vector<32x128xf32>, vector<1x128xf32> -> vector<1x128xf32>
    %937 = arith.addf %936, %4 : vector<1x128xf32>
    %cst_232 = arith.constant dense<0.000000e+00> : vector<1x128xf32>
    %938 = tpu.matmul %916, %13, %cst_232 {dimension_numbers = #tpu.dot_dimension_numbers<[1], [0], [0], [1], [0, 0, 1, 1], [], []>} : vector<1x32xf32>, vector<32x128xf32>, vector<1x128xf32> -> vector<1x128xf32>
    %939 = arith.addf %937, %938 : vector<1x128xf32>
    %940 = arith.negf %939 : vector<1x128xf32>
    %941 = math.exp %940 : vector<1x128xf32>
    %cst_233 = arith.constant 1.000000e+00 : f32
    %942 = vector.broadcast %cst_233 : f32 to vector<1x128xf32>
    %943 = arith.addf %942, %941 : vector<1x128xf32>
    %944 = arith.divf %942, %943 : vector<1x128xf32>
    %945 = math.tanh %939 : vector<1x128xf32>
    %946 = vector.extract_strided_slice %944 {offsets = [0, 32], sizes = [1, 32], strides = [1, 1]} : vector<1x128xf32> to vector<1x32xf32>
    %947 = arith.mulf %946, %913 : vector<1x32xf32>
    %948 = vector.extract_strided_slice %944 {offsets = [0, 0], sizes = [1, 32], strides = [1, 1]} : vector<1x128xf32> to vector<1x32xf32>
    %949 = vector.extract_strided_slice %945 {offsets = [0, 64], sizes = [1, 32], strides = [1, 1]} : vector<1x128xf32> to vector<1x32xf32>
    %950 = arith.mulf %948, %949 : vector<1x32xf32>
    %951 = arith.addf %947, %950 : vector<1x32xf32>
    %952 = vector.extract_strided_slice %944 {offsets = [0, 96], sizes = [1, 32], strides = [1, 1]} : vector<1x128xf32> to vector<1x32xf32>
    %953 = math.tanh %951 : vector<1x32xf32>
    %954 = arith.mulf %952, %953 : vector<1x32xf32>
    %c23_234 = arith.constant 23 : index
    %c0_235 = arith.constant 0 : index
    %955 = vector.load %arg7[%c23_234, %c0_235] : memref<24x32xf32, #tpu.memory_space<vmem>>, vector<1x32xf32>
    tpu.vector_store %arg7[%c23_234, %c0_235], %954 {strides = array<i32>} : memref<24x32xf32, #tpu.memory_space<vmem>>, vector<1x32xf32>,
    %c0_236 = arith.constant 0 : index
    %c0_237 = arith.constant 0 : index
    %956 = vector.load %arg7[%c0_236, %c0_237] : memref<24x32xf32, #tpu.memory_space<vmem>>, vector<24x32xf32>
    %cst_238 = arith.constant dense<0.000000e+00> : vector<24x16xf32>
    %957 = tpu.matmul %956, %14, %cst_238 {dimension_numbers = #tpu.dot_dimension_numbers<[1], [0], [0], [1], [0, 0, 1, 1], [], []>} : vector<24x32xf32>, vector<32x16xf32>, vector<24x16xf32> -> vector<24x16xf32>
    %958 = vector.broadcast %5 : vector<1x16xf32> to vector<24x16xf32>
    %959 = arith.addf %957, %958 : vector<24x16xf32>
    %cst_239 = arith.constant 0.000000e+00 : f32
    %960 = vector.broadcast %cst_239 : f32 to vector<24x16xf32>
    %961 = arith.maximumf %959, %960 : vector<24x16xf32>
    %cst_240 = arith.constant dense<0.000000e+00> : vector<24x1xf32>
    %962 = tpu.matmul %961, %15, %cst_240 {dimension_numbers = #tpu.dot_dimension_numbers<[1], [0], [0], [1], [0, 0, 1, 1], [], []>} : vector<24x16xf32>, vector<16x1xf32>, vector<24x1xf32> -> vector<24x1xf32>
    %963 = vector.broadcast %6 : vector<1x1xf32> to vector<24x1xf32>
    %964 = arith.addf %962, %963 : vector<24x1xf32>
    %c0_241 = arith.constant 0 : index
    %c0_242 = arith.constant 0 : index
    %965 = vector.load %arg5[%c0_241, %c0_242] : memref<24x1xf32, #tpu.memory_space<vmem>>, vector<24x1xf32>
    tpu.vector_store %arg5[%c0_241, %c0_242], %964 {strides = array<i32>} : memref<24x1xf32, #tpu.memory_space<vmem>>, vector<24x1xf32>,
    return
  }
}

</mosaic_0001>

<llo_original>
// kernel: mul.10
$region0: #{mul.10}
  #allocation0 [shape = 's32[1]{0}', space=sflag, size = 0x4, scoped, tag = 'scoped memory for mul.10']
  %s0 = inlined_call_operand.vmem [shape: f32[40], index: 0, kind: input, shape index: {}]
  %s1 = inlined_call_operand.vmem [shape: f32[40], index: 1, kind: input, shape index: {}]
  %s2 = inlined_call_operand.vmem [shape: f32[40], index: 2, kind: output, shape index: {}]
  %v3 = vld [vmem:[%s0] sm:$0x1]
  %v4 = vld [vmem:[%s1] sm:$0x1]
  %5 = xla_tuple %v3, %v4
  %6 = xla_tuple %5
  %v7 = vmul.f32 %v3, %v4
  %8 = xla_tuple %v7
  %9 = vst [vmem:[%s2] sm:$0x1] %v7

// kernel: edge_gcn_lstm_forward.1
$region0: #{edge_gcn_lstm_forward.1}
  #allocation0 [shape = 'u32[]', space=smem, size = 0x4, offset = 0x4, fixed_abs, tag = 'smem constant byte address 0x4 - core index']
  #allocation1 [shape = 'u32[144,128]{1,0:T(1,128)}', space=vmem, size = 0x12000, scoped, tag = 'internal scratch']
  #allocation2 [shape = 'f32[24,128]{1,0:T(8,128)}', space=vmem, size = 0x3000, scoped, tag = 'scratch operand']
  #allocation3 [shape = 'f32[24,32]{1,0:T(8,128)}', space=vmem, size = 0x3000, scoped, tag = 'scratch operand']
  %s0 = inlined_call_operand.vmem [shape: f32[16,1], index: 0, kind: input, shape index: {}]
  %s1 = inlined_call_operand.vmem [shape: f32[16,16], index: 1, kind: input, shape index: {}]
  %s2 = inlined_call_operand.vmem [shape: f32[24,32], index: 2, kind: input, shape index: {}]
  %s3 = inlined_call_operand.vmem [shape: f32[24,2], index: 3, kind: input, shape index: {}]
  %s4 = inlined_call_operand.vmem [shape: f32[184,128], index: 4, kind: input, shape index: {}]
  %s5 = inlined_call_operand.vmem [shape: f32[24,1], index: 5, kind: output, shape index: {}]
  %s6 = sld [smem:[#allocation0]]
  $region30: #{edge_gcn_lstm_forward.1} parent=0
    _
  %s8 = ssub.s32 1, %s6
  %s9 = scalar_select 0, %s8, %s6
  // Predicated region
  $region2: #{edge_gcn_lstm_forward.1} parent=0 // pred_check
    _
  $region3: #{edge_gcn_lstm_forward.1} parent=0 // pred_check_branch
    %11 = sbr.rel (0) target = $region5
  $region4: #{edge_gcn_lstm_forward.1} parent=0 // pred_region
    _
  $region5: #{edge_gcn_lstm_forward.1} parent=0 // pred_fallthru
    _
  // Predicated region
  $region6: #{edge_gcn_lstm_forward.1} parent=0 // pred_check
    _
  $region7: #{edge_gcn_lstm_forward.1} parent=0 // pred_check_branch
    %13 = sbr.rel (0) target = $region9
  $region8: #{edge_gcn_lstm_forward.1} parent=0 // pred_region
    _
  $region9: #{edge_gcn_lstm_forward.1} parent=0 // pred_fallthru
    _
  // Predicated region
  $region10: #{edge_gcn_lstm_forward.1} parent=0 // pred_check
    _
  $region11: #{edge_gcn_lstm_forward.1} parent=0 // pred_check_branch
    %15 = sbr.rel (0) target = $region13
  $region12: #{edge_gcn_lstm_forward.1} parent=0 // pred_region
    _
  $region13: #{edge_gcn_lstm_forward.1} parent=0 // pred_fallthru
    _
  // Predicated region
  $region14: #{edge_gcn_lstm_forward.1} parent=0 // pred_check
    _
  $region15: #{edge_gcn_lstm_forward.1} parent=0 // pred_check_branch
    %17 = sbr.rel (0) target = $region17
  $region16: #{edge_gcn_lstm_forward.1} parent=0 // pred_region
    _
  $region17: #{edge_gcn_lstm_forward.1} parent=0 // pred_fallthru
    _
  // Predicated region
  $region18: #{edge_gcn_lstm_forward.1} parent=0 // pred_check
    _
  $region19: #{edge_gcn_lstm_forward.1} parent=0 // pred_check_branch
    %19 = sbr.rel (0) target = $region21
  $region20: #{edge_gcn_lstm_forward.1} parent=0 // pred_region
    _
  $region21: #{edge_gcn_lstm_forward.1} parent=0 // pred_fallthru
    _
  %v20 = vld [vmem:[%s4] sm:$0x1]
  %v21 = vld [vmem:[%s4 + $0x1] sm:$0x1]
  %v22 = vld [vmem:[%s4 + $0x2] sm:$0x1]
  %v23 = vld [vmem:[%s4 + $0x3] sm:$0x1]
  %v24 = vld [vmem:[%s4 + $0x4] sm:$0x1]
  %v25 = vld [vmem:[%s4 + $0x5] sm:$0x1]
  %v26 = vld [vmem:[%s4 + $0x6] sm:$0x1]
  %v27 = vld [vmem:[%s4 + $0x8] sm:$0xff]
  %v28 = vld [vmem:[%s4 + $0x10] sm:$0xff]
  %v29 = vld [vmem:[%s4 + $0x18] sm:$0xff]
  %v30 = vld [vmem:[%s4 + $0x20] sm:$0x3]
  %v31 = vld [vmem:[%s4 + $0x28] sm:$0xff]
  %v32 = vld [vmem:[%s4 + $0x30] sm:$0xff]
  %v33 = vld [vmem:[%s4 + $0x38] sm:$0xff]
  %v34 = vld [vmem:[%s4 + $0x40] sm:$0xff]
  %v35 = vld [vmem:[%s4 + $0x48] sm:$0xff]
  %v36 = vld [vmem:[%s4 + $0x50] sm:$0xff]
  %v37 = vld [vmem:[%s4 + $0x58] sm:$0xff]
  %v38 = vld [vmem:[%s4 + $0x60] sm:$0xff]
  %v39 = vld [vmem:[%s4 + $0x68] sm:$0xff]
  %v40 = vld [vmem:[%s4 + $0x70] sm:$0xff]
  %v41 = vld [vmem:[%s4 + $0x78] sm:$0xff]
  %v42 = vld [vmem:[%s4 + $0x80] sm:$0xff]
  %v43 = vld [vmem:[%s4 + $0x88] sm:$0xff]
  %v44 = vld [vmem:[%s4 + $0x90] sm:$0xff]
  %v45 = vld [vmem:[%s4 + $0x98] sm:$0xff]
  %v46 = vld [vmem:[%s4 + $0xa0] sm:$0xff]
  %v47 = vld [vmem:[%s4 + $0xa8] sm:$0xff]
  %v48 = vld [vmem:[%s4 + $0xb0] sm:$0xff]
  %v49 = vld [vmem:[%s1] sm:$0xff]
  %v50 = vld [vmem:[%s1 + $0x8] sm:$0xff]
  %v51 = vld [vmem:[%s0] sm:$0xff]
  %v52 = vld [vmem:[%s0 + $0x8] sm:$0xff]
  %54 = vset.pattern.permute.xlu0 0
  %55 = vperm.xlu0 %54, %v51
  %v56 = vpop.permute.xlu0 %55
  %59 = vset.pattern.permute.xlu0 0
  %60 = vperm.xlu0 %59, %v52
  %v61 = vpop.permute.xlu0 %60
  %v63 = vlaneseq
  %v64 = vshrl.u32 %v63, 7
  %v65 = vsub.s32 0, %v64
  %v66 = vrot.slane %v20, %v65
  %v67 = vmul.f32 %v56, %v66
  %v68 = vmul.f32 %v61, %v66
  %v69 = vlaneseq
  %v70 = vshrl.u32 %v69, 7
  %v71 = vsub.s32 0, %v70
  %v72 = vrot.slane %v21, %v71
  %vm73 = vcmask 130048
  %v75 = vsel %vm73, %v49, 0
  %v78 = vsel %vm73, %v50, 0
  %80 = vmatprep.subr.mxu0 0.0
  %81 = vmatpush1.msra.mxu0 %v67
  %82 = vmatprep.subr.mxu0 0.0
  %83 = vmatpush1.msra.mxu0 %v68
  %84 = vmatprep.subr.mxu0 0.0
  %85 = vmatpush1.msra.mxu0 0.0
  %86 = vmatprep.subr.mxu0 0.0
  %87 = vmatpush1.msra.mxu0 0.0
  %88 = vmatprep.subr.mxu0 0.0
  %89 = vmatpush1.msra.mxu0 0.0
  %90 = vmatprep.subr.mxu0 0.0
  %91 = vmatpush1.msra.mxu0 0.0
  %92 = vmatprep.subr.mxu0 0.0
  %93 = vmatpush1.msra.mxu0 0.0
  %94 = vmatprep.subr.mxu0 0.0
  %95 = vmatpush1.msra.mxu0 0.0
  %96 = vmatprep.subr.mxu0 0.0
  %97 = vmatpush1.msra.mxu0 0.0
  %98 = vmatprep.subr.mxu0 0.0
  %99 = vmatpush1.msra.mxu0 0.0
  %100 = vmatprep.subr.mxu0 0.0
  %101 = vmatpush1.msra.mxu0 0.0
  %102 = vmatprep.subr.mxu0 0.0
  %103 = vmatpush1.msra.mxu0 0.0
  %104 = vmatprep.subr.mxu0 0.0
  %105 = vmatpush1.msra.mxu0 0.0
  %106 = vmatprep.subr.mxu0 0.0
  %107 = vmatpush1.msra.mxu0 0.0
  %108 = vmatprep.subr.mxu0 0.0
  %109 = vmatpush1.msra.mxu0 0.0
  %110 = vmatprep.subr.mxu0 0.0
  %111 = vmatpush1.msra.mxu0 0.0
  %112 = vmatprep.subr.mxu0 0.0
  %113 = vmatpush1.msra.mxu0 0.0
  %114 = vmatprep.subr.mxu0 0.0
  %115 = vmatpush1.msra.mxu0 0.0
  %116 = vmatprep.subr.mxu0 0.0
  %117 = vmatpush1.msra.mxu0 0.0
  %118 = vmatprep.subr.mxu0 0.0
  %119 = vmatpush1.msra.mxu0 0.0
  %120 = vmatprep.subr.mxu0 0.0
  %121 = vmatpush1.msra.mxu0 0.0
  %122 = vmatprep.subr.mxu0 0.0
  %123 = vmatpush1.msra.mxu0 0.0
  %124 = vmatprep.subr.mxu0 0.0
  %125 = vmatpush1.msra.mxu0 0.0
  %126 = vmatprep.subr.mxu0 0.0
  %127 = vmatpush1.msra.mxu0 0.0
  %128 = vmatprep.subr.mxu0 0.0
  %129 = vmatpush1.msra.mxu0 0.0
  %130 = vmatprep.subr.mxu0 0.0
  %131 = vmatpush1.msra.mxu0 0.0
  %132 = vmatprep.subr.mxu0 0.0
  %133 = vmatpush1.msra.mxu0 0.0
  %134 = vmatprep.subr.mxu0 0.0
  %135 = vmatpush1.msra.mxu0 0.0
  %136 = vmatprep.subr.mxu0 0.0
  %137 = vmatpush1.msra.mxu0 0.0
  %138 = vmatprep.subr.mxu0 0.0
  %139 = vmatpush1.msra.mxu0 0.0
  %140 = vmatprep.subr.mxu0 0.0
  %141 = vmatpush1.msra.mxu0 0.0
  %142 = vmatprep.subr.mxu0 0.0
  %143 = vmatpush1.msra.mxu0 0.0
  %144 = vmatprep.mubr.f32.mxu0 0.0
  %145 = vmatmul.mubr.f32.gmra.mrb[0].mxu0 %v75
  %v146 = vpop.f32.mrb[0].mxu0
  %v147 = vadd.f32 %v72, %v146
  %v148 = vpop.f32.mrb[0].mxu0
  %149 = vmatprep.mubr.f32.mxu0 0.0
  %150 = vmatmul.mubr.f32.gmra.mrb[0].mxu0 %v78
  %v151 = vpop.f32.mrb[0].mxu0
  %v152 = vadd.f32 %v72, %v151
  %v153 = vpop.f32.mrb[0].mxu0
  %154 = vdwg.mxu0
  %v155 = vmax.f32 %v147, 0.0
  %v156 = vmax.f32 %v152, 0.0
  %vm157 = vcmask 64512
  %v159 = vsel %vm157, %v155, 0
  %v162 = vsel %vm157, %v156, 0
  %164 = vmatprep.subr.mxu0 0.0
  %165 = vmatpush1.msra.mxu0 %v27
  %166 = vmatprep.subr.mxu0 0.0
  %167 = vmatpush1.msra.mxu0 0.0
  %168 = vmatprep.subr.mxu0 0.0
  %169 = vmatpush1.msra.mxu0 0.0
  %170 = vmatprep.subr.mxu0 0.0
  %171 = vmatpush1.msra.mxu0 0.0
  %172 = vmatprep.subr.mxu0 0.0
  %173 = vmatpush1.msra.mxu0 0.0
  %174 = vmatprep.subr.mxu0 0.0
  %175 = vmatpush1.msra.mxu0 0.0
  %176 = vmatprep.subr.mxu0 0.0
  %177 = vmatpush1.msra.mxu0 0.0
  %178 = vmatprep.subr.mxu0 0.0
  %179 = vmatpush1.msra.mxu0 0.0
  %180 = vmatprep.subr.mxu0 0.0
  %181 = vmatpush1.msra.mxu0 0.0
  %182 = vmatprep.subr.mxu0 0.0
  %183 = vmatpush1.msra.mxu0 0.0
  %184 = vmatprep.subr.mxu0 0.0
  %185 = vmatpush1.msra.mxu0 0.0
  %186 = vmatprep.subr.mxu0 0.0
  %187 = vmatpush1.msra.mxu0 0.0
  %188 = vmatprep.subr.mxu0 0.0
  %189 = vmatpush1.msra.mxu0 0.0
  %190 = vmatprep.subr.mxu0 0.0
  %191 = vmatpush1.msra.mxu0 0.0
  %192 = vmatprep.subr.mxu0 0.0
  %193 = vmatpush1.msra.mxu0 0.0
  %194 = vmatprep.subr.mxu0 0.0
  %195 = vmatpush1.msra.mxu0 0.0
  %196 = vmatprep.subr.mxu0 0.0
  %197 = vmatpush1.msra.mxu0 0.0
  %198 = vmatprep.subr.mxu0 0.0
  %199 = vmatpush1.msra.mxu0 0.0
  %200 = vmatprep.subr.mxu0 0.0
  %201 = vmatpush1.msra.mxu0 0.0
  %202 = vmatprep.subr.mxu0 0.0
  %203 = vmatpush1.msra.mxu0 0.0
  %204 = vmatprep.subr.mxu0 0.0
  %205 = vmatpush1.msra.mxu0 0.0
  %206 = vmatprep.subr.mxu0 0.0
  %207 = vmatpush1.msra.mxu0 0.0
  %208 = vmatprep.subr.mxu0 0.0
  %209 = vmatpush1.msra.mxu0 0.0
  %210 = vmatprep.subr.mxu0 0.0
  %211 = vmatpush1.msra.mxu0 0.0
  %212 = vmatprep.subr.mxu0 0.0
  %213 = vmatpush1.msra.mxu0 0.0
  %214 = vmatprep.subr.mxu0 0.0
  %215 = vmatpush1.msra.mxu0 0.0
  %216 = vmatprep.subr.mxu0 0.0
  %217 = vmatpush1.msra.mxu0 0.0
  %218 = vmatprep.subr.mxu0 0.0
  %219 = vmatpush1.msra.mxu0 0.0
  %220 = vmatprep.subr.mxu0 0.0
  %221 = vmatpush1.msra.mxu0 0.0
  %222 = vmatprep.subr.mxu0 0.0
  %223 = vmatpush1.msra.mxu0 0.0
  %224 = vmatprep.subr.mxu0 0.0
  %225 = vmatpush1.msra.mxu0 0.0
  %226 = vmatprep.subr.mxu0 0.0
  %227 = vmatpush1.msra.mxu0 0.0
  %228 = vmatprep.mubr.f32.mxu0 0.0
  %229 = vmatmul.mubr.f32.gmra.mrb[0].mxu0 %v159
  %v230 = vpop.f32.mrb[0].mxu0
  %v231 = vadd.f32 0.0, %v230
  %v232 = vpop.f32.mrb[0].mxu0
  %233 = vmatprep.mubr.f32.mxu0 0.0
  %234 = vmatmul.mubr.f32.gmra.mrb[0].mxu0 %v162
  %v235 = vpop.f32.mrb[0].mxu0
  %v236 = vadd.f32 0.0, %v235
  %v237 = vpop.f32.mrb[0].mxu0
  %238 = vdwg.mxu0
  %v239 = vlaneseq
  %v240 = vshrl.u32 %v239, 7
  %v241 = vsub.s32 0, %v240
  %v242 = vrot.slane %v22, %v241
  %243 = vmatprep.subr.mxu0 0.0
  %244 = vmatpush1.msra.mxu0 %v231
  %245 = vmatprep.subr.mxu0 0.0
  %246 = vmatpush1.msra.mxu0 %v236
  %247 = vmatprep.subr.mxu0 0.0
  %248 = vmatpush1.msra.mxu0 0.0
  %249 = vmatprep.subr.mxu0 0.0
  %250 = vmatpush1.msra.mxu0 0.0
  %251 = vmatprep.subr.mxu0 0.0
  %252 = vmatpush1.msra.mxu0 0.0
  %253 = vmatprep.subr.mxu0 0.0
  %254 = vmatpush1.msra.mxu0 0.0
  %255 = vmatprep.subr.mxu0 0.0
  %256 = vmatpush1.msra.mxu0 0.0
  %257 = vmatprep.subr.mxu0 0.0
  %258 = vmatpush1.msra.mxu0 0.0
  %259 = vmatprep.subr.mxu0 0.0
  %260 = vmatpush1.msra.mxu0 0.0
  %261 = vmatprep.subr.mxu0 0.0
  %262 = vmatpush1.msra.mxu0 0.0
  %263 = vmatprep.subr.mxu0 0.0
  %264 = vmatpush1.msra.mxu0 0.0
  %265 = vmatprep.subr.mxu0 0.0
  %266 = vmatpush1.msra.mxu0 0.0
  %267 = vmatprep.subr.mxu0 0.0
  %268 = vmatpush1.msra.mxu0 0.0
  %269 = vmatprep.subr.mxu0 0.0
  %270 = vmatpush1.msra.mxu0 0.0
  %271 = vmatprep.subr.mxu0 0.0
  %272 = vmatpush1.msra.mxu0 0.0
  %273 = vmatprep.subr.mxu0 0.0
  %274 = vmatpush1.msra.mxu0 0.0
  %275 = vmatprep.subr.mxu0 0.0
  %276 = vmatpush1.msra.mxu0 0.0
  %277 = vmatprep.subr.mxu0 0.0
  %278 = vmatpush1.msra.mxu0 0.0
  %279 = vmatprep.subr.mxu0 0.0
  %280 = vmatpush1.msra.mxu0 0.0
  %281 = vmatprep.subr.mxu0 0.0
  %282 = vmatpush1.msra.mxu0 0.0
  %283 = vmatprep.subr.mxu0 0.0
  %284 = vmatpush1.msra.mxu0 0.0
  %285 = vmatprep.subr.mxu0 0.0
  %286 = vmatpush1.msra.mxu0 0.0
  %287 = vmatprep.subr.mxu0 0.0
  %288 = vmatpush1.msra.mxu0 0.0
  %289 = vmatprep.subr.mxu0 0.0
  %290 = vmatpush1.msra.mxu0 0.0
  %291 = vmatprep.subr.mxu0 0.0
  %292 = vmatpush1.msra.mxu0 0.0
  %293 = vmatprep.subr.mxu0 0.0
  %294 = vmatpush1.msra.mxu0 0.0
  %295 = vmatprep.subr.mxu0 0.0
  %296 = vmatpush1.msra.mxu0 0.0
  %297 = vmatprep.subr.mxu0 0.0
  %298 = vmatpush1.msra.mxu0 0.0
  %299 = vmatprep.subr.mxu0 0.0
  %300 = vmatpush1.msra.mxu0 0.0
  %301 = vmatprep.subr.mxu0 0.0
  %302 = vmatpush1.msra.mxu0 0.0
  %303 = vmatprep.subr.mxu0 0.0
  %304 = vmatpush1.msra.mxu0 0.0
  %305 = vmatprep.subr.mxu0 0.0
  %306 = vmatpush1.msra.mxu0 0.0
  %307 = vmatprep.mubr.f32.mxu0 0.0
  %308 = vmatmul.mubr.f32.gmra.mrb[0].mxu0 %v75
  %v309 = vpop.f32.mrb[0].mxu0
  %v310 = vadd.f32 %v242, %v309
  %v311 = vpop.f32.mrb[0].mxu0
  %312 = vmatprep.mubr.f32.mxu0 0.0
  %313 = vmatmul.mubr.f32.gmra.mrb[0].mxu0 %v78
  %v314 = vpop.f32.mrb[0].mxu0
  %v315 = vadd.f32 %v242, %v314
  %v316 = vpop.f32.mrb[0].mxu0
  %317 = vdwg.mxu0
  %v318 = vmax.f32 %v310, 0.0
  %v319 = vmax.f32 %v315, 0.0
  %v321 = vsel %vm157, %v318, 0
  %v324 = vsel %vm157, %v319, 0
  %326 = vmatprep.subr.mxu0 0.0
  %327 = vmatpush1.msra.mxu0 %v28
  %328 = vmatprep.subr.mxu0 0.0
  %329 = vmatpush1.msra.mxu0 0.0
  %330 = vmatprep.subr.mxu0 0.0
  %331 = vmatpush1.msra.mxu0 0.0
  %332 = vmatprep.subr.mxu0 0.0
  %333 = vmatpush1.msra.mxu0 0.0
  %334 = vmatprep.subr.mxu0 0.0
  %335 = vmatpush1.msra.mxu0 0.0
  %336 = vmatprep.subr.mxu0 0.0
  %337 = vmatpush1.msra.mxu0 0.0
  %338 = vmatprep.subr.mxu0 0.0
  %339 = vmatpush1.msra.mxu0 0.0
  %340 = vmatprep.subr.mxu0 0.0
  %341 = vmatpush1.msra.mxu0 0.0
  %342 = vmatprep.subr.mxu0 0.0
  %343 = vmatpush1.msra.mxu0 0.0
  %344 = vmatprep.subr.mxu0 0.0
  %345 = vmatpush1.msra.mxu0 0.0
  %346 = vmatprep.subr.mxu0 0.0
  %347 = vmatpush1.msra.mxu0 0.0
  %348 = vmatprep.subr.mxu0 0.0
  %349 = vmatpush1.msra.mxu0 0.0
  %350 = vmatprep.subr.mxu0 0.0
  %351 = vmatpush1.msra.mxu0 0.0
  %352 = vmatprep.subr.mxu0 0.0
  %353 = vmatpush1.msra.mxu0 0.0
  %354 = vmatprep.subr.mxu0 0.0
  %355 = vmatpush1.msra.mxu0 0.0
  %356 = vmatprep.subr.mxu0 0.0
  %357 = vmatpush1.msra.mxu0 0.0
  %358 = vmatprep.subr.mxu0 0.0
  %359 = vmatpush1.msra.mxu0 0.0
  %360 = vmatprep.subr.mxu0 0.0
  %361 = vmatpush1.msra.mxu0 0.0
  %362 = vmatprep.subr.mxu0 0.0
  %363 = vmatpush1.msra.mxu0 0.0
  %364 = vmatprep.subr.mxu0 0.0
  %365 = vmatpush1.msra.mxu0 0.0
  %366 = vmatprep.subr.mxu0 0.0
  %367 = vmatpush1.msra.mxu0 0.0
  %368 = vmatprep.subr.mxu0 0.0
  %369 = vmatpush1.msra.mxu0 0.0
  %370 = vmatprep.subr.mxu0 0.0
  %371 = vmatpush1.msra.mxu0 0.0
  %372 = vmatprep.subr.mxu0 0.0
  %373 = vmatpush1.msra.mxu0 0.0
  %374 = vmatprep.subr.mxu0 0.0
  %375 = vmatpush1.msra.mxu0 0.0
  %376 = vmatprep.subr.mxu0 0.0
  %377 = vmatpush1.msra.mxu0 0.0
  %378 = vmatprep.subr.mxu0 0.0
  %379 = vmatpush1.msra.mxu0 0.0
  %380 = vmatprep.subr.mxu0 0.0
  %381 = vmatpush1.msra.mxu0 0.0
  %382 = vmatprep.subr.mxu0 0.0
  %383 = vmatpush1.msra.mxu0 0.0
  %384 = vmatprep.subr.mxu0 0.0
  %385 = vmatpush1.msra.mxu0 0.0
  %386 = vmatprep.subr.mxu0 0.0
  %387 = vmatpush1.msra.mxu0 0.0
  %388 = vmatprep.subr.mxu0 0.0
  %389 = vmatpush1.msra.mxu0 0.0
  %390 = vmatprep.mubr.f32.mxu0 0.0
  %391 = vmatmul.mubr.f32.gmra.mrb[0].mxu0 %v321
  %v392 = vpop.f32.mrb[0].mxu0
  %v393 = vadd.f32 0.0, %v392
  %v394 = vpop.f32.mrb[0].mxu0
  %395 = vmatprep.mubr.f32.mxu0 0.0
  %396 = vmatmul.mubr.f32.gmra.mrb[0].mxu0 %v324
  %v397 = vpop.f32.mrb[0].mxu0
  %v398 = vadd.f32 0.0, %v397
  %v399 = vpop.f32.mrb[0].mxu0
  %400 = vdwg.mxu0
  %401 = vmatprep.subr.mxu0 0.0
  %402 = vmatpush1.msra.mxu0 %v29
  %403 = vmatprep.subr.mxu0 0.0
  %404 = vmatpush1.msra.mxu0 0.0
  %405 = vmatprep.subr.mxu0 0.0
  %406 = vmatpush1.msra.mxu0 0.0
  %407 = vmatprep.subr.mxu0 0.0
  %408 = vmatpush1.msra.mxu0 0.0
  %409 = vmatprep.subr.mxu0 0.0
  %410 = vmatpush1.msra.mxu0 0.0
  %411 = vmatprep.subr.mxu0 0.0
  %412 = vmatpush1.msra.mxu0 0.0
  %413 = vmatprep.subr.mxu0 0.0
  %414 = vmatpush1.msra.mxu0 0.0
  %415 = vmatprep.subr.mxu0 0.0
  %416 = vmatpush1.msra.mxu0 0.0
  %417 = vmatprep.subr.mxu0 0.0
  %418 = vmatpush1.msra.mxu0 0.0
  %419 = vmatprep.subr.mxu0 0.0
  %420 = vmatpush1.msra.mxu0 0.0
  %421 = vmatprep.subr.mxu0 0.0
  %422 = vmatpush1.msra.mxu0 0.0
  %423 = vmatprep.subr.mxu0 0.0
  %424 = vmatpush1.msra.mxu0 0.0
  %425 = vmatprep.subr.mxu0 0.0
  %426 = vmatpush1.msra.mxu0 0.0
  %427 = vmatprep.subr.mxu0 0.0
  %428 = vmatpush1.msra.mxu0 0.0
  %429 = vmatprep.subr.mxu0 0.0
  %430 = vmatpush1.msra.mxu0 0.0
  %431 = vmatprep.subr.mxu0 0.0
  %432 = vmatpush1.msra.mxu0 0.0
  %433 = vmatprep.subr.mxu0 0.0
  %434 = vmatpush1.msra.mxu0 0.0
  %435 = vmatprep.subr.mxu0 0.0
  %436 = vmatpush1.msra.mxu0 0.0
  %437 = vmatprep.subr.mxu0 0.0
  %438 = vmatpush1.msra.mxu0 0.0
  %439 = vmatprep.subr.mxu0 0.0
  %440 = vmatpush1.msra.mxu0 0.0
  %441 = vmatprep.subr.mxu0 0.0
  %442 = vmatpush1.msra.mxu0 0.0
  %443 = vmatprep.subr.mxu0 0.0
  %444 = vmatpush1.msra.mxu0 0.0
  %445 = vmatprep.subr.mxu0 0.0
  %446 = vmatpush1.msra.mxu0 0.0
  %447 = vmatprep.subr.mxu0 0.0
  %448 = vmatpush1.msra.mxu0 0.0
  %449 = vmatprep.subr.mxu0 0.0
  %450 = vmatpush1.msra.mxu0 0.0
  %451 = vmatprep.subr.mxu0 0.0
  %452 = vmatpush1.msra.mxu0 0.0
  %453 = vmatprep.subr.mxu0 0.0
  %454 = vmatpush1.msra.mxu0 0.0
  %455 = vmatprep.subr.mxu0 0.0
  %456 = vmatpush1.msra.mxu0 0.0
  %457 = vmatprep.subr.mxu0 0.0
  %458 = vmatpush1.msra.mxu0 0.0
  %459 = vmatprep.subr.mxu0 0.0
  %460 = vmatpush1.msra.mxu0 0.0
  %461 = vmatprep.subr.mxu0 0.0
  %462 = vmatpush1.msra.mxu0 0.0
  %463 = vmatprep.subr.mxu0 0.0
  %464 = vmatpush1.msra.mxu0 0.0
  %465 = vmatprep.mubr.f32.mxu0 0.0
  %466 = vmatmul.mubr.f32.gmra.mrb[0].mxu0 %v321
  %v467 = vpop.f32.mrb[0].mxu0
  %v468 = vadd.f32 0.0, %v467
  %v469 = vpop.f32.mrb[0].mxu0
  %470 = vmatprep.mubr.f32.mxu0 0.0
  %471 = vmatmul.mubr.f32.gmra.mrb[0].mxu0 %v324
  %v472 = vpop.f32.mrb[0].mxu0
  %v473 = vadd.f32 0.0, %v472
  %v474 = vpop.f32.mrb[0].mxu0
  %475 = vdwg.mxu0
  %v476 = vld [vmem:[%s2] sm:$0xff]
  %v477 = vld [vmem:[%s2 + $0x8] sm:$0xff]
  %v478 = vld [vmem:[%s2 + $0x10] sm:$0xff]
  %v479 = vld [vmem:[%s3] sm:$0xff]
  %v480 = vld [vmem:[%s3 + $0x8] sm:$0xff]
  %v481 = vld [vmem:[%s3 + $0x10] sm:$0xff]
  %vm482 = vcmask 15360
  %v484 = vsel %vm482, %v479, 0
  %v487 = vsel %vm482, %v480, 0
  %v490 = vsel %vm482, %v481, 0
  %vm492 = vcmask 1041408
  %v494 = vsel %vm492, %v30, 0
  %496 = vmatprep.subr.mxu0 0.0
  %497 = vmatpush1.msra.mxu0 %v494
  %498 = vmatprep.subr.mxu0 0.0
  %499 = vmatpush1.msra.mxu0 0.0
  %500 = vmatprep.subr.mxu0 0.0
  %501 = vmatpush1.msra.mxu0 0.0
  %502 = vmatprep.subr.mxu0 0.0
  %503 = vmatpush1.msra.mxu0 0.0
  %504 = vmatprep.subr.mxu0 0.0
  %505 = vmatpush1.msra.mxu0 0.0
  %506 = vmatprep.subr.mxu0 0.0
  %507 = vmatpush1.msra.mxu0 0.0
  %508 = vmatprep.subr.mxu0 0.0
  %509 = vmatpush1.msra.mxu0 0.0
  %510 = vmatprep.subr.mxu0 0.0
  %511 = vmatpush1.msra.mxu0 0.0
  %512 = vmatprep.subr.mxu0 0.0
  %513 = vmatpush1.msra.mxu0 0.0
  %514 = vmatprep.subr.mxu0 0.0
  %515 = vmatpush1.msra.mxu0 0.0
  %516 = vmatprep.subr.mxu0 0.0
  %517 = vmatpush1.msra.mxu0 0.0
  %518 = vmatprep.subr.mxu0 0.0
  %519 = vmatpush1.msra.mxu0 0.0
  %520 = vmatprep.subr.mxu0 0.0
  %521 = vmatpush1.msra.mxu0 0.0
  %522 = vmatprep.subr.mxu0 0.0
  %523 = vmatpush1.msra.mxu0 0.0
  %524 = vmatprep.subr.mxu0 0.0
  %525 = vmatpush1.msra.mxu0 0.0
  %526 = vmatprep.subr.mxu0 0.0
  %527 = vmatpush1.msra.mxu0 0.0
  %528 = vmatprep.subr.mxu0 0.0
  %529 = vmatpush1.msra.mxu0 0.0
  %530 = vmatprep.subr.mxu0 0.0
  %531 = vmatpush1.msra.mxu0 0.0
  %532 = vmatprep.subr.mxu0 0.0
  %533 = vmatpush1.msra.mxu0 0.0
  %534 = vmatprep.subr.mxu0 0.0
  %535 = vmatpush1.msra.mxu0 0.0
  %536 = vmatprep.subr.mxu0 0.0
  %537 = vmatpush1.msra.mxu0 0.0
  %538 = vmatprep.subr.mxu0 0.0
  %539 = vmatpush1.msra.mxu0 0.0
  %540 = vmatprep.subr.mxu0 0.0
  %541 = vmatpush1.msra.mxu0 0.0
  %542 = vmatprep.subr.mxu0 0.0
  %543 = vmatpush1.msra.mxu0 0.0
  %544 = vmatprep.subr.mxu0 0.0
  %545 = vmatpush1.msra.mxu0 0.0
  %546 = vmatprep.subr.mxu0 0.0
  %547 = vmatpush1.msra.mxu0 0.0
  %548 = vmatprep.subr.mxu0 0.0
  %549 = vmatpush1.msra.mxu0 0.0
  %550 = vmatprep.subr.mxu0 0.0
  %551 = vmatpush1.msra.mxu0 0.0
  %552 = vmatprep.subr.mxu0 0.0
  %553 = vmatpush1.msra.mxu0 0.0
  %554 = vmatprep.subr.mxu0 0.0
  %555 = vmatpush1.msra.mxu0 0.0
  %556 = vmatprep.subr.mxu0 0.0
  %557 = vmatpush1.msra.mxu0 0.0
  %558 = vmatprep.subr.mxu0 0.0
  %559 = vmatpush1.msra.mxu0 0.0
  %560 = vmatprep.mubr.f32.mxu0 0.0
  %561 = vmatmul.mubr.f32.gmra.mrb[0].mxu0 %v484
  %v562 = vpop.f32.mrb[0].mxu0
  %v563 = vadd.f32 0.0, %v562
  %v564 = vpop.f32.mrb[0].mxu0
  %565 = vmatprep.mubr.f32.mxu0 0.0
  %566 = vmatmul.mubr.f32.gmra.mrb[0].mxu0 %v487
  %v567 = vpop.f32.mrb[0].mxu0
  %v568 = vadd.f32 0.0, %v567
  %v569 = vpop.f32.mrb[0].mxu0
  %570 = vmatprep.mubr.f32.mxu0 0.0
  %571 = vmatmul.mubr.f32.gmra.mrb[0].mxu0 %v490
  %v572 = vpop.f32.mrb[0].mxu0
  %v573 = vadd.f32 0.0, %v572
  %v574 = vpop.f32.mrb[0].mxu0
  %575 = vdwg.mxu0
  %vm576 = vcmask 261120
  %v578 = vsel %vm576, %v476, 0
  %v581 = vsel %vm576, %v477, 0
  %v584 = vsel %vm576, %v478, 0
  %586 = vmatprep.subr.mxu0 0.0
  %587 = vmatpush1.msra.mxu0 %v393
  %588 = vmatprep.subr.mxu0 0.0
  %589 = vmatpush1.msra.mxu0 %v398
  %590 = vmatprep.subr.mxu0 0.0
  %591 = vmatpush1.msra.mxu0 %v468
  %592 = vmatprep.subr.mxu0 0.0
  %593 = vmatpush1.msra.mxu0 %v473
  %594 = vmatprep.subr.mxu0 0.0
  %595 = vmatpush1.msra.mxu0 0.0
  %596 = vmatprep.subr.mxu0 0.0
  %597 = vmatpush1.msra.mxu0 0.0
  %598 = vmatprep.subr.mxu0 0.0
  %599 = vmatpush1.msra.mxu0 0.0
  %600 = vmatprep.subr.mxu0 0.0
  %601 = vmatpush1.msra.mxu0 0.0
  %602 = vmatprep.subr.mxu0 0.0
  %603 = vmatpush1.msra.mxu0 0.0
  %604 = vmatprep.subr.mxu0 0.0
  %605 = vmatpush1.msra.mxu0 0.0
  %606 = vmatprep.subr.mxu0 0.0
  %607 = vmatpush1.msra.mxu0 0.0
  %608 = vmatprep.subr.mxu0 0.0
  %609 = vmatpush1.msra.mxu0 0.0
  %610 = vmatprep.subr.mxu0 0.0
  %611 = vmatpush1.msra.mxu0 0.0
  %612 = vmatprep.subr.mxu0 0.0
  %613 = vmatpush1.msra.mxu0 0.0
  %614 = vmatprep.subr.mxu0 0.0
  %615 = vmatpush1.msra.mxu0 0.0
  %616 = vmatprep.subr.mxu0 0.0
  %617 = vmatpush1.msra.mxu0 0.0
  %618 = vmatprep.subr.mxu0 0.0
  %619 = vmatpush1.msra.mxu0 0.0
  %620 = vmatprep.subr.mxu0 0.0
  %621 = vmatpush1.msra.mxu0 0.0
  %622 = vmatprep.subr.mxu0 0.0
  %623 = vmatpush1.msra.mxu0 0.0
  %624 = vmatprep.subr.mxu0 0.0
  %625 = vmatpush1.msra.mxu0 0.0
  %626 = vmatprep.subr.mxu0 0.0
  %627 = vmatpush1.msra.mxu0 0.0
  %628 = vmatprep.subr.mxu0 0.0
  %629 = vmatpush1.msra.mxu0 0.0
  %630 = vmatprep.subr.mxu0 0.0
  %631 = vmatpush1.msra.mxu0 0.0
  %632 = vmatprep.subr.mxu0 0.0
  %633 = vmatpush1.msra.mxu0 0.0
  %634 = vmatprep.subr.mxu0 0.0
  %635 = vmatpush1.msra.mxu0 0.0
  %636 = vmatprep.subr.mxu0 0.0
  %637 = vmatpush1.msra.mxu0 0.0
  %638 = vmatprep.subr.mxu0 0.0
  %639 = vmatpush1.msra.mxu0 0.0
  %640 = vmatprep.subr.mxu0 0.0
  %641 = vmatpush1.msra.mxu0 0.0
  %642 = vmatprep.subr.mxu0 0.0
  %643 = vmatpush1.msra.mxu0 0.0
  %644 = vmatprep.subr.mxu0 0.0
  %645 = vmatpush1.msra.mxu0 0.0
  %646 = vmatprep.subr.mxu0 0.0
  %647 = vmatpush1.msra.mxu0 0.0
  %648 = vmatprep.subr.mxu0 0.0
  %649 = vmatpush1.msra.mxu0 0.0
  %650 = vmatprep.mubr.f32.mxu0 0.0
  %651 = vmatmul.mubr.f32.gmra.mrb[0].mxu0 %v578
  %v652 = vpop.f32.mrb[0].mxu0
  %v653 = vadd.f32 %v563, %v652
  %v654 = vpop.f32.mrb[0].mxu0
  %655 = vmatprep.mubr.f32.mxu0 0.0
  %656 = vmatmul.mubr.f32.gmra.mrb[0].mxu0 %v581
  %v657 = vpop.f32.mrb[0].mxu0
  %v658 = vadd.f32 %v568, %v657
  %v659 = vpop.f32.mrb[0].mxu0
  %660 = vmatprep.mubr.f32.mxu0 0.0
  %661 = vmatmul.mubr.f32.gmra.mrb[0].mxu0 %v584
  %v662 = vpop.f32.mrb[0].mxu0
  %v663 = vadd.f32 %v573, %v662
  %v664 = vpop.f32.mrb[0].mxu0
  %665 = vdwg.mxu0
  %v666 = vlaneseq
  %v667 = vshrl.u32 %v666, 7
  %v668 = vsub.s32 0, %v667
  %v669 = vrot.slane %v23, %v668
  %v670 = vadd.f32 %v653, %v669
  %v671 = vadd.f32 %v658, %v669
  %v672 = vadd.f32 %v663, %v669
  %673 = vst [vmem:[#allocation2] sm:$0xff] %v670
  %674 = vst [vmem:[#allocation2 + $0x8] sm:$0xff] %v671
  %675 = vst [vmem:[#allocation2 + $0x10] sm:$0xff] %v672
  %v676 = vld [vmem:[#allocation2] sm:$0x1]
  %v678 = vsel %vm576, 0.0, 0
  %680 = vmatprep.subr.mxu0 0.0
  %681 = vmatpush1.msra.mxu0 %v31
  %682 = vmatprep.subr.mxu0 0.0
  %683 = vmatpush1.msra.mxu0 %v32
  %684 = vmatprep.subr.mxu0 0.0
  %685 = vmatpush1.msra.mxu0 %v33
  %686 = vmatprep.subr.mxu0 0.0
  %687 = vmatpush1.msra.mxu0 %v34
  %688 = vmatprep.subr.mxu0 0.0
  %689 = vmatpush1.msra.mxu0 0.0
  %690 = vmatprep.subr.mxu0 0.0
  %691 = vmatpush1.msra.mxu0 0.0
  %692 = vmatprep.subr.mxu0 0.0
  %693 = vmatpush1.msra.mxu0 0.0
  %694 = vmatprep.subr.mxu0 0.0
  %695 = vmatpush1.msra.mxu0 0.0
  %696 = vmatprep.subr.mxu0 0.0
  %697 = vmatpush1.msra.mxu0 0.0
  %698 = vmatprep.subr.mxu0 0.0
  %699 = vmatpush1.msra.mxu0 0.0
  %700 = vmatprep.subr.mxu0 0.0
  %701 = vmatpush1.msra.mxu0 0.0
  %702 = vmatprep.subr.mxu0 0.0
  %703 = vmatpush1.msra.mxu0 0.0
  %704 = vmatprep.subr.mxu0 0.0
  %705 = vmatpush1.msra.mxu0 0.0
  %706 = vmatprep.subr.mxu0 0.0
  %707 = vmatpush1.msra.mxu0 0.0
  %708 = vmatprep.subr.mxu0 0.0
  %709 = vmatpush1.msra.mxu0 0.0
  %710 = vmatprep.subr.mxu0 0.0
  %711 = vmatpush1.msra.mxu0 0.0
  %712 = vmatprep.subr.mxu0 0.0
  %713 = vmatpush1.msra.mxu0 0.0
  %714 = vmatprep.subr.mxu0 0.0
  %715 = vmatpush1.msra.mxu0 0.0
  %716 = vmatprep.subr.mxu0 0.0
  %717 = vmatpush1.msra.mxu0 0.0
  %718 = vmatprep.subr.mxu0 0.0
  %719 = vmatpush1.msra.mxu0 0.0
  %720 = vmatprep.subr.mxu0 0.0
  %721 = vmatpush1.msra.mxu0 0.0
  %722 = vmatprep.subr.mxu0 0.0
  %723 = vmatpush1.msra.mxu0 0.0
  %724 = vmatprep.subr.mxu0 0.0
  %725 = vmatpush1.msra.mxu0 0.0
  %726 = vmatprep.subr.mxu0 0.0
  %727 = vmatpush1.msra.mxu0 0.0
  %728 = vmatprep.subr.mxu0 0.0
  %729 = vmatpush1.msra.mxu0 0.0
  %730 = vmatprep.subr.mxu0 0.0
  %731 = vmatpush1.msra.mxu0 0.0
  %732 = vmatprep.subr.mxu0 0.0
  %733 = vmatpush1.msra.mxu0 0.0
  %734 = vmatprep.subr.mxu0 0.0
  %735 = vmatpush1.msra.mxu0 0.0
  %736 = vmatprep.subr.mxu0 0.0
  %737 = vmatpush1.msra.mxu0 0.0
  %738 = vmatprep.subr.mxu0 0.0
  %739 = vmatpush1.msra.mxu0 0.0
  %740 = vmatprep.subr.mxu0 0.0
  %741 = vmatpush1.msra.mxu0 0.0
  %742 = vmatprep.subr.mxu0 0.0
  %743 = vmatpush1.msra.mxu0 0.0
  %744 = vmatprep.mubr.f32.mxu0 0.0
  %745 = vmatmul.mubr.f32.gmra.mrb[0].mxu0 %v678
  %v746 = vpop.f32.mrb[0].mxu0
  %v747 = vadd.f32 0.0, %v746
  %v748 = vpop.f32.mrb[0].mxu0
  %749 = vdwg.mxu0
  %v750 = vadd.f32 %v676, %v747
  %v751 = vxor.u32 %v750, 2147483648
  %v752 = vmul.f32 %v751, 1.442695
  %v753 = vpow.pop %v752
  %v754 = vadd.f32 %v753, 1.0
  %v755 = vrcp.pop %v754
  %v756 = vmul.f32 1.0, %v755
  %v757 = vtanh.pop %v750
  %v758 = vmul.f32 %v756, 0.0
  %760 = vrot.lane.b32.xlu0 %v757, 64
  %v761 = vpop.permute.xlu0 %760
  %v763 = vmul.f32 %v756, %v761
  %765 = vrot.lane.b32.xlu0 %v763, 32
  %v766 = vpop.permute.xlu0 %765
  %v768 = vadd.f32 %v758, %v766
  %v769 = vtanh.pop %v768
  %771 = vrot.lane.b32.xlu0 %v769, 64
  %v772 = vpop.permute.xlu0 %771
  %v774 = vmul.f32 %v756, %v772
  %776 = vrot.lane.b32.xlu0 %v774, 32
  %v777 = vpop.permute.xlu0 %776
  %v778 = vsel %vm576, %v777, 0
  %780 = vmatprep.subr.mxu0 0.0
  %781 = vmatpush1.msra.mxu0 %v35
  %782 = vmatprep.subr.mxu0 0.0
  %783 = vmatpush1.msra.mxu0 %v36
  %784 = vmatprep.subr.mxu0 0.0
  %785 = vmatpush1.msra.mxu0 %v37
  %786 = vmatprep.subr.mxu0 0.0
  %787 = vmatpush1.msra.mxu0 %v38
  %788 = vmatprep.subr.mxu0 0.0
  %789 = vmatpush1.msra.mxu0 0.0
  %790 = vmatprep.subr.mxu0 0.0
  %791 = vmatpush1.msra.mxu0 0.0
  %792 = vmatprep.subr.mxu0 0.0
  %793 = vmatpush1.msra.mxu0 0.0
  %794 = vmatprep.subr.mxu0 0.0
  %795 = vmatpush1.msra.mxu0 0.0
  %796 = vmatprep.subr.mxu0 0.0
  %797 = vmatpush1.msra.mxu0 0.0
  %798 = vmatprep.subr.mxu0 0.0
  %799 = vmatpush1.msra.mxu0 0.0
  %800 = vmatprep.subr.mxu0 0.0
  %801 = vmatpush1.msra.mxu0 0.0
  %802 = vmatprep.subr.mxu0 0.0
  %803 = vmatpush1.msra.mxu0 0.0
  %804 = vmatprep.subr.mxu0 0.0
  %805 = vmatpush1.msra.mxu0 0.0
  %806 = vmatprep.subr.mxu0 0.0
  %807 = vmatpush1.msra.mxu0 0.0
  %808 = vmatprep.subr.mxu0 0.0
  %809 = vmatpush1.msra.mxu0 0.0
  %810 = vmatprep.subr.mxu0 0.0
  %811 = vmatpush1.msra.mxu0 0.0
  %812 = vmatprep.subr.mxu0 0.0
  %813 = vmatpush1.msra.mxu0 0.0
  %814 = vmatprep.subr.mxu0 0.0
  %815 = vmatpush1.msra.mxu0 0.0
  %816 = vmatprep.subr.mxu0 0.0
  %817 = vmatpush1.msra.mxu0 0.0
  %818 = vmatprep.subr.mxu0 0.0
  %819 = vmatpush1.msra.mxu0 0.0
  %820 = vmatprep.subr.mxu0 0.0
  %821 = vmatpush1.msra.mxu0 0.0
  %822 = vmatprep.subr.mxu0 0.0
  %823 = vmatpush1.msra.mxu0 0.0
  %824 = vmatprep.subr.mxu0 0.0
  %825 = vmatpush1.msra.mxu0 0.0
  %826 = vmatprep.subr.mxu0 0.0
  %827 = vmatpush1.msra.mxu0 0.0
  %828 = vmatprep.subr.mxu0 0.0
  %829 = vmatpush1.msra.mxu0 0.0
  %830 = vmatprep.subr.mxu0 0.0
  %831 = vmatpush1.msra.mxu0 0.0
  %832 = vmatprep.subr.mxu0 0.0
  %833 = vmatpush1.msra.mxu0 0.0
  %834 = vmatprep.subr.mxu0 0.0
  %835 = vmatpush1.msra.mxu0 0.0
  %836 = vmatprep.subr.mxu0 0.0
  %837 = vmatpush1.msra.mxu0 0.0
  %838 = vmatprep.subr.mxu0 0.0
  %839 = vmatpush1.msra.mxu0 0.0
  %840 = vmatprep.subr.mxu0 0.0
  %841 = vmatpush1.msra.mxu0 0.0
  %842 = vmatprep.subr.mxu0 0.0
  %843 = vmatpush1.msra.mxu0 0.0
  %844 = vmatprep.mubr.f32.mxu0 0.0
  %845 = vmatmul.mubr.f32.gmra.mrb[0].mxu0 %v778
  %v846 = vpop.f32.mrb[0].mxu0
  %v847 = vadd.f32 %v24, %v846
  %v848 = vpop.f32.mrb[0].mxu0
  %849 = vdwg.mxu0
  %850 = vmatprep.subr.mxu0 0.0
  %851 = vmatpush1.msra.mxu0 %v39
  %852 = vmatprep.subr.mxu0 0.0
  %853 = vmatpush1.msra.mxu0 %v40
  %854 = vmatprep.subr.mxu0 0.0
  %855 = vmatpush1.msra.mxu0 %v41
  %856 = vmatprep.subr.mxu0 0.0
  %857 = vmatpush1.msra.mxu0 %v42
  %858 = vmatprep.subr.mxu0 0.0
  %859 = vmatpush1.msra.mxu0 0.0
  %860 = vmatprep.subr.mxu0 0.0
  %861 = vmatpush1.msra.mxu0 0.0
  %862 = vmatprep.subr.mxu0 0.0
  %863 = vmatpush1.msra.mxu0 0.0
  %864 = vmatprep.subr.mxu0 0.0
  %865 = vmatpush1.msra.mxu0 0.0
  %866 = vmatprep.subr.mxu0 0.0
  %867 = vmatpush1.msra.mxu0 0.0
  %868 = vmatprep.subr.mxu0 0.0
  %869 = vmatpush1.msra.mxu0 0.0
  %870 = vmatprep.subr.mxu0 0.0
  %871 = vmatpush1.msra.mxu0 0.0
  %872 = vmatprep.subr.mxu0 0.0
  %873 = vmatpush1.msra.mxu0 0.0
  %874 = vmatprep.subr.mxu0 0.0
  %875 = vmatpush1.msra.mxu0 0.0
  %876 = vmatprep.subr.mxu0 0.0
  %877 = vmatpush1.msra.mxu0 0.0
  %878 = vmatprep.subr.mxu0 0.0
  %879 = vmatpush1.msra.mxu0 0.0
  %880 = vmatprep.subr.mxu0 0.0
  %881 = vmatpush1.msra.mxu0 0.0
  %882 = vmatprep.subr.mxu0 0.0
  %883 = vmatpush1.msra.mxu0 0.0
  %884 = vmatprep.subr.mxu0 0.0
  %885 = vmatpush1.msra.mxu0 0.0
  %886 = vmatprep.subr.mxu0 0.0
  %887 = vmatpush1.msra.mxu0 0.0
  %888 = vmatprep.subr.mxu0 0.0
  %889 = vmatpush1.msra.mxu0 0.0
  %890 = vmatprep.subr.mxu0 0.0
  %891 = vmatpush1.msra.mxu0 0.0
  %892 = vmatprep.subr.mxu0 0.0
  %893 = vmatpush1.msra.mxu0 0.0
  %894 = vmatprep.subr.mxu0 0.0
  %895 = vmatpush1.msra.mxu0 0.0
  %896 = vmatprep.subr.mxu0 0.0
  %897 = vmatpush1.msra.mxu0 0.0
  %898 = vmatprep.subr.mxu0 0.0
  %899 = vmatpush1.msra.mxu0 0.0
  %900 = vmatprep.subr.mxu0 0.0
  %901 = vmatpush1.msra.mxu0 0.0
  %902 = vmatprep.subr.mxu0 0.0
  %903 = vmatpush1.msra.mxu0 0.0
  %904 = vmatprep.subr.mxu0 0.0
  %905 = vmatpush1.msra.mxu0 0.0
  %906 = vmatprep.subr.mxu0 0.0
  %907 = vmatpush1.msra.mxu0 0.0
  %908 = vmatprep.subr.mxu0 0.0
  %909 = vmatpush1.msra.mxu0 0.0
  %910 = vmatprep.subr.mxu0 0.0
  %911 = vmatpush1.msra.mxu0 0.0
  %912 = vmatprep.subr.mxu0 0.0
  %913 = vmatpush1.msra.mxu0 0.0
  %914 = vmatprep.mubr.f32.mxu0 0.0
  %915 = vmatmul.mubr.f32.gmra.mrb[0].mxu0 %v678
  %v916 = vpop.f32.mrb[0].mxu0
  %v917 = vadd.f32 0.0, %v916
  %v918 = vpop.f32.mrb[0].mxu0
  %919 = vdwg.mxu0
  %v920 = vadd.f32 %v847, %v917
  %v921 = vxor.u32 %v920, 2147483648
  %v922 = vmul.f32 %v921, 1.442695
  %v923 = vpow.pop %v922
  %v924 = vadd.f32 %v923, 1.0
  %v925 = vrcp.pop %v924
  %v926 = vmul.f32 1.0, %v925
  %v927 = vtanh.pop %v920
  %v928 = vmul.f32 %v926, 0.0
  %930 = vrot.lane.b32.xlu0 %v927, 64
  %v931 = vpop.permute.xlu0 %930
  %v933 = vmul.f32 %v926, %v931
  %935 = vrot.lane.b32.xlu0 %v933, 32
  %v936 = vpop.permute.xlu0 %935
  %v938 = vadd.f32 %v928, %v936
  %v939 = vtanh.pop %v938
  %941 = vrot.lane.b32.xlu0 %v939, 64
  %v942 = vpop.permute.xlu0 %941
  %v944 = vmul.f32 %v926, %v942
  %946 = vrot.lane.b32.xlu0 %v944, 32
  %v947 = vpop.permute.xlu0 %946
  %vm949 = vcmask 253952
  %950 = vst.msk [vmem:[#allocation3] sm:$0x1] %vm949, %v947
  %v951 = vld [vmem:[#allocation2 + $0x1] sm:$0x1]
  %952 = vmatprep.subr.mxu0 0.0
  %953 = vmatpush1.msra.mxu0 %v31
  %954 = vmatprep.subr.mxu0 0.0
  %955 = vmatpush1.msra.mxu0 %v32
  %956 = vmatprep.subr.mxu0 0.0
  %957 = vmatpush1.msra.mxu0 %v33
  %958 = vmatprep.subr.mxu0 0.0
  %959 = vmatpush1.msra.mxu0 %v34
  %960 = vmatprep.subr.mxu0 0.0
  %961 = vmatpush1.msra.mxu0 0.0
  %962 = vmatprep.subr.mxu0 0.0
  %963 = vmatpush1.msra.mxu0 0.0
  %964 = vmatprep.subr.mxu0 0.0
  %965 = vmatpush1.msra.mxu0 0.0
  %966 = vmatprep.subr.mxu0 0.0
  %967 = vmatpush1.msra.mxu0 0.0
  %968 = vmatprep.subr.mxu0 0.0
  %969 = vmatpush1.msra.mxu0 0.0
  %970 = vmatprep.subr.mxu0 0.0
  %971 = vmatpush1.msra.mxu0 0.0
  %972 = vmatprep.subr.mxu0 0.0
  %973 = vmatpush1.msra.mxu0 0.0
  %974 = vmatprep.subr.mxu0 0.0
  %975 = vmatpush1.msra.mxu0 0.0
  %976 = vmatprep.subr.mxu0 0.0
  %977 = vmatpush1.msra.mxu0 0.0
  %978 = vmatprep.subr.mxu0 0.0
  %979 = vmatpush1.msra.mxu0 0.0
  %980 = vmatprep.subr.mxu0 0.0
  %981 = vmatpush1.msra.mxu0 0.0
  %982 = vmatprep.subr.mxu0 0.0
  %983 = vmatpush1.msra.mxu0 0.0
  %984 = vmatprep.subr.mxu0 0.0
  %985 = vmatpush1.msra.mxu0 0.0
  %986 = vmatprep.subr.mxu0 0.0
  %987 = vmatpush1.msra.mxu0 0.0
  %988 = vmatprep.subr.mxu0 0.0
  %989 = vmatpush1.msra.mxu0 0.0
  %990 = vmatprep.subr.mxu0 0.0
  %991 = vmatpush1.msra.mxu0 0.0
  %992 = vmatprep.subr.mxu0 0.0
  %993 = vmatpush1.msra.mxu0 0.0
  %994 = vmatprep.subr.mxu0 0.0
  %995 = vmatpush1.msra.mxu0 0.0
  %996 = vmatprep.subr.mxu0 0.0
  %997 = vmatpush1.msra.mxu0 0.0
  %998 = vmatprep.subr.mxu0 0.0
  %999 = vmatpush1.msra.mxu0 0.0
  %1000 = vmatprep.subr.mxu0 0.0
  %1001 = vmatpush1.msra.mxu0 0.0
  %1002 = vmatprep.subr.mxu0 0.0
  %1003 = vmatpush1.msra.mxu0 0.0
  %1004 = vmatprep.subr.mxu0 0.0
  %1005 = vmatpush1.msra.mxu0 0.0
  %1006 = vmatprep.subr.mxu0 0.0
  %1007 = vmatpush1.msra.mxu0 0.0
  %1008 = vmatprep.subr.mxu0 0.0
  %1009 = vmatpush1.msra.mxu0 0.0
  %1010 = vmatprep.subr.mxu0 0.0
  %1011 = vmatpush1.msra.mxu0 0.0
  %1012 = vmatprep.subr.mxu0 0.0
  %1013 = vmatpush1.msra.mxu0 0.0
  %1014 = vmatprep.subr.mxu0 0.0
  %1015 = vmatpush1.msra.mxu0 0.0
  %1016 = vmatprep.mubr.f32.mxu0 0.0
  %1017 = vmatmul.mubr.f32.gmra.mrb[0].mxu0 %v778
  %v1018 = vpop.f32.mrb[0].mxu0
  %v1019 = vadd.f32 0.0, %v1018
  %v1020 = vpop.f32.mrb[0].mxu0
  %1021 = vdwg.mxu0
  %v1022 = vadd.f32 %v951, %v1019
  %v1023 = vxor.u32 %v1022, 2147483648
  %v1024 = vmul.f32 %v1023, 1.442695
  %v1025 = vpow.pop %v1024
  %v1026 = vadd.f32 %v1025, 1.0
  %v1027 = vrcp.pop %v1026
  %v1028 = vmul.f32 1.0, %v1027
  %v1029 = vtanh.pop %v1022
  %v1030 = vmul.f32 %v1028, %v768
  %1032 = vrot.lane.b32.xlu0 %v1029, 64
  %v1033 = vpop.permute.xlu0 %1032
  %v1035 = vmul.f32 %v1028, %v1033
  %1037 = vrot.lane.b32.xlu0 %v1035, 32
  %v1038 = vpop.permute.xlu0 %1037
  %v1040 = vadd.f32 %v1030, %v1038
  %v1041 = vtanh.pop %v1040
  %1043 = vrot.lane.b32.xlu0 %v1041, 64
  %v1044 = vpop.permute.xlu0 %1043
  %v1046 = vmul.f32 %v1028, %v1044
  %1048 = vrot.lane.b32.xlu0 %v1046, 32
  %v1049 = vpop.permute.xlu0 %1048
  %v1050 = vsel %vm576, %v1049, 0
  %1052 = vmatprep.subr.mxu0 0.0
  %1053 = vmatpush1.msra.mxu0 %v35
  %1054 = vmatprep.subr.mxu0 0.0
  %1055 = vmatpush1.msra.mxu0 %v36
  %1056 = vmatprep.subr.mxu0 0.0
  %1057 = vmatpush1.msra.mxu0 %v37
  %1058 = vmatprep.subr.mxu0 0.0
  %1059 = vmatpush1.msra.mxu0 %v38
  %1060 = vmatprep.subr.mxu0 0.0
  %1061 = vmatpush1.msra.mxu0 0.0
  %1062 = vmatprep.subr.mxu0 0.0
  %1063 = vmatpush1.msra.mxu0 0.0
  %1064 = vmatprep.subr.mxu0 0.0
  %1065 = vmatpush1.msra.mxu0 0.0
  %1066 = vmatprep.subr.mxu0 0.0
  %1067 = vmatpush1.msra.mxu0 0.0
  %1068 = vmatprep.subr.mxu0 0.0
  %1069 = vmatpush1.msra.mxu0 0.0
  %1070 = vmatprep.subr.mxu0 0.0
  %1071 = vmatpush1.msra.mxu0 0.0
  %1072 = vmatprep.subr.mxu0 0.0
  %1073 = vmatpush1.msra.mxu0 0.0
  %1074 = vmatprep.subr.mxu0 0.0
  %1075 = vmatpush1.msra.mxu0 0.0
  %1076 = vmatprep.subr.mxu0 0.0
  %1077 = vmatpush1.msra.mxu0 0.0
  %1078 = vmatprep.subr.mxu0 0.0
  %1079 = vmatpush1.msra.mxu0 0.0
  %1080 = vmatprep.subr.mxu0 0.0
  %1081 = vmatpush1.msra.mxu0 0.0
  %1082 = vmatprep.subr.mxu0 0.0
  %1083 = vmatpush1.msra.mxu0 0.0
  %1084 = vmatprep.subr.mxu0 0.0
  %1085 = vmatpush1.msra.mxu0 0.0
  %1086 = vmatprep.subr.mxu0 0.0
  %1087 = vmatpush1.msra.mxu0 0.0
  %1088 = vmatprep.subr.mxu0 0.0
  %1089 = vmatpush1.msra.mxu0 0.0
  %1090 = vmatprep.subr.mxu0 0.0
  %1091 = vmatpush1.msra.mxu0 0.0
  %1092 = vmatprep.subr.mxu0 0.0
  %1093 = vmatpush1.msra.mxu0 0.0
  %1094 = vmatprep.subr.mxu0 0.0
  %1095 = vmatpush1.msra.mxu0 0.0
  %1096 = vmatprep.subr.mxu0 0.0
  %1097 = vmatpush1.msra.mxu0 0.0
  %1098 = vmatprep.subr.mxu0 0.0
  %1099 = vmatpush1.msra.mxu0 0.0
  %1100 = vmatprep.subr.mxu0 0.0
  %1101 = vmatpush1.msra.mxu0 0.0
  %1102 = vmatprep.subr.mxu0 0.0
  %1103 = vmatpush1.msra.mxu0 0.0
  %1104 = vmatprep.subr.mxu0 0.0
  %1105 = vmatpush1.msra.mxu0 0.0
  %1106 = vmatprep.subr.mxu0 0.0
  %1107 = vmatpush1.msra.mxu0 0.0
  %1108 = vmatprep.subr.mxu0 0.0
  %1109 = vmatpush1.msra.mxu0 0.0
  %1110 = vmatprep.subr.mxu0 0.0
  %1111 = vmatpush1.msra.mxu0 0.0
  %1112 = vmatprep.subr.mxu0 0.0
  %1113 = vmatpush1.msra.mxu0 0.0
  %1114 = vmatprep.subr.mxu0 0.0
  %1115 = vmatpush1.msra.mxu0 0.0
  %1116 = vmatprep.mubr.f32.mxu0 0.0
  %1117 = vmatmul.mubr.f32.gmra.mrb[0].mxu0 %v1050
  %v1118 = vpop.f32.mrb[0].mxu0
  %v1119 = vadd.f32 %v24, %v1118
  %v1120 = vpop.f32.mrb[0].mxu0
  %1121 = vdwg.mxu0
  %v1122 = vsel %vm576, %v947, 0
  %1124 = vmatprep.subr.mxu0 0.0
  %1125 = vmatpush1.msra.mxu0 %v39
  %1126 = vmatprep.subr.mxu0 0.0
  %1127 = vmatpush1.msra.mxu0 %v40
  %1128 = vmatprep.subr.mxu0 0.0
  %1129 = vmatpush1.msra.mxu0 %v41
  %1130 = vmatprep.subr.mxu0 0.0
  %1131 = vmatpush1.msra.mxu0 %v42
  %1132 = vmatprep.subr.mxu0 0.0
  %1133 = vmatpush1.msra.mxu0 0.0
  %1134 = vmatprep.subr.mxu0 0.0
  %1135 = vmatpush1.msra.mxu0 0.0
  %1136 = vmatprep.subr.mxu0 0.0
  %1137 = vmatpush1.msra.mxu0 0.0
  %1138 = vmatprep.subr.mxu0 0.0
  %1139 = vmatpush1.msra.mxu0 0.0
  %1140 = vmatprep.subr.mxu0 0.0
  %1141 = vmatpush1.msra.mxu0 0.0
  %1142 = vmatprep.subr.mxu0 0.0
  %1143 = vmatpush1.msra.mxu0 0.0
  %1144 = vmatprep.subr.mxu0 0.0
  %1145 = vmatpush1.msra.mxu0 0.0
  %1146 = vmatprep.subr.mxu0 0.0
  %1147 = vmatpush1.msra.mxu0 0.0
  %1148 = vmatprep.subr.mxu0 0.0
  %1149 = vmatpush1.msra.mxu0 0.0
  %1150 = vmatprep.subr.mxu0 0.0
  %1151 = vmatpush1.msra.mxu0 0.0
  %1152 = vmatprep.subr.mxu0 0.0
  %1153 = vmatpush1.msra.mxu0 0.0
  %1154 = vmatprep.subr.mxu0 0.0
  %1155 = vmatpush1.msra.mxu0 0.0
  %1156 = vmatprep.subr.mxu0 0.0
  %1157 = vmatpush1.msra.mxu0 0.0
  %1158 = vmatprep.subr.mxu0 0.0
  %1159 = vmatpush1.msra.mxu0 0.0
  %1160 = vmatprep.subr.mxu0 0.0
  %1161 = vmatpush1.msra.mxu0 0.0
  %1162 = vmatprep.subr.mxu0 0.0
  %1163 = vmatpush1.msra.mxu0 0.0
  %1164 = vmatprep.subr.mxu0 0.0
  %1165 = vmatpush1.msra.mxu0 0.0
  %1166 = vmatprep.subr.mxu0 0.0
  %1167 = vmatpush1.msra.mxu0 0.0
  %1168 = vmatprep.subr.mxu0 0.0
  %1169 = vmatpush1.msra.mxu0 0.0
  %1170 = vmatprep.subr.mxu0 0.0
  %1171 = vmatpush1.msra.mxu0 0.0
  %1172 = vmatprep.subr.mxu0 0.0
  %1173 = vmatpush1.msra.mxu0 0.0
  %1174 = vmatprep.subr.mxu0 0.0
  %1175 = vmatpush1.msra.mxu0 0.0
  %1176 = vmatprep.subr.mxu0 0.0
  %1177 = vmatpush1.msra.mxu0 0.0
  %1178 = vmatprep.subr.mxu0 0.0
  %1179 = vmatpush1.msra.mxu0 0.0
  %1180 = vmatprep.subr.mxu0 0.0
  %1181 = vmatpush1.msra.mxu0 0.0
  %1182 = vmatprep.subr.mxu0 0.0
  %1183 = vmatpush1.msra.mxu0 0.0
  %1184 = vmatprep.subr.mxu0 0.0
  %1185 = vmatpush1.msra.mxu0 0.0
  %1186 = vmatprep.subr.mxu0 0.0
  %1187 = vmatpush1.msra.mxu0 0.0
  %1188 = vmatprep.mubr.f32.mxu0 0.0
  %1189 = vmatmul.mubr.f32.gmra.mrb[0].mxu0 %v1122
  %v1190 = vpop.f32.mrb[0].mxu0
  %v1191 = vadd.f32 0.0, %v1190
  %v1192 = vpop.f32.mrb[0].mxu0
  %1193 = vdwg.mxu0
  %v1194 = vadd.f32 %v1119, %v1191
  %v1195 = vxor.u32 %v1194, 2147483648
  %v1196 = vmul.f32 %v1195, 1.442695
  %v1197 = vpow.pop %v1196
  %v1198 = vadd.f32 %v1197, 1.0
  %v1199 = vrcp.pop %v1198
  %v1200 = vmul.f32 1.0, %v1199
  %v1201 = vtanh.pop %v1194
  %v1202 = vmul.f32 %v1200, %v938
  %1204 = vrot.lane.b32.xlu0 %v1201, 64
  %v1205 = vpop.permute.xlu0 %1204
  %v1207 = vmul.f32 %v1200, %v1205
  %1209 = vrot.lane.b32.xlu0 %v1207, 32
  %v1210 = vpop.permute.xlu0 %1209
  %v1212 = vadd.f32 %v1202, %v1210
  %v1213 = vtanh.pop %v1212
  %1215 = vrot.lane.b32.xlu0 %v1213, 64
  %v1216 = vpop.permute.xlu0 %1215
  %v1218 = vmul.f32 %v1200, %v1216
  %1220 = vrot.lane.b32.xlu0 %v1218, 32
  %v1221 = vpop.permute.xlu0 %1220
  %1223 = vst.msk [vmem:[#allocation3 + $0x1] sm:$0x1] %vm949, %v1221
  %v1224 = vld [vmem:[#allocation2 + $0x2] sm:$0x1]
  %1225 = vmatprep.subr.mxu0 0.0
  %1226 = vmatpush1.msra.mxu0 %v31
  %1227 = vmatprep.subr.mxu0 0.0
  %1228 = vmatpush1.msra.mxu0 %v32
  %1229 = vmatprep.subr.mxu0 0.0
  %1230 = vmatpush1.msra.mxu0 %v33
  %1231 = vmatprep.subr.mxu0 0.0
  %1232 = vmatpush1.msra.mxu0 %v34
  %1233 = vmatprep.subr.mxu0 0.0
  %1234 = vmatpush1.msra.mxu0 0.0
  %1235 = vmatprep.subr.mxu0 0.0
  %1236 = vmatpush1.msra.mxu0 0.0
  %1237 = vmatprep.subr.mxu0 0.0
  %1238 = vmatpush1.msra.mxu0 0.0
  %1239 = vmatprep.subr.mxu0 0.0
  %1240 = vmatpush1.msra.mxu0 0.0
  %1241 = vmatprep.subr.mxu0 0.0
  %1242 = vmatpush1.msra.mxu0 0.0
  %1243 = vmatprep.subr.mxu0 0.0
  %1244 = vmatpush1.msra.mxu0 0.0
  %1245 = vmatprep.subr.mxu0 0.0
  %1246 = vmatpush1.msra.mxu0 0.0
  %1247 = vmatprep.subr.mxu0 0.0
  %1248 = vmatpush1.msra.mxu0 0.0
  %1249 = vmatprep.subr.mxu0 0.0
  %1250 = vmatpush1.msra.mxu0 0.0
  %1251 = vmatprep.subr.mxu0 0.0
  %1252 = vmatpush1.msra.mxu0 0.0
  %1253 = vmatprep.subr.mxu0 0.0
  %1254 = vmatpush1.msra.mxu0 0.0
  %1255 = vmatprep.subr.mxu0 0.0
  %1256 = vmatpush1.msra.mxu0 0.0
  %1257 = vmatprep.subr.mxu0 0.0
  %1258 = vmatpush1.msra.mxu0 0.0
  %1259 = vmatprep.subr.mxu0 0.0
  %1260 = vmatpush1.msra.mxu0 0.0
  %1261 = vmatprep.subr.mxu0 0.0
  %1262 = vmatpush1.msra.mxu0 0.0
  %1263 = vmatprep.subr.mxu0 0.0
  %1264 = vmatpush1.msra.mxu0 0.0
  %1265 = vmatprep.subr.mxu0 0.0
  %1266 = vmatpush1.msra.mxu0 0.0
  %1267 = vmatprep.subr.mxu0 0.0
  %1268 = vmatpush1.msra.mxu0 0.0
  %1269 = vmatprep.subr.mxu0 0.0
  %1270 = vmatpush1.msra.mxu0 0.0
  %1271 = vmatprep.subr.mxu0 0.0
  %1272 = vmatpush1.msra.mxu0 0.0
  %1273 = vmatprep.subr.mxu0 0.0
  %1274 = vmatpush1.msra.mxu0 0.0
  %1275 = vmatprep.subr.mxu0 0.0
  %1276 = vmatpush1.msra.mxu0 0.0
  %1277 = vmatprep.subr.mxu0 0.0
  %1278 = vmatpush1.msra.mxu0 0.0
  %1279 = vmatprep.subr.mxu0 0.0
  %1280 = vmatpush1.msra.mxu0 0.0
  %1281 = vmatprep.subr.mxu0 0.0
  %1282 = vmatpush1.msra.mxu0 0.0
  %1283 = vmatprep.subr.mxu0 0.0
  %1284 = vmatpush1.msra.mxu0 0.0
  %1285 = vmatprep.subr.mxu0 0.0
  %1286 = vmatpush1.msra.mxu0 0.0
  %1287 = vmatprep.subr.mxu0 0.0
  %1288 = vmatpush1.msra.mxu0 0.0
  %1289 = vmatprep.mubr.f32.mxu0 0.0
  %1290 = vmatmul.mubr.f32.gmra.mrb[0].mxu0 %v1050
  %v1291 = vpop.f32.mrb[0].mxu0
  %v1292 = vadd.f32 0.0, %v1291
  %v1293 = vpop.f32.mrb[0].mxu0
  %1294 = vdwg.mxu0
  %v1295 = vadd.f32 %v1224, %v1292
  %v1296 = vxor.u32 %v1295, 2147483648
  %v1297 = vmul.f32 %v1296, 1.442695
  %v1298 = vpow.pop %v1297
  %v1299 = vadd.f32 %v1298, 1.0
  %v1300 = vrcp.pop %v1299
  %v1301 = vmul.f32 1.0, %v1300
  %v1302 = vtanh.pop %v1295
  %v1303 = vmul.f32 %v1301, %v1040
  %1305 = vrot.lane.b32.xlu0 %v1302, 64
  %v1306 = vpop.permute.xlu0 %1305
  %v1308 = vmul.f32 %v1301, %v1306
  %1310 = vrot.lane.b32.xlu0 %v1308, 32
  %v1311 = vpop.permute.xlu0 %1310
  %v1313 = vadd.f32 %v1303, %v1311
  %v1314 = vtanh.pop %v1313
  %1316 = vrot.lane.b32.xlu0 %v1314, 64
  %v1317 = vpop.permute.xlu0 %1316
  %v1319 = vmul.f32 %v1301, %v1317
  %1321 = vrot.lane.b32.xlu0 %v1319, 32
  %v1322 = vpop.permute.xlu0 %1321
  %v1323 = vsel %vm576, %v1322, 0
  %1325 = vmatprep.subr.mxu0 0.0
  %1326 = vmatpush1.msra.mxu0 %v35
  %1327 = vmatprep.subr.mxu0 0.0
  %1328 = vmatpush1.msra.mxu0 %v36
  %1329 = vmatprep.subr.mxu0 0.0
  %1330 = vmatpush1.msra.mxu0 %v37
  %1331 = vmatprep.subr.mxu0 0.0
  %1332 = vmatpush1.msra.mxu0 %v38
  %1333 = vmatprep.subr.mxu0 0.0
  %1334 = vmatpush1.msra.mxu0 0.0
  %1335 = vmatprep.subr.mxu0 0.0
  %1336 = vmatpush1.msra.mxu0 0.0
  %1337 = vmatprep.subr.mxu0 0.0
  %1338 = vmatpush1.msra.mxu0 0.0
  %1339 = vmatprep.subr.mxu0 0.0
  %1340 = vmatpush1.msra.mxu0 0.0
  %1341 = vmatprep.subr.mxu0 0.0
  %1342 = vmatpush1.msra.mxu0 0.0
  %1343 = vmatprep.subr.mxu0 0.0
  %1344 = vmatpush1.msra.mxu0 0.0
  %1345 = vmatprep.subr.mxu0 0.0
  %1346 = vmatpush1.msra.mxu0 0.0
  %1347 = vmatprep.subr.mxu0 0.0
  %1348 = vmatpush1.msra.mxu0 0.0
  %1349 = vmatprep.subr.mxu0 0.0
  %1350 = vmatpush1.msra.mxu0 0.0
  %1351 = vmatprep.subr.mxu0 0.0
  %1352 = vmatpush1.msra.mxu0 0.0
  %1353 = vmatprep.subr.mxu0 0.0
  %1354 = vmatpush1.msra.mxu0 0.0
  %1355 = vmatprep.subr.mxu0 0.0
  %1356 = vmatpush1.msra.mxu0 0.0
  %1357 = vmatprep.subr.mxu0 0.0
  %1358 = vmatpush1.msra.mxu0 0.0
  %1359 = vmatprep.subr.mxu0 0.0
  %1360 = vmatpush1.msra.mxu0 0.0
  %1361 = vmatprep.subr.mxu0 0.0
  %1362 = vmatpush1.msra.mxu0 0.0
  %1363 = vmatprep.subr.mxu0 0.0
  %1364 = vmatpush1.msra.mxu0 0.0
  %1365 = vmatprep.subr.mxu0 0.0
  %1366 = vmatpush1.msra.mxu0 0.0
  %1367 = vmatprep.subr.mxu0 0.0
  %1368 = vmatpush1.msra.mxu0 0.0
  %1369 = vmatprep.subr.mxu0 0.0
  %1370 = vmatpush1.msra.mxu0 0.0
  %1371 = vmatprep.subr.mxu0 0.0
  %1372 = vmatpush1.msra.mxu0 0.0
  %1373 = vmatprep.subr.mxu0 0.0
  %1374 = vmatpush1.msra.mxu0 0.0
  %1375 = vmatprep.subr.mxu0 0.0
  %1376 = vmatpush1.msra.mxu0 0.0
  %1377 = vmatprep.subr.mxu0 0.0
  %1378 = vmatpush1.msra.mxu0 0.0
  %1379 = vmatprep.subr.mxu0 0.0
  %1380 = vmatpush1.msra.mxu0 0.0
  %1381 = vmatprep.subr.mxu0 0.0
  %1382 = vmatpush1.msra.mxu0 0.0
  %1383 = vmatprep.subr.mxu0 0.0
  %1384 = vmatpush1.msra.mxu0 0.0
  %1385 = vmatprep.subr.mxu0 0.0
  %1386 = vmatpush1.msra.mxu0 0.0
  %1387 = vmatprep.subr.mxu0 0.0
  %1388 = vmatpush1.msra.mxu0 0.0
  %1389 = vmatprep.mubr.f32.mxu0 0.0
  %1390 = vmatmul.mubr.f32.gmra.mrb[0].mxu0 %v1323
  %v1391 = vpop.f32.mrb[0].mxu0
  %v1392 = vadd.f32 %v24, %v1391
  %v1393 = vpop.f32.mrb[0].mxu0
  %1394 = vdwg.mxu0
  %v1395 = vsel %vm576, %v1221, 0
  %1397 = vmatprep.subr.mxu0 0.0
  %1398 = vmatpush1.msra.mxu0 %v39
  %1399 = vmatprep.subr.mxu0 0.0
  %1400 = vmatpush1.msra.mxu0 %v40
  %1401 = vmatprep.subr.mxu0 0.0
  %1402 = vmatpush1.msra.mxu0 %v41
  %1403 = vmatprep.subr.mxu0 0.0
  %1404 = vmatpush1.msra.mxu0 %v42
  %1405 = vmatprep.subr.mxu0 0.0
  %1406 = vmatpush1.msra.mxu0 0.0
  %1407 = vmatprep.subr.mxu0 0.0
  %1408 = vmatpush1.msra.mxu0 0.0
  %1409 = vmatprep.subr.mxu0 0.0
  %1410 = vmatpush1.msra.mxu0 0.0
  %1411 = vmatprep.subr.mxu0 0.0
  %1412 = vmatpush1.msra.mxu0 0.0
  %1413 = vmatprep.subr.mxu0 0.0
  %1414 = vmatpush1.msra.mxu0 0.0
  %1415 = vmatprep.subr.mxu0 0.0
  %1416 = vmatpush1.msra.mxu0 0.0
  %1417 = vmatprep.subr.mxu0 0.0
  %1418 = vmatpush1.msra.mxu0 0.0
  %1419 = vmatprep.subr.mxu0 0.0
  %1420 = vmatpush1.msra.mxu0 0.0
  %1421 = vmatprep.subr.mxu0 0.0
  %1422 = vmatpush1.msra.mxu0 0.0
  %1423 = vmatprep.subr.mxu0 0.0
  %1424 = vmatpush1.msra.mxu0 0.0
  %1425 = vmatprep.subr.mxu0 0.0
  %1426 = vmatpush1.msra.mxu0 0.0
  %1427 = vmatprep.subr.mxu0 0.0
  %1428 = vmatpush1.msra.mxu0 0.0
  %1429 = vmatprep.subr.mxu0 0.0
  %1430 = vmatpush1.msra.mxu0 0.0
  %1431 = vmatprep.subr.mxu0 0.0
  %1432 = vmatpush1.msra.mxu0 0.0
  %1433 = vmatprep.subr.mxu0 0.0
  %1434 = vmatpush1.msra.mxu0 0.0
  %1435 = vmatprep.subr.mxu0 0.0
  %1436 = vmatpush1.msra.mxu0 0.0
  %1437 = vmatprep.subr.mxu0 0.0
  %1438 = vmatpush1.msra.mxu0 0.0
  %1439 = vmatprep.subr.mxu0 0.0
  %1440 = vmatpush1.msra.mxu0 0.0
  %1441 = vmatprep.subr.mxu0 0.0
  %1442 = vmatpush1.msra.mxu0 0.0
  %1443 = vmatprep.subr.mxu0 0.0
  %1444 = vmatpush1.msra.mxu0 0.0
  %1445 = vmatprep.subr.mxu0 0.0
  %1446 = vmatpush1.msra.mxu0 0.0
  %1447 = vmatprep.subr.mxu0 0.0
  %1448 = vmatpush1.msra.mxu0 0.0
  %1449 = vmatprep.subr.mxu0 0.0
  %1450 = vmatpush1.msra.mxu0 0.0
  %1451 = vmatprep.subr.mxu0 0.0
  %1452 = vmatpush1.msra.mxu0 0.0
  %1453 = vmatprep.subr.mxu0 0.0
  %1454 = vmatpush1.msra.mxu0 0.0
  %1455 = vmatprep.subr.mxu0 0.0
  %1456 = vmatpush1.msra.mxu0 0.0
  %1457 = vmatprep.subr.mxu0 0.0
  %1458 = vmatpush1.msra.mxu0 0.0
  %1459 = vmatprep.subr.mxu0 0.0
  %1460 = vmatpush1.msra.mxu0 0.0
  %1461 = vmatprep.mubr.f32.mxu0 0.0
  %1462 = vmatmul.mubr.f32.gmra.mrb[0].mxu0 %v1395
  %v1463 = vpop.f32.mrb[0].mxu0
  %v1464 = vadd.f32 0.0, %v1463
  %v1465 = vpop.f32.mrb[0].mxu0
  %1466 = vdwg.mxu0
  %v1467 = vadd.f32 %v1392, %v1464
  %v1468 = vxor.u32 %v1467, 2147483648
  %v1469 = vmul.f32 %v1468, 1.442695
  %v1470 = vpow.pop %v1469
  %v1471 = vadd.f32 %v1470, 1.0
  %v1472 = vrcp.pop %v1471
  %v1473 = vmul.f32 1.0, %v1472
  %v1474 = vtanh.pop %v1467
  %v1475 = vmul.f32 %v1473, %v1212
  %1477 = vrot.lane.b32.xlu0 %v1474, 64
  %v1478 = vpop.permute.xlu0 %1477
  %v1480 = vmul.f32 %v1473, %v1478
  %1482 = vrot.lane.b32.xlu0 %v1480, 32
  %v1483 = vpop.permute.xlu0 %1482
  %v1485 = vadd.f32 %v1475, %v1483
  %v1486 = vtanh.pop %v1485
  %1488 = vrot.lane.b32.xlu0 %v1486, 64
  %v1489 = vpop.permute.xlu0 %1488
  %v1491 = vmul.f32 %v1473, %v1489
  %1493 = vrot.lane.b32.xlu0 %v1491, 32
  %v1494 = vpop.permute.xlu0 %1493
  %1496 = vst.msk [vmem:[#allocation3 + $0x2] sm:$0x1] %vm949, %v1494
  %v1497 = vld [vmem:[#allocation2 + $0x3] sm:$0x1]
  %1498 = vmatprep.subr.mxu0 0.0
  %1499 = vmatpush1.msra.mxu0 %v31
  %1500 = vmatprep.subr.mxu0 0.0
  %1501 = vmatpush1.msra.mxu0 %v32
  %1502 = vmatprep.subr.mxu0 0.0
  %1503 = vmatpush1.msra.mxu0 %v33
  %1504 = vmatprep.subr.mxu0 0.0
  %1505 = vmatpush1.msra.mxu0 %v34
  %1506 = vmatprep.subr.mxu0 0.0
  %1507 = vmatpush1.msra.mxu0 0.0
  %1508 = vmatprep.subr.mxu0 0.0
  %1509 = vmatpush1.msra.mxu0 0.0
  %1510 = vmatprep.subr.mxu0 0.0
  %1511 = vmatpush1.msra.mxu0 0.0
  %1512 = vmatprep.subr.mxu0 0.0
  %1513 = vmatpush1.msra.mxu0 0.0
  %1514 = vmatprep.subr.mxu0 0.0
  %1515 = vmatpush1.msra.mxu0 0.0
  %1516 = vmatprep.subr.mxu0 0.0
  %1517 = vmatpush1.msra.mxu0 0.0
  %1518 = vmatprep.subr.mxu0 0.0
  %1519 = vmatpush1.msra.mxu0 0.0
  %1520 = vmatprep.subr.mxu0 0.0
  %1521 = vmatpush1.msra.mxu0 0.0
  %1522 = vmatprep.subr.mxu0 0.0
  %1523 = vmatpush1.msra.mxu0 0.0
  %1524 = vmatprep.subr.mxu0 0.0
  %1525 = vmatpush1.msra.mxu0 0.0
  %1526 = vmatprep.subr.mxu0 0.0
  %1527 = vmatpush1.msra.mxu0 0.0
  %1528 = vmatprep.subr.mxu0 0.0
  %1529 = vmatpush1.msra.mxu0 0.0
  %1530 = vmatprep.subr.mxu0 0.0
  %1531 = vmatpush1.msra.mxu0 0.0
  %1532 = vmatprep.subr.mxu0 0.0
  %1533 = vmatpush1.msra.mxu0 0.0
  %1534 = vmatprep.subr.mxu0 0.0
  %1535 = vmatpush1.msra.mxu0 0.0
  %1536 = vmatprep.subr.mxu0 0.0
  %1537 = vmatpush1.msra.mxu0 0.0
  %1538 = vmatprep.subr.mxu0 0.0
  %1539 = vmatpush1.msra.mxu0 0.0
  %1540 = vmatprep.subr.mxu0 0.0
  %1541 = vmatpush1.msra.mxu0 0.0
  %1542 = vmatprep.subr.mxu0 0.0
  %1543 = vmatpush1.msra.mxu0 0.0
  %1544 = vmatprep.subr.mxu0 0.0
  %1545 = vmatpush1.msra.mxu0 0.0
  %1546 = vmatprep.subr.mxu0 0.0
  %1547 = vmatpush1.msra.mxu0 0.0
  %1548 = vmatprep.subr.mxu0 0.0
  %1549 = vmatpush1.msra.mxu0 0.0
  %1550 = vmatprep.subr.mxu0 0.0
  %1551 = vmatpush1.msra.mxu0 0.0
  %1552 = vmatprep.subr.mxu0 0.0
  %1553 = vmatpush1.msra.mxu0 0.0
  %1554 = vmatprep.subr.mxu0 0.0
  %1555 = vmatpush1.msra.mxu0 0.0
  %1556 = vmatprep.subr.mxu0 0.0
  %1557 = vmatpush1.msra.mxu0 0.0
  %1558 = vmatprep.subr.mxu0 0.0
  %1559 = vmatpush1.msra.mxu0 0.0
  %1560 = vmatprep.subr.mxu0 0.0
  %1561 = vmatpush1.msra.mxu0 0.0
  %1562 = vmatprep.mubr.f32.mxu0 0.0
  %1563 = vmatmul.mubr.f32.gmra.mrb[0].mxu0 %v1323
  %v1564 = vpop.f32.mrb[0].mxu0
  %v1565 = vadd.f32 0.0, %v1564
  %v1566 = vpop.f32.mrb[0].mxu0
  %1567 = vdwg.mxu0
  %v1568 = vadd.f32 %v1497, %v1565
  %v1569 = vxor.u32 %v1568, 2147483648
  %v1570 = vmul.f32 %v1569, 1.442695
  %v1571 = vpow.pop %v1570
  %v1572 = vadd.f32 %v1571, 1.0
  %v1573 = vrcp.pop %v1572
  %v1574 = vmul.f32 1.0, %v1573
  %v1575 = vtanh.pop %v1568
  %v1576 = vmul.f32 %v1574, %v1313
  %1578 = vrot.lane.b32.xlu0 %v1575, 64
  %v1579 = vpop.permute.xlu0 %1578
  %v1581 = vmul.f32 %v1574, %v1579
  %1583 = vrot.lane.b32.xlu0 %v1581, 32
  %v1584 = vpop.permute.xlu0 %1583
  %v1586 = vadd.f32 %v1576, %v1584
  %v1587 = vtanh.pop %v1586
  %1589 = vrot.lane.b32.xlu0 %v1587, 64
  %v1590 = vpop.permute.xlu0 %1589
  %v1592 = vmul.f32 %v1574, %v1590
  %1594 = vrot.lane.b32.xlu0 %v1592, 32
  %v1595 = vpop.permute.xlu0 %1594
  %v1596 = vsel %vm576, %v1595, 0
  %1598 = vmatprep.subr.mxu0 0.0
  %1599 = vmatpush1.msra.mxu0 %v35
  %1600 = vmatprep.subr.mxu0 0.0
  %1601 = vmatpush1.msra.mxu0 %v36
  %1602 = vmatprep.subr.mxu0 0.0
  %1603 = vmatpush1.msra.mxu0 %v37
  %1604 = vmatprep.subr.mxu0 0.0
  %1605 = vmatpush1.msra.mxu0 %v38
  %1606 = vmatprep.subr.mxu0 0.0
  %1607 = vmatpush1.msra.mxu0 0.0
  %1608 = vmatprep.subr.mxu0 0.0
  %1609 = vmatpush1.msra.mxu0 0.0
  %1610 = vmatprep.subr.mxu0 0.0
  %1611 = vmatpush1.msra.mxu0 0.0
  %1612 = vmatprep.subr.mxu0 0.0
  %1613 = vmatpush1.msra.mxu0 0.0
  %1614 = vmatprep.subr.mxu0 0.0
  %1615 = vmatpush1.msra.mxu0 0.0
  %1616 = vmatprep.subr.mxu0 0.0
  %1617 = vmatpush1.msra.mxu0 0.0
  %1618 = vmatprep.subr.mxu0 0.0
  %1619 = vmatpush1.msra.mxu0 0.0
  %1620 = vmatprep.subr.mxu0 0.0
  %1621 = vmatpush1.msra.mxu0 0.0
  %1622 = vmatprep.subr.mxu0 0.0
  %1623 = vmatpush1.msra.mxu0 0.0
  %1624 = vmatprep.subr.mxu0 0.0
  %1625 = vmatpush1.msra.mxu0 0.0
  %1626 = vmatprep.subr.mxu0 0.0
  %1627 = vmatpush1.msra.mxu0 0.0
  %1628 = vmatprep.subr.mxu0 0.0
  %1629 = vmatpush1.msra.mxu0 0.0
  %1630 = vmatprep.subr.mxu0 0.0
  %1631 = vmatpush1.msra.mxu0 0.0
  %1632 = vmatprep.subr.mxu0 0.0
  %1633 = vmatpush1.msra.mxu0 0.0
  %1634 = vmatprep.subr.mxu0 0.0
  %1635 = vmatpush1.msra.mxu0 0.0
  %1636 = vmatprep.subr.mxu0 0.0
  %1637 = vmatpush1.msra.mxu0 0.0
  %1638 = vmatprep.subr.mxu0 0.0
  %1639 = vmatpush1.msra.mxu0 0.0
  %1640 = vmatprep.subr.mxu0 0.0
  %1641 = vmatpush1.msra.mxu0 0.0
  %1642 = vmatprep.subr.mxu0 0.0
  %1643 = vmatpush1.msra.mxu0 0.0
  %1644 = vmatprep.subr.mxu0 0.0
  %1645 = vmatpush1.msra.mxu0 0.0
  %1646 = vmatprep.subr.mxu0 0.0
  %1647 = vmatpush1.msra.mxu0 0.0
  %1648 = vmatprep.subr.mxu0 0.0
  %1649 = vmatpush1.msra.mxu0 0.0
  %1650 = vmatprep.subr.mxu0 0.0
  %1651 = vmatpush1.msra.mxu0 0.0
  %1652 = vmatprep.subr.mxu0 0.0
  %1653 = vmatpush1.msra.mxu0 0.0
  %1654 = vmatprep.subr.mxu0 0.0
  %1655 = vmatpush1.msra.mxu0 0.0
  %1656 = vmatprep.subr.mxu0 0.0
  %1657 = vmatpush1.msra.mxu0 0.0
  %1658 = vmatprep.subr.mxu0 0.0
  %1659 = vmatpush1.msra.mxu0 0.0
  %1660 = vmatprep.subr.mxu0 0.0
  %1661 = vmatpush1.msra.mxu0 0.0
  %1662 = vmatprep.mubr.f32.mxu0 0.0
  %1663 = vmatmul.mubr.f32.gmra.mrb[0].mxu0 %v1596
  %v1664 = vpop.f32.mrb[0].mxu0
  %v1665 = vadd.f32 %v24, %v1664
  %v1666 = vpop.f32.mrb[0].mxu0
  %1667 = vdwg.mxu0
  %v1668 = vsel %vm576, %v1494, 0
  %1670 = vmatprep.subr.mxu0 0.0
  %1671 = vmatpush1.msra.mxu0 %v39
  %1672 = vmatprep.subr.mxu0 0.0
  %1673 = vmatpush1.msra.mxu0 %v40
  %1674 = vmatprep.subr.mxu0 0.0
  %1675 = vmatpush1.msra.mxu0 %v41
  %1676 = vmatprep.subr.mxu0 0.0
  %1677 = vmatpush1.msra.mxu0 %v42
  %1678 = vmatprep.subr.mxu0 0.0
  %1679 = vmatpush1.msra.mxu0 0.0
  %1680 = vmatprep.subr.mxu0 0.0
  %1681 = vmatpush1.msra.mxu0 0.0
  %1682 = vmatprep.subr.mxu0 0.0
  %1683 = vmatpush1.msra.mxu0 0.0
  %1684 = vmatprep.subr.mxu0 0.0
  %1685 = vmatpush1.msra.mxu0 0.0
  %1686 = vmatprep.subr.mxu0 0.0
  %1687 = vmatpush1.msra.mxu0 0.0
  %1688 = vmatprep.subr.mxu0 0.0
  %1689 = vmatpush1.msra.mxu0 0.0
  %1690 = vmatprep.subr.mxu0 0.0
  %1691 = vmatpush1.msra.mxu0 0.0
  %1692 = vmatprep.subr.mxu0 0.0
  %1693 = vmatpush1.msra.mxu0 0.0
  %1694 = vmatprep.subr.mxu0 0.0
  %1695 = vmatpush1.msra.mxu0 0.0
  %1696 = vmatprep.subr.mxu0 0.0
  %1697 = vmatpush1.msra.mxu0 0.0
  %1698 = vmatprep.subr.mxu0 0.0
  %1699 = vmatpush1.msra.mxu0 0.0
  %1700 = vmatprep.subr.mxu0 0.0
  %1701 = vmatpush1.msra.mxu0 0.0
  %1702 = vmatprep.subr.mxu0 0.0
  %1703 = vmatpush1.msra.mxu0 0.0
  %1704 = vmatprep.subr.mxu0 0.0
  %1705 = vmatpush1.msra.mxu0 0.0
  %1706 = vmatprep.subr.mxu0 0.0
  %1707 = vmatpush1.msra.mxu0 0.0
  %1708 = vmatprep.subr.mxu0 0.0
  %1709 = vmatpush1.msra.mxu0 0.0
  %1710 = vmatprep.subr.mxu0 0.0
  %1711 = vmatpush1.msra.mxu0 0.0
  %1712 = vmatprep.subr.mxu0 0.0
  %1713 = vmatpush1.msra.mxu0 0.0
  %1714 = vmatprep.subr.mxu0 0.0
  %1715 = vmatpush1.msra.mxu0 0.0
  %1716 = vmatprep.subr.mxu0 0.0
  %1717 = vmatpush1.msra.mxu0 0.0
  %1718 = vmatprep.subr.mxu0 0.0
  %1719 = vmatpush1.msra.mxu0 0.0
  %1720 = vmatprep.subr.mxu0 0.0
  %1721 = vmatpush1.msra.mxu0 0.0
  %1722 = vmatprep.subr.mxu0 0.0
  %1723 = vmatpush1.msra.mxu0 0.0
  %1724 = vmatprep.subr.mxu0 0.0
  %1725 = vmatpush1.msra.mxu0 0.0
  %1726 = vmatprep.subr.mxu0 0.0
  %1727 = vmatpush1.msra.mxu0 0.0
  %1728 = vmatprep.subr.mxu0 0.0
  %1729 = vmatpush1.msra.mxu0 0.0
  %1730 = vmatprep.subr.mxu0 0.0
  %1731 = vmatpush1.msra.mxu0 0.0
  %1732 = vmatprep.subr.mxu0 0.0
  %1733 = vmatpush1.msra.mxu0 0.0
  %1734 = vmatprep.mubr.f32.mxu0 0.0
  %1735 = vmatmul.mubr.f32.gmra.mrb[0].mxu0 %v1668
  %v1736 = vpop.f32.mrb[0].mxu0
  %v1737 = vadd.f32 0.0, %v1736
  %v1738 = vpop.f32.mrb[0].mxu0
  %1739 = vdwg.mxu0
  %v1740 = vadd.f32 %v1665, %v1737
  %v1741 = vxor.u32 %v1740, 2147483648
  %v1742 = vmul.f32 %v1741, 1.442695
  %v1743 = vpow.pop %v1742
  %v1744 = vadd.f32 %v1743, 1.0
  %v1745 = vrcp.pop %v1744
  %v1746 = vmul.f32 1.0, %v1745
  %v1747 = vtanh.pop %v1740
  %v1748 = vmul.f32 %v1746, %v1485
  %1750 = vrot.lane.b32.xlu0 %v1747, 64
  %v1751 = vpop.permute.xlu0 %1750
  %v1753 = vmul.f32 %v1746, %v1751
  %1755 = vrot.lane.b32.xlu0 %v1753, 32
  %v1756 = vpop.permute.xlu0 %1755
  %v1758 = vadd.f32 %v1748, %v1756
  %v1759 = vtanh.pop %v1758
  %1761 = vrot.lane.b32.xlu0 %v1759, 64
  %v1762 = vpop.permute.xlu0 %1761
  %v1764 = vmul.f32 %v1746, %v1762
  %1766 = vrot.lane.b32.xlu0 %v1764, 32
  %v1767 = vpop.permute.xlu0 %1766
  %1769 = vst.msk [vmem:[#allocation3 + $0x3] sm:$0x1] %vm949, %v1767
  %v1770 = vld [vmem:[#allocation2 + $0x4] sm:$0x1]
  %1771 = vmatprep.subr.mxu0 0.0
  %1772 = vmatpush1.msra.mxu0 %v31
  %1773 = vmatprep.subr.mxu0 0.0
  %1774 = vmatpush1.msra.mxu0 %v32
  %1775 = vmatprep.subr.mxu0 0.0
  %1776 = vmatpush1.msra.mxu0 %v33
  %1777 = vmatprep.subr.mxu0 0.0
  %1778 = vmatpush1.msra.mxu0 %v34
  %1779 = vmatprep.subr.mxu0 0.0
  %1780 = vmatpush1.msra.mxu0 0.0
  %1781 = vmatprep.subr.mxu0 0.0
  %1782 = vmatpush1.msra.mxu0 0.0
  %1783 = vmatprep.subr.mxu0 0.0
  %1784 = vmatpush1.msra.mxu0 0.0
  %1785 = vmatprep.subr.mxu0 0.0
  %1786 = vmatpush1.msra.mxu0 0.0
  %1787 = vmatprep.subr.mxu0 0.0
  %1788 = vmatpush1.msra.mxu0 0.0
  %1789 = vmatprep.subr.mxu0 0.0
  %1790 = vmatpush1.msra.mxu0 0.0
  %1791 = vmatprep.subr.mxu0 0.0
  %1792 = vmatpush1.msra.mxu0 0.0
  %1793 = vmatprep.subr.mxu0 0.0
  %1794 = vmatpush1.msra.mxu0 0.0
  %1795 = vmatprep.subr.mxu0 0.0
  %1796 = vmatpush1.msra.mxu0 0.0
  %1797 = vmatprep.subr.mxu0 0.0
  %1798 = vmatpush1.msra.mxu0 0.0
  %1799 = vmatprep.subr.mxu0 0.0
  %1800 = vmatpush1.msra.mxu0 0.0
  %1801 = vmatprep.subr.mxu0 0.0
  %1802 = vmatpush1.msra.mxu0 0.0
  %1803 = vmatprep.subr.mxu0 0.0
  %1804 = vmatpush1.msra.mxu0 0.0
  %1805 = vmatprep.subr.mxu0 0.0
  %1806 = vmatpush1.msra.mxu0 0.0
  %1807 = vmatprep.subr.mxu0 0.0
  %1808 = vmatpush1.msra.mxu0 0.0
  %1809 = vmatprep.subr.mxu0 0.0
  %1810 = vmatpush1.msra.mxu0 0.0
  %1811 = vmatprep.subr.mxu0 0.0
  %1812 = vmatpush1.msra.mxu0 0.0
  %1813 = vmatprep.subr.mxu0 0.0
  %1814 = vmatpush1.msra.mxu0 0.0
  %1815 = vmatprep.subr.mxu0 0.0
  %1816 = vmatpush1.msra.mxu0 0.0
  %1817 = vmatprep.subr.mxu0 0.0
  %1818 = vmatpush1.msra.mxu0 0.0
  %1819 = vmatprep.subr.mxu0 0.0
  %1820 = vmatpush1.msra.mxu0 0.0
  %1821 = vmatprep.subr.mxu0 0.0
  %1822 = vmatpush1.msra.mxu0 0.0
  %1823 = vmatprep.subr.mxu0 0.0
  %1824 = vmatpush1.msra.mxu0 0.0
  %1825 = vmatprep.subr.mxu0 0.0
  %1826 = vmatpush1.msra.mxu0 0.0
  %1827 = vmatprep.subr.mxu0 0.0
  %1828 = vmatpush1.msra.mxu0 0.0
  %1829 = vmatprep.subr.mxu0 0.0
  %1830 = vmatpush1.msra.mxu0 0.0
  %1831 = vmatprep.subr.mxu0 0.0
  %1832 = vmatpush1.msra.mxu0 0.0
  %1833 = vmatprep.subr.mxu0 0.0
  %1834 = vmatpush1.msra.mxu0 0.0
  %1835 = vmatprep.mubr.f32.mxu0 0.0
  %1836 = vmatmul.mubr.f32.gmra.mrb[0].mxu0 %v1596
  %v1837 = vpop.f32.mrb[0].mxu0
  %v1838 = vadd.f32 0.0, %v1837
  %v1839 = vpop.f32.mrb[0].mxu0
  %1840 = vdwg.mxu0
  %v1841 = vadd.f32 %v1770, %v1838
  %v1842 = vxor.u32 %v1841, 2147483648
  %v1843 = vmul.f32 %v1842, 1.442695
  %v1844 = vpow.pop %v1843
  %v1845 = vadd.f32 %v1844, 1.0
  %v1846 = vrcp.pop %v1845
  %v1847 = vmul.f32 1.0, %v1846
  %v1848 = vtanh.pop %v1841
  %v1849 = vmul.f32 %v1847, %v1586
  %1851 = vrot.lane.b32.xlu0 %v1848, 64
  %v1852 = vpop.permute.xlu0 %1851
  %v1854 = vmul.f32 %v1847, %v1852
  %1856 = vrot.lane.b32.xlu0 %v1854, 32
  %v1857 = vpop.permute.xlu0 %1856
  %v1859 = vadd.f32 %v1849, %v1857
  %v1860 = vtanh.pop %v1859
  %1862 = vrot.lane.b32.xlu0 %v1860, 64
  %v1863 = vpop.permute.xlu0 %1862
  %v1865 = vmul.f32 %v1847, %v1863
  %1867 = vrot.lane.b32.xlu0 %v1865, 32
  %v1868 = vpop.permute.xlu0 %1867
  %v1869 = vsel %vm576, %v1868, 0
  %1871 = vmatprep.subr.mxu0 0.0
  %1872 = vmatpush1.msra.mxu0 %v35
  %1873 = vmatprep.subr.mxu0 0.0
  %1874 = vmatpush1.msra.mxu0 %v36
  %1875 = vmatprep.subr.mxu0 0.0
  %1876 = vmatpush1.msra.mxu0 %v37
  %1877 = vmatprep.subr.mxu0 0.0
  %1878 = vmatpush1.msra.mxu0 %v38
  %1879 = vmatprep.subr.mxu0 0.0
  %1880 = vmatpush1.msra.mxu0 0.0
  %1881 = vmatprep.subr.mxu0 0.0
  %1882 = vmatpush1.msra.mxu0 0.0
  %1883 = vmatprep.subr.mxu0 0.0
  %1884 = vmatpush1.msra.mxu0 0.0
  %1885 = vmatprep.subr.mxu0 0.0
  %1886 = vmatpush1.msra.mxu0 0.0
  %1887 = vmatprep.subr.mxu0 0.0
  %1888 = vmatpush1.msra.mxu0 0.0
  %1889 = vmatprep.subr.mxu0 0.0
  %1890 = vmatpush1.msra.mxu0 0.0
  %1891 = vmatprep.subr.mxu0 0.0
  %1892 = vmatpush1.msra.mxu0 0.0
  %1893 = vmatprep.subr.mxu0 0.0
  %1894 = vmatpush1.msra.mxu0 0.0
  %1895 = vmatprep.subr.mxu0 0.0
  %1896 = vmatpush1.msra.mxu0 0.0
  %1897 = vmatprep.subr.mxu0 0.0
  %1898 = vmatpush1.msra.mxu0 0.0
  %1899 = vmatprep.subr.mxu0 0.0
  %1900 = vmatpush1.msra.mxu0 0.0
  %1901 = vmatprep.subr.mxu0 0.0
  %1902 = vmatpush1.msra.mxu0 0.0
  %1903 = vmatprep.subr.mxu0 0.0
  %1904 = vmatpush1.msra.mxu0 0.0
  %1905 = vmatprep.subr.mxu0 0.0
  %1906 = vmatpush1.msra.mxu0 0.0
  %1907 = vmatprep.subr.mxu0 0.0
  %1908 = vmatpush1.msra.mxu0 0.0
  %1909 = vmatprep.subr.mxu0 0.0
  %1910 = vmatpush1.msra.mxu0 0.0
  %1911 = vmatprep.subr.mxu0 0.0
  %1912 = vmatpush1.msra.mxu0 0.0
  %1913 = vmatprep.subr.mxu0 0.0
  %1914 = vmatpush1.msra.mxu0 0.0
  %1915 = vmatprep.subr.mxu0 0.0
  %1916 = vmatpush1.msra.mxu0 0.0
  %1917 = vmatprep.subr.mxu0 0.0
  %1918 = vmatpush1.msra.mxu0 0.0
  %1919 = vmatprep.subr.mxu0 0.0
  %1920 = vmatpush1.msra.mxu0 0.0
  %1921 = vmatprep.subr.mxu0 0.0
  %1922 = vmatpush1.msra.mxu0 0.0
  %1923 = vmatprep.subr.mxu0 0.0
  %1924 = vmatpush1.msra.mxu0 0.0
  %1925 = vmatprep.subr.mxu0 0.0
  %1926 = vmatpush1.msra.mxu0 0.0
  %1927 = vmatprep.subr.mxu0 0.0
  %1928 = vmatpush1.msra.mxu0 0.0
  %1929 = vmatprep.subr.mxu0 0.0
  %1930 = vmatpush1.msra.mxu0 0.0
  %1931 = vmatprep.subr.mxu0 0.0
  %1932 = vmatpush1.msra.mxu0 0.0
  %1933 = vmatprep.subr.mxu0 0.0
  %1934 = vmatpush1.msra.mxu0 0.0
  %1935 = vmatprep.mubr.f32.mxu0 0.0
  %1936 = vmatmul.mubr.f32.gmra.mrb[0].mxu0 %v1869
  %v1937 = vpop.f32.mrb[0].mxu0
  %v1938 = vadd.f32 %v24, %v1937
  %v1939 = vpop.f32.mrb[0].mxu0
  %1940 = vdwg.mxu0
  %v1941 = vsel %vm576, %v1767, 0
  %1943 = vmatprep.subr.mxu0 0.0
  %1944 = vmatpush1.msra.mxu0 %v39
  %1945 = vmatprep.subr.mxu0 0.0
  %1946 = vmatpush1.msra.mxu0 %v40
  %1947 = vmatprep.subr.mxu0 0.0
  %1948 = vmatpush1.msra.mxu0 %v41
  %1949 = vmatprep.subr.mxu0 0.0
  %1950 = vmatpush1.msra.mxu0 %v42
  %1951 = vmatprep.subr.mxu0 0.0
  %1952 = vmatpush1.msra.mxu0 0.0
  %1953 = vmatprep.subr.mxu0 0.0
  %1954 = vmatpush1.msra.mxu0 0.0
  %1955 = vmatprep.subr.mxu0 0.0
  %1956 = vmatpush1.msra.mxu0 0.0
  %1957 = vmatprep.subr.mxu0 0.0
  %1958 = vmatpush1.msra.mxu0 0.0
  %1959 = vmatprep.subr.mxu0 0.0
  %1960 = vmatpush1.msra.mxu0 0.0
  %1961 = vmatprep.subr.mxu0 0.0
  %1962 = vmatpush1.msra.mxu0 0.0
  %1963 = vmatprep.subr.mxu0 0.0
  %1964 = vmatpush1.msra.mxu0 0.0
  %1965 = vmatprep.subr.mxu0 0.0
  %1966 = vmatpush1.msra.mxu0 0.0
  %1967 = vmatprep.subr.mxu0 0.0
  %1968 = vmatpush1.msra.mxu0 0.0
  %1969 = vmatprep.subr.mxu0 0.0
  %1970 = vmatpush1.msra.mxu0 0.0
  %1971 = vmatprep.subr.mxu0 0.0
  %1972 = vmatpush1.msra.mxu0 0.0
  %1973 = vmatprep.subr.mxu0 0.0
  %1974 = vmatpush1.msra.mxu0 0.0
  %1975 = vmatprep.subr.mxu0 0.0
  %1976 = vmatpush1.msra.mxu0 0.0
  %1977 = vmatprep.subr.mxu0 0.0
  %1978 = vmatpush1.msra.mxu0 0.0
  %1979 = vmatprep.subr.mxu0 0.0
  %1980 = vmatpush1.msra.mxu0 0.0
  %1981 = vmatprep.subr.mxu0 0.0
  %1982 = vmatpush1.msra.mxu0 0.0
  %1983 = vmatprep.subr.mxu0 0.0
  %1984 = vmatpush1.msra.mxu0 0.0
  %1985 = vmatprep.subr.mxu0 0.0
  %1986 = vmatpush1.msra.mxu0 0.0
  %1987 = vmatprep.subr.mxu0 0.0
  %1988 = vmatpush1.msra.mxu0 0.0
  %1989 = vmatprep.subr.mxu0 0.0
  %1990 = vmatpush1.msra.mxu0 0.0
  %1991 = vmatprep.subr.mxu0 0.0
  %1992 = vmatpush1.msra.mxu0 0.0
  %1993 = vmatprep.subr.mxu0 0.0
  %1994 = vmatpush1.msra.mxu0 0.0
  %1995 = vmatprep.subr.mxu0 0.0
  %1996 = vmatpush1.msra.mxu0 0.0
  %1997 = vmatprep.subr.mxu0 0.0
  %1998 = vmatpush1.msra.mxu0 0.0
  %1999 = vmatprep.subr.mxu0 0.0
  %2000 = vmatpush1.msra.mxu0 0.0
  %2001 = vmatprep.subr.mxu0 0.0
  %2002 = vmatpush1.msra.mxu0 0.0
  %2003 = vmatprep.subr.mxu0 0.0
  %2004 = vmatpush1.msra.mxu0 0.0
  %2005 = vmatprep.subr.mxu0 0.0
  %2006 = vmatpush1.msra.mxu0 0.0
  %2007 = vmatprep.mubr.f32.mxu0 0.0
  %2008 = vmatmul.mubr.f32.gmra.mrb[0].mxu0 %v1941
  %v2009 = vpop.f32.mrb[0].mxu0
  %v2010 = vadd.f32 0.0, %v2009
  %v2011 = vpop.f32.mrb[0].mxu0
  %2012 = vdwg.mxu0
  %v2013 = vadd.f32 %v1938, %v2010
  %v2014 = vxor.u32 %v2013, 2147483648
  %v2015 = vmul.f32 %v2014, 1.442695
  %v2016 = vpow.pop %v2015
  %v2017 = vadd.f32 %v2016, 1.0
  %v2018 = vrcp.pop %v2017
  %v2019 = vmul.f32 1.0, %v2018
  %v2020 = vtanh.pop %v2013
  %v2021 = vmul.f32 %v2019, %v1758
  %2023 = vrot.lane.b32.xlu0 %v2020, 64
  %v2024 = vpop.permute.xlu0 %2023
  %v2026 = vmul.f32 %v2019, %v2024
  %2028 = vrot.lane.b32.xlu0 %v2026, 32
  %v2029 = vpop.permute.xlu0 %2028
  %v2031 = vadd.f32 %v2021, %v2029
  %v2032 = vtanh.pop %v2031
  %2034 = vrot.lane.b32.xlu0 %v2032, 64
  %v2035 = vpop.permute.xlu0 %2034
  %v2037 = vmul.f32 %v2019, %v2035
  %2039 = vrot.lane.b32.xlu0 %v2037, 32
  %v2040 = vpop.permute.xlu0 %2039
  %2042 = vst.msk [vmem:[#allocation3 + $0x4] sm:$0x1] %vm949, %v2040
  %v2043 = vld [vmem:[#allocation2 + $0x5] sm:$0x1]
  %2044 = vmatprep.subr.mxu0 0.0
  %2045 = vmatpush1.msra.mxu0 %v31
  %2046 = vmatprep.subr.mxu0 0.0
  %2047 = vmatpush1.msra.mxu0 %v32
  %2048 = vmatprep.subr.mxu0 0.0
  %2049 = vmatpush1.msra.mxu0 %v33
  %2050 = vmatprep.subr.mxu0 0.0
  %2051 = vmatpush1.msra.mxu0 %v34
  %2052 = vmatprep.subr.mxu0 0.0
  %2053 = vmatpush1.msra.mxu0 0.0
  %2054 = vmatprep.subr.mxu0 0.0
  %2055 = vmatpush1.msra.mxu0 0.0
  %2056 = vmatprep.subr.mxu0 0.0
  %2057 = vmatpush1.msra.mxu0 0.0
  %2058 = vmatprep.subr.mxu0 0.0
  %2059 = vmatpush1.msra.mxu0 0.0
  %2060 = vmatprep.subr.mxu0 0.0
  %2061 = vmatpush1.msra.mxu0 0.0
  %2062 = vmatprep.subr.mxu0 0.0
  %2063 = vmatpush1.msra.mxu0 0.0
  %2064 = vmatprep.subr.mxu0 0.0
  %2065 = vmatpush1.msra.mxu0 0.0
  %2066 = vmatprep.subr.mxu0 0.0
  %2067 = vmatpush1.msra.mxu0 0.0
  %2068 = vmatprep.subr.mxu0 0.0
  %2069 = vmatpush1.msra.mxu0 0.0
  %2070 = vmatprep.subr.mxu0 0.0
  %2071 = vmatpush1.msra.mxu0 0.0
  %2072 = vmatprep.subr.mxu0 0.0
  %2073 = vmatpush1.msra.mxu0 0.0
  %2074 = vmatprep.subr.mxu0 0.0
  %2075 = vmatpush1.msra.mxu0 0.0
  %2076 = vmatprep.subr.mxu0 0.0
  %2077 = vmatpush1.msra.mxu0 0.0
  %2078 = vmatprep.subr.mxu0 0.0
  %2079 = vmatpush1.msra.mxu0 0.0
  %2080 = vmatprep.subr.mxu0 0.0
  %2081 = vmatpush1.msra.mxu0 0.0
  %2082 = vmatprep.subr.mxu0 0.0
  %2083 = vmatpush1.msra.mxu0 0.0
  %2084 = vmatprep.subr.mxu0 0.0
  %2085 = vmatpush1.msra.mxu0 0.0
  %2086 = vmatprep.subr.mxu0 0.0
  %2087 = vmatpush1.msra.mxu0 0.0
  %2088 = vmatprep.subr.mxu0 0.0
  %2089 = vmatpush1.msra.mxu0 0.0
  %2090 = vmatprep.subr.mxu0 0.0
  %2091 = vmatpush1.msra.mxu0 0.0
  %2092 = vmatprep.subr.mxu0 0.0
  %2093 = vmatpush1.msra.mxu0 0.0
  %2094 = vmatprep.subr.mxu0 0.0
  %2095 = vmatpush1.msra.mxu0 0.0
  %2096 = vmatprep.subr.mxu0 0.0
  %2097 = vmatpush1.msra.mxu0 0.0
  %2098 = vmatprep.subr.mxu0 0.0
  %2099 = vmatpush1.msra.mxu0 0.0
  %2100 = vmatprep.subr.mxu0 0.0
  %2101 = vmatpush1.msra.mxu0 0.0
  %2102 = vmatprep.subr.mxu0 0.0
  %2103 = vmatpush1.msra.mxu0 0.0
  %2104 = vmatprep.subr.mxu0 0.0
  %2105 = vmatpush1.msra.mxu0 0.0
  %2106 = vmatprep.subr.mxu0 0.0
  %2107 = vmatpush1.msra.mxu0 0.0
  %2108 = vmatprep.mubr.f32.mxu0 0.0
  %2109 = vmatmul.mubr.f32.gmra.mrb[0].mxu0 %v1869
  %v2110 = vpop.f32.mrb[0].mxu0
  %v2111 = vadd.f32 0.0, %v2110
  %v2112 = vpop.f32.mrb[0].mxu0
  %2113 = vdwg.mxu0
  %v2114 = vadd.f32 %v2043, %v2111
  %v2115 = vxor.u32 %v2114, 2147483648
  %v2116 = vmul.f32 %v2115, 1.442695
  %v2117 = vpow.pop %v2116
  %v2118 = vadd.f32 %v2117, 1.0
  %v2119 = vrcp.pop %v2118
  %v2120 = vmul.f32 1.0, %v2119
  %v2121 = vtanh.pop %v2114
  %v2122 = vmul.f32 %v2120, %v1859
  %2124 = vrot.lane.b32.xlu0 %v2121, 64
  %v2125 = vpop.permute.xlu0 %2124
  %v2127 = vmul.f32 %v2120, %v2125
  %2129 = vrot.lane.b32.xlu0 %v2127, 32
  %v2130 = vpop.permute.xlu0 %2129
  %v2132 = vadd.f32 %v2122, %v2130
  %v2133 = vtanh.pop %v2132
  %2135 = vrot.lane.b32.xlu0 %v2133, 64
  %v2136 = vpop.permute.xlu0 %2135
  %v2138 = vmul.f32 %v2120, %v2136
  %2140 = vrot.lane.b32.xlu0 %v2138, 32
  %v2141 = vpop.permute.xlu0 %2140
  %v2142 = vsel %vm576, %v2141, 0
  %2144 = vmatprep.subr.mxu0 0.0
  %2145 = vmatpush1.msra.mxu0 %v35
  %2146 = vmatprep.subr.mxu0 0.0
  %2147 = vmatpush1.msra.mxu0 %v36
  %2148 = vmatprep.subr.mxu0 0.0
  %2149 = vmatpush1.msra.mxu0 %v37
  %2150 = vmatprep.subr.mxu0 0.0
  %2151 = vmatpush1.msra.mxu0 %v38
  %2152 = vmatprep.subr.mxu0 0.0
  %2153 = vmatpush1.msra.mxu0 0.0
  %2154 = vmatprep.subr.mxu0 0.0
  %2155 = vmatpush1.msra.mxu0 0.0
  %2156 = vmatprep.subr.mxu0 0.0
  %2157 = vmatpush1.msra.mxu0 0.0
  %2158 = vmatprep.subr.mxu0 0.0
  %2159 = vmatpush1.msra.mxu0 0.0
  %2160 = vmatprep.subr.mxu0 0.0
  %2161 = vmatpush1.msra.mxu0 0.0
  %2162 = vmatprep.subr.mxu0 0.0
  %2163 = vmatpush1.msra.mxu0 0.0
  %2164 = vmatprep.subr.mxu0 0.0
  %2165 = vmatpush1.msra.mxu0 0.0
  %2166 = vmatprep.subr.mxu0 0.0
  %2167 = vmatpush1.msra.mxu0 0.0
  %2168 = vmatprep.subr.mxu0 0.0
  %2169 = vmatpush1.msra.mxu0 0.0
  %2170 = vmatprep.subr.mxu0 0.0
  %2171 = vmatpush1.msra.mxu0 0.0
  %2172 = vmatprep.subr.mxu0 0.0
  %2173 = vmatpush1.msra.mxu0 0.0
  %2174 = vmatprep.subr.mxu0 0.0
  %2175 = vmatpush1.msra.mxu0 0.0
  %2176 = vmatprep.subr.mxu0 0.0
  %2177 = vmatpush1.msra.mxu0 0.0
  %2178 = vmatprep.subr.mxu0 0.0
  %2179 = vmatpush1.msra.mxu0 0.0
  %2180 = vmatprep.subr.mxu0 0.0
  %2181 = vmatpush1.msra.mxu0 0.0
  %2182 = vmatprep.subr.mxu0 0.0
  %2183 = vmatpush1.msra.mxu0 0.0
  %2184 = vmatprep.subr.mxu0 0.0
  %2185 = vmatpush1.msra.mxu0 0.0
  %2186 = vmatprep.subr.mxu0 0.0
  %2187 = vmatpush1.msra.mxu0 0.0
  %2188 = vmatprep.subr.mxu0 0.0
  %2189 = vmatpush1.msra.mxu0 0.0
  %2190 = vmatprep.subr.mxu0 0.0
  %2191 = vmatpush1.msra.mxu0 0.0
  %2192 = vmatprep.subr.mxu0 0.0
  %2193 = vmatpush1.msra.mxu0 0.0
  %2194 = vmatprep.subr.mxu0 0.0
  %2195 = vmatpush1.msra.mxu0 0.0
  %2196 = vmatprep.subr.mxu0 0.0
  %2197 = vmatpush1.msra.mxu0 0.0
  %2198 = vmatprep.subr.mxu0 0.0
  %2199 = vmatpush1.msra.mxu0 0.0
  %2200 = vmatprep.subr.mxu0 0.0
  %2201 = vmatpush1.msra.mxu0 0.0
  %2202 = vmatprep.subr.mxu0 0.0
  %2203 = vmatpush1.msra.mxu0 0.0
  %2204 = vmatprep.subr.mxu0 0.0
  %2205 = vmatpush1.msra.mxu0 0.0
  %2206 = vmatprep.subr.mxu0 0.0
  %2207 = vmatpush1.msra.mxu0 0.0
  %2208 = vmatprep.mubr.f32.mxu0 0.0
  %2209 = vmatmul.mubr.f32.gmra.mrb[0].mxu0 %v2142
  %v2210 = vpop.f32.mrb[0].mxu0
  %v2211 = vadd.f32 %v24, %v2210
  %v2212 = vpop.f32.mrb[0].mxu0
  %2213 = vdwg.mxu0
  %v2214 = vsel %vm576, %v2040, 0
  %2216 = vmatprep.subr.mxu0 0.0
  %2217 = vmatpush1.msra.mxu0 %v39
  %2218 = vmatprep.subr.mxu0 0.0
  %2219 = vmatpush1.msra.mxu0 %v40
  %2220 = vmatprep.subr.mxu0 0.0
  %2221 = vmatpush1.msra.mxu0 %v41
  %2222 = vmatprep.subr.mxu0 0.0
  %2223 = vmatpush1.msra.mxu0 %v42
  %2224 = vmatprep.subr.mxu0 0.0
  %2225 = vmatpush1.msra.mxu0 0.0
  %2226 = vmatprep.subr.mxu0 0.0
  %2227 = vmatpush1.msra.mxu0 0.0
  %2228 = vmatprep.subr.mxu0 0.0
  %2229 = vmatpush1.msra.mxu0 0.0
  %2230 = vmatprep.subr.mxu0 0.0
  %2231 = vmatpush1.msra.mxu0 0.0
  %2232 = vmatprep.subr.mxu0 0.0
  %2233 = vmatpush1.msra.mxu0 0.0
  %2234 = vmatprep.subr.mxu0 0.0
  %2235 = vmatpush1.msra.mxu0 0.0
  %2236 = vmatprep.subr.mxu0 0.0
  %2237 = vmatpush1.msra.mxu0 0.0
  %2238 = vmatprep.subr.mxu0 0.0
  %2239 = vmatpush1.msra.mxu0 0.0
  %2240 = vmatprep.subr.mxu0 0.0
  %2241 = vmatpush1.msra.mxu0 0.0
  %2242 = vmatprep.subr.mxu0 0.0
  %2243 = vmatpush1.msra.mxu0 0.0
  %2244 = vmatprep.subr.mxu0 0.0
  %2245 = vmatpush1.msra.mxu0 0.0
  %2246 = vmatprep.subr.mxu0 0.0
  %2247 = vmatpush1.msra.mxu0 0.0
  %2248 = vmatprep.subr.mxu0 0.0
  %2249 = vmatpush1.msra.mxu0 0.0
  %2250 = vmatprep.subr.mxu0 0.0
  %2251 = vmatpush1.msra.mxu0 0.0
  %2252 = vmatprep.subr.mxu0 0.0
  %2253 = vmatpush1.msra.mxu0 0.0
  %2254 = vmatprep.subr.mxu0 0.0
  %2255 = vmatpush1.msra.mxu0 0.0
  %2256 = vmatprep.subr.mxu0 0.0
  %2257 = vmatpush1.msra.mxu0 0.0
  %2258 = vmatprep.subr.mxu0 0.0
  %2259 = vmatpush1.msra.mxu0 0.0
  %2260 = vmatprep.subr.mxu0 0.0
  %2261 = vmatpush1.msra.mxu0 0.0
  %2262 = vmatprep.subr.mxu0 0.0
  %2263 = vmatpush1.msra.mxu0 0.0
  %2264 = vmatprep.subr.mxu0 0.0
  %2265 = vmatpush1.msra.mxu0 0.0
  %2266 = vmatprep.subr.mxu0 0.0
  %2267 = vmatpush1.msra.mxu0 0.0
  %2268 = vmatprep.subr.mxu0 0.0
  %2269 = vmatpush1.msra.mxu0 0.0
  %2270 = vmatprep.subr.mxu0 0.0
  %2271 = vmatpush1.msra.mxu0 0.0
  %2272 = vmatprep.subr.mxu0 0.0
  %2273 = vmatpush1.msra.mxu0 0.0
  %2274 = vmatprep.subr.mxu0 0.0
  %2275 = vmatpush1.msra.mxu0 0.0
  %2276 = vmatprep.subr.mxu0 0.0
  %2277 = vmatpush1.msra.mxu0 0.0
  %2278 = vmatprep.subr.mxu0 0.0
  %2279 = vmatpush1.msra.mxu0 0.0
  %2280 = vmatprep.mubr.f32.mxu0 0.0
  %2281 = vmatmul.mubr.f32.gmra.mrb[0].mxu0 %v2214
  %v2282 = vpop.f32.mrb[0].mxu0
  %v2283 = vadd.f32 0.0, %v2282
  %v2284 = vpop.f32.mrb[0].mxu0
  %2285 = vdwg.mxu0
  %v2286 = vadd.f32 %v2211, %v2283
  %v2287 = vxor.u32 %v2286, 2147483648
  %v2288 = vmul.f32 %v2287, 1.442695
  %v2289 = vpow.pop %v2288
  %v2290 = vadd.f32 %v2289, 1.0
  %v2291 = vrcp.pop %v2290
  %v2292 = vmul.f32 1.0, %v2291
  %v2293 = vtanh.pop %v2286
  %v2294 = vmul.f32 %v2292, %v2031
  %2296 = vrot.lane.b32.xlu0 %v2293, 64
  %v2297 = vpop.permute.xlu0 %2296
  %v2299 = vmul.f32 %v2292, %v2297
  %2301 = vrot.lane.b32.xlu0 %v2299, 32
  %v2302 = vpop.permute.xlu0 %2301
  %v2304 = vadd.f32 %v2294, %v2302
  %v2305 = vtanh.pop %v2304
  %2307 = vrot.lane.b32.xlu0 %v2305, 64
  %v2308 = vpop.permute.xlu0 %2307
  %v2310 = vmul.f32 %v2292, %v2308
  %2312 = vrot.lane.b32.xlu0 %v2310, 32
  %v2313 = vpop.permute.xlu0 %2312
  %2315 = vst.msk [vmem:[#allocation3 + $0x5] sm:$0x1] %vm949, %v2313
  %v2316 = vld [vmem:[#allocation2 + $0x6] sm:$0x1]
  %2317 = vmatprep.subr.mxu0 0.0
  %2318 = vmatpush1.msra.mxu0 %v31
  %2319 = vmatprep.subr.mxu0 0.0
  %2320 = vmatpush1.msra.mxu0 %v32
  %2321 = vmatprep.subr.mxu0 0.0
  %2322 = vmatpush1.msra.mxu0 %v33
  %2323 = vmatprep.subr.mxu0 0.0
  %2324 = vmatpush1.msra.mxu0 %v34
  %2325 = vmatprep.subr.mxu0 0.0
  %2326 = vmatpush1.msra.mxu0 0.0
  %2327 = vmatprep.subr.mxu0 0.0
  %2328 = vmatpush1.msra.mxu0 0.0
  %2329 = vmatprep.subr.mxu0 0.0
  %2330 = vmatpush1.msra.mxu0 0.0
  %2331 = vmatprep.subr.mxu0 0.0
  %2332 = vmatpush1.msra.mxu0 0.0
  %2333 = vmatprep.subr.mxu0 0.0
  %2334 = vmatpush1.msra.mxu0 0.0
  %2335 = vmatprep.subr.mxu0 0.0
  %2336 = vmatpush1.msra.mxu0 0.0
  %2337 = vmatprep.subr.mxu0 0.0
  %2338 = vmatpush1.msra.mxu0 0.0
  %2339 = vmatprep.subr.mxu0 0.0
  %2340 = vmatpush1.msra.mxu0 0.0
  %2341 = vmatprep.subr.mxu0 0.0
  %2342 = vmatpush1.msra.mxu0 0.0
  %2343 = vmatprep.subr.mxu0 0.0
  %2344 = vmatpush1.msra.mxu0 0.0
  %2345 = vmatprep.subr.mxu0 0.0
  %2346 = vmatpush1.msra.mxu0 0.0
  %2347 = vmatprep.subr.mxu0 0.0
  %2348 = vmatpush1.msra.mxu0 0.0
  %2349 = vmatprep.subr.mxu0 0.0
  %2350 = vmatpush1.msra.mxu0 0.0
  %2351 = vmatprep.subr.mxu0 0.0
  %2352 = vmatpush1.msra.mxu0 0.0
  %2353 = vmatprep.subr.mxu0 0.0
  %2354 = vmatpush1.msra.mxu0 0.0
  %2355 = vmatprep.subr.mxu0 0.0
  %2356 = vmatpush1.msra.mxu0 0.0
  %2357 = vmatprep.subr.mxu0 0.0
  %2358 = vmatpush1.msra.mxu0 0.0
  %2359 = vmatprep.subr.mxu0 0.0
  %2360 = vmatpush1.msra.mxu0 0.0
  %2361 = vmatprep.subr.mxu0 0.0
  %2362 = vmatpush1.msra.mxu0 0.0
  %2363 = vmatprep.subr.mxu0 0.0
  %2364 = vmatpush1.msra.mxu0 0.0
  %2365 = vmatprep.subr.mxu0 0.0
  %2366 = vmatpush1.msra.mxu0 0.0
  %2367 = vmatprep.subr.mxu0 0.0
  %2368 = vmatpush1.msra.mxu0 0.0
  %2369 = vmatprep.subr.mxu0 0.0
  %2370 = vmatpush1.msra.mxu0 0.0
  %2371 = vmatprep.subr.mxu0 0.0
  %2372 = vmatpush1.msra.mxu0 0.0
  %2373 = vmatprep.subr.mxu0 0.0
  %2374 = vmatpush1.msra.mxu0 0.0
  %2375 = vmatprep.subr.mxu0 0.0
  %2376 = vmatpush1.msra.mxu0 0.0
  %2377 = vmatprep.subr.mxu0 0.0
  %2378 = vmatpush1.msra.mxu0 0.0
  %2379 = vmatprep.subr.mxu0 0.0
  %2380 = vmatpush1.msra.mxu0 0.0
  %2381 = vmatprep.mubr.f32.mxu0 0.0
  %2382 = vmatmul.mubr.f32.gmra.mrb[0].mxu0 %v2142
  %v2383 = vpop.f32.mrb[0].mxu0
  %v2384 = vadd.f32 0.0, %v2383
  %v2385 = vpop.f32.mrb[0].mxu0
  %2386 = vdwg.mxu0
  %v2387 = vadd.f32 %v2316, %v2384
  %v2388 = vxor.u32 %v2387, 2147483648
  %v2389 = vmul.f32 %v2388, 1.442695
  %v2390 = vpow.pop %v2389
  %v2391 = vadd.f32 %v2390, 1.0
  %v2392 = vrcp.pop %v2391
  %v2393 = vmul.f32 1.0, %v2392
  %v2394 = vtanh.pop %v2387
  %v2395 = vmul.f32 %v2393, %v2132
  %2397 = vrot.lane.b32.xlu0 %v2394, 64
  %v2398 = vpop.permute.xlu0 %2397
  %v2400 = vmul.f32 %v2393, %v2398
  %2402 = vrot.lane.b32.xlu0 %v2400, 32
  %v2403 = vpop.permute.xlu0 %2402
  %v2405 = vadd.f32 %v2395, %v2403
  %v2406 = vtanh.pop %v2405
  %2408 = vrot.lane.b32.xlu0 %v2406, 64
  %v2409 = vpop.permute.xlu0 %2408
  %v2411 = vmul.f32 %v2393, %v2409
  %2413 = vrot.lane.b32.xlu0 %v2411, 32
  %v2414 = vpop.permute.xlu0 %2413
  %v2415 = vsel %vm576, %v2414, 0
  %2417 = vmatprep.subr.mxu0 0.0
  %2418 = vmatpush1.msra.mxu0 %v35
  %2419 = vmatprep.subr.mxu0 0.0
  %2420 = vmatpush1.msra.mxu0 %v36
  %2421 = vmatprep.subr.mxu0 0.0
  %2422 = vmatpush1.msra.mxu0 %v37
  %2423 = vmatprep.subr.mxu0 0.0
  %2424 = vmatpush1.msra.mxu0 %v38
  %2425 = vmatprep.subr.mxu0 0.0
  %2426 = vmatpush1.msra.mxu0 0.0
  %2427 = vmatprep.subr.mxu0 0.0
  %2428 = vmatpush1.msra.mxu0 0.0
  %2429 = vmatprep.subr.mxu0 0.0
  %2430 = vmatpush1.msra.mxu0 0.0
  %2431 = vmatprep.subr.mxu0 0.0
  %2432 = vmatpush1.msra.mxu0 0.0
  %2433 = vmatprep.subr.mxu0 0.0
  %2434 = vmatpush1.msra.mxu0 0.0
  %2435 = vmatprep.subr.mxu0 0.0
  %2436 = vmatpush1.msra.mxu0 0.0
  %2437 = vmatprep.subr.mxu0 0.0
  %2438 = vmatpush1.msra.mxu0 0.0
  %2439 = vmatprep.subr.mxu0 0.0
  %2440 = vmatpush1.msra.mxu0 0.0
  %2441 = vmatprep.subr.mxu0 0.0
  %2442 = vmatpush1.msra.mxu0 0.0
  %2443 = vmatprep.subr.mxu0 0.0
  %2444 = vmatpush1.msra.mxu0 0.0
  %2445 = vmatprep.subr.mxu0 0.0
  %2446 = vmatpush1.msra.mxu0 0.0
  %2447 = vmatprep.subr.mxu0 0.0
  %2448 = vmatpush1.msra.mxu0 0.0
  %2449 = vmatprep.subr.mxu0 0.0
  %2450 = vmatpush1.msra.mxu0 0.0
  %2451 = vmatprep.subr.mxu0 0.0
  %2452 = vmatpush1.msra.mxu0 0.0
  %2453 = vmatprep.subr.mxu0 0.0
  %2454 = vmatpush1.msra.mxu0 0.0
  %2455 = vmatprep.subr.mxu0 0.0
  %2456 = vmatpush1.msra.mxu0 0.0
  %2457 = vmatprep.subr.mxu0 0.0
  %2458 = vmatpush1.msra.mxu0 0.0
  %2459 = vmatprep.subr.mxu0 0.0
  %2460 = vmatpush1.msra.mxu0 0.0
  %2461 = vmatprep.subr.mxu0 0.0
  %2462 = vmatpush1.msra.mxu0 0.0
  %2463 = vmatprep.subr.mxu0 0.0
  %2464 = vmatpush1.msra.mxu0 0.0
  %2465 = vmatprep.subr.mxu0 0.0
  %2466 = vmatpush1.msra.mxu0 0.0
  %2467 = vmatprep.subr.mxu0 0.0
  %2468 = vmatpush1.msra.mxu0 0.0
  %2469 = vmatprep.subr.mxu0 0.0
  %2470 = vmatpush1.msra.mxu0 0.0
  %2471 = vmatprep.subr.mxu0 0.0
  %2472 = vmatpush1.msra.mxu0 0.0
  %2473 = vmatprep.subr.mxu0 0.0
  %2474 = vmatpush1.msra.mxu0 0.0
  %2475 = vmatprep.subr.mxu0 0.0
  %2476 = vmatpush1.msra.mxu0 0.0
  %2477 = vmatprep.subr.mxu0 0.0
  %2478 = vmatpush1.msra.mxu0 0.0
  %2479 = vmatprep.subr.mxu0 0.0
  %2480 = vmatpush1.msra.mxu0 0.0
  %2481 = vmatprep.mubr.f32.mxu0 0.0
  %2482 = vmatmul.mubr.f32.gmra.mrb[0].mxu0 %v2415
  %v2483 = vpop.f32.mrb[0].mxu0
  %v2484 = vadd.f32 %v24, %v2483
  %v2485 = vpop.f32.mrb[0].mxu0
  %2486 = vdwg.mxu0
  %v2487 = vsel %vm576, %v2313, 0
  %2489 = vmatprep.subr.mxu0 0.0
  %2490 = vmatpush1.msra.mxu0 %v39
  %2491 = vmatprep.subr.mxu0 0.0
  %2492 = vmatpush1.msra.mxu0 %v40
  %2493 = vmatprep.subr.mxu0 0.0
  %2494 = vmatpush1.msra.mxu0 %v41
  %2495 = vmatprep.subr.mxu0 0.0
  %2496 = vmatpush1.msra.mxu0 %v42
  %2497 = vmatprep.subr.mxu0 0.0
  %2498 = vmatpush1.msra.mxu0 0.0
  %2499 = vmatprep.subr.mxu0 0.0
  %2500 = vmatpush1.msra.mxu0 0.0
  %2501 = vmatprep.subr.mxu0 0.0
  %2502 = vmatpush1.msra.mxu0 0.0
  %2503 = vmatprep.subr.mxu0 0.0
  %2504 = vmatpush1.msra.mxu0 0.0
  %2505 = vmatprep.subr.mxu0 0.0
  %2506 = vmatpush1.msra.mxu0 0.0
  %2507 = vmatprep.subr.mxu0 0.0
  %2508 = vmatpush1.msra.mxu0 0.0
  %2509 = vmatprep.subr.mxu0 0.0
  %2510 = vmatpush1.msra.mxu0 0.0
  %2511 = vmatprep.subr.mxu0 0.0
  %2512 = vmatpush1.msra.mxu0 0.0
  %2513 = vmatprep.subr.mxu0 0.0
  %2514 = vmatpush1.msra.mxu0 0.0
  %2515 = vmatprep.subr.mxu0 0.0
  %2516 = vmatpush1.msra.mxu0 0.0
  %2517 = vmatprep.subr.mxu0 0.0
  %2518 = vmatpush1.msra.mxu0 0.0
  %2519 = vmatprep.subr.mxu0 0.0
  %2520 = vmatpush1.msra.mxu0 0.0
  %2521 = vmatprep.subr.mxu0 0.0
  %2522 = vmatpush1.msra.mxu0 0.0
  %2523 = vmatprep.subr.mxu0 0.0
  %2524 = vmatpush1.msra.mxu0 0.0
  %2525 = vmatprep.subr.mxu0 0.0
  %2526 = vmatpush1.msra.mxu0 0.0
  %2527 = vmatprep.subr.mxu0 0.0
  %2528 = vmatpush1.msra.mxu0 0.0
  %2529 = vmatprep.subr.mxu0 0.0
  %2530 = vmatpush1.msra.mxu0 0.0
  %2531 = vmatprep.subr.mxu0 0.0
  %2532 = vmatpush1.msra.mxu0 0.0
  %2533 = vmatprep.subr.mxu0 0.0
  %2534 = vmatpush1.msra.mxu0 0.0
  %2535 = vmatprep.subr.mxu0 0.0
  %2536 = vmatpush1.msra.mxu0 0.0
  %2537 = vmatprep.subr.mxu0 0.0
  %2538 = vmatpush1.msra.mxu0 0.0
  %2539 = vmatprep.subr.mxu0 0.0
  %2540 = vmatpush1.msra.mxu0 0.0
  %2541 = vmatprep.subr.mxu0 0.0
  %2542 = vmatpush1.msra.mxu0 0.0
  %2543 = vmatprep.subr.mxu0 0.0
  %2544 = vmatpush1.msra.mxu0 0.0
  %2545 = vmatprep.subr.mxu0 0.0
  %2546 = vmatpush1.msra.mxu0 0.0
  %2547 = vmatprep.subr.mxu0 0.0
  %2548 = vmatpush1.msra.mxu0 0.0
  %2549 = vmatprep.subr.mxu0 0.0
  %2550 = vmatpush1.msra.mxu0 0.0
  %2551 = vmatprep.subr.mxu0 0.0
  %2552 = vmatpush1.msra.mxu0 0.0
  %2553 = vmatprep.mubr.f32.mxu0 0.0
  %2554 = vmatmul.mubr.f32.gmra.mrb[0].mxu0 %v2487
  %v2555 = vpop.f32.mrb[0].mxu0
  %v2556 = vadd.f32 0.0, %v2555
  %v2557 = vpop.f32.mrb[0].mxu0
  %2558 = vdwg.mxu0
  %v2559 = vadd.f32 %v2484, %v2556
  %v2560 = vxor.u32 %v2559, 2147483648
  %v2561 = vmul.f32 %v2560, 1.442695
  %v2562 = vpow.pop %v2561
  %v2563 = vadd.f32 %v2562, 1.0
  %v2564 = vrcp.pop %v2563
  %v2565 = vmul.f32 1.0, %v2564
  %v2566 = vtanh.pop %v2559
  %v2567 = vmul.f32 %v2565, %v2304
  %2569 = vrot.lane.b32.xlu0 %v2566, 64
  %v2570 = vpop.permute.xlu0 %2569
  %v2572 = vmul.f32 %v2565, %v2570
  %2574 = vrot.lane.b32.xlu0 %v2572, 32
  %v2575 = vpop.permute.xlu0 %2574
  %v2577 = vadd.f32 %v2567, %v2575
  %v2578 = vtanh.pop %v2577
  %2580 = vrot.lane.b32.xlu0 %v2578, 64
  %v2581 = vpop.permute.xlu0 %2580
  %v2583 = vmul.f32 %v2565, %v2581
  %2585 = vrot.lane.b32.xlu0 %v2583, 32
  %v2586 = vpop.permute.xlu0 %2585
  %2588 = vst.msk [vmem:[#allocation3 + $0x6] sm:$0x1] %vm949, %v2586
  %v2589 = vld [vmem:[#allocation2 + $0x7] sm:$0x1]
  %2590 = vmatprep.subr.mxu0 0.0
  %2591 = vmatpush1.msra.mxu0 %v31
  %2592 = vmatprep.subr.mxu0 0.0
  %2593 = vmatpush1.msra.mxu0 %v32
  %2594 = vmatprep.subr.mxu0 0.0
  %2595 = vmatpush1.msra.mxu0 %v33
  %2596 = vmatprep.subr.mxu0 0.0
  %2597 = vmatpush1.msra.mxu0 %v34
  %2598 = vmatprep.subr.mxu0 0.0
  %2599 = vmatpush1.msra.mxu0 0.0
  %2600 = vmatprep.subr.mxu0 0.0
  %2601 = vmatpush1.msra.mxu0 0.0
  %2602 = vmatprep.subr.mxu0 0.0
  %2603 = vmatpush1.msra.mxu0 0.0
  %2604 = vmatprep.subr.mxu0 0.0
  %2605 = vmatpush1.msra.mxu0 0.0
  %2606 = vmatprep.subr.mxu0 0.0
  %2607 = vmatpush1.msra.mxu0 0.0
  %2608 = vmatprep.subr.mxu0 0.0
  %2609 = vmatpush1.msra.mxu0 0.0
  %2610 = vmatprep.subr.mxu0 0.0
  %2611 = vmatpush1.msra.mxu0 0.0
  %2612 = vmatprep.subr.mxu0 0.0
  %2613 = vmatpush1.msra.mxu0 0.0
  %2614 = vmatprep.subr.mxu0 0.0
  %2615 = vmatpush1.msra.mxu0 0.0
  %2616 = vmatprep.subr.mxu0 0.0
  %2617 = vmatpush1.msra.mxu0 0.0
  %2618 = vmatprep.subr.mxu0 0.0
  %2619 = vmatpush1.msra.mxu0 0.0
  %2620 = vmatprep.subr.mxu0 0.0
  %2621 = vmatpush1.msra.mxu0 0.0
  %2622 = vmatprep.subr.mxu0 0.0
  %2623 = vmatpush1.msra.mxu0 0.0
  %2624 = vmatprep.subr.mxu0 0.0
  %2625 = vmatpush1.msra.mxu0 0.0
  %2626 = vmatprep.subr.mxu0 0.0
  %2627 = vmatpush1.msra.mxu0 0.0
  %2628 = vmatprep.subr.mxu0 0.0
  %2629 = vmatpush1.msra.mxu0 0.0
  %2630 = vmatprep.subr.mxu0 0.0
  %2631 = vmatpush1.msra.mxu0 0.0
  %2632 = vmatprep.subr.mxu0 0.0
  %2633 = vmatpush1.msra.mxu0 0.0
  %2634 = vmatprep.subr.mxu0 0.0
  %2635 = vmatpush1.msra.mxu0 0.0
  %2636 = vmatprep.subr.mxu0 0.0
  %2637 = vmatpush1.msra.mxu0 0.0
  %2638 = vmatprep.subr.mxu0 0.0
  %2639 = vmatpush1.msra.mxu0 0.0
  %2640 = vmatprep.subr.mxu0 0.0
  %2641 = vmatpush1.msra.mxu0 0.0
  %2642 = vmatprep.subr.mxu0 0.0
  %2643 = vmatpush1.msra.mxu0 0.0
  %2644 = vmatprep.subr.mxu0 0.0
  %2645 = vmatpush1.msra.mxu0 0.0
  %2646 = vmatprep.subr.mxu0 0.0
  %2647 = vmatpush1.msra.mxu0 0.0
  %2648 = vmatprep.subr.mxu0 0.0
  %2649 = vmatpush1.msra.mxu0 0.0
  %2650 = vmatprep.subr.mxu0 0.0
  %2651 = vmatpush1.msra.mxu0 0.0
  %2652 = vmatprep.subr.mxu0 0.0
  %2653 = vmatpush1.msra.mxu0 0.0
  %2654 = vmatprep.mubr.f32.mxu0 0.0
  %2655 = vmatmul.mubr.f32.gmra.mrb[0].mxu0 %v2415
  %v2656 = vpop.f32.mrb[0].mxu0
  %v2657 = vadd.f32 0.0, %v2656
  %v2658 = vpop.f32.mrb[0].mxu0
  %2659 = vdwg.mxu0
  %v2660 = vadd.f32 %v2589, %v2657
  %v2661 = vxor.u32 %v2660, 2147483648
  %v2662 = vmul.f32 %v2661, 1.442695
  %v2663 = vpow.pop %v2662
  %v2664 = vadd.f32 %v2663, 1.0
  %v2665 = vrcp.pop %v2664
  %v2666 = vmul.f32 1.0, %v2665
  %v2667 = vtanh.pop %v2660
  %v2668 = vmul.f32 %v2666, %v2405
  %2670 = vrot.lane.b32.xlu0 %v2667, 64
  %v2671 = vpop.permute.xlu0 %2670
  %v2673 = vmul.f32 %v2666, %v2671
  %2675 = vrot.lane.b32.xlu0 %v2673, 32
  %v2676 = vpop.permute.xlu0 %2675
  %v2678 = vadd.f32 %v2668, %v2676
  %v2679 = vtanh.pop %v2678
  %2681 = vrot.lane.b32.xlu0 %v2679, 64
  %v2682 = vpop.permute.xlu0 %2681
  %v2684 = vmul.f32 %v2666, %v2682
  %2686 = vrot.lane.b32.xlu0 %v2684, 32
  %v2687 = vpop.permute.xlu0 %2686
  %v2688 = vsel %vm576, %v2687, 0
  %2690 = vmatprep.subr.mxu0 0.0
  %2691 = vmatpush1.msra.mxu0 %v35
  %2692 = vmatprep.subr.mxu0 0.0
  %2693 = vmatpush1.msra.mxu0 %v36
  %2694 = vmatprep.subr.mxu0 0.0
  %2695 = vmatpush1.msra.mxu0 %v37
  %2696 = vmatprep.subr.mxu0 0.0
  %2697 = vmatpush1.msra.mxu0 %v38
  %2698 = vmatprep.subr.mxu0 0.0
  %2699 = vmatpush1.msra.mxu0 0.0
  %2700 = vmatprep.subr.mxu0 0.0
  %2701 = vmatpush1.msra.mxu0 0.0
  %2702 = vmatprep.subr.mxu0 0.0
  %2703 = vmatpush1.msra.mxu0 0.0
  %2704 = vmatprep.subr.mxu0 0.0
  %2705 = vmatpush1.msra.mxu0 0.0
  %2706 = vmatprep.subr.mxu0 0.0
  %2707 = vmatpush1.msra.mxu0 0.0
  %2708 = vmatprep.subr.mxu0 0.0
  %2709 = vmatpush1.msra.mxu0 0.0
  %2710 = vmatprep.subr.mxu0 0.0
  %2711 = vmatpush1.msra.mxu0 0.0
  %2712 = vmatprep.subr.mxu0 0.0
  %2713 = vmatpush1.msra.mxu0 0.0
  %2714 = vmatprep.subr.mxu0 0.0
  %2715 = vmatpush1.msra.mxu0 0.0
  %2716 = vmatprep.subr.mxu0 0.0
  %2717 = vmatpush1.msra.mxu0 0.0
  %2718 = vmatprep.subr.mxu0 0.0
  %2719 = vmatpush1.msra.mxu0 0.0
  %2720 = vmatprep.subr.mxu0 0.0
  %2721 = vmatpush1.msra.mxu0 0.0
  %2722 = vmatprep.subr.mxu0 0.0
  %2723 = vmatpush1.msra.mxu0 0.0
  %2724 = vmatprep.subr.mxu0 0.0
  %2725 = vmatpush1.msra.mxu0 0.0
  %2726 = vmatprep.subr.mxu0 0.0
  %2727 = vmatpush1.msra.mxu0 0.0
  %2728 = vmatprep.subr.mxu0 0.0
  %2729 = vmatpush1.msra.mxu0 0.0
  %2730 = vmatprep.subr.mxu0 0.0
  %2731 = vmatpush1.msra.mxu0 0.0
  %2732 = vmatprep.subr.mxu0 0.0
  %2733 = vmatpush1.msra.mxu0 0.0
  %2734 = vmatprep.subr.mxu0 0.0
  %2735 = vmatpush1.msra.mxu0 0.0
  %2736 = vmatprep.subr.mxu0 0.0
  %2737 = vmatpush1.msra.mxu0 0.0
  %2738 = vmatprep.subr.mxu0 0.0
  %2739 = vmatpush1.msra.mxu0 0.0
  %2740 = vmatprep.subr.mxu0 0.0
  %2741 = vmatpush1.msra.mxu0 0.0
  %2742 = vmatprep.subr.mxu0 0.0
  %2743 = vmatpush1.msra.mxu0 0.0
  %2744 = vmatprep.subr.mxu0 0.0
  %2745 = vmatpush1.msra.mxu0 0.0
  %2746 = vmatprep.subr.mxu0 0.0
  %2747 = vmatpush1.msra.mxu0 0.0
  %2748 = vmatprep.subr.mxu0 0.0
  %2749 = vmatpush1.msra.mxu0 0.0
  %2750 = vmatprep.subr.mxu0 0.0
  %2751 = vmatpush1.msra.mxu0 0.0
  %2752 = vmatprep.subr.mxu0 0.0
  %2753 = vmatpush1.msra.mxu0 0.0
  %2754 = vmatprep.mubr.f32.mxu0 0.0
  %2755 = vmatmul.mubr.f32.gmra.mrb[0].mxu0 %v2688
  %v2756 = vpop.f32.mrb[0].mxu0
  %v2757 = vadd.f32 %v24, %v2756
  %v2758 = vpop.f32.mrb[0].mxu0
  %2759 = vdwg.mxu0
  %v2760 = vsel %vm576, %v2586, 0
  %2762 = vmatprep.subr.mxu0 0.0
  %2763 = vmatpush1.msra.mxu0 %v39
  %2764 = vmatprep.subr.mxu0 0.0
  %2765 = vmatpush1.msra.mxu0 %v40
  %2766 = vmatprep.subr.mxu0 0.0
  %2767 = vmatpush1.msra.mxu0 %v41
  %2768 = vmatprep.subr.mxu0 0.0
  %2769 = vmatpush1.msra.mxu0 %v42
  %2770 = vmatprep.subr.mxu0 0.0
  %2771 = vmatpush1.msra.mxu0 0.0
  %2772 = vmatprep.subr.mxu0 0.0
  %2773 = vmatpush1.msra.mxu0 0.0
  %2774 = vmatprep.subr.mxu0 0.0
  %2775 = vmatpush1.msra.mxu0 0.0
  %2776 = vmatprep.subr.mxu0 0.0
  %2777 = vmatpush1.msra.mxu0 0.0
  %2778 = vmatprep.subr.mxu0 0.0
  %2779 = vmatpush1.msra.mxu0 0.0
  %2780 = vmatprep.subr.mxu0 0.0
  %2781 = vmatpush1.msra.mxu0 0.0
  %2782 = vmatprep.subr.mxu0 0.0
  %2783 = vmatpush1.msra.mxu0 0.0
  %2784 = vmatprep.subr.mxu0 0.0
  %2785 = vmatpush1.msra.mxu0 0.0
  %2786 = vmatprep.subr.mxu0 0.0
  %2787 = vmatpush1.msra.mxu0 0.0
  %2788 = vmatprep.subr.mxu0 0.0
  %2789 = vmatpush1.msra.mxu0 0.0
  %2790 = vmatprep.subr.mxu0 0.0
  %2791 = vmatpush1.msra.mxu0 0.0
  %2792 = vmatprep.subr.mxu0 0.0
  %2793 = vmatpush1.msra.mxu0 0.0
  %2794 = vmatprep.subr.mxu0 0.0
  %2795 = vmatpush1.msra.mxu0 0.0
  %2796 = vmatprep.subr.mxu0 0.0
  %2797 = vmatpush1.msra.mxu0 0.0
  %2798 = vmatprep.subr.mxu0 0.0
  %2799 = vmatpush1.msra.mxu0 0.0
  %2800 = vmatprep.subr.mxu0 0.0
  %2801 = vmatpush1.msra.mxu0 0.0
  %2802 = vmatprep.subr.mxu0 0.0
  %2803 = vmatpush1.msra.mxu0 0.0
  %2804 = vmatprep.subr.mxu0 0.0
  %2805 = vmatpush1.msra.mxu0 0.0
  %2806 = vmatprep.subr.mxu0 0.0
  %2807 = vmatpush1.msra.mxu0 0.0
  %2808 = vmatprep.subr.mxu0 0.0
  %2809 = vmatpush1.msra.mxu0 0.0
  %2810 = vmatprep.subr.mxu0 0.0
  %2811 = vmatpush1.msra.mxu0 0.0
  %2812 = vmatprep.subr.mxu0 0.0
  %2813 = vmatpush1.msra.mxu0 0.0
  %2814 = vmatprep.subr.mxu0 0.0
  %2815 = vmatpush1.msra.mxu0 0.0
  %2816 = vmatprep.subr.mxu0 0.0
  %2817 = vmatpush1.msra.mxu0 0.0
  %2818 = vmatprep.subr.mxu0 0.0
  %2819 = vmatpush1.msra.mxu0 0.0
  %2820 = vmatprep.subr.mxu0 0.0
  %2821 = vmatpush1.msra.mxu0 0.0
  %2822 = vmatprep.subr.mxu0 0.0
  %2823 = vmatpush1.msra.mxu0 0.0
  %2824 = vmatprep.subr.mxu0 0.0
  %2825 = vmatpush1.msra.mxu0 0.0
  %2826 = vmatprep.mubr.f32.mxu0 0.0
  %2827 = vmatmul.mubr.f32.gmra.mrb[0].mxu0 %v2760
  %v2828 = vpop.f32.mrb[0].mxu0
  %v2829 = vadd.f32 0.0, %v2828
  %v2830 = vpop.f32.mrb[0].mxu0
  %2831 = vdwg.mxu0
  %v2832 = vadd.f32 %v2757, %v2829
  %v2833 = vxor.u32 %v2832, 2147483648
  %v2834 = vmul.f32 %v2833, 1.442695
  %v2835 = vpow.pop %v2834
  %v2836 = vadd.f32 %v2835, 1.0
  %v2837 = vrcp.pop %v2836
  %v2838 = vmul.f32 1.0, %v2837
  %v2839 = vtanh.pop %v2832
  %v2840 = vmul.f32 %v2838, %v2577
  %2842 = vrot.lane.b32.xlu0 %v2839, 64
  %v2843 = vpop.permute.xlu0 %2842
  %v2845 = vmul.f32 %v2838, %v2843
  %2847 = vrot.lane.b32.xlu0 %v2845, 32
  %v2848 = vpop.permute.xlu0 %2847
  %v2850 = vadd.f32 %v2840, %v2848
  %v2851 = vtanh.pop %v2850
  %2853 = vrot.lane.b32.xlu0 %v2851, 64
  %v2854 = vpop.permute.xlu0 %2853
  %v2856 = vmul.f32 %v2838, %v2854
  %2858 = vrot.lane.b32.xlu0 %v2856, 32
  %v2859 = vpop.permute.xlu0 %2858
  %2861 = vst.msk [vmem:[#allocation3 + $0x7] sm:$0x1] %vm949, %v2859
  %v2862 = vld [vmem:[#allocation2 + $0x8] sm:$0x1]
  %2863 = vmatprep.subr.mxu0 0.0
  %2864 = vmatpush1.msra.mxu0 %v31
  %2865 = vmatprep.subr.mxu0 0.0
  %2866 = vmatpush1.msra.mxu0 %v32
  %2867 = vmatprep.subr.mxu0 0.0
  %2868 = vmatpush1.msra.mxu0 %v33
  %2869 = vmatprep.subr.mxu0 0.0
  %2870 = vmatpush1.msra.mxu0 %v34
  %2871 = vmatprep.subr.mxu0 0.0
  %2872 = vmatpush1.msra.mxu0 0.0
  %2873 = vmatprep.subr.mxu0 0.0
  %2874 = vmatpush1.msra.mxu0 0.0
  %2875 = vmatprep.subr.mxu0 0.0
  %2876 = vmatpush1.msra.mxu0 0.0
  %2877 = vmatprep.subr.mxu0 0.0
  %2878 = vmatpush1.msra.mxu0 0.0
  %2879 = vmatprep.subr.mxu0 0.0
  %2880 = vmatpush1.msra.mxu0 0.0
  %2881 = vmatprep.subr.mxu0 0.0
  %2882 = vmatpush1.msra.mxu0 0.0
  %2883 = vmatprep.subr.mxu0 0.0
  %2884 = vmatpush1.msra.mxu0 0.0
  %2885 = vmatprep.subr.mxu0 0.0
  %2886 = vmatpush1.msra.mxu0 0.0
  %2887 = vmatprep.subr.mxu0 0.0
  %2888 = vmatpush1.msra.mxu0 0.0
  %2889 = vmatprep.subr.mxu0 0.0
  %2890 = vmatpush1.msra.mxu0 0.0
  %2891 = vmatprep.subr.mxu0 0.0
  %2892 = vmatpush1.msra.mxu0 0.0
  %2893 = vmatprep.subr.mxu0 0.0
  %2894 = vmatpush1.msra.mxu0 0.0
  %2895 = vmatprep.subr.mxu0 0.0
  %2896 = vmatpush1.msra.mxu0 0.0
  %2897 = vmatprep.subr.mxu0 0.0
  %2898 = vmatpush1.msra.mxu0 0.0
  %2899 = vmatprep.subr.mxu0 0.0
  %2900 = vmatpush1.msra.mxu0 0.0
  %2901 = vmatprep.subr.mxu0 0.0
  %2902 = vmatpush1.msra.mxu0 0.0
  %2903 = vmatprep.subr.mxu0 0.0
  %2904 = vmatpush1.msra.mxu0 0.0
  %2905 = vmatprep.subr.mxu0 0.0
  %2906 = vmatpush1.msra.mxu0 0.0
  %2907 = vmatprep.subr.mxu0 0.0
  %2908 = vmatpush1.msra.mxu0 0.0
  %2909 = vmatprep.subr.mxu0 0.0
  %2910 = vmatpush1.msra.mxu0 0.0
  %2911 = vmatprep.subr.mxu0 0.0
  %2912 = vmatpush1.msra.mxu0 0.0
  %2913 = vmatprep.subr.mxu0 0.0
  %2914 = vmatpush1.msra.mxu0 0.0
  %2915 = vmatprep.subr.mxu0 0.0
  %2916 = vmatpush1.msra.mxu0 0.0
  %2917 = vmatprep.subr.mxu0 0.0
  %2918 = vmatpush1.msra.mxu0 0.0
  %2919 = vmatprep.subr.mxu0 0.0
  %2920 = vmatpush1.msra.mxu0 0.0
  %2921 = vmatprep.subr.mxu0 0.0
  %2922 = vmatpush1.msra.mxu0 0.0
  %2923 = vmatprep.subr.mxu0 0.0
  %2924 = vmatpush1.msra.mxu0 0.0
  %2925 = vmatprep.subr.mxu0 0.0
  %2926 = vmatpush1.msra.mxu0 0.0
  %2927 = vmatprep.mubr.f32.mxu0 0.0
  %2928 = vmatmul.mubr.f32.gmra.mrb[0].mxu0 %v2688
  %v2929 = vpop.f32.mrb[0].mxu0
  %v2930 = vadd.f32 0.0, %v2929
  %v2931 = vpop.f32.mrb[0].mxu0
  %2932 = vdwg.mxu0
  %v2933 = vadd.f32 %v2862, %v2930
  %v2934 = vxor.u32 %v2933, 2147483648
  %v2935 = vmul.f32 %v2934, 1.442695
  %v2936 = vpow.pop %v2935
  %v2937 = vadd.f32 %v2936, 1.0
  %v2938 = vrcp.pop %v2937
  %v2939 = vmul.f32 1.0, %v2938
  %v2940 = vtanh.pop %v2933
  %v2941 = vmul.f32 %v2939, %v2678
  %2943 = vrot.lane.b32.xlu0 %v2940, 64
  %v2944 = vpop.permute.xlu0 %2943
  %v2946 = vmul.f32 %v2939, %v2944
  %2948 = vrot.lane.b32.xlu0 %v2946, 32
  %v2949 = vpop.permute.xlu0 %2948
  %v2951 = vadd.f32 %v2941, %v2949
  %v2952 = vtanh.pop %v2951
  %2954 = vrot.lane.b32.xlu0 %v2952, 64
  %v2955 = vpop.permute.xlu0 %2954
  %v2957 = vmul.f32 %v2939, %v2955
  %2959 = vrot.lane.b32.xlu0 %v2957, 32
  %v2960 = vpop.permute.xlu0 %2959
  %v2961 = vsel %vm576, %v2960, 0
  %2963 = vmatprep.subr.mxu0 0.0
  %2964 = vmatpush1.msra.mxu0 %v35
  %2965 = vmatprep.subr.mxu0 0.0
  %2966 = vmatpush1.msra.mxu0 %v36
  %2967 = vmatprep.subr.mxu0 0.0
  %2968 = vmatpush1.msra.mxu0 %v37
  %2969 = vmatprep.subr.mxu0 0.0
  %2970 = vmatpush1.msra.mxu0 %v38
  %2971 = vmatprep.subr.mxu0 0.0
  %2972 = vmatpush1.msra.mxu0 0.0
  %2973 = vmatprep.subr.mxu0 0.0
  %2974 = vmatpush1.msra.mxu0 0.0
  %2975 = vmatprep.subr.mxu0 0.0
  %2976 = vmatpush1.msra.mxu0 0.0
  %2977 = vmatprep.subr.mxu0 0.0
  %2978 = vmatpush1.msra.mxu0 0.0
  %2979 = vmatprep.subr.mxu0 0.0
  %2980 = vmatpush1.msra.mxu0 0.0
  %2981 = vmatprep.subr.mxu0 0.0
  %2982 = vmatpush1.msra.mxu0 0.0
  %2983 = vmatprep.subr.mxu0 0.0
  %2984 = vmatpush1.msra.mxu0 0.0
  %2985 = vmatprep.subr.mxu0 0.0
  %2986 = vmatpush1.msra.mxu0 0.0
  %2987 = vmatprep.subr.mxu0 0.0
  %2988 = vmatpush1.msra.mxu0 0.0
  %2989 = vmatprep.subr.mxu0 0.0
  %2990 = vmatpush1.msra.mxu0 0.0
  %2991 = vmatprep.subr.mxu0 0.0
  %2992 = vmatpush1.msra.mxu0 0.0
  %2993 = vmatprep.subr.mxu0 0.0
  %2994 = vmatpush1.msra.mxu0 0.0
  %2995 = vmatprep.subr.mxu0 0.0
  %2996 = vmatpush1.msra.mxu0 0.0
  %2997 = vmatprep.subr.mxu0 0.0
  %2998 = vmatpush1.msra.mxu0 0.0
  %2999 = vmatprep.subr.mxu0 0.0
  %3000 = vmatpush1.msra.mxu0 0.0
  %3001 = vmatprep.subr.mxu0 0.0
  %3002 = vmatpush1.msra.mxu0 0.0
  %3003 = vmatprep.subr.mxu0 0.0
  %3004 = vmatpush1.msra.mxu0 0.0
  %3005 = vmatprep.subr.mxu0 0.0
  %3006 = vmatpush1.msra.mxu0 0.0
  %3007 = vmatprep.subr.mxu0 0.0
  %3008 = vmatpush1.msra.mxu0 0.0
  %3009 = vmatprep.subr.mxu0 0.0
  %3010 = vmatpush1.msra.mxu0 0.0
  %3011 = vmatprep.subr.mxu0 0.0
  %3012 = vmatpush1.msra.mxu0 0.0
  %3013 = vmatprep.subr.mxu0 0.0
  %3014 = vmatpush1.msra.mxu0 0.0
  %3015 = vmatprep.subr.mxu0 0.0
  %3016 = vmatpush1.msra.mxu0 0.0
  %3017 = vmatprep.subr.mxu0 0.0
  %3018 = vmatpush1.msra.mxu0 0.0
  %3019 = vmatprep.subr.mxu0 0.0
  %3020 = vmatpush1.msra.mxu0 0.0
  %3021 = vmatprep.subr.mxu0 0.0
  %3022 = vmatpush1.msra.mxu0 0.0
  %3023 = vmatprep.subr.mxu0 0.0
  %3024 = vmatpush1.msra.mxu0 0.0
  %3025 = vmatprep.subr.mxu0 0.0
  %3026 = vmatpush1.msra.mxu0 0.0
  %3027 = vmatprep.mubr.f32.mxu0 0.0
  %3028 = vmatmul.mubr.f32.gmra.mrb[0].mxu0 %v2961
  %v3029 = vpop.f32.mrb[0].mxu0
  %v3030 = vadd.f32 %v24, %v3029
  %v3031 = vpop.f32.mrb[0].mxu0
  %3032 = vdwg.mxu0
  %v3033 = vsel %vm576, %v2859, 0
  %3035 = vmatprep.subr.mxu0 0.0
  %3036 = vmatpush1.msra.mxu0 %v39
  %3037 = vmatprep.subr.mxu0 0.0
  %3038 = vmatpush1.msra.mxu0 %v40
  %3039 = vmatprep.subr.mxu0 0.0
  %3040 = vmatpush1.msra.mxu0 %v41
  %3041 = vmatprep.subr.mxu0 0.0
  %3042 = vmatpush1.msra.mxu0 %v42
  %3043 = vmatprep.subr.mxu0 0.0
  %3044 = vmatpush1.msra.mxu0 0.0
  %3045 = vmatprep.subr.mxu0 0.0
  %3046 = vmatpush1.msra.mxu0 0.0
  %3047 = vmatprep.subr.mxu0 0.0
  %3048 = vmatpush1.msra.mxu0 0.0
  %3049 = vmatprep.subr.mxu0 0.0
  %3050 = vmatpush1.msra.mxu0 0.0
  %3051 = vmatprep.subr.mxu0 0.0
  %3052 = vmatpush1.msra.mxu0 0.0
  %3053 = vmatprep.subr.mxu0 0.0
  %3054 = vmatpush1.msra.mxu0 0.0
  %3055 = vmatprep.subr.mxu0 0.0
  %3056 = vmatpush1.msra.mxu0 0.0
  %3057 = vmatprep.subr.mxu0 0.0
  %3058 = vmatpush1.msra.mxu0 0.0
  %3059 = vmatprep.subr.mxu0 0.0
  %3060 = vmatpush1.msra.mxu0 0.0
  %3061 = vmatprep.subr.mxu0 0.0
  %3062 = vmatpush1.msra.mxu0 0.0
  %3063 = vmatprep.subr.mxu0 0.0
  %3064 = vmatpush1.msra.mxu0 0.0
  %3065 = vmatprep.subr.mxu0 0.0
  %3066 = vmatpush1.msra.mxu0 0.0
  %3067 = vmatprep.subr.mxu0 0.0
  %3068 = vmatpush1.msra.mxu0 0.0
  %3069 = vmatprep.subr.mxu0 0.0
  %3070 = vmatpush1.msra.mxu0 0.0
  %3071 = vmatprep.subr.mxu0 0.0
  %3072 = vmatpush1.msra.mxu0 0.0
  %3073 = vmatprep.subr.mxu0 0.0
  %3074 = vmatpush1.msra.mxu0 0.0
  %3075 = vmatprep.subr.mxu0 0.0
  %3076 = vmatpush1.msra.mxu0 0.0
  %3077 = vmatprep.subr.mxu0 0.0
  %3078 = vmatpush1.msra.mxu0 0.0
  %3079 = vmatprep.subr.mxu0 0.0
  %3080 = vmatpush1.msra.mxu0 0.0
  %3081 = vmatprep.subr.mxu0 0.0
  %3082 = vmatpush1.msra.mxu0 0.0
  %3083 = vmatprep.subr.mxu0 0.0
  %3084 = vmatpush1.msra.mxu0 0.0
  %3085 = vmatprep.subr.mxu0 0.0
  %3086 = vmatpush1.msra.mxu0 0.0
  %3087 = vmatprep.subr.mxu0 0.0
  %3088 = vmatpush1.msra.mxu0 0.0
  %3089 = vmatprep.subr.mxu0 0.0
  %3090 = vmatpush1.msra.mxu0 0.0
  %3091 = vmatprep.subr.mxu0 0.0
  %3092 = vmatpush1.msra.mxu0 0.0
  %3093 = vmatprep.subr.mxu0 0.0
  %3094 = vmatpush1.msra.mxu0 0.0
  %3095 = vmatprep.subr.mxu0 0.0
  %3096 = vmatpush1.msra.mxu0 0.0
  %3097 = vmatprep.subr.mxu0 0.0
  %3098 = vmatpush1.msra.mxu0 0.0
  %3099 = vmatprep.mubr.f32.mxu0 0.0
  %3100 = vmatmul.mubr.f32.gmra.mrb[0].mxu0 %v3033
  %v3101 = vpop.f32.mrb[0].mxu0
  %v3102 = vadd.f32 0.0, %v3101
  %v3103 = vpop.f32.mrb[0].mxu0
  %3104 = vdwg.mxu0
  %v3105 = vadd.f32 %v3030, %v3102
  %v3106 = vxor.u32 %v3105, 2147483648
  %v3107 = vmul.f32 %v3106, 1.442695
  %v3108 = vpow.pop %v3107
  %v3109 = vadd.f32 %v3108, 1.0
  %v3110 = vrcp.pop %v3109
  %v3111 = vmul.f32 1.0, %v3110
  %v3112 = vtanh.pop %v3105
  %v3113 = vmul.f32 %v3111, %v2850
  %3115 = vrot.lane.b32.xlu0 %v3112, 64
  %v3116 = vpop.permute.xlu0 %3115
  %v3118 = vmul.f32 %v3111, %v3116
  %3120 = vrot.lane.b32.xlu0 %v3118, 32
  %v3121 = vpop.permute.xlu0 %3120
  %v3123 = vadd.f32 %v3113, %v3121
  %v3124 = vtanh.pop %v3123
  %3126 = vrot.lane.b32.xlu0 %v3124, 64
  %v3127 = vpop.permute.xlu0 %3126
  %v3129 = vmul.f32 %v3111, %v3127
  %3131 = vrot.lane.b32.xlu0 %v3129, 32
  %v3132 = vpop.permute.xlu0 %3131
  %3134 = vst.msk [vmem:[#allocation3 + $0x8] sm:$0x1] %vm949, %v3132
  %v3135 = vld [vmem:[#allocation2 + $0x9] sm:$0x1]
  %3136 = vmatprep.subr.mxu0 0.0
  %3137 = vmatpush1.msra.mxu0 %v31
  %3138 = vmatprep.subr.mxu0 0.0
  %3139 = vmatpush1.msra.mxu0 %v32
  %3140 = vmatprep.subr.mxu0 0.0
  %3141 = vmatpush1.msra.mxu0 %v33
  %3142 = vmatprep.subr.mxu0 0.0
  %3143 = vmatpush1.msra.mxu0 %v34
  %3144 = vmatprep.subr.mxu0 0.0
  %3145 = vmatpush1.msra.mxu0 0.0
  %3146 = vmatprep.subr.mxu0 0.0
  %3147 = vmatpush1.msra.mxu0 0.0
  %3148 = vmatprep.subr.mxu0 0.0
  %3149 = vmatpush1.msra.mxu0 0.0
  %3150 = vmatprep.subr.mxu0 0.0
  %3151 = vmatpush1.msra.mxu0 0.0
  %3152 = vmatprep.subr.mxu0 0.0
  %3153 = vmatpush1.msra.mxu0 0.0
  %3154 = vmatprep.subr.mxu0 0.0
  %3155 = vmatpush1.msra.mxu0 0.0
  %3156 = vmatprep.subr.mxu0 0.0
  %3157 = vmatpush1.msra.mxu0 0.0
  %3158 = vmatprep.subr.mxu0 0.0
  %3159 = vmatpush1.msra.mxu0 0.0
  %3160 = vmatprep.subr.mxu0 0.0
  %3161 = vmatpush1.msra.mxu0 0.0
  %3162 = vmatprep.subr.mxu0 0.0
  %3163 = vmatpush1.msra.mxu0 0.0
  %3164 = vmatprep.subr.mxu0 0.0
  %3165 = vmatpush1.msra.mxu0 0.0
  %3166 = vmatprep.subr.mxu0 0.0
  %3167 = vmatpush1.msra.mxu0 0.0
  %3168 = vmatprep.subr.mxu0 0.0
  %3169 = vmatpush1.msra.mxu0 0.0
  %3170 = vmatprep.subr.mxu0 0.0
  %3171 = vmatpush1.msra.mxu0 0.0
  %3172 = vmatprep.subr.mxu0 0.0
  %3173 = vmatpush1.msra.mxu0 0.0
  %3174 = vmatprep.subr.mxu0 0.0
  %3175 = vmatpush1.msra.mxu0 0.0
  %3176 = vmatprep.subr.mxu0 0.0
  %3177 = vmatpush1.msra.mxu0 0.0
  %3178 = vmatprep.subr.mxu0 0.0
  %3179 = vmatpush1.msra.mxu0 0.0
  %3180 = vmatprep.subr.mxu0 0.0
  %3181 = vmatpush1.msra.mxu0 0.0
  %3182 = vmatprep.subr.mxu0 0.0
  %3183 = vmatpush1.msra.mxu0 0.0
  %3184 = vmatprep.subr.mxu0 0.0
  %3185 = vmatpush1.msra.mxu0 0.0
  %3186 = vmatprep.subr.mxu0 0.0
  %3187 = vmatpush1.msra.mxu0 0.0
  %3188 = vmatprep.subr.mxu0 0.0
  %3189 = vmatpush1.msra.mxu0 0.0
  %3190 = vmatprep.subr.mxu0 0.0
  %3191 = vmatpush1.msra.mxu0 0.0
  %3192 = vmatprep.subr.mxu0 0.0
  %3193 = vmatpush1.msra.mxu0 0.0
  %3194 = vmatprep.subr.mxu0 0.0
  %3195 = vmatpush1.msra.mxu0 0.0
  %3196 = vmatprep.subr.mxu0 0.0
  %3197 = vmatpush1.msra.mxu0 0.0
  %3198 = vmatprep.subr.mxu0 0.0
  %3199 = vmatpush1.msra.mxu0 0.0
  %3200 = vmatprep.mubr.f32.mxu0 0.0
  %3201 = vmatmul.mubr.f32.gmra.mrb[0].mxu0 %v2961
  %v3202 = vpop.f32.mrb[0].mxu0
  %v3203 = vadd.f32 0.0, %v3202
  %v3204 = vpop.f32.mrb[0].mxu0
  %3205 = vdwg.mxu0
  %v3206 = vadd.f32 %v3135, %v3203
  %v3207 = vxor.u32 %v3206, 2147483648
  %v3208 = vmul.f32 %v3207, 1.442695
  %v3209 = vpow.pop %v3208
  %v3210 = vadd.f32 %v3209, 1.0
  %v3211 = vrcp.pop %v3210
  %v3212 = vmul.f32 1.0, %v3211
  %v3213 = vtanh.pop %v3206
  %v3214 = vmul.f32 %v3212, %v2951
  %3216 = vrot.lane.b32.xlu0 %v3213, 64
  %v3217 = vpop.permute.xlu0 %3216
  %v3219 = vmul.f32 %v3212, %v3217
  %3221 = vrot.lane.b32.xlu0 %v3219, 32
  %v3222 = vpop.permute.xlu0 %3221
  %v3224 = vadd.f32 %v3214, %v3222
  %v3225 = vtanh.pop %v3224
  %3227 = vrot.lane.b32.xlu0 %v3225, 64
  %v3228 = vpop.permute.xlu0 %3227
  %v3230 = vmul.f32 %v3212, %v3228
  %3232 = vrot.lane.b32.xlu0 %v3230, 32
  %v3233 = vpop.permute.xlu0 %3232
  %v3234 = vsel %vm576, %v3233, 0
  %3236 = vmatprep.subr.mxu0 0.0
  %3237 = vmatpush1.msra.mxu0 %v35
  %3238 = vmatprep.subr.mxu0 0.0
  %3239 = vmatpush1.msra.mxu0 %v36
  %3240 = vmatprep.subr.mxu0 0.0
  %3241 = vmatpush1.msra.mxu0 %v37
  %3242 = vmatprep.subr.mxu0 0.0
  %3243 = vmatpush1.msra.mxu0 %v38
  %3244 = vmatprep.subr.mxu0 0.0
  %3245 = vmatpush1.msra.mxu0 0.0
  %3246 = vmatprep.subr.mxu0 0.0
  %3247 = vmatpush1.msra.mxu0 0.0
  %3248 = vmatprep.subr.mxu0 0.0
  %3249 = vmatpush1.msra.mxu0 0.0
  %3250 = vmatprep.subr.mxu0 0.0
  %3251 = vmatpush1.msra.mxu0 0.0
  %3252 = vmatprep.subr.mxu0 0.0
  %3253 = vmatpush1.msra.mxu0 0.0
  %3254 = vmatprep.subr.mxu0 0.0
  %3255 = vmatpush1.msra.mxu0 0.0
  %3256 = vmatprep.subr.mxu0 0.0
  %3257 = vmatpush1.msra.mxu0 0.0
  %3258 = vmatprep.subr.mxu0 0.0
  %3259 = vmatpush1.msra.mxu0 0.0
  %3260 = vmatprep.subr.mxu0 0.0
  %3261 = vmatpush1.msra.mxu0 0.0
  %3262 = vmatprep.subr.mxu0 0.0
  %3263 = vmatpush1.msra.mxu0 0.0
  %3264 = vmatprep.subr.mxu0 0.0
  %3265 = vmatpush1.msra.mxu0 0.0
  %3266 = vmatprep.subr.mxu0 0.0
  %3267 = vmatpush1.msra.mxu0 0.0
  %3268 = vmatprep.subr.mxu0 0.0
  %3269 = vmatpush1.msra.mxu0 0.0
  %3270 = vmatprep.subr.mxu0 0.0
  %3271 = vmatpush1.msra.mxu0 0.0
  %3272 = vmatprep.subr.mxu0 0.0
  %3273 = vmatpush1.msra.mxu0 0.0
  %3274 = vmatprep.subr.mxu0 0.0
  %3275 = vmatpush1.msra.mxu0 0.0
  %3276 = vmatprep.subr.mxu0 0.0
  %3277 = vmatpush1.msra.mxu0 0.0
  %3278 = vmatprep.subr.mxu0 0.0
  %3279 = vmatpush1.msra.mxu0 0.0
  %3280 = vmatprep.subr.mxu0 0.0
  %3281 = vmatpush1.msra.mxu0 0.0
  %3282 = vmatprep.subr.mxu0 0.0
  %3283 = vmatpush1.msra.mxu0 0.0
  %3284 = vmatprep.subr.mxu0 0.0
  %3285 = vmatpush1.msra.mxu0 0.0
  %3286 = vmatprep.subr.mxu0 0.0
  %3287 = vmatpush1.msra.mxu0 0.0
  %3288 = vmatprep.subr.mxu0 0.0
  %3289 = vmatpush1.msra.mxu0 0.0
  %3290 = vmatprep.subr.mxu0 0.0
  %3291 = vmatpush1.msra.mxu0 0.0
  %3292 = vmatprep.subr.mxu0 0.0
  %3293 = vmatpush1.msra.mxu0 0.0
  %3294 = vmatprep.subr.mxu0 0.0
  %3295 = vmatpush1.msra.mxu0 0.0
  %3296 = vmatprep.subr.mxu0 0.0
  %3297 = vmatpush1.msra.mxu0 0.0
  %3298 = vmatprep.subr.mxu0 0.0
  %3299 = vmatpush1.msra.mxu0 0.0
  %3300 = vmatprep.mubr.f32.mxu0 0.0
  %3301 = vmatmul.mubr.f32.gmra.mrb[0].mxu0 %v3234
  %v3302 = vpop.f32.mrb[0].mxu0
  %v3303 = vadd.f32 %v24, %v3302
  %v3304 = vpop.f32.mrb[0].mxu0
  %3305 = vdwg.mxu0
  %v3306 = vsel %vm576, %v3132, 0
  %3308 = vmatprep.subr.mxu0 0.0
  %3309 = vmatpush1.msra.mxu0 %v39
  %3310 = vmatprep.subr.mxu0 0.0
  %3311 = vmatpush1.msra.mxu0 %v40
  %3312 = vmatprep.subr.mxu0 0.0
  %3313 = vmatpush1.msra.mxu0 %v41
  %3314 = vmatprep.subr.mxu0 0.0
  %3315 = vmatpush1.msra.mxu0 %v42
  %3316 = vmatprep.subr.mxu0 0.0
  %3317 = vmatpush1.msra.mxu0 0.0
  %3318 = vmatprep.subr.mxu0 0.0
  %3319 = vmatpush1.msra.mxu0 0.0
  %3320 = vmatprep.subr.mxu0 0.0
  %3321 = vmatpush1.msra.mxu0 0.0
  %3322 = vmatprep.subr.mxu0 0.0
  %3323 = vmatpush1.msra.mxu0 0.0
  %3324 = vmatprep.subr.mxu0 0.0
  %3325 = vmatpush1.msra.mxu0 0.0
  %3326 = vmatprep.subr.mxu0 0.0
  %3327 = vmatpush1.msra.mxu0 0.0
  %3328 = vmatprep.subr.mxu0 0.0
  %3329 = vmatpush1.msra.mxu0 0.0
  %3330 = vmatprep.subr.mxu0 0.0
  %3331 = vmatpush1.msra.mxu0 0.0
  %3332 = vmatprep.subr.mxu0 0.0
  %3333 = vmatpush1.msra.mxu0 0.0
  %3334 = vmatprep.subr.mxu0 0.0
  %3335 = vmatpush1.msra.mxu0 0.0
  %3336 = vmatprep.subr.mxu0 0.0
  %3337 = vmatpush1.msra.mxu0 0.0
  %3338 = vmatprep.subr.mxu0 0.0
  %3339 = vmatpush1.msra.mxu0 0.0
  %3340 = vmatprep.subr.mxu0 0.0
  %3341 = vmatpush1.msra.mxu0 0.0
  %3342 = vmatprep.subr.mxu0 0.0
  %3343 = vmatpush1.msra.mxu0 0.0
  %3344 = vmatprep.subr.mxu0 0.0
  %3345 = vmatpush1.msra.mxu0 0.0
  %3346 = vmatprep.subr.mxu0 0.0
  %3347 = vmatpush1.msra.mxu0 0.0
  %3348 = vmatprep.subr.mxu0 0.0
  %3349 = vmatpush1.msra.mxu0 0.0
  %3350 = vmatprep.subr.mxu0 0.0
  %3351 = vmatpush1.msra.mxu0 0.0
  %3352 = vmatprep.subr.mxu0 0.0
  %3353 = vmatpush1.msra.mxu0 0.0
  %3354 = vmatprep.subr.mxu0 0.0
  %3355 = vmatpush1.msra.mxu0 0.0
  %3356 = vmatprep.subr.mxu0 0.0
  %3357 = vmatpush1.msra.mxu0 0.0
  %3358 = vmatprep.subr.mxu0 0.0
  %3359 = vmatpush1.msra.mxu0 0.0
  %3360 = vmatprep.subr.mxu0 0.0
  %3361 = vmatpush1.msra.mxu0 0.0
  %3362 = vmatprep.subr.mxu0 0.0
  %3363 = vmatpush1.msra.mxu0 0.0
  %3364 = vmatprep.subr.mxu0 0.0
  %3365 = vmatpush1.msra.mxu0 0.0
  %3366 = vmatprep.subr.mxu0 0.0
  %3367 = vmatpush1.msra.mxu0 0.0
  %3368 = vmatprep.subr.mxu0 0.0
  %3369 = vmatpush1.msra.mxu0 0.0
  %3370 = vmatprep.subr.mxu0 0.0
  %3371 = vmatpush1.msra.mxu0 0.0
  %3372 = vmatprep.mubr.f32.mxu0 0.0
  %3373 = vmatmul.mubr.f32.gmra.mrb[0].mxu0 %v3306
  %v3374 = vpop.f32.mrb[0].mxu0
  %v3375 = vadd.f32 0.0, %v3374
  %v3376 = vpop.f32.mrb[0].mxu0
  %3377 = vdwg.mxu0
  %v3378 = vadd.f32 %v3303, %v3375
  %v3379 = vxor.u32 %v3378, 2147483648
  %v3380 = vmul.f32 %v3379, 1.442695
  %v3381 = vpow.pop %v3380
  %v3382 = vadd.f32 %v3381, 1.0
  %v3383 = vrcp.pop %v3382
  %v3384 = vmul.f32 1.0, %v3383
  %v3385 = vtanh.pop %v3378
  %v3386 = vmul.f32 %v3384, %v3123
  %3388 = vrot.lane.b32.xlu0 %v3385, 64
  %v3389 = vpop.permute.xlu0 %3388
  %v3391 = vmul.f32 %v3384, %v3389
  %3393 = vrot.lane.b32.xlu0 %v3391, 32
  %v3394 = vpop.permute.xlu0 %3393
  %v3396 = vadd.f32 %v3386, %v3394
  %v3397 = vtanh.pop %v3396
  %3399 = vrot.lane.b32.xlu0 %v3397, 64
  %v3400 = vpop.permute.xlu0 %3399
  %v3402 = vmul.f32 %v3384, %v3400
  %3404 = vrot.lane.b32.xlu0 %v3402, 32
  %v3405 = vpop.permute.xlu0 %3404
  %3407 = vst.msk [vmem:[#allocation3 + $0x9] sm:$0x1] %vm949, %v3405
  %v3408 = vld [vmem:[#allocation2 + $0xa] sm:$0x1]
  %3409 = vmatprep.subr.mxu0 0.0
  %3410 = vmatpush1.msra.mxu0 %v31
  %3411 = vmatprep.subr.mxu0 0.0
  %3412 = vmatpush1.msra.mxu0 %v32
  %3413 = vmatprep.subr.mxu0 0.0
  %3414 = vmatpush1.msra.mxu0 %v33
  %3415 = vmatprep.subr.mxu0 0.0
  %3416 = vmatpush1.msra.mxu0 %v34
  %3417 = vmatprep.subr.mxu0 0.0
  %3418 = vmatpush1.msra.mxu0 0.0
  %3419 = vmatprep.subr.mxu0 0.0
  %3420 = vmatpush1.msra.mxu0 0.0
  %3421 = vmatprep.subr.mxu0 0.0
  %3422 = vmatpush1.msra.mxu0 0.0
  %3423 = vmatprep.subr.mxu0 0.0
  %3424 = vmatpush1.msra.mxu0 0.0
  %3425 = vmatprep.subr.mxu0 0.0
  %3426 = vmatpush1.msra.mxu0 0.0
  %3427 = vmatprep.subr.mxu0 0.0
  %3428 = vmatpush1.msra.mxu0 0.0
  %3429 = vmatprep.subr.mxu0 0.0
  %3430 = vmatpush1.msra.mxu0 0.0
  %3431 = vmatprep.subr.mxu0 0.0
  %3432 = vmatpush1.msra.mxu0 0.0
  %3433 = vmatprep.subr.mxu0 0.0
  %3434 = vmatpush1.msra.mxu0 0.0
  %3435 = vmatprep.subr.mxu0 0.0
  %3436 = vmatpush1.msra.mxu0 0.0
  %3437 = vmatprep.subr.mxu0 0.0
  %3438 = vmatpush1.msra.mxu0 0.0
  %3439 = vmatprep.subr.mxu0 0.0
  %3440 = vmatpush1.msra.mxu0 0.0
  %3441 = vmatprep.subr.mxu0 0.0
  %3442 = vmatpush1.msra.mxu0 0.0
  %3443 = vmatprep.subr.mxu0 0.0
  %3444 = vmatpush1.msra.mxu0 0.0
  %3445 = vmatprep.subr.mxu0 0.0
  %3446 = vmatpush1.msra.mxu0 0.0
  %3447 = vmatprep.subr.mxu0 0.0
  %3448 = vmatpush1.msra.mxu0 0.0
  %3449 = vmatprep.subr.mxu0 0.0
  %3450 = vmatpush1.msra.mxu0 0.0
  %3451 = vmatprep.subr.mxu0 0.0
  %3452 = vmatpush1.msra.mxu0 0.0
  %3453 = vmatprep.subr.mxu0 0.0
  %3454 = vmatpush1.msra.mxu0 0.0
  %3455 = vmatprep.subr.mxu0 0.0
  %3456 = vmatpush1.msra.mxu0 0.0
  %3457 = vmatprep.subr.mxu0 0.0
  %3458 = vmatpush1.msra.mxu0 0.0
  %3459 = vmatprep.subr.mxu0 0.0
  %3460 = vmatpush1.msra.mxu0 0.0
  %3461 = vmatprep.subr.mxu0 0.0
  %3462 = vmatpush1.msra.mxu0 0.0
  %3463 = vmatprep.subr.mxu0 0.0
  %3464 = vmatpush1.msra.mxu0 0.0
  %3465 = vmatprep.subr.mxu0 0.0
  %3466 = vmatpush1.msra.mxu0 0.0
  %3467 = vmatprep.subr.mxu0 0.0
  %3468 = vmatpush1.msra.mxu0 0.0
  %3469 = vmatprep.subr.mxu0 0.0
  %3470 = vmatpush1.msra.mxu0 0.0
  %3471 = vmatprep.subr.mxu0 0.0
  %3472 = vmatpush1.msra.mxu0 0.0
  %3473 = vmatprep.mubr.f32.mxu0 0.0
  %3474 = vmatmul.mubr.f32.gmra.mrb[0].mxu0 %v3234
  %v3475 = vpop.f32.mrb[0].mxu0
  %v3476 = vadd.f32 0.0, %v3475
  %v3477 = vpop.f32.mrb[0].mxu0
  %3478 = vdwg.mxu0
  %v3479 = vadd.f32 %v3408, %v3476
  %v3480 = vxor.u32 %v3479, 2147483648
  %v3481 = vmul.f32 %v3480, 1.442695
  %v3482 = vpow.pop %v3481
  %v3483 = vadd.f32 %v3482, 1.0
  %v3484 = vrcp.pop %v3483
  %v3485 = vmul.f32 1.0, %v3484
  %v3486 = vtanh.pop %v3479
  %v3487 = vmul.f32 %v3485, %v3224
  %3489 = vrot.lane.b32.xlu0 %v3486, 64
  %v3490 = vpop.permute.xlu0 %3489
  %v3492 = vmul.f32 %v3485, %v3490
  %3494 = vrot.lane.b32.xlu0 %v3492, 32
  %v3495 = vpop.permute.xlu0 %3494
  %v3497 = vadd.f32 %v3487, %v3495
  %v3498 = vtanh.pop %v3497
  %3500 = vrot.lane.b32.xlu0 %v3498, 64
  %v3501 = vpop.permute.xlu0 %3500
  %v3503 = vmul.f32 %v3485, %v3501
  %3505 = vrot.lane.b32.xlu0 %v3503, 32
  %v3506 = vpop.permute.xlu0 %3505
  %v3507 = vsel %vm576, %v3506, 0
  %3509 = vmatprep.subr.mxu0 0.0
  %3510 = vmatpush1.msra.mxu0 %v35
  %3511 = vmatprep.subr.mxu0 0.0
  %3512 = vmatpush1.msra.mxu0 %v36
  %3513 = vmatprep.subr.mxu0 0.0
  %3514 = vmatpush1.msra.mxu0 %v37
  %3515 = vmatprep.subr.mxu0 0.0
  %3516 = vmatpush1.msra.mxu0 %v38
  %3517 = vmatprep.subr.mxu0 0.0
  %3518 = vmatpush1.msra.mxu0 0.0
  %3519 = vmatprep.subr.mxu0 0.0
  %3520 = vmatpush1.msra.mxu0 0.0
  %3521 = vmatprep.subr.mxu0 0.0
  %3522 = vmatpush1.msra.mxu0 0.0
  %3523 = vmatprep.subr.mxu0 0.0
  %3524 = vmatpush1.msra.mxu0 0.0
  %3525 = vmatprep.subr.mxu0 0.0
  %3526 = vmatpush1.msra.mxu0 0.0
  %3527 = vmatprep.subr.mxu0 0.0
  %3528 = vmatpush1.msra.mxu0 0.0
  %3529 = vmatprep.subr.mxu0 0.0
  %3530 = vmatpush1.msra.mxu0 0.0
  %3531 = vmatprep.subr.mxu0 0.0
  %3532 = vmatpush1.msra.mxu0 0.0
  %3533 = vmatprep.subr.mxu0 0.0
  %3534 = vmatpush1.msra.mxu0 0.0
  %3535 = vmatprep.subr.mxu0 0.0
  %3536 = vmatpush1.msra.mxu0 0.0
  %3537 = vmatprep.subr.mxu0 0.0
  %3538 = vmatpush1.msra.mxu0 0.0
  %3539 = vmatprep.subr.mxu0 0.0
  %3540 = vmatpush1.msra.mxu0 0.0
  %3541 = vmatprep.subr.mxu0 0.0
  %3542 = vmatpush1.msra.mxu0 0.0
  %3543 = vmatprep.subr.mxu0 0.0
  %3544 = vmatpush1.msra.mxu0 0.0
  %3545 = vmatprep.subr.mxu0 0.0
  %3546 = vmatpush1.msra.mxu0 0.0
  %3547 = vmatprep.subr.mxu0 0.0
  %3548 = vmatpush1.msra.mxu0 0.0
  %3549 = vmatprep.subr.mxu0 0.0
  %3550 = vmatpush1.msra.mxu0 0.0
  %3551 = vmatprep.subr.mxu0 0.0
  %3552 = vmatpush1.msra.mxu0 0.0
  %3553 = vmatprep.subr.mxu0 0.0
  %3554 = vmatpush1.msra.mxu0 0.0
  %3555 = vmatprep.subr.mxu0 0.0
  %3556 = vmatpush1.msra.mxu0 0.0
  %3557 = vmatprep.subr.mxu0 0.0
  %3558 = vmatpush1.msra.mxu0 0.0
  %3559 = vmatprep.subr.mxu0 0.0
  %3560 = vmatpush1.msra.mxu0 0.0
  %3561 = vmatprep.subr.mxu0 0.0
  %3562 = vmatpush1.msra.mxu0 0.0
  %3563 = vmatprep.subr.mxu0 0.0
  %3564 = vmatpush1.msra.mxu0 0.0
  %3565 = vmatprep.subr.mxu0 0.0
  %3566 = vmatpush1.msra.mxu0 0.0
  %3567 = vmatprep.subr.mxu0 0.0
  %3568 = vmatpush1.msra.mxu0 0.0
  %3569 = vmatprep.subr.mxu0 0.0
  %3570 = vmatpush1.msra.mxu0 0.0
  %3571 = vmatprep.subr.mxu0 0.0
  %3572 = vmatpush1.msra.mxu0 0.0
  %3573 = vmatprep.mubr.f32.mxu0 0.0
  %3574 = vmatmul.mubr.f32.gmra.mrb[0].mxu0 %v3507
  %v3575 = vpop.f32.mrb[0].mxu0
  %v3576 = vadd.f32 %v24, %v3575
  %v3577 = vpop.f32.mrb[0].mxu0
  %3578 = vdwg.mxu0
  %v3579 = vsel %vm576, %v3405, 0
  %3581 = vmatprep.subr.mxu0 0.0
  %3582 = vmatpush1.msra.mxu0 %v39
  %3583 = vmatprep.subr.mxu0 0.0
  %3584 = vmatpush1.msra.mxu0 %v40
  %3585 = vmatprep.subr.mxu0 0.0
  %3586 = vmatpush1.msra.mxu0 %v41
  %3587 = vmatprep.subr.mxu0 0.0
  %3588 = vmatpush1.msra.mxu0 %v42
  %3589 = vmatprep.subr.mxu0 0.0
  %3590 = vmatpush1.msra.mxu0 0.0
  %3591 = vmatprep.subr.mxu0 0.0
  %3592 = vmatpush1.msra.mxu0 0.0
  %3593 = vmatprep.subr.mxu0 0.0
  %3594 = vmatpush1.msra.mxu0 0.0
  %3595 = vmatprep.subr.mxu0 0.0
  %3596 = vmatpush1.msra.mxu0 0.0
  %3597 = vmatprep.subr.mxu0 0.0
  %3598 = vmatpush1.msra.mxu0 0.0
  %3599 = vmatprep.subr.mxu0 0.0
  %3600 = vmatpush1.msra.mxu0 0.0
  %3601 = vmatprep.subr.mxu0 0.0
  %3602 = vmatpush1.msra.mxu0 0.0
  %3603 = vmatprep.subr.mxu0 0.0
  %3604 = vmatpush1.msra.mxu0 0.0
  %3605 = vmatprep.subr.mxu0 0.0
  %3606 = vmatpush1.msra.mxu0 0.0
  %3607 = vmatprep.subr.mxu0 0.0
  %3608 = vmatpush1.msra.mxu0 0.0
  %3609 = vmatprep.subr.mxu0 0.0
  %3610 = vmatpush1.msra.mxu0 0.0
  %3611 = vmatprep.subr.mxu0 0.0
  %3612 = vmatpush1.msra.mxu0 0.0
  %3613 = vmatprep.subr.mxu0 0.0
  %3614 = vmatpush1.msra.mxu0 0.0
  %3615 = vmatprep.subr.mxu0 0.0
  %3616 = vmatpush1.msra.mxu0 0.0
  %3617 = vmatprep.subr.mxu0 0.0
  %3618 = vmatpush1.msra.mxu0 0.0
  %3619 = vmatprep.subr.mxu0 0.0
  %3620 = vmatpush1.msra.mxu0 0.0
  %3621 = vmatprep.subr.mxu0 0.0
  %3622 = vmatpush1.msra.mxu0 0.0
  %3623 = vmatprep.subr.mxu0 0.0
  %3624 = vmatpush1.msra.mxu0 0.0
  %3625 = vmatprep.subr.mxu0 0.0
  %3626 = vmatpush1.msra.mxu0 0.0
  %3627 = vmatprep.subr.mxu0 0.0
  %3628 = vmatpush1.msra.mxu0 0.0
  %3629 = vmatprep.subr.mxu0 0.0
  %3630 = vmatpush1.msra.mxu0 0.0
  %3631 = vmatprep.subr.mxu0 0.0
  %3632 = vmatpush1.msra.mxu0 0.0
  %3633 = vmatprep.subr.mxu0 0.0
  %3634 = vmatpush1.msra.mxu0 0.0
  %3635 = vmatprep.subr.mxu0 0.0
  %3636 = vmatpush1.msra.mxu0 0.0
  %3637 = vmatprep.subr.mxu0 0.0
  %3638 = vmatpush1.msra.mxu0 0.0
  %3639 = vmatprep.subr.mxu0 0.0
  %3640 = vmatpush1.msra.mxu0 0.0
  %3641 = vmatprep.subr.mxu0 0.0
  %3642 = vmatpush1.msra.mxu0 0.0
  %3643 = vmatprep.subr.mxu0 0.0
  %3644 = vmatpush1.msra.mxu0 0.0
  %3645 = vmatprep.mubr.f32.mxu0 0.0
  %3646 = vmatmul.mubr.f32.gmra.mrb[0].mxu0 %v3579
  %v3647 = vpop.f32.mrb[0].mxu0
  %v3648 = vadd.f32 0.0, %v3647
  %v3649 = vpop.f32.mrb[0].mxu0
  %3650 = vdwg.mxu0
  %v3651 = vadd.f32 %v3576, %v3648
  %v3652 = vxor.u32 %v3651, 2147483648
  %v3653 = vmul.f32 %v3652, 1.442695
  %v3654 = vpow.pop %v3653
  %v3655 = vadd.f32 %v3654, 1.0
  %v3656 = vrcp.pop %v3655
  %v3657 = vmul.f32 1.0, %v3656
  %v3658 = vtanh.pop %v3651
  %v3659 = vmul.f32 %v3657, %v3396
  %3661 = vrot.lane.b32.xlu0 %v3658, 64
  %v3662 = vpop.permute.xlu0 %3661
  %v3664 = vmul.f32 %v3657, %v3662
  %3666 = vrot.lane.b32.xlu0 %v3664, 32
  %v3667 = vpop.permute.xlu0 %3666
  %v3669 = vadd.f32 %v3659, %v3667
  %v3670 = vtanh.pop %v3669
  %3672 = vrot.lane.b32.xlu0 %v3670, 64
  %v3673 = vpop.permute.xlu0 %3672
  %v3675 = vmul.f32 %v3657, %v3673
  %3677 = vrot.lane.b32.xlu0 %v3675, 32
  %v3678 = vpop.permute.xlu0 %3677
  %3680 = vst.msk [vmem:[#allocation3 + $0xa] sm:$0x1] %vm949, %v3678
  %v3681 = vld [vmem:[#allocation2 + $0xb] sm:$0x1]
  %3682 = vmatprep.subr.mxu0 0.0
  %3683 = vmatpush1.msra.mxu0 %v31
  %3684 = vmatprep.subr.mxu0 0.0
  %3685 = vmatpush1.msra.mxu0 %v32
  %3686 = vmatprep.subr.mxu0 0.0
  %3687 = vmatpush1.msra.mxu0 %v33
  %3688 = vmatprep.subr.mxu0 0.0
  %3689 = vmatpush1.msra.mxu0 %v34
  %3690 = vmatprep.subr.mxu0 0.0
  %3691 = vmatpush1.msra.mxu0 0.0
  %3692 = vmatprep.subr.mxu0 0.0
  %3693 = vmatpush1.msra.mxu0 0.0
  %3694 = vmatprep.subr.mxu0 0.0
  %3695 = vmatpush1.msra.mxu0 0.0
  %3696 = vmatprep.subr.mxu0 0.0
  %3697 = vmatpush1.msra.mxu0 0.0
  %3698 = vmatprep.subr.mxu0 0.0
  %3699 = vmatpush1.msra.mxu0 0.0
  %3700 = vmatprep.subr.mxu0 0.0
  %3701 = vmatpush1.msra.mxu0 0.0
  %3702 = vmatprep.subr.mxu0 0.0
  %3703 = vmatpush1.msra.mxu0 0.0
  %3704 = vmatprep.subr.mxu0 0.0
  %3705 = vmatpush1.msra.mxu0 0.0
  %3706 = vmatprep.subr.mxu0 0.0
  %3707 = vmatpush1.msra.mxu0 0.0
  %3708 = vmatprep.subr.mxu0 0.0
  %3709 = vmatpush1.msra.mxu0 0.0
  %3710 = vmatprep.subr.mxu0 0.0
  %3711 = vmatpush1.msra.mxu0 0.0
  %3712 = vmatprep.subr.mxu0 0.0
  %3713 = vmatpush1.msra.mxu0 0.0
  %3714 = vmatprep.subr.mxu0 0.0
  %3715 = vmatpush1.msra.mxu0 0.0
  %3716 = vmatprep.subr.mxu0 0.0
  %3717 = vmatpush1.msra.mxu0 0.0
  %3718 = vmatprep.subr.mxu0 0.0
  %3719 = vmatpush1.msra.mxu0 0.0
  %3720 = vmatprep.subr.mxu0 0.0
  %3721 = vmatpush1.msra.mxu0 0.0
  %3722 = vmatprep.subr.mxu0 0.0
  %3723 = vmatpush1.msra.mxu0 0.0
  %3724 = vmatprep.subr.mxu0 0.0
  %3725 = vmatpush1.msra.mxu0 0.0
  %3726 = vmatprep.subr.mxu0 0.0
  %3727 = vmatpush1.msra.mxu0 0.0
  %3728 = vmatprep.subr.mxu0 0.0
  %3729 = vmatpush1.msra.mxu0 0.0
  %3730 = vmatprep.subr.mxu0 0.0
  %3731 = vmatpush1.msra.mxu0 0.0
  %3732 = vmatprep.subr.mxu0 0.0
  %3733 = vmatpush1.msra.mxu0 0.0
  %3734 = vmatprep.subr.mxu0 0.0
  %3735 = vmatpush1.msra.mxu0 0.0
  %3736 = vmatprep.subr.mxu0 0.0
  %3737 = vmatpush1.msra.mxu0 0.0
  %3738 = vmatprep.subr.mxu0 0.0
  %3739 = vmatpush1.msra.mxu0 0.0
  %3740 = vmatprep.subr.mxu0 0.0
  %3741 = vmatpush1.msra.mxu0 0.0
  %3742 = vmatprep.subr.mxu0 0.0
  %3743 = vmatpush1.msra.mxu0 0.0
  %3744 = vmatprep.subr.mxu0 0.0
  %3745 = vmatpush1.msra.mxu0 0.0
  %3746 = vmatprep.mubr.f32.mxu0 0.0
  %3747 = vmatmul.mubr.f32.gmra.mrb[0].mxu0 %v3507
  %v3748 = vpop.f32.mrb[0].mxu0
  %v3749 = vadd.f32 0.0, %v3748
  %v3750 = vpop.f32.mrb[0].mxu0
  %3751 = vdwg.mxu0
  %v3752 = vadd.f32 %v3681, %v3749
  %v3753 = vxor.u32 %v3752, 2147483648
  %v3754 = vmul.f32 %v3753, 1.442695
  %v3755 = vpow.pop %v3754
  %v3756 = vadd.f32 %v3755, 1.0
  %v3757 = vrcp.pop %v3756
  %v3758 = vmul.f32 1.0, %v3757
  %v3759 = vtanh.pop %v3752
  %v3760 = vmul.f32 %v3758, %v3497
  %3762 = vrot.lane.b32.xlu0 %v3759, 64
  %v3763 = vpop.permute.xlu0 %3762
  %v3765 = vmul.f32 %v3758, %v3763
  %3767 = vrot.lane.b32.xlu0 %v3765, 32
  %v3768 = vpop.permute.xlu0 %3767
  %v3770 = vadd.f32 %v3760, %v3768
  %v3771 = vtanh.pop %v3770
  %3773 = vrot.lane.b32.xlu0 %v3771, 64
  %v3774 = vpop.permute.xlu0 %3773
  %v3776 = vmul.f32 %v3758, %v3774
  %3778 = vrot.lane.b32.xlu0 %v3776, 32
  %v3779 = vpop.permute.xlu0 %3778
  %v3780 = vsel %vm576, %v3779, 0
  %3782 = vmatprep.subr.mxu0 0.0
  %3783 = vmatpush1.msra.mxu0 %v35
  %3784 = vmatprep.subr.mxu0 0.0
  %3785 = vmatpush1.msra.mxu0 %v36
  %3786 = vmatprep.subr.mxu0 0.0
  %3787 = vmatpush1.msra.mxu0 %v37
  %3788 = vmatprep.subr.mxu0 0.0
  %3789 = vmatpush1.msra.mxu0 %v38
  %3790 = vmatprep.subr.mxu0 0.0
  %3791 = vmatpush1.msra.mxu0 0.0
  %3792 = vmatprep.subr.mxu0 0.0
  %3793 = vmatpush1.msra.mxu0 0.0
  %3794 = vmatprep.subr.mxu0 0.0
  %3795 = vmatpush1.msra.mxu0 0.0
  %3796 = vmatprep.subr.mxu0 0.0
  %3797 = vmatpush1.msra.mxu0 0.0
  %3798 = vmatprep.subr.mxu0 0.0
  %3799 = vmatpush1.msra.mxu0 0.0
  %3800 = vmatprep.subr.mxu0 0.0
  %3801 = vmatpush1.msra.mxu0 0.0
  %3802 = vmatprep.subr.mxu0 0.0
  %3803 = vmatpush1.msra.mxu0 0.0
  %3804 = vmatprep.subr.mxu0 0.0
  %3805 = vmatpush1.msra.mxu0 0.0
  %3806 = vmatprep.subr.mxu0 0.0
  %3807 = vmatpush1.msra.mxu0 0.0
  %3808 = vmatprep.subr.mxu0 0.0
  %3809 = vmatpush1.msra.mxu0 0.0
  %3810 = vmatprep.subr.mxu0 0.0
  %3811 = vmatpush1.msra.mxu0 0.0
  %3812 = vmatprep.subr.mxu0 0.0
  %3813 = vmatpush1.msra.mxu0 0.0
  %3814 = vmatprep.subr.mxu0 0.0
  %3815 = vmatpush1.msra.mxu0 0.0
  %3816 = vmatprep.subr.mxu0 0.0
  %3817 = vmatpush1.msra.mxu0 0.0
  %3818 = vmatprep.subr.mxu0 0.0
  %3819 = vmatpush1.msra.mxu0 0.0
  %3820 = vmatprep.subr.mxu0 0.0
  %3821 = vmatpush1.msra.mxu0 0.0
  %3822 = vmatprep.subr.mxu0 0.0
  %3823 = vmatpush1.msra.mxu0 0.0
  %3824 = vmatprep.subr.mxu0 0.0
  %3825 = vmatpush1.msra.mxu0 0.0
  %3826 = vmatprep.subr.mxu0 0.0
  %3827 = vmatpush1.msra.mxu0 0.0
  %3828 = vmatprep.subr.mxu0 0.0
  %3829 = vmatpush1.msra.mxu0 0.0
  %3830 = vmatprep.subr.mxu0 0.0
  %3831 = vmatpush1.msra.mxu0 0.0
  %3832 = vmatprep.subr.mxu0 0.0
  %3833 = vmatpush1.msra.mxu0 0.0
  %3834 = vmatprep.subr.mxu0 0.0
  %3835 = vmatpush1.msra.mxu0 0.0
  %3836 = vmatprep.subr.mxu0 0.0
  %3837 = vmatpush1.msra.mxu0 0.0
  %3838 = vmatprep.subr.mxu0 0.0
  %3839 = vmatpush1.msra.mxu0 0.0
  %3840 = vmatprep.subr.mxu0 0.0
  %3841 = vmatpush1.msra.mxu0 0.0
  %3842 = vmatprep.subr.mxu0 0.0
  %3843 = vmatpush1.msra.mxu0 0.0
  %3844 = vmatprep.subr.mxu0 0.0
  %3845 = vmatpush1.msra.mxu0 0.0
  %3846 = vmatprep.mubr.f32.mxu0 0.0
  %3847 = vmatmul.mubr.f32.gmra.mrb[0].mxu0 %v3780
  %v3848 = vpop.f32.mrb[0].mxu0
  %v3849 = vadd.f32 %v24, %v3848
  %v3850 = vpop.f32.mrb[0].mxu0
  %3851 = vdwg.mxu0
  %v3852 = vsel %vm576, %v3678, 0
  %3854 = vmatprep.subr.mxu0 0.0
  %3855 = vmatpush1.msra.mxu0 %v39
  %3856 = vmatprep.subr.mxu0 0.0
  %3857 = vmatpush1.msra.mxu0 %v40
  %3858 = vmatprep.subr.mxu0 0.0
  %3859 = vmatpush1.msra.mxu0 %v41
  %3860 = vmatprep.subr.mxu0 0.0
  %3861 = vmatpush1.msra.mxu0 %v42
  %3862 = vmatprep.subr.mxu0 0.0
  %3863 = vmatpush1.msra.mxu0 0.0
  %3864 = vmatprep.subr.mxu0 0.0
  %3865 = vmatpush1.msra.mxu0 0.0
  %3866 = vmatprep.subr.mxu0 0.0
  %3867 = vmatpush1.msra.mxu0 0.0
  %3868 = vmatprep.subr.mxu0 0.0
  %3869 = vmatpush1.msra.mxu0 0.0
  %3870 = vmatprep.subr.mxu0 0.0
  %3871 = vmatpush1.msra.mxu0 0.0
  %3872 = vmatprep.subr.mxu0 0.0
  %3873 = vmatpush1.msra.mxu0 0.0
  %3874 = vmatprep.subr.mxu0 0.0
  %3875 = vmatpush1.msra.mxu0 0.0
  %3876 = vmatprep.subr.mxu0 0.0
  %3877 = vmatpush1.msra.mxu0 0.0
  %3878 = vmatprep.subr.mxu0 0.0
  %3879 = vmatpush1.msra.mxu0 0.0
  %3880 = vmatprep.subr.mxu0 0.0
  %3881 = vmatpush1.msra.mxu0 0.0
  %3882 = vmatprep.subr.mxu0 0.0
  %3883 = vmatpush1.msra.mxu0 0.0
  %3884 = vmatprep.subr.mxu0 0.0
  %3885 = vmatpush1.msra.mxu0 0.0
  %3886 = vmatprep.subr.mxu0 0.0
  %3887 = vmatpush1.msra.mxu0 0.0
  %3888 = vmatprep.subr.mxu0 0.0
  %3889 = vmatpush1.msra.mxu0 0.0
  %3890 = vmatprep.subr.mxu0 0.0
  %3891 = vmatpush1.msra.mxu0 0.0
  %3892 = vmatprep.subr.mxu0 0.0
  %3893 = vmatpush1.msra.mxu0 0.0
  %3894 = vmatprep.subr.mxu0 0.0
  %3895 = vmatpush1.msra.mxu0 0.0
  %3896 = vmatprep.subr.mxu0 0.0
  %3897 = vmatpush1.msra.mxu0 0.0
  %3898 = vmatprep.subr.mxu0 0.0
  %3899 = vmatpush1.msra.mxu0 0.0
  %3900 = vmatprep.subr.mxu0 0.0
  %3901 = vmatpush1.msra.mxu0 0.0
  %3902 = vmatprep.subr.mxu0 0.0
  %3903 = vmatpush1.msra.mxu0 0.0
  %3904 = vmatprep.subr.mxu0 0.0
  %3905 = vmatpush1.msra.mxu0 0.0
  %3906 = vmatprep.subr.mxu0 0.0
  %3907 = vmatpush1.msra.mxu0 0.0
  %3908 = vmatprep.subr.mxu0 0.0
  %3909 = vmatpush1.msra.mxu0 0.0
  %3910 = vmatprep.subr.mxu0 0.0
  %3911 = vmatpush1.msra.mxu0 0.0
  %3912 = vmatprep.subr.mxu0 0.0
  %3913 = vmatpush1.msra.mxu0 0.0
  %3914 = vmatprep.subr.mxu0 0.0
  %3915 = vmatpush1.msra.mxu0 0.0
  %3916 = vmatprep.subr.mxu0 0.0
  %3917 = vmatpush1.msra.mxu0 0.0
  %3918 = vmatprep.mubr.f32.mxu0 0.0
  %3919 = vmatmul.mubr.f32.gmra.mrb[0].mxu0 %v3852
  %v3920 = vpop.f32.mrb[0].mxu0
  %v3921 = vadd.f32 0.0, %v3920
  %v3922 = vpop.f32.mrb[0].mxu0
  %3923 = vdwg.mxu0
  %v3924 = vadd.f32 %v3849, %v3921
  %v3925 = vxor.u32 %v3924, 2147483648
  %v3926 = vmul.f32 %v3925, 1.442695
  %v3927 = vpow.pop %v3926
  %v3928 = vadd.f32 %v3927, 1.0
  %v3929 = vrcp.pop %v3928
  %v3930 = vmul.f32 1.0, %v3929
  %v3931 = vtanh.pop %v3924
  %v3932 = vmul.f32 %v3930, %v3669
  %3934 = vrot.lane.b32.xlu0 %v3931, 64
  %v3935 = vpop.permute.xlu0 %3934
  %v3937 = vmul.f32 %v3930, %v3935
  %3939 = vrot.lane.b32.xlu0 %v3937, 32
  %v3940 = vpop.permute.xlu0 %3939
  %v3942 = vadd.f32 %v3932, %v3940
  %v3943 = vtanh.pop %v3942
  %3945 = vrot.lane.b32.xlu0 %v3943, 64
  %v3946 = vpop.permute.xlu0 %3945
  %v3948 = vmul.f32 %v3930, %v3946
  %3950 = vrot.lane.b32.xlu0 %v3948, 32
  %v3951 = vpop.permute.xlu0 %3950
  %3953 = vst.msk [vmem:[#allocation3 + $0xb] sm:$0x1] %vm949, %v3951
  %v3954 = vld [vmem:[#allocation2 + $0xc] sm:$0x1]
  %3955 = vmatprep.subr.mxu0 0.0
  %3956 = vmatpush1.msra.mxu0 %v31
  %3957 = vmatprep.subr.mxu0 0.0
  %3958 = vmatpush1.msra.mxu0 %v32
  %3959 = vmatprep.subr.mxu0 0.0
  %3960 = vmatpush1.msra.mxu0 %v33
  %3961 = vmatprep.subr.mxu0 0.0
  %3962 = vmatpush1.msra.mxu0 %v34
  %3963 = vmatprep.subr.mxu0 0.0
  %3964 = vmatpush1.msra.mxu0 0.0
  %3965 = vmatprep.subr.mxu0 0.0
  %3966 = vmatpush1.msra.mxu0 0.0
  %3967 = vmatprep.subr.mxu0 0.0
  %3968 = vmatpush1.msra.mxu0 0.0
  %3969 = vmatprep.subr.mxu0 0.0
  %3970 = vmatpush1.msra.mxu0 0.0
  %3971 = vmatprep.subr.mxu0 0.0
  %3972 = vmatpush1.msra.mxu0 0.0
  %3973 = vmatprep.subr.mxu0 0.0
  %3974 = vmatpush1.msra.mxu0 0.0
  %3975 = vmatprep.subr.mxu0 0.0
  %3976 = vmatpush1.msra.mxu0 0.0
  %3977 = vmatprep.subr.mxu0 0.0
  %3978 = vmatpush1.msra.mxu0 0.0
  %3979 = vmatprep.subr.mxu0 0.0
  %3980 = vmatpush1.msra.mxu0 0.0
  %3981 = vmatprep.subr.mxu0 0.0
  %3982 = vmatpush1.msra.mxu0 0.0
  %3983 = vmatprep.subr.mxu0 0.0
  %3984 = vmatpush1.msra.mxu0 0.0
  %3985 = vmatprep.subr.mxu0 0.0
  %3986 = vmatpush1.msra.mxu0 0.0
  %3987 = vmatprep.subr.mxu0 0.0
  %3988 = vmatpush1.msra.mxu0 0.0
  %3989 = vmatprep.subr.mxu0 0.0
  %3990 = vmatpush1.msra.mxu0 0.0
  %3991 = vmatprep.subr.mxu0 0.0
  %3992 = vmatpush1.msra.mxu0 0.0
  %3993 = vmatprep.subr.mxu0 0.0
  %3994 = vmatpush1.msra.mxu0 0.0
  %3995 = vmatprep.subr.mxu0 0.0
  %3996 = vmatpush1.msra.mxu0 0.0
  %3997 = vmatprep.subr.mxu0 0.0
  %3998 = vmatpush1.msra.mxu0 0.0
  %3999 = vmatprep.subr.mxu0 0.0
  %4000 = vmatpush1.msra.mxu0 0.0
  %4001 = vmatprep.subr.mxu0 0.0
  %4002 = vmatpush1.msra.mxu0 0.0
  %4003 = vmatprep.subr.mxu0 0.0
  %4004 = vmatpush1.msra.mxu0 0.0
  %4005 = vmatprep.subr.mxu0 0.0
  %4006 = vmatpush1.msra.mxu0 0.0
  %4007 = vmatprep.subr.mxu0 0.0
  %4008 = vmatpush1.msra.mxu0 0.0
  %4009 = vmatprep.subr.mxu0 0.0
  %4010 = vmatpush1.msra.mxu0 0.0
  %4011 = vmatprep.subr.mxu0 0.0
  %4012 = vmatpush1.msra.mxu0 0.0
  %4013 = vmatprep.subr.mxu0 0.0
  %4014 = vmatpush1.msra.mxu0 0.0
  %4015 = vmatprep.subr.mxu0 0.0
  %4016 = vmatpush1.msra.mxu0 0.0
  %4017 = vmatprep.subr.mxu0 0.0
  %4018 = vmatpush1.msra.mxu0 0.0
  %4019 = vmatprep.mubr.f32.mxu0 0.0
  %4020 = vmatmul.mubr.f32.gmra.mrb[0].mxu0 %v3780
  %v4021 = vpop.f32.mrb[0].mxu0
  %v4022 = vadd.f32 0.0, %v4021
  %v4023 = vpop.f32.mrb[0].mxu0
  %4024 = vdwg.mxu0
  %v4025 = vadd.f32 %v3954, %v4022
  %v4026 = vxor.u32 %v4025, 2147483648
  %v4027 = vmul.f32 %v4026, 1.442695
  %v4028 = vpow.pop %v4027
  %v4029 = vadd.f32 %v4028, 1.0
  %v4030 = vrcp.pop %v4029
  %v4031 = vmul.f32 1.0, %v4030
  %v4032 = vtanh.pop %v4025
  %v4033 = vmul.f32 %v4031, %v3770
  %4035 = vrot.lane.b32.xlu0 %v4032, 64
  %v4036 = vpop.permute.xlu0 %4035
  %v4038 = vmul.f32 %v4031, %v4036
  %4040 = vrot.lane.b32.xlu0 %v4038, 32
  %v4041 = vpop.permute.xlu0 %4040
  %v4043 = vadd.f32 %v4033, %v4041
  %v4044 = vtanh.pop %v4043
  %4046 = vrot.lane.b32.xlu0 %v4044, 64
  %v4047 = vpop.permute.xlu0 %4046
  %v4049 = vmul.f32 %v4031, %v4047
  %4051 = vrot.lane.b32.xlu0 %v4049, 32
  %v4052 = vpop.permute.xlu0 %4051
  %v4053 = vsel %vm576, %v4052, 0
  %4055 = vmatprep.subr.mxu0 0.0
  %4056 = vmatpush1.msra.mxu0 %v35
  %4057 = vmatprep.subr.mxu0 0.0
  %4058 = vmatpush1.msra.mxu0 %v36
  %4059 = vmatprep.subr.mxu0 0.0
  %4060 = vmatpush1.msra.mxu0 %v37
  %4061 = vmatprep.subr.mxu0 0.0
  %4062 = vmatpush1.msra.mxu0 %v38
  %4063 = vmatprep.subr.mxu0 0.0
  %4064 = vmatpush1.msra.mxu0 0.0
  %4065 = vmatprep.subr.mxu0 0.0
  %4066 = vmatpush1.msra.mxu0 0.0
  %4067 = vmatprep.subr.mxu0 0.0
  %4068 = vmatpush1.msra.mxu0 0.0
  %4069 = vmatprep.subr.mxu0 0.0
  %4070 = vmatpush1.msra.mxu0 0.0
  %4071 = vmatprep.subr.mxu0 0.0
  %4072 = vmatpush1.msra.mxu0 0.0
  %4073 = vmatprep.subr.mxu0 0.0
  %4074 = vmatpush1.msra.mxu0 0.0
  %4075 = vmatprep.subr.mxu0 0.0
  %4076 = vmatpush1.msra.mxu0 0.0
  %4077 = vmatprep.subr.mxu0 0.0
  %4078 = vmatpush1.msra.mxu0 0.0
  %4079 = vmatprep.subr.mxu0 0.0
  %4080 = vmatpush1.msra.mxu0 0.0
  %4081 = vmatprep.subr.mxu0 0.0
  %4082 = vmatpush1.msra.mxu0 0.0
  %4083 = vmatprep.subr.mxu0 0.0
  %4084 = vmatpush1.msra.mxu0 0.0
  %4085 = vmatprep.subr.mxu0 0.0
  %4086 = vmatpush1.msra.mxu0 0.0
  %4087 = vmatprep.subr.mxu0 0.0
  %4088 = vmatpush1.msra.mxu0 0.0
  %4089 = vmatprep.subr.mxu0 0.0
  %4090 = vmatpush1.msra.mxu0 0.0
  %4091 = vmatprep.subr.mxu0 0.0
  %4092 = vmatpush1.msra.mxu0 0.0
  %4093 = vmatprep.subr.mxu0 0.0
  %4094 = vmatpush1.msra.mxu0 0.0
  %4095 = vmatprep.subr.mxu0 0.0
  %4096 = vmatpush1.msra.mxu0 0.0
  %4097 = vmatprep.subr.mxu0 0.0
  %4098 = vmatpush1.msra.mxu0 0.0
  %4099 = vmatprep.subr.mxu0 0.0
  %4100 = vmatpush1.msra.mxu0 0.0
  %4101 = vmatprep.subr.mxu0 0.0
  %4102 = vmatpush1.msra.mxu0 0.0
  %4103 = vmatprep.subr.mxu0 0.0
  %4104 = vmatpush1.msra.mxu0 0.0
  %4105 = vmatprep.subr.mxu0 0.0
  %4106 = vmatpush1.msra.mxu0 0.0
  %4107 = vmatprep.subr.mxu0 0.0
  %4108 = vmatpush1.msra.mxu0 0.0
  %4109 = vmatprep.subr.mxu0 0.0
  %4110 = vmatpush1.msra.mxu0 0.0
  %4111 = vmatprep.subr.mxu0 0.0
  %4112 = vmatpush1.msra.mxu0 0.0
  %4113 = vmatprep.subr.mxu0 0.0
  %4114 = vmatpush1.msra.mxu0 0.0
  %4115 = vmatprep.subr.mxu0 0.0
  %4116 = vmatpush1.msra.mxu0 0.0
  %4117 = vmatprep.subr.mxu0 0.0
  %4118 = vmatpush1.msra.mxu0 0.0
  %4119 = vmatprep.mubr.f32.mxu0 0.0
  %4120 = vmatmul.mubr.f32.gmra.mrb[0].mxu0 %v4053
  %v4121 = vpop.f32.mrb[0].mxu0
  %v4122 = vadd.f32 %v24, %v4121
  %v4123 = vpop.f32.mrb[0].mxu0
  %4124 = vdwg.mxu0
  %v4125 = vsel %vm576, %v3951, 0
  %4127 = vmatprep.subr.mxu0 0.0
  %4128 = vmatpush1.msra.mxu0 %v39
  %4129 = vmatprep.subr.mxu0 0.0
  %4130 = vmatpush1.msra.mxu0 %v40
  %4131 = vmatprep.subr.mxu0 0.0
  %4132 = vmatpush1.msra.mxu0 %v41
  %4133 = vmatprep.subr.mxu0 0.0
  %4134 = vmatpush1.msra.mxu0 %v42
  %4135 = vmatprep.subr.mxu0 0.0
  %4136 = vmatpush1.msra.mxu0 0.0
  %4137 = vmatprep.subr.mxu0 0.0
  %4138 = vmatpush1.msra.mxu0 0.0
  %4139 = vmatprep.subr.mxu0 0.0
  %4140 = vmatpush1.msra.mxu0 0.0
  %4141 = vmatprep.subr.mxu0 0.0
  %4142 = vmatpush1.msra.mxu0 0.0
  %4143 = vmatprep.subr.mxu0 0.0
  %4144 = vmatpush1.msra.mxu0 0.0
  %4145 = vmatprep.subr.mxu0 0.0
  %4146 = vmatpush1.msra.mxu0 0.0
  %4147 = vmatprep.subr.mxu0 0.0
  %4148 = vmatpush1.msra.mxu0 0.0
  %4149 = vmatprep.subr.mxu0 0.0
  %4150 = vmatpush1.msra.mxu0 0.0
  %4151 = vmatprep.subr.mxu0 0.0
  %4152 = vmatpush1.msra.mxu0 0.0
  %4153 = vmatprep.subr.mxu0 0.0
  %4154 = vmatpush1.msra.mxu0 0.0
  %4155 = vmatprep.subr.mxu0 0.0
  %4156 = vmatpush1.msra.mxu0 0.0
  %4157 = vmatprep.subr.mxu0 0.0
  %4158 = vmatpush1.msra.mxu0 0.0
  %4159 = vmatprep.subr.mxu0 0.0
  %4160 = vmatpush1.msra.mxu0 0.0
  %4161 = vmatprep.subr.mxu0 0.0
  %4162 = vmatpush1.msra.mxu0 0.0
  %4163 = vmatprep.subr.mxu0 0.0
  %4164 = vmatpush1.msra.mxu0 0.0
  %4165 = vmatprep.subr.mxu0 0.0
  %4166 = vmatpush1.msra.mxu0 0.0
  %4167 = vmatprep.subr.mxu0 0.0
  %4168 = vmatpush1.msra.mxu0 0.0
  %4169 = vmatprep.subr.mxu0 0.0
  %4170 = vmatpush1.msra.mxu0 0.0
  %4171 = vmatprep.subr.mxu0 0.0
  %4172 = vmatpush1.msra.mxu0 0.0
  %4173 = vmatprep.subr.mxu0 0.0
  %4174 = vmatpush1.msra.mxu0 0.0
  %4175 = vmatprep.subr.mxu0 0.0
  %4176 = vmatpush1.msra.mxu0 0.0
  %4177 = vmatprep.subr.mxu0 0.0
  %4178 = vmatpush1.msra.mxu0 0.0
  %4179 = vmatprep.subr.mxu0 0.0
  %4180 = vmatpush1.msra.mxu0 0.0
  %4181 = vmatprep.subr.mxu0 0.0
  %4182 = vmatpush1.msra.mxu0 0.0
  %4183 = vmatprep.subr.mxu0 0.0
  %4184 = vmatpush1.msra.mxu0 0.0
  %4185 = vmatprep.subr.mxu0 0.0
  %4186 = vmatpush1.msra.mxu0 0.0
  %4187 = vmatprep.subr.mxu0 0.0
  %4188 = vmatpush1.msra.mxu0 0.0
  %4189 = vmatprep.subr.mxu0 0.0
  %4190 = vmatpush1.msra.mxu0 0.0
  %4191 = vmatprep.mubr.f32.mxu0 0.0
  %4192 = vmatmul.mubr.f32.gmra.mrb[0].mxu0 %v4125
  %v4193 = vpop.f32.mrb[0].mxu0
  %v4194 = vadd.f32 0.0, %v4193
  %v4195 = vpop.f32.mrb[0].mxu0
  %4196 = vdwg.mxu0
  %v4197 = vadd.f32 %v4122, %v4194
  %v4198 = vxor.u32 %v4197, 2147483648
  %v4199 = vmul.f32 %v4198, 1.442695
  %v4200 = vpow.pop %v4199
  %v4201 = vadd.f32 %v4200, 1.0
  %v4202 = vrcp.pop %v4201
  %v4203 = vmul.f32 1.0, %v4202
  %v4204 = vtanh.pop %v4197
  %v4205 = vmul.f32 %v4203, %v3942
  %4207 = vrot.lane.b32.xlu0 %v4204, 64
  %v4208 = vpop.permute.xlu0 %4207
  %v4210 = vmul.f32 %v4203, %v4208
  %4212 = vrot.lane.b32.xlu0 %v4210, 32
  %v4213 = vpop.permute.xlu0 %4212
  %v4215 = vadd.f32 %v4205, %v4213
  %v4216 = vtanh.pop %v4215
  %4218 = vrot.lane.b32.xlu0 %v4216, 64
  %v4219 = vpop.permute.xlu0 %4218
  %v4221 = vmul.f32 %v4203, %v4219
  %4223 = vrot.lane.b32.xlu0 %v4221, 32
  %v4224 = vpop.permute.xlu0 %4223
  %4226 = vst.msk [vmem:[#allocation3 + $0xc] sm:$0x1] %vm949, %v4224
  %v4227 = vld [vmem:[#allocation2 + $0xd] sm:$0x1]
  %4228 = vmatprep.subr.mxu0 0.0
  %4229 = vmatpush1.msra.mxu0 %v31
  %4230 = vmatprep.subr.mxu0 0.0
  %4231 = vmatpush1.msra.mxu0 %v32
  %4232 = vmatprep.subr.mxu0 0.0
  %4233 = vmatpush1.msra.mxu0 %v33
  %4234 = vmatprep.subr.mxu0 0.0
  %4235 = vmatpush1.msra.mxu0 %v34
  %4236 = vmatprep.subr.mxu0 0.0
  %4237 = vmatpush1.msra.mxu0 0.0
  %4238 = vmatprep.subr.mxu0 0.0
  %4239 = vmatpush1.msra.mxu0 0.0
  %4240 = vmatprep.subr.mxu0 0.0
  %4241 = vmatpush1.msra.mxu0 0.0
  %4242 = vmatprep.subr.mxu0 0.0
  %4243 = vmatpush1.msra.mxu0 0.0
  %4244 = vmatprep.subr.mxu0 0.0
  %4245 = vmatpush1.msra.mxu0 0.0
  %4246 = vmatprep.subr.mxu0 0.0
  %4247 = vmatpush1.msra.mxu0 0.0
  %4248 = vmatprep.subr.mxu0 0.0
  %4249 = vmatpush1.msra.mxu0 0.0
  %4250 = vmatprep.subr.mxu0 0.0
  %4251 = vmatpush1.msra.mxu0 0.0
  %4252 = vmatprep.subr.mxu0 0.0
  %4253 = vmatpush1.msra.mxu0 0.0
  %4254 = vmatprep.subr.mxu0 0.0
  %4255 = vmatpush1.msra.mxu0 0.0
  %4256 = vmatprep.subr.mxu0 0.0
  %4257 = vmatpush1.msra.mxu0 0.0
  %4258 = vmatprep.subr.mxu0 0.0
  %4259 = vmatpush1.msra.mxu0 0.0
  %4260 = vmatprep.subr.mxu0 0.0
  %4261 = vmatpush1.msra.mxu0 0.0
  %4262 = vmatprep.subr.mxu0 0.0
  %4263 = vmatpush1.msra.mxu0 0.0
  %4264 = vmatprep.subr.mxu0 0.0
  %4265 = vmatpush1.msra.mxu0 0.0
  %4266 = vmatprep.subr.mxu0 0.0
  %4267 = vmatpush1.msra.mxu0 0.0
  %4268 = vmatprep.subr.mxu0 0.0
  %4269 = vmatpush1.msra.mxu0 0.0
  %4270 = vmatprep.subr.mxu0 0.0
  %4271 = vmatpush1.msra.mxu0 0.0
  %4272 = vmatprep.subr.mxu0 0.0
  %4273 = vmatpush1.msra.mxu0 0.0
  %4274 = vmatprep.subr.mxu0 0.0
  %4275 = vmatpush1.msra.mxu0 0.0
  %4276 = vmatprep.subr.mxu0 0.0
  %4277 = vmatpush1.msra.mxu0 0.0
  %4278 = vmatprep.subr.mxu0 0.0
  %4279 = vmatpush1.msra.mxu0 0.0
  %4280 = vmatprep.subr.mxu0 0.0
  %4281 = vmatpush1.msra.mxu0 0.0
  %4282 = vmatprep.subr.mxu0 0.0
  %4283 = vmatpush1.msra.mxu0 0.0
  %4284 = vmatprep.subr.mxu0 0.0
  %4285 = vmatpush1.msra.mxu0 0.0
  %4286 = vmatprep.subr.mxu0 0.0
  %4287 = vmatpush1.msra.mxu0 0.0
  %4288 = vmatprep.subr.mxu0 0.0
  %4289 = vmatpush1.msra.mxu0 0.0
  %4290 = vmatprep.subr.mxu0 0.0
  %4291 = vmatpush1.msra.mxu0 0.0
  %4292 = vmatprep.mubr.f32.mxu0 0.0
  %4293 = vmatmul.mubr.f32.gmra.mrb[0].mxu0 %v4053
  %v4294 = vpop.f32.mrb[0].mxu0
  %v4295 = vadd.f32 0.0, %v4294
  %v4296 = vpop.f32.mrb[0].mxu0
  %4297 = vdwg.mxu0
  %v4298 = vadd.f32 %v4227, %v4295
  %v4299 = vxor.u32 %v4298, 2147483648
  %v4300 = vmul.f32 %v4299, 1.442695
  %v4301 = vpow.pop %v4300
  %v4302 = vadd.f32 %v4301, 1.0
  %v4303 = vrcp.pop %v4302
  %v4304 = vmul.f32 1.0, %v4303
  %v4305 = vtanh.pop %v4298
  %v4306 = vmul.f32 %v4304, %v4043
  %4308 = vrot.lane.b32.xlu0 %v4305, 64
  %v4309 = vpop.permute.xlu0 %4308
  %v4311 = vmul.f32 %v4304, %v4309
  %4313 = vrot.lane.b32.xlu0 %v4311, 32
  %v4314 = vpop.permute.xlu0 %4313
  %v4316 = vadd.f32 %v4306, %v4314
  %v4317 = vtanh.pop %v4316
  %4319 = vrot.lane.b32.xlu0 %v4317, 64
  %v4320 = vpop.permute.xlu0 %4319
  %v4322 = vmul.f32 %v4304, %v4320
  %4324 = vrot.lane.b32.xlu0 %v4322, 32
  %v4325 = vpop.permute.xlu0 %4324
  %v4326 = vsel %vm576, %v4325, 0
  %4328 = vmatprep.subr.mxu0 0.0
  %4329 = vmatpush1.msra.mxu0 %v35
  %4330 = vmatprep.subr.mxu0 0.0
  %4331 = vmatpush1.msra.mxu0 %v36
  %4332 = vmatprep.subr.mxu0 0.0
  %4333 = vmatpush1.msra.mxu0 %v37
  %4334 = vmatprep.subr.mxu0 0.0
  %4335 = vmatpush1.msra.mxu0 %v38
  %4336 = vmatprep.subr.mxu0 0.0
  %4337 = vmatpush1.msra.mxu0 0.0
  %4338 = vmatprep.subr.mxu0 0.0
  %4339 = vmatpush1.msra.mxu0 0.0
  %4340 = vmatprep.subr.mxu0 0.0
  %4341 = vmatpush1.msra.mxu0 0.0
  %4342 = vmatprep.subr.mxu0 0.0
  %4343 = vmatpush1.msra.mxu0 0.0
  %4344 = vmatprep.subr.mxu0 0.0
  %4345 = vmatpush1.msra.mxu0 0.0
  %4346 = vmatprep.subr.mxu0 0.0
  %4347 = vmatpush1.msra.mxu0 0.0
  %4348 = vmatprep.subr.mxu0 0.0
  %4349 = vmatpush1.msra.mxu0 0.0
  %4350 = vmatprep.subr.mxu0 0.0
  %4351 = vmatpush1.msra.mxu0 0.0
  %4352 = vmatprep.subr.mxu0 0.0
  %4353 = vmatpush1.msra.mxu0 0.0
  %4354 = vmatprep.subr.mxu0 0.0
  %4355 = vmatpush1.msra.mxu0 0.0
  %4356 = vmatprep.subr.mxu0 0.0
  %4357 = vmatpush1.msra.mxu0 0.0
  %4358 = vmatprep.subr.mxu0 0.0
  %4359 = vmatpush1.msra.mxu0 0.0
  %4360 = vmatprep.subr.mxu0 0.0
  %4361 = vmatpush1.msra.mxu0 0.0
  %4362 = vmatprep.subr.mxu0 0.0
  %4363 = vmatpush1.msra.mxu0 0.0
  %4364 = vmatprep.subr.mxu0 0.0
  %4365 = vmatpush1.msra.mxu0 0.0
  %4366 = vmatprep.subr.mxu0 0.0
  %4367 = vmatpush1.msra.mxu0 0.0
  %4368 = vmatprep.subr.mxu0 0.0
  %4369 = vmatpush1.msra.mxu0 0.0
  %4370 = vmatprep.subr.mxu0 0.0
  %4371 = vmatpush1.msra.mxu0 0.0
  %4372 = vmatprep.subr.mxu0 0.0
  %4373 = vmatpush1.msra.mxu0 0.0
  %4374 = vmatprep.subr.mxu0 0.0
  %4375 = vmatpush1.msra.mxu0 0.0
  %4376 = vmatprep.subr.mxu0 0.0
  %4377 = vmatpush1.msra.mxu0 0.0
  %4378 = vmatprep.subr.mxu0 0.0
  %4379 = vmatpush1.msra.mxu0 0.0
  %4380 = vmatprep.subr.mxu0 0.0
  %4381 = vmatpush1.msra.mxu0 0.0
  %4382 = vmatprep.subr.mxu0 0.0
  %4383 = vmatpush1.msra.mxu0 0.0
  %4384 = vmatprep.subr.mxu0 0.0
  %4385 = vmatpush1.msra.mxu0 0.0
  %4386 = vmatprep.subr.mxu0 0.0
  %4387 = vmatpush1.msra.mxu0 0.0
  %4388 = vmatprep.subr.mxu0 0.0
  %4389 = vmatpush1.msra.mxu0 0.0
  %4390 = vmatprep.subr.mxu0 0.0
  %4391 = vmatpush1.msra.mxu0 0.0
  %4392 = vmatprep.mubr.f32.mxu0 0.0
  %4393 = vmatmul.mubr.f32.gmra.mrb[0].mxu0 %v4326
  %v4394 = vpop.f32.mrb[0].mxu0
  %v4395 = vadd.f32 %v24, %v4394
  %v4396 = vpop.f32.mrb[0].mxu0
  %4397 = vdwg.mxu0
  %v4398 = vsel %vm576, %v4224, 0
  %4400 = vmatprep.subr.mxu0 0.0
  %4401 = vmatpush1.msra.mxu0 %v39
  %4402 = vmatprep.subr.mxu0 0.0
  %4403 = vmatpush1.msra.mxu0 %v40
  %4404 = vmatprep.subr.mxu0 0.0
  %4405 = vmatpush1.msra.mxu0 %v41
  %4406 = vmatprep.subr.mxu0 0.0
  %4407 = vmatpush1.msra.mxu0 %v42
  %4408 = vmatprep.subr.mxu0 0.0
  %4409 = vmatpush1.msra.mxu0 0.0
  %4410 = vmatprep.subr.mxu0 0.0
  %4411 = vmatpush1.msra.mxu0 0.0
  %4412 = vmatprep.subr.mxu0 0.0
  %4413 = vmatpush1.msra.mxu0 0.0
  %4414 = vmatprep.subr.mxu0 0.0
  %4415 = vmatpush1.msra.mxu0 0.0
  %4416 = vmatprep.subr.mxu0 0.0
  %4417 = vmatpush1.msra.mxu0 0.0
  %4418 = vmatprep.subr.mxu0 0.0
  %4419 = vmatpush1.msra.mxu0 0.0
  %4420 = vmatprep.subr.mxu0 0.0
  %4421 = vmatpush1.msra.mxu0 0.0
  %4422 = vmatprep.subr.mxu0 0.0
  %4423 = vmatpush1.msra.mxu0 0.0
  %4424 = vmatprep.subr.mxu0 0.0
  %4425 = vmatpush1.msra.mxu0 0.0
  %4426 = vmatprep.subr.mxu0 0.0
  %4427 = vmatpush1.msra.mxu0 0.0
  %4428 = vmatprep.subr.mxu0 0.0
  %4429 = vmatpush1.msra.mxu0 0.0
  %4430 = vmatprep.subr.mxu0 0.0
  %4431 = vmatpush1.msra.mxu0 0.0
  %4432 = vmatprep.subr.mxu0 0.0
  %4433 = vmatpush1.msra.mxu0 0.0
  %4434 = vmatprep.subr.mxu0 0.0
  %4435 = vmatpush1.msra.mxu0 0.0
  %4436 = vmatprep.subr.mxu0 0.0
  %4437 = vmatpush1.msra.mxu0 0.0
  %4438 = vmatprep.subr.mxu0 0.0
  %4439 = vmatpush1.msra.mxu0 0.0
  %4440 = vmatprep.subr.mxu0 0.0
  %4441 = vmatpush1.msra.mxu0 0.0
  %4442 = vmatprep.subr.mxu0 0.0
  %4443 = vmatpush1.msra.mxu0 0.0
  %4444 = vmatprep.subr.mxu0 0.0
  %4445 = vmatpush1.msra.mxu0 0.0
  %4446 = vmatprep.subr.mxu0 0.0
  %4447 = vmatpush1.msra.mxu0 0.0
  %4448 = vmatprep.subr.mxu0 0.0
  %4449 = vmatpush1.msra.mxu0 0.0
  %4450 = vmatprep.subr.mxu0 0.0
  %4451 = vmatpush1.msra.mxu0 0.0
  %4452 = vmatprep.subr.mxu0 0.0
  %4453 = vmatpush1.msra.mxu0 0.0
  %4454 = vmatprep.subr.mxu0 0.0
  %4455 = vmatpush1.msra.mxu0 0.0
  %4456 = vmatprep.subr.mxu0 0.0
  %4457 = vmatpush1.msra.mxu0 0.0
  %4458 = vmatprep.subr.mxu0 0.0
  %4459 = vmatpush1.msra.mxu0 0.0
  %4460 = vmatprep.subr.mxu0 0.0
  %4461 = vmatpush1.msra.mxu0 0.0
  %4462 = vmatprep.subr.mxu0 0.0
  %4463 = vmatpush1.msra.mxu0 0.0
  %4464 = vmatprep.mubr.f32.mxu0 0.0
  %4465 = vmatmul.mubr.f32.gmra.mrb[0].mxu0 %v4398
  %v4466 = vpop.f32.mrb[0].mxu0
  %v4467 = vadd.f32 0.0, %v4466
  %v4468 = vpop.f32.mrb[0].mxu0
  %4469 = vdwg.mxu0
  %v4470 = vadd.f32 %v4395, %v4467
  %v4471 = vxor.u32 %v4470, 2147483648
  %v4472 = vmul.f32 %v4471, 1.442695
  %v4473 = vpow.pop %v4472
  %v4474 = vadd.f32 %v4473, 1.0
  %v4475 = vrcp.pop %v4474
  %v4476 = vmul.f32 1.0, %v4475
  %v4477 = vtanh.pop %v4470
  %v4478 = vmul.f32 %v4476, %v4215
  %4480 = vrot.lane.b32.xlu0 %v4477, 64
  %v4481 = vpop.permute.xlu0 %4480
  %v4483 = vmul.f32 %v4476, %v4481
  %4485 = vrot.lane.b32.xlu0 %v4483, 32
  %v4486 = vpop.permute.xlu0 %4485
  %v4488 = vadd.f32 %v4478, %v4486
  %v4489 = vtanh.pop %v4488
  %4491 = vrot.lane.b32.xlu0 %v4489, 64
  %v4492 = vpop.permute.xlu0 %4491
  %v4494 = vmul.f32 %v4476, %v4492
  %4496 = vrot.lane.b32.xlu0 %v4494, 32
  %v4497 = vpop.permute.xlu0 %4496
  %4499 = vst.msk [vmem:[#allocation3 + $0xd] sm:$0x1] %vm949, %v4497
  %v4500 = vld [vmem:[#allocation2 + $0xe] sm:$0x1]
  %4501 = vmatprep.subr.mxu0 0.0
  %4502 = vmatpush1.msra.mxu0 %v31
  %4503 = vmatprep.subr.mxu0 0.0
  %4504 = vmatpush1.msra.mxu0 %v32
  %4505 = vmatprep.subr.mxu0 0.0
  %4506 = vmatpush1.msra.mxu0 %v33
  %4507 = vmatprep.subr.mxu0 0.0
  %4508 = vmatpush1.msra.mxu0 %v34
  %4509 = vmatprep.subr.mxu0 0.0
  %4510 = vmatpush1.msra.mxu0 0.0
  %4511 = vmatprep.subr.mxu0 0.0
  %4512 = vmatpush1.msra.mxu0 0.0
  %4513 = vmatprep.subr.mxu0 0.0
  %4514 = vmatpush1.msra.mxu0 0.0
  %4515 = vmatprep.subr.mxu0 0.0
  %4516 = vmatpush1.msra.mxu0 0.0
  %4517 = vmatprep.subr.mxu0 0.0
  %4518 = vmatpush1.msra.mxu0 0.0
  %4519 = vmatprep.subr.mxu0 0.0
  %4520 = vmatpush1.msra.mxu0 0.0
  %4521 = vmatprep.subr.mxu0 0.0
  %4522 = vmatpush1.msra.mxu0 0.0
  %4523 = vmatprep.subr.mxu0 0.0
  %4524 = vmatpush1.msra.mxu0 0.0
  %4525 = vmatprep.subr.mxu0 0.0
  %4526 = vmatpush1.msra.mxu0 0.0
  %4527 = vmatprep.subr.mxu0 0.0
  %4528 = vmatpush1.msra.mxu0 0.0
  %4529 = vmatprep.subr.mxu0 0.0
  %4530 = vmatpush1.msra.mxu0 0.0
  %4531 = vmatprep.subr.mxu0 0.0
  %4532 = vmatpush1.msra.mxu0 0.0
  %4533 = vmatprep.subr.mxu0 0.0
  %4534 = vmatpush1.msra.mxu0 0.0
  %4535 = vmatprep.subr.mxu0 0.0
  %4536 = vmatpush1.msra.mxu0 0.0
  %4537 = vmatprep.subr.mxu0 0.0
  %4538 = vmatpush1.msra.mxu0 0.0
  %4539 = vmatprep.subr.mxu0 0.0
  %4540 = vmatpush1.msra.mxu0 0.0
  %4541 = vmatprep.subr.mxu0 0.0
  %4542 = vmatpush1.msra.mxu0 0.0
  %4543 = vmatprep.subr.mxu0 0.0
  %4544 = vmatpush1.msra.mxu0 0.0
  %4545 = vmatprep.subr.mxu0 0.0
  %4546 = vmatpush1.msra.mxu0 0.0
  %4547 = vmatprep.subr.mxu0 0.0
  %4548 = vmatpush1.msra.mxu0 0.0
  %4549 = vmatprep.subr.mxu0 0.0
  %4550 = vmatpush1.msra.mxu0 0.0
  %4551 = vmatprep.subr.mxu0 0.0
  %4552 = vmatpush1.msra.mxu0 0.0
  %4553 = vmatprep.subr.mxu0 0.0
  %4554 = vmatpush1.msra.mxu0 0.0
  %4555 = vmatprep.subr.mxu0 0.0
  %4556 = vmatpush1.msra.mxu0 0.0
  %4557 = vmatprep.subr.mxu0 0.0
  %4558 = vmatpush1.msra.mxu0 0.0
  %4559 = vmatprep.subr.mxu0 0.0
  %4560 = vmatpush1.msra.mxu0 0.0
  %4561 = vmatprep.subr.mxu0 0.0
  %4562 = vmatpush1.msra.mxu0 0.0
  %4563 = vmatprep.subr.mxu0 0.0
  %4564 = vmatpush1.msra.mxu0 0.0
  %4565 = vmatprep.mubr.f32.mxu0 0.0
  %4566 = vmatmul.mubr.f32.gmra.mrb[0].mxu0 %v4326
  %v4567 = vpop.f32.mrb[0].mxu0
  %v4568 = vadd.f32 0.0, %v4567
  %v4569 = vpop.f32.mrb[0].mxu0
  %4570 = vdwg.mxu0
  %v4571 = vadd.f32 %v4500, %v4568
  %v4572 = vxor.u32 %v4571, 2147483648
  %v4573 = vmul.f32 %v4572, 1.442695
  %v4574 = vpow.pop %v4573
  %v4575 = vadd.f32 %v4574, 1.0
  %v4576 = vrcp.pop %v4575
  %v4577 = vmul.f32 1.0, %v4576
  %v4578 = vtanh.pop %v4571
  %v4579 = vmul.f32 %v4577, %v4316
  %4581 = vrot.lane.b32.xlu0 %v4578, 64
  %v4582 = vpop.permute.xlu0 %4581
  %v4584 = vmul.f32 %v4577, %v4582
  %4586 = vrot.lane.b32.xlu0 %v4584, 32
  %v4587 = vpop.permute.xlu0 %4586
  %v4589 = vadd.f32 %v4579, %v4587
  %v4590 = vtanh.pop %v4589
  %4592 = vrot.lane.b32.xlu0 %v4590, 64
  %v4593 = vpop.permute.xlu0 %4592
  %v4595 = vmul.f32 %v4577, %v4593
  %4597 = vrot.lane.b32.xlu0 %v4595, 32
  %v4598 = vpop.permute.xlu0 %4597
  %v4599 = vsel %vm576, %v4598, 0
  %4601 = vmatprep.subr.mxu0 0.0
  %4602 = vmatpush1.msra.mxu0 %v35
  %4603 = vmatprep.subr.mxu0 0.0
  %4604 = vmatpush1.msra.mxu0 %v36
  %4605 = vmatprep.subr.mxu0 0.0
  %4606 = vmatpush1.msra.mxu0 %v37
  %4607 = vmatprep.subr.mxu0 0.0
  %4608 = vmatpush1.msra.mxu0 %v38
  %4609 = vmatprep.subr.mxu0 0.0
  %4610 = vmatpush1.msra.mxu0 0.0
  %4611 = vmatprep.subr.mxu0 0.0
  %4612 = vmatpush1.msra.mxu0 0.0
  %4613 = vmatprep.subr.mxu0 0.0
  %4614 = vmatpush1.msra.mxu0 0.0
  %4615 = vmatprep.subr.mxu0 0.0
  %4616 = vmatpush1.msra.mxu0 0.0
  %4617 = vmatprep.subr.mxu0 0.0
  %4618 = vmatpush1.msra.mxu0 0.0
  %4619 = vmatprep.subr.mxu0 0.0
  %4620 = vmatpush1.msra.mxu0 0.0
  %4621 = vmatprep.subr.mxu0 0.0
  %4622 = vmatpush1.msra.mxu0 0.0
  %4623 = vmatprep.subr.mxu0 0.0
  %4624 = vmatpush1.msra.mxu0 0.0
  %4625 = vmatprep.subr.mxu0 0.0
  %4626 = vmatpush1.msra.mxu0 0.0
  %4627 = vmatprep.subr.mxu0 0.0
  %4628 = vmatpush1.msra.mxu0 0.0
  %4629 = vmatprep.subr.mxu0 0.0
  %4630 = vmatpush1.msra.mxu0 0.0
  %4631 = vmatprep.subr.mxu0 0.0
  %4632 = vmatpush1.msra.mxu0 0.0
  %4633 = vmatprep.subr.mxu0 0.0
  %4634 = vmatpush1.msra.mxu0 0.0
  %4635 = vmatprep.subr.mxu0 0.0
  %4636 = vmatpush1.msra.mxu0 0.0
  %4637 = vmatprep.subr.mxu0 0.0
  %4638 = vmatpush1.msra.mxu0 0.0
  %4639 = vmatprep.subr.mxu0 0.0
  %4640 = vmatpush1.msra.mxu0 0.0
  %4641 = vmatprep.subr.mxu0 0.0
  %4642 = vmatpush1.msra.mxu0 0.0
  %4643 = vmatprep.subr.mxu0 0.0
  %4644 = vmatpush1.msra.mxu0 0.0
  %4645 = vmatprep.subr.mxu0 0.0
  %4646 = vmatpush1.msra.mxu0 0.0
  %4647 = vmatprep.subr.mxu0 0.0
  %4648 = vmatpush1.msra.mxu0 0.0
  %4649 = vmatprep.subr.mxu0 0.0
  %4650 = vmatpush1.msra.mxu0 0.0
  %4651 = vmatprep.subr.mxu0 0.0
  %4652 = vmatpush1.msra.mxu0 0.0
  %4653 = vmatprep.subr.mxu0 0.0
  %4654 = vmatpush1.msra.mxu0 0.0
  %4655 = vmatprep.subr.mxu0 0.0
  %4656 = vmatpush1.msra.mxu0 0.0
  %4657 = vmatprep.subr.mxu0 0.0
  %4658 = vmatpush1.msra.mxu0 0.0
  %4659 = vmatprep.subr.mxu0 0.0
  %4660 = vmatpush1.msra.mxu0 0.0
  %4661 = vmatprep.subr.mxu0 0.0
  %4662 = vmatpush1.msra.mxu0 0.0
  %4663 = vmatprep.subr.mxu0 0.0
  %4664 = vmatpush1.msra.mxu0 0.0
  %4665 = vmatprep.mubr.f32.mxu0 0.0
  %4666 = vmatmul.mubr.f32.gmra.mrb[0].mxu0 %v4599
  %v4667 = vpop.f32.mrb[0].mxu0
  %v4668 = vadd.f32 %v24, %v4667
  %v4669 = vpop.f32.mrb[0].mxu0
  %4670 = vdwg.mxu0
  %v4671 = vsel %vm576, %v4497, 0
  %4673 = vmatprep.subr.mxu0 0.0
  %4674 = vmatpush1.msra.mxu0 %v39
  %4675 = vmatprep.subr.mxu0 0.0
  %4676 = vmatpush1.msra.mxu0 %v40
  %4677 = vmatprep.subr.mxu0 0.0
  %4678 = vmatpush1.msra.mxu0 %v41
  %4679 = vmatprep.subr.mxu0 0.0
  %4680 = vmatpush1.msra.mxu0 %v42
  %4681 = vmatprep.subr.mxu0 0.0
  %4682 = vmatpush1.msra.mxu0 0.0
  %4683 = vmatprep.subr.mxu0 0.0
  %4684 = vmatpush1.msra.mxu0 0.0
  %4685 = vmatprep.subr.mxu0 0.0
  %4686 = vmatpush1.msra.mxu0 0.0
  %4687 = vmatprep.subr.mxu0 0.0
  %4688 = vmatpush1.msra.mxu0 0.0
  %4689 = vmatprep.subr.mxu0 0.0
  %4690 = vmatpush1.msra.mxu0 0.0
  %4691 = vmatprep.subr.mxu0 0.0
  %4692 = vmatpush1.msra.mxu0 0.0
  %4693 = vmatprep.subr.mxu0 0.0
  %4694 = vmatpush1.msra.mxu0 0.0
  %4695 = vmatprep.subr.mxu0 0.0
  %4696 = vmatpush1.msra.mxu0 0.0
  %4697 = vmatprep.subr.mxu0 0.0
  %4698 = vmatpush1.msra.mxu0 0.0
  %4699 = vmatprep.subr.mxu0 0.0
  %4700 = vmatpush1.msra.mxu0 0.0
  %4701 = vmatprep.subr.mxu0 0.0
  %4702 = vmatpush1.msra.mxu0 0.0
  %4703 = vmatprep.subr.mxu0 0.0
  %4704 = vmatpush1.msra.mxu0 0.0
  %4705 = vmatprep.subr.mxu0 0.0
  %4706 = vmatpush1.msra.mxu0 0.0
  %4707 = vmatprep.subr.mxu0 0.0
  %4708 = vmatpush1.msra.mxu0 0.0
  %4709 = vmatprep.subr.mxu0 0.0
  %4710 = vmatpush1.msra.mxu0 0.0
  %4711 = vmatprep.subr.mxu0 0.0
  %4712 = vmatpush1.msra.mxu0 0.0
  %4713 = vmatprep.subr.mxu0 0.0
  %4714 = vmatpush1.msra.mxu0 0.0
  %4715 = vmatprep.subr.mxu0 0.0
  %4716 = vmatpush1.msra.mxu0 0.0
  %4717 = vmatprep.subr.mxu0 0.0
  %4718 = vmatpush1.msra.mxu0 0.0
  %4719 = vmatprep.subr.mxu0 0.0
  %4720 = vmatpush1.msra.mxu0 0.0
  %4721 = vmatprep.subr.mxu0 0.0
  %4722 = vmatpush1.msra.mxu0 0.0
  %4723 = vmatprep.subr.mxu0 0.0
  %4724 = vmatpush1.msra.mxu0 0.0
  %4725 = vmatprep.subr.mxu0 0.0
  %4726 = vmatpush1.msra.mxu0 0.0
  %4727 = vmatprep.subr.mxu0 0.0
  %4728 = vmatpush1.msra.mxu0 0.0
  %4729 = vmatprep.subr.mxu0 0.0
  %4730 = vmatpush1.msra.mxu0 0.0
  %4731 = vmatprep.subr.mxu0 0.0
  %4732 = vmatpush1.msra.mxu0 0.0
  %4733 = vmatprep.subr.mxu0 0.0
  %4734 = vmatpush1.msra.mxu0 0.0
  %4735 = vmatprep.subr.mxu0 0.0
  %4736 = vmatpush1.msra.mxu0 0.0
  %4737 = vmatprep.mubr.f32.mxu0 0.0
  %4738 = vmatmul.mubr.f32.gmra.mrb[0].mxu0 %v4671
  %v4739 = vpop.f32.mrb[0].mxu0
  %v4740 = vadd.f32 0.0, %v4739
  %v4741 = vpop.f32.mrb[0].mxu0
  %4742 = vdwg.mxu0
  %v4743 = vadd.f32 %v4668, %v4740
  %v4744 = vxor.u32 %v4743, 2147483648
  %v4745 = vmul.f32 %v4744, 1.442695
  %v4746 = vpow.pop %v4745
  %v4747 = vadd.f32 %v4746, 1.0
  %v4748 = vrcp.pop %v4747
  %v4749 = vmul.f32 1.0, %v4748
  %v4750 = vtanh.pop %v4743
  %v4751 = vmul.f32 %v4749, %v4488
  %4753 = vrot.lane.b32.xlu0 %v4750, 64
  %v4754 = vpop.permute.xlu0 %4753
  %v4756 = vmul.f32 %v4749, %v4754
  %4758 = vrot.lane.b32.xlu0 %v4756, 32
  %v4759 = vpop.permute.xlu0 %4758
  %v4761 = vadd.f32 %v4751, %v4759
  %v4762 = vtanh.pop %v4761
  %4764 = vrot.lane.b32.xlu0 %v4762, 64
  %v4765 = vpop.permute.xlu0 %4764
  %v4767 = vmul.f32 %v4749, %v4765
  %4769 = vrot.lane.b32.xlu0 %v4767, 32
  %v4770 = vpop.permute.xlu0 %4769
  %4772 = vst.msk [vmem:[#allocation3 + $0xe] sm:$0x1] %vm949, %v4770
  %v4773 = vld [vmem:[#allocation2 + $0xf] sm:$0x1]
  %4774 = vmatprep.subr.mxu0 0.0
  %4775 = vmatpush1.msra.mxu0 %v31
  %4776 = vmatprep.subr.mxu0 0.0
  %4777 = vmatpush1.msra.mxu0 %v32
  %4778 = vmatprep.subr.mxu0 0.0
  %4779 = vmatpush1.msra.mxu0 %v33
  %4780 = vmatprep.subr.mxu0 0.0
  %4781 = vmatpush1.msra.mxu0 %v34
  %4782 = vmatprep.subr.mxu0 0.0
  %4783 = vmatpush1.msra.mxu0 0.0
  %4784 = vmatprep.subr.mxu0 0.0
  %4785 = vmatpush1.msra.mxu0 0.0
  %4786 = vmatprep.subr.mxu0 0.0
  %4787 = vmatpush1.msra.mxu0 0.0
  %4788 = vmatprep.subr.mxu0 0.0
  %4789 = vmatpush1.msra.mxu0 0.0
  %4790 = vmatprep.subr.mxu0 0.0
  %4791 = vmatpush1.msra.mxu0 0.0
  %4792 = vmatprep.subr.mxu0 0.0
  %4793 = vmatpush1.msra.mxu0 0.0
  %4794 = vmatprep.subr.mxu0 0.0
  %4795 = vmatpush1.msra.mxu0 0.0
  %4796 = vmatprep.subr.mxu0 0.0
  %4797 = vmatpush1.msra.mxu0 0.0
  %4798 = vmatprep.subr.mxu0 0.0
  %4799 = vmatpush1.msra.mxu0 0.0
  %4800 = vmatprep.subr.mxu0 0.0
  %4801 = vmatpush1.msra.mxu0 0.0
  %4802 = vmatprep.subr.mxu0 0.0
  %4803 = vmatpush1.msra.mxu0 0.0
  %4804 = vmatprep.subr.mxu0 0.0
  %4805 = vmatpush1.msra.mxu0 0.0
  %4806 = vmatprep.subr.mxu0 0.0
  %4807 = vmatpush1.msra.mxu0 0.0
  %4808 = vmatprep.subr.mxu0 0.0
  %4809 = vmatpush1.msra.mxu0 0.0
  %4810 = vmatprep.subr.mxu0 0.0
  %4811 = vmatpush1.msra.mxu0 0.0
  %4812 = vmatprep.subr.mxu0 0.0
  %4813 = vmatpush1.msra.mxu0 0.0
  %4814 = vmatprep.subr.mxu0 0.0
  %4815 = vmatpush1.msra.mxu0 0.0
  %4816 = vmatprep.subr.mxu0 0.0
  %4817 = vmatpush1.msra.mxu0 0.0
  %4818 = vmatprep.subr.mxu0 0.0
  %4819 = vmatpush1.msra.mxu0 0.0
  %4820 = vmatprep.subr.mxu0 0.0
  %4821 = vmatpush1.msra.mxu0 0.0
  %4822 = vmatprep.subr.mxu0 0.0
  %4823 = vmatpush1.msra.mxu0 0.0
  %4824 = vmatprep.subr.mxu0 0.0
  %4825 = vmatpush1.msra.mxu0 0.0
  %4826 = vmatprep.subr.mxu0 0.0
  %4827 = vmatpush1.msra.mxu0 0.0
  %4828 = vmatprep.subr.mxu0 0.0
  %4829 = vmatpush1.msra.mxu0 0.0
  %4830 = vmatprep.subr.mxu0 0.0
  %4831 = vmatpush1.msra.mxu0 0.0
  %4832 = vmatprep.subr.mxu0 0.0
  %4833 = vmatpush1.msra.mxu0 0.0
  %4834 = vmatprep.subr.mxu0 0.0
  %4835 = vmatpush1.msra.mxu0 0.0
  %4836 = vmatprep.subr.mxu0 0.0
  %4837 = vmatpush1.msra.mxu0 0.0
  %4838 = vmatprep.mubr.f32.mxu0 0.0
  %4839 = vmatmul.mubr.f32.gmra.mrb[0].mxu0 %v4599
  %v4840 = vpop.f32.mrb[0].mxu0
  %v4841 = vadd.f32 0.0, %v4840
  %v4842 = vpop.f32.mrb[0].mxu0
  %4843 = vdwg.mxu0
  %v4844 = vadd.f32 %v4773, %v4841
  %v4845 = vxor.u32 %v4844, 2147483648
  %v4846 = vmul.f32 %v4845, 1.442695
  %v4847 = vpow.pop %v4846
  %v4848 = vadd.f32 %v4847, 1.0
  %v4849 = vrcp.pop %v4848
  %v4850 = vmul.f32 1.0, %v4849
  %v4851 = vtanh.pop %v4844
  %v4852 = vmul.f32 %v4850, %v4589
  %4854 = vrot.lane.b32.xlu0 %v4851, 64
  %v4855 = vpop.permute.xlu0 %4854
  %v4857 = vmul.f32 %v4850, %v4855
  %4859 = vrot.lane.b32.xlu0 %v4857, 32
  %v4860 = vpop.permute.xlu0 %4859
  %v4862 = vadd.f32 %v4852, %v4860
  %v4863 = vtanh.pop %v4862
  %4865 = vrot.lane.b32.xlu0 %v4863, 64
  %v4866 = vpop.permute.xlu0 %4865
  %v4868 = vmul.f32 %v4850, %v4866
  %4870 = vrot.lane.b32.xlu0 %v4868, 32
  %v4871 = vpop.permute.xlu0 %4870
  %v4872 = vsel %vm576, %v4871, 0
  %4874 = vmatprep.subr.mxu0 0.0
  %4875 = vmatpush1.msra.mxu0 %v35
  %4876 = vmatprep.subr.mxu0 0.0
  %4877 = vmatpush1.msra.mxu0 %v36
  %4878 = vmatprep.subr.mxu0 0.0
  %4879 = vmatpush1.msra.mxu0 %v37
  %4880 = vmatprep.subr.mxu0 0.0
  %4881 = vmatpush1.msra.mxu0 %v38
  %4882 = vmatprep.subr.mxu0 0.0
  %4883 = vmatpush1.msra.mxu0 0.0
  %4884 = vmatprep.subr.mxu0 0.0
  %4885 = vmatpush1.msra.mxu0 0.0
  %4886 = vmatprep.subr.mxu0 0.0
  %4887 = vmatpush1.msra.mxu0 0.0
  %4888 = vmatprep.subr.mxu0 0.0
  %4889 = vmatpush1.msra.mxu0 0.0
  %4890 = vmatprep.subr.mxu0 0.0
  %4891 = vmatpush1.msra.mxu0 0.0
  %4892 = vmatprep.subr.mxu0 0.0
  %4893 = vmatpush1.msra.mxu0 0.0
  %4894 = vmatprep.subr.mxu0 0.0
  %4895 = vmatpush1.msra.mxu0 0.0
  %4896 = vmatprep.subr.mxu0 0.0
  %4897 = vmatpush1.msra.mxu0 0.0
  %4898 = vmatprep.subr.mxu0 0.0
  %4899 = vmatpush1.msra.mxu0 0.0
  %4900 = vmatprep.subr.mxu0 0.0
  %4901 = vmatpush1.msra.mxu0 0.0
  %4902 = vmatprep.subr.mxu0 0.0
  %4903 = vmatpush1.msra.mxu0 0.0
  %4904 = vmatprep.subr.mxu0 0.0
  %4905 = vmatpush1.msra.mxu0 0.0
  %4906 = vmatprep.subr.mxu0 0.0
  %4907 = vmatpush1.msra.mxu0 0.0
  %4908 = vmatprep.subr.mxu0 0.0
  %4909 = vmatpush1.msra.mxu0 0.0
  %4910 = vmatprep.subr.mxu0 0.0
  %4911 = vmatpush1.msra.mxu0 0.0
  %4912 = vmatprep.subr.mxu0 0.0
  %4913 = vmatpush1.msra.mxu0 0.0
  %4914 = vmatprep.subr.mxu0 0.0
  %4915 = vmatpush1.msra.mxu0 0.0
  %4916 = vmatprep.subr.mxu0 0.0
  %4917 = vmatpush1.msra.mxu0 0.0
  %4918 = vmatprep.subr.mxu0 0.0
  %4919 = vmatpush1.msra.mxu0 0.0
  %4920 = vmatprep.subr.mxu0 0.0
  %4921 = vmatpush1.msra.mxu0 0.0
  %4922 = vmatprep.subr.mxu0 0.0
  %4923 = vmatpush1.msra.mxu0 0.0
  %4924 = vmatprep.subr.mxu0 0.0
  %4925 = vmatpush1.msra.mxu0 0.0
  %4926 = vmatprep.subr.mxu0 0.0
  %4927 = vmatpush1.msra.mxu0 0.0
  %4928 = vmatprep.subr.mxu0 0.0
  %4929 = vmatpush1.msra.mxu0 0.0
  %4930 = vmatprep.subr.mxu0 0.0
  %4931 = vmatpush1.msra.mxu0 0.0
  %4932 = vmatprep.subr.mxu0 0.0
  %4933 = vmatpush1.msra.mxu0 0.0
  %4934 = vmatprep.subr.mxu0 0.0
  %4935 = vmatpush1.msra.mxu0 0.0
  %4936 = vmatprep.subr.mxu0 0.0
  %4937 = vmatpush1.msra.mxu0 0.0
  %4938 = vmatprep.mubr.f32.mxu0 0.0
  %4939 = vmatmul.mubr.f32.gmra.mrb[0].mxu0 %v4872
  %v4940 = vpop.f32.mrb[0].mxu0
  %v4941 = vadd.f32 %v24, %v4940
  %v4942 = vpop.f32.mrb[0].mxu0
  %4943 = vdwg.mxu0
  %v4944 = vsel %vm576, %v4770, 0
  %4946 = vmatprep.subr.mxu0 0.0
  %4947 = vmatpush1.msra.mxu0 %v39
  %4948 = vmatprep.subr.mxu0 0.0
  %4949 = vmatpush1.msra.mxu0 %v40
  %4950 = vmatprep.subr.mxu0 0.0
  %4951 = vmatpush1.msra.mxu0 %v41
  %4952 = vmatprep.subr.mxu0 0.0
  %4953 = vmatpush1.msra.mxu0 %v42
  %4954 = vmatprep.subr.mxu0 0.0
  %4955 = vmatpush1.msra.mxu0 0.0
  %4956 = vmatprep.subr.mxu0 0.0
  %4957 = vmatpush1.msra.mxu0 0.0
  %4958 = vmatprep.subr.mxu0 0.0
  %4959 = vmatpush1.msra.mxu0 0.0
  %4960 = vmatprep.subr.mxu0 0.0
  %4961 = vmatpush1.msra.mxu0 0.0
  %4962 = vmatprep.subr.mxu0 0.0
  %4963 = vmatpush1.msra.mxu0 0.0
  %4964 = vmatprep.subr.mxu0 0.0
  %4965 = vmatpush1.msra.mxu0 0.0
  %4966 = vmatprep.subr.mxu0 0.0
  %4967 = vmatpush1.msra.mxu0 0.0
  %4968 = vmatprep.subr.mxu0 0.0
  %4969 = vmatpush1.msra.mxu0 0.0
  %4970 = vmatprep.subr.mxu0 0.0
  %4971 = vmatpush1.msra.mxu0 0.0
  %4972 = vmatprep.subr.mxu0 0.0
  %4973 = vmatpush1.msra.mxu0 0.0
  %4974 = vmatprep.subr.mxu0 0.0
  %4975 = vmatpush1.msra.mxu0 0.0
  %4976 = vmatprep.subr.mxu0 0.0
  %4977 = vmatpush1.msra.mxu0 0.0
  %4978 = vmatprep.subr.mxu0 0.0
  %4979 = vmatpush1.msra.mxu0 0.0
  %4980 = vmatprep.subr.mxu0 0.0
  %4981 = vmatpush1.msra.mxu0 0.0
  %4982 = vmatprep.subr.mxu0 0.0
  %4983 = vmatpush1.msra.mxu0 0.0
  %4984 = vmatprep.subr.mxu0 0.0
  %4985 = vmatpush1.msra.mxu0 0.0
  %4986 = vmatprep.subr.mxu0 0.0
  %4987 = vmatpush1.msra.mxu0 0.0
  %4988 = vmatprep.subr.mxu0 0.0
  %4989 = vmatpush1.msra.mxu0 0.0
  %4990 = vmatprep.subr.mxu0 0.0
  %4991 = vmatpush1.msra.mxu0 0.0
  %4992 = vmatprep.subr.mxu0 0.0
  %4993 = vmatpush1.msra.mxu0 0.0
  %4994 = vmatprep.subr.mxu0 0.0
  %4995 = vmatpush1.msra.mxu0 0.0
  %4996 = vmatprep.subr.mxu0 0.0
  %4997 = vmatpush1.msra.mxu0 0.0
  %4998 = vmatprep.subr.mxu0 0.0
  %4999 = vmatpush1.msra.mxu0 0.0
  %5000 = vmatprep.subr.mxu0 0.0
  %5001 = vmatpush1.msra.mxu0 0.0
  %5002 = vmatprep.subr.mxu0 0.0
  %5003 = vmatpush1.msra.mxu0 0.0
  %5004 = vmatprep.subr.mxu0 0.0
  %5005 = vmatpush1.msra.mxu0 0.0
  %5006 = vmatprep.subr.mxu0 0.0
  %5007 = vmatpush1.msra.mxu0 0.0
  %5008 = vmatprep.subr.mxu0 0.0
  %5009 = vmatpush1.msra.mxu0 0.0
  %5010 = vmatprep.mubr.f32.mxu0 0.0
  %5011 = vmatmul.mubr.f32.gmra.mrb[0].mxu0 %v4944
  %v5012 = vpop.f32.mrb[0].mxu0
  %v5013 = vadd.f32 0.0, %v5012
  %v5014 = vpop.f32.mrb[0].mxu0
  %5015 = vdwg.mxu0
  %v5016 = vadd.f32 %v4941, %v5013
  %v5017 = vxor.u32 %v5016, 2147483648
  %v5018 = vmul.f32 %v5017, 1.442695
  %v5019 = vpow.pop %v5018
  %v5020 = vadd.f32 %v5019, 1.0
  %v5021 = vrcp.pop %v5020
  %v5022 = vmul.f32 1.0, %v5021
  %v5023 = vtanh.pop %v5016
  %v5024 = vmul.f32 %v5022, %v4761
  %5026 = vrot.lane.b32.xlu0 %v5023, 64
  %v5027 = vpop.permute.xlu0 %5026
  %v5029 = vmul.f32 %v5022, %v5027
  %5031 = vrot.lane.b32.xlu0 %v5029, 32
  %v5032 = vpop.permute.xlu0 %5031
  %v5034 = vadd.f32 %v5024, %v5032
  %v5035 = vtanh.pop %v5034
  %5037 = vrot.lane.b32.xlu0 %v5035, 64
  %v5038 = vpop.permute.xlu0 %5037
  %v5040 = vmul.f32 %v5022, %v5038
  %5042 = vrot.lane.b32.xlu0 %v5040, 32
  %v5043 = vpop.permute.xlu0 %5042
  %5045 = vst.msk [vmem:[#allocation3 + $0xf] sm:$0x1] %vm949, %v5043
  %v5046 = vld [vmem:[#allocation2 + $0x10] sm:$0x1]
  %5047 = vmatprep.subr.mxu0 0.0
  %5048 = vmatpush1.msra.mxu0 %v31
  %5049 = vmatprep.subr.mxu0 0.0
  %5050 = vmatpush1.msra.mxu0 %v32
  %5051 = vmatprep.subr.mxu0 0.0
  %5052 = vmatpush1.msra.mxu0 %v33
  %5053 = vmatprep.subr.mxu0 0.0
  %5054 = vmatpush1.msra.mxu0 %v34
  %5055 = vmatprep.subr.mxu0 0.0
  %5056 = vmatpush1.msra.mxu0 0.0
  %5057 = vmatprep.subr.mxu0 0.0
  %5058 = vmatpush1.msra.mxu0 0.0
  %5059 = vmatprep.subr.mxu0 0.0
  %5060 = vmatpush1.msra.mxu0 0.0
  %5061 = vmatprep.subr.mxu0 0.0
  %5062 = vmatpush1.msra.mxu0 0.0
  %5063 = vmatprep.subr.mxu0 0.0
  %5064 = vmatpush1.msra.mxu0 0.0
  %5065 = vmatprep.subr.mxu0 0.0
  %5066 = vmatpush1.msra.mxu0 0.0
  %5067 = vmatprep.subr.mxu0 0.0
  %5068 = vmatpush1.msra.mxu0 0.0
  %5069 = vmatprep.subr.mxu0 0.0
  %5070 = vmatpush1.msra.mxu0 0.0
  %5071 = vmatprep.subr.mxu0 0.0
  %5072 = vmatpush1.msra.mxu0 0.0
  %5073 = vmatprep.subr.mxu0 0.0
  %5074 = vmatpush1.msra.mxu0 0.0
  %5075 = vmatprep.subr.mxu0 0.0
  %5076 = vmatpush1.msra.mxu0 0.0
  %5077 = vmatprep.subr.mxu0 0.0
  %5078 = vmatpush1.msra.mxu0 0.0
  %5079 = vmatprep.subr.mxu0 0.0
  %5080 = vmatpush1.msra.mxu0 0.0
  %5081 = vmatprep.subr.mxu0 0.0
  %5082 = vmatpush1.msra.mxu0 0.0
  %5083 = vmatprep.subr.mxu0 0.0
  %5084 = vmatpush1.msra.mxu0 0.0
  %5085 = vmatprep.subr.mxu0 0.0
  %5086 = vmatpush1.msra.mxu0 0.0
  %5087 = vmatprep.subr.mxu0 0.0
  %5088 = vmatpush1.msra.mxu0 0.0
  %5089 = vmatprep.subr.mxu0 0.0
  %5090 = vmatpush1.msra.mxu0 0.0
  %5091 = vmatprep.subr.mxu0 0.0
  %5092 = vmatpush1.msra.mxu0 0.0
  %5093 = vmatprep.subr.mxu0 0.0
  %5094 = vmatpush1.msra.mxu0 0.0
  %5095 = vmatprep.subr.mxu0 0.0
  %5096 = vmatpush1.msra.mxu0 0.0
  %5097 = vmatprep.subr.mxu0 0.0
  %5098 = vmatpush1.msra.mxu0 0.0
  %5099 = vmatprep.subr.mxu0 0.0
  %5100 = vmatpush1.msra.mxu0 0.0
  %5101 = vmatprep.subr.mxu0 0.0
  %5102 = vmatpush1.msra.mxu0 0.0
  %5103 = vmatprep.subr.mxu0 0.0
  %5104 = vmatpush1.msra.mxu0 0.0
  %5105 = vmatprep.subr.mxu0 0.0
  %5106 = vmatpush1.msra.mxu0 0.0
  %5107 = vmatprep.subr.mxu0 0.0
  %5108 = vmatpush1.msra.mxu0 0.0
  %5109 = vmatprep.subr.mxu0 0.0
  %5110 = vmatpush1.msra.mxu0 0.0
  %5111 = vmatprep.mubr.f32.mxu0 0.0
  %5112 = vmatmul.mubr.f32.gmra.mrb[0].mxu0 %v4872
  %v5113 = vpop.f32.mrb[0].mxu0
  %v5114 = vadd.f32 0.0, %v5113
  %v5115 = vpop.f32.mrb[0].mxu0
  %5116 = vdwg.mxu0
  %v5117 = vadd.f32 %v5046, %v5114
  %v5118 = vxor.u32 %v5117, 2147483648
  %v5119 = vmul.f32 %v5118, 1.442695
  %v5120 = vpow.pop %v5119
  %v5121 = vadd.f32 %v5120, 1.0
  %v5122 = vrcp.pop %v5121
  %v5123 = vmul.f32 1.0, %v5122
  %v5124 = vtanh.pop %v5117
  %v5125 = vmul.f32 %v5123, %v4862
  %5127 = vrot.lane.b32.xlu0 %v5124, 64
  %v5128 = vpop.permute.xlu0 %5127
  %v5130 = vmul.f32 %v5123, %v5128
  %5132 = vrot.lane.b32.xlu0 %v5130, 32
  %v5133 = vpop.permute.xlu0 %5132
  %v5135 = vadd.f32 %v5125, %v5133
  %v5136 = vtanh.pop %v5135
  %5138 = vrot.lane.b32.xlu0 %v5136, 64
  %v5139 = vpop.permute.xlu0 %5138
  %v5141 = vmul.f32 %v5123, %v5139
  %5143 = vrot.lane.b32.xlu0 %v5141, 32
  %v5144 = vpop.permute.xlu0 %5143
  %v5145 = vsel %vm576, %v5144, 0
  %5147 = vmatprep.subr.mxu0 0.0
  %5148 = vmatpush1.msra.mxu0 %v35
  %5149 = vmatprep.subr.mxu0 0.0
  %5150 = vmatpush1.msra.mxu0 %v36
  %5151 = vmatprep.subr.mxu0 0.0
  %5152 = vmatpush1.msra.mxu0 %v37
  %5153 = vmatprep.subr.mxu0 0.0
  %5154 = vmatpush1.msra.mxu0 %v38
  %5155 = vmatprep.subr.mxu0 0.0
  %5156 = vmatpush1.msra.mxu0 0.0
  %5157 = vmatprep.subr.mxu0 0.0
  %5158 = vmatpush1.msra.mxu0 0.0
  %5159 = vmatprep.subr.mxu0 0.0
  %5160 = vmatpush1.msra.mxu0 0.0
  %5161 = vmatprep.subr.mxu0 0.0
  %5162 = vmatpush1.msra.mxu0 0.0
  %5163 = vmatprep.subr.mxu0 0.0
  %5164 = vmatpush1.msra.mxu0 0.0
  %5165 = vmatprep.subr.mxu0 0.0
  %5166 = vmatpush1.msra.mxu0 0.0
  %5167 = vmatprep.subr.mxu0 0.0
  %5168 = vmatpush1.msra.mxu0 0.0
  %5169 = vmatprep.subr.mxu0 0.0
  %5170 = vmatpush1.msra.mxu0 0.0
  %5171 = vmatprep.subr.mxu0 0.0
  %5172 = vmatpush1.msra.mxu0 0.0
  %5173 = vmatprep.subr.mxu0 0.0
  %5174 = vmatpush1.msra.mxu0 0.0
  %5175 = vmatprep.subr.mxu0 0.0
  %5176 = vmatpush1.msra.mxu0 0.0
  %5177 = vmatprep.subr.mxu0 0.0
  %5178 = vmatpush1.msra.mxu0 0.0
  %5179 = vmatprep.subr.mxu0 0.0
  %5180 = vmatpush1.msra.mxu0 0.0
  %5181 = vmatprep.subr.mxu0 0.0
  %5182 = vmatpush1.msra.mxu0 0.0
  %5183 = vmatprep.subr.mxu0 0.0
  %5184 = vmatpush1.msra.mxu0 0.0
  %5185 = vmatprep.subr.mxu0 0.0
  %5186 = vmatpush1.msra.mxu0 0.0
  %5187 = vmatprep.subr.mxu0 0.0
  %5188 = vmatpush1.msra.mxu0 0.0
  %5189 = vmatprep.subr.mxu0 0.0
  %5190 = vmatpush1.msra.mxu0 0.0
  %5191 = vmatprep.subr.mxu0 0.0
  %5192 = vmatpush1.msra.mxu0 0.0
  %5193 = vmatprep.subr.mxu0 0.0
  %5194 = vmatpush1.msra.mxu0 0.0
  %5195 = vmatprep.subr.mxu0 0.0
  %5196 = vmatpush1.msra.mxu0 0.0
  %5197 = vmatprep.subr.mxu0 0.0
  %5198 = vmatpush1.msra.mxu0 0.0
  %5199 = vmatprep.subr.mxu0 0.0
  %5200 = vmatpush1.msra.mxu0 0.0
  %5201 = vmatprep.subr.mxu0 0.0
  %5202 = vmatpush1.msra.mxu0 0.0
  %5203 = vmatprep.subr.mxu0 0.0
  %5204 = vmatpush1.msra.mxu0 0.0
  %5205 = vmatprep.subr.mxu0 0.0
  %5206 = vmatpush1.msra.mxu0 0.0
  %5207 = vmatprep.subr.mxu0 0.0
  %5208 = vmatpush1.msra.mxu0 0.0
  %5209 = vmatprep.subr.mxu0 0.0
  %5210 = vmatpush1.msra.mxu0 0.0
  %5211 = vmatprep.mubr.f32.mxu0 0.0
  %5212 = vmatmul.mubr.f32.gmra.mrb[0].mxu0 %v5145
  %v5213 = vpop.f32.mrb[0].mxu0
  %v5214 = vadd.f32 %v24, %v5213
  %v5215 = vpop.f32.mrb[0].mxu0
  %5216 = vdwg.mxu0
  %v5217 = vsel %vm576, %v5043, 0
  %5219 = vmatprep.subr.mxu0 0.0
  %5220 = vmatpush1.msra.mxu0 %v39
  %5221 = vmatprep.subr.mxu0 0.0
  %5222 = vmatpush1.msra.mxu0 %v40
  %5223 = vmatprep.subr.mxu0 0.0
  %5224 = vmatpush1.msra.mxu0 %v41
  %5225 = vmatprep.subr.mxu0 0.0
  %5226 = vmatpush1.msra.mxu0 %v42
  %5227 = vmatprep.subr.mxu0 0.0
  %5228 = vmatpush1.msra.mxu0 0.0
  %5229 = vmatprep.subr.mxu0 0.0
  %5230 = vmatpush1.msra.mxu0 0.0
  %5231 = vmatprep.subr.mxu0 0.0
  %5232 = vmatpush1.msra.mxu0 0.0
  %5233 = vmatprep.subr.mxu0 0.0
  %5234 = vmatpush1.msra.mxu0 0.0
  %5235 = vmatprep.subr.mxu0 0.0
  %5236 = vmatpush1.msra.mxu0 0.0
  %5237 = vmatprep.subr.mxu0 0.0
  %5238 = vmatpush1.msra.mxu0 0.0
  %5239 = vmatprep.subr.mxu0 0.0
  %5240 = vmatpush1.msra.mxu0 0.0
  %5241 = vmatprep.subr.mxu0 0.0
  %5242 = vmatpush1.msra.mxu0 0.0
  %5243 = vmatprep.subr.mxu0 0.0
  %5244 = vmatpush1.msra.mxu0 0.0
  %5245 = vmatprep.subr.mxu0 0.0
  %5246 = vmatpush1.msra.mxu0 0.0
  %5247 = vmatprep.subr.mxu0 0.0
  %5248 = vmatpush1.msra.mxu0 0.0
  %5249 = vmatprep.subr.mxu0 0.0
  %5250 = vmatpush1.msra.mxu0 0.0
  %5251 = vmatprep.subr.mxu0 0.0
  %5252 = vmatpush1.msra.mxu0 0.0
  %5253 = vmatprep.subr.mxu0 0.0
  %5254 = vmatpush1.msra.mxu0 0.0
  %5255 = vmatprep.subr.mxu0 0.0
  %5256 = vmatpush1.msra.mxu0 0.0
  %5257 = vmatprep.subr.mxu0 0.0
  %5258 = vmatpush1.msra.mxu0 0.0
  %5259 = vmatprep.subr.mxu0 0.0
  %5260 = vmatpush1.msra.mxu0 0.0
  %5261 = vmatprep.subr.mxu0 0.0
  %5262 = vmatpush1.msra.mxu0 0.0
  %5263 = vmatprep.subr.mxu0 0.0
  %5264 = vmatpush1.msra.mxu0 0.0
  %5265 = vmatprep.subr.mxu0 0.0
  %5266 = vmatpush1.msra.mxu0 0.0
  %5267 = vmatprep.subr.mxu0 0.0
  %5268 = vmatpush1.msra.mxu0 0.0
  %5269 = vmatprep.subr.mxu0 0.0
  %5270 = vmatpush1.msra.mxu0 0.0
  %5271 = vmatprep.subr.mxu0 0.0
  %5272 = vmatpush1.msra.mxu0 0.0
  %5273 = vmatprep.subr.mxu0 0.0
  %5274 = vmatpush1.msra.mxu0 0.0
  %5275 = vmatprep.subr.mxu0 0.0
  %5276 = vmatpush1.msra.mxu0 0.0
  %5277 = vmatprep.subr.mxu0 0.0
  %5278 = vmatpush1.msra.mxu0 0.0
  %5279 = vmatprep.subr.mxu0 0.0
  %5280 = vmatpush1.msra.mxu0 0.0
  %5281 = vmatprep.subr.mxu0 0.0
  %5282 = vmatpush1.msra.mxu0 0.0
  %5283 = vmatprep.mubr.f32.mxu0 0.0
  %5284 = vmatmul.mubr.f32.gmra.mrb[0].mxu0 %v5217
  %v5285 = vpop.f32.mrb[0].mxu0
  %v5286 = vadd.f32 0.0, %v5285
  %v5287 = vpop.f32.mrb[0].mxu0
  %5288 = vdwg.mxu0
  %v5289 = vadd.f32 %v5214, %v5286
  %v5290 = vxor.u32 %v5289, 2147483648
  %v5291 = vmul.f32 %v5290, 1.442695
  %v5292 = vpow.pop %v5291
  %v5293 = vadd.f32 %v5292, 1.0
  %v5294 = vrcp.pop %v5293
  %v5295 = vmul.f32 1.0, %v5294
  %v5296 = vtanh.pop %v5289
  %v5297 = vmul.f32 %v5295, %v5034
  %5299 = vrot.lane.b32.xlu0 %v5296, 64
  %v5300 = vpop.permute.xlu0 %5299
  %v5302 = vmul.f32 %v5295, %v5300
  %5304 = vrot.lane.b32.xlu0 %v5302, 32
  %v5305 = vpop.permute.xlu0 %5304
  %v5307 = vadd.f32 %v5297, %v5305
  %v5308 = vtanh.pop %v5307
  %5310 = vrot.lane.b32.xlu0 %v5308, 64
  %v5311 = vpop.permute.xlu0 %5310
  %v5313 = vmul.f32 %v5295, %v5311
  %5315 = vrot.lane.b32.xlu0 %v5313, 32
  %v5316 = vpop.permute.xlu0 %5315
  %5318 = vst.msk [vmem:[#allocation3 + $0x10] sm:$0x1] %vm949, %v5316
  %v5319 = vld [vmem:[#allocation2 + $0x11] sm:$0x1]
  %5320 = vmatprep.subr.mxu0 0.0
  %5321 = vmatpush1.msra.mxu0 %v31
  %5322 = vmatprep.subr.mxu0 0.0
  %5323 = vmatpush1.msra.mxu0 %v32
  %5324 = vmatprep.subr.mxu0 0.0
  %5325 = vmatpush1.msra.mxu0 %v33
  %5326 = vmatprep.subr.mxu0 0.0
  %5327 = vmatpush1.msra.mxu0 %v34
  %5328 = vmatprep.subr.mxu0 0.0
  %5329 = vmatpush1.msra.mxu0 0.0
  %5330 = vmatprep.subr.mxu0 0.0
  %5331 = vmatpush1.msra.mxu0 0.0
  %5332 = vmatprep.subr.mxu0 0.0
  %5333 = vmatpush1.msra.mxu0 0.0
  %5334 = vmatprep.subr.mxu0 0.0
  %5335 = vmatpush1.msra.mxu0 0.0
  %5336 = vmatprep.subr.mxu0 0.0
  %5337 = vmatpush1.msra.mxu0 0.0
  %5338 = vmatprep.subr.mxu0 0.0
  %5339 = vmatpush1.msra.mxu0 0.0
  %5340 = vmatprep.subr.mxu0 0.0
  %5341 = vmatpush1.msra.mxu0 0.0
  %5342 = vmatprep.subr.mxu0 0.0
  %5343 = vmatpush1.msra.mxu0 0.0
  %5344 = vmatprep.subr.mxu0 0.0
  %5345 = vmatpush1.msra.mxu0 0.0
  %5346 = vmatprep.subr.mxu0 0.0
  %5347 = vmatpush1.msra.mxu0 0.0
  %5348 = vmatprep.subr.mxu0 0.0
  %5349 = vmatpush1.msra.mxu0 0.0
  %5350 = vmatprep.subr.mxu0 0.0
  %5351 = vmatpush1.msra.mxu0 0.0
  %5352 = vmatprep.subr.mxu0 0.0
  %5353 = vmatpush1.msra.mxu0 0.0
  %5354 = vmatprep.subr.mxu0 0.0
  %5355 = vmatpush1.msra.mxu0 0.0
  %5356 = vmatprep.subr.mxu0 0.0
  %5357 = vmatpush1.msra.mxu0 0.0
  %5358 = vmatprep.subr.mxu0 0.0
  %5359 = vmatpush1.msra.mxu0 0.0
  %5360 = vmatprep.subr.mxu0 0.0
  %5361 = vmatpush1.msra.mxu0 0.0
  %5362 = vmatprep.subr.mxu0 0.0
  %5363 = vmatpush1.msra.mxu0 0.0
  %5364 = vmatprep.subr.mxu0 0.0
  %5365 = vmatpush1.msra.mxu0 0.0
  %5366 = vmatprep.subr.mxu0 0.0
  %5367 = vmatpush1.msra.mxu0 0.0
  %5368 = vmatprep.subr.mxu0 0.0
  %5369 = vmatpush1.msra.mxu0 0.0
  %5370 = vmatprep.subr.mxu0 0.0
  %5371 = vmatpush1.msra.mxu0 0.0
  %5372 = vmatprep.subr.mxu0 0.0
  %5373 = vmatpush1.msra.mxu0 0.0
  %5374 = vmatprep.subr.mxu0 0.0
  %5375 = vmatpush1.msra.mxu0 0.0
  %5376 = vmatprep.subr.mxu0 0.0
  %5377 = vmatpush1.msra.mxu0 0.0
  %5378 = vmatprep.subr.mxu0 0.0
  %5379 = vmatpush1.msra.mxu0 0.0
  %5380 = vmatprep.subr.mxu0 0.0
  %5381 = vmatpush1.msra.mxu0 0.0
  %5382 = vmatprep.subr.mxu0 0.0
  %5383 = vmatpush1.msra.mxu0 0.0
  %5384 = vmatprep.mubr.f32.mxu0 0.0
  %5385 = vmatmul.mubr.f32.gmra.mrb[0].mxu0 %v5145
  %v5386 = vpop.f32.mrb[0].mxu0
  %v5387 = vadd.f32 0.0, %v5386
  %v5388 = vpop.f32.mrb[0].mxu0
  %5389 = vdwg.mxu0
  %v5390 = vadd.f32 %v5319, %v5387
  %v5391 = vxor.u32 %v5390, 2147483648
  %v5392 = vmul.f32 %v5391, 1.442695
  %v5393 = vpow.pop %v5392
  %v5394 = vadd.f32 %v5393, 1.0
  %v5395 = vrcp.pop %v5394
  %v5396 = vmul.f32 1.0, %v5395
  %v5397 = vtanh.pop %v5390
  %v5398 = vmul.f32 %v5396, %v5135
  %5400 = vrot.lane.b32.xlu0 %v5397, 64
  %v5401 = vpop.permute.xlu0 %5400
  %v5403 = vmul.f32 %v5396, %v5401
  %5405 = vrot.lane.b32.xlu0 %v5403, 32
  %v5406 = vpop.permute.xlu0 %5405
  %v5408 = vadd.f32 %v5398, %v5406
  %v5409 = vtanh.pop %v5408
  %5411 = vrot.lane.b32.xlu0 %v5409, 64
  %v5412 = vpop.permute.xlu0 %5411
  %v5414 = vmul.f32 %v5396, %v5412
  %5416 = vrot.lane.b32.xlu0 %v5414, 32
  %v5417 = vpop.permute.xlu0 %5416
  %v5418 = vsel %vm576, %v5417, 0
  %5420 = vmatprep.subr.mxu0 0.0
  %5421 = vmatpush1.msra.mxu0 %v35
  %5422 = vmatprep.subr.mxu0 0.0
  %5423 = vmatpush1.msra.mxu0 %v36
  %5424 = vmatprep.subr.mxu0 0.0
  %5425 = vmatpush1.msra.mxu0 %v37
  %5426 = vmatprep.subr.mxu0 0.0
  %5427 = vmatpush1.msra.mxu0 %v38
  %5428 = vmatprep.subr.mxu0 0.0
  %5429 = vmatpush1.msra.mxu0 0.0
  %5430 = vmatprep.subr.mxu0 0.0
  %5431 = vmatpush1.msra.mxu0 0.0
  %5432 = vmatprep.subr.mxu0 0.0
  %5433 = vmatpush1.msra.mxu0 0.0
  %5434 = vmatprep.subr.mxu0 0.0
  %5435 = vmatpush1.msra.mxu0 0.0
  %5436 = vmatprep.subr.mxu0 0.0
  %5437 = vmatpush1.msra.mxu0 0.0
  %5438 = vmatprep.subr.mxu0 0.0
  %5439 = vmatpush1.msra.mxu0 0.0
  %5440 = vmatprep.subr.mxu0 0.0
  %5441 = vmatpush1.msra.mxu0 0.0
  %5442 = vmatprep.subr.mxu0 0.0
  %5443 = vmatpush1.msra.mxu0 0.0
  %5444 = vmatprep.subr.mxu0 0.0
  %5445 = vmatpush1.msra.mxu0 0.0
  %5446 = vmatprep.subr.mxu0 0.0
  %5447 = vmatpush1.msra.mxu0 0.0
  %5448 = vmatprep.subr.mxu0 0.0
  %5449 = vmatpush1.msra.mxu0 0.0
  %5450 = vmatprep.subr.mxu0 0.0
  %5451 = vmatpush1.msra.mxu0 0.0
  %5452 = vmatprep.subr.mxu0 0.0
  %5453 = vmatpush1.msra.mxu0 0.0
  %5454 = vmatprep.subr.mxu0 0.0
  %5455 = vmatpush1.msra.mxu0 0.0
  %5456 = vmatprep.subr.mxu0 0.0
  %5457 = vmatpush1.msra.mxu0 0.0
  %5458 = vmatprep.subr.mxu0 0.0
  %5459 = vmatpush1.msra.mxu0 0.0
  %5460 = vmatprep.subr.mxu0 0.0
  %5461 = vmatpush1.msra.mxu0 0.0
  %5462 = vmatprep.subr.mxu0 0.0
  %5463 = vmatpush1.msra.mxu0 0.0
  %5464 = vmatprep.subr.mxu0 0.0
  %5465 = vmatpush1.msra.mxu0 0.0
  %5466 = vmatprep.subr.mxu0 0.0
  %5467 = vmatpush1.msra.mxu0 0.0
  %5468 = vmatprep.subr.mxu0 0.0
  %5469 = vmatpush1.msra.mxu0 0.0
  %5470 = vmatprep.subr.mxu0 0.0
  %5471 = vmatpush1.msra.mxu0 0.0
  %5472 = vmatprep.subr.mxu0 0.0
  %5473 = vmatpush1.msra.mxu0 0.0
  %5474 = vmatprep.subr.mxu0 0.0
  %5475 = vmatpush1.msra.mxu0 0.0
  %5476 = vmatprep.subr.mxu0 0.0
  %5477 = vmatpush1.msra.mxu0 0.0
  %5478 = vmatprep.subr.mxu0 0.0
  %5479 = vmatpush1.msra.mxu0 0.0
  %5480 = vmatprep.subr.mxu0 0.0
  %5481 = vmatpush1.msra.mxu0 0.0
  %5482 = vmatprep.subr.mxu0 0.0
  %5483 = vmatpush1.msra.mxu0 0.0
  %5484 = vmatprep.mubr.f32.mxu0 0.0
  %5485 = vmatmul.mubr.f32.gmra.mrb[0].mxu0 %v5418
  %v5486 = vpop.f32.mrb[0].mxu0
  %v5487 = vadd.f32 %v24, %v5486
  %v5488 = vpop.f32.mrb[0].mxu0
  %5489 = vdwg.mxu0
  %v5490 = vsel %vm576, %v5316, 0
  %5492 = vmatprep.subr.mxu0 0.0
  %5493 = vmatpush1.msra.mxu0 %v39
  %5494 = vmatprep.subr.mxu0 0.0
  %5495 = vmatpush1.msra.mxu0 %v40
  %5496 = vmatprep.subr.mxu0 0.0
  %5497 = vmatpush1.msra.mxu0 %v41
  %5498 = vmatprep.subr.mxu0 0.0
  %5499 = vmatpush1.msra.mxu0 %v42
  %5500 = vmatprep.subr.mxu0 0.0
  %5501 = vmatpush1.msra.mxu0 0.0
  %5502 = vmatprep.subr.mxu0 0.0
  %5503 = vmatpush1.msra.mxu0 0.0
  %5504 = vmatprep.subr.mxu0 0.0
  %5505 = vmatpush1.msra.mxu0 0.0
  %5506 = vmatprep.subr.mxu0 0.0
  %5507 = vmatpush1.msra.mxu0 0.0
  %5508 = vmatprep.subr.mxu0 0.0
  %5509 = vmatpush1.msra.mxu0 0.0
  %5510 = vmatprep.subr.mxu0 0.0
  %5511 = vmatpush1.msra.mxu0 0.0
  %5512 = vmatprep.subr.mxu0 0.0
  %5513 = vmatpush1.msra.mxu0 0.0
  %5514 = vmatprep.subr.mxu0 0.0
  %5515 = vmatpush1.msra.mxu0 0.0
  %5516 = vmatprep.subr.mxu0 0.0
  %5517 = vmatpush1.msra.mxu0 0.0
  %5518 = vmatprep.subr.mxu0 0.0
  %5519 = vmatpush1.msra.mxu0 0.0
  %5520 = vmatprep.subr.mxu0 0.0
  %5521 = vmatpush1.msra.mxu0 0.0
  %5522 = vmatprep.subr.mxu0 0.0
  %5523 = vmatpush1.msra.mxu0 0.0
  %5524 = vmatprep.subr.mxu0 0.0
  %5525 = vmatpush1.msra.mxu0 0.0
  %5526 = vmatprep.subr.mxu0 0.0
  %5527 = vmatpush1.msra.mxu0 0.0
  %5528 = vmatprep.subr.mxu0 0.0
  %5529 = vmatpush1.msra.mxu0 0.0
  %5530 = vmatprep.subr.mxu0 0.0
  %5531 = vmatpush1.msra.mxu0 0.0
  %5532 = vmatprep.subr.mxu0 0.0
  %5533 = vmatpush1.msra.mxu0 0.0
  %5534 = vmatprep.subr.mxu0 0.0
  %5535 = vmatpush1.msra.mxu0 0.0
  %5536 = vmatprep.subr.mxu0 0.0
  %5537 = vmatpush1.msra.mxu0 0.0
  %5538 = vmatprep.subr.mxu0 0.0
  %5539 = vmatpush1.msra.mxu0 0.0
  %5540 = vmatprep.subr.mxu0 0.0
  %5541 = vmatpush1.msra.mxu0 0.0
  %5542 = vmatprep.subr.mxu0 0.0
  %5543 = vmatpush1.msra.mxu0 0.0
  %5544 = vmatprep.subr.mxu0 0.0
  %5545 = vmatpush1.msra.mxu0 0.0
  %5546 = vmatprep.subr.mxu0 0.0
  %5547 = vmatpush1.msra.mxu0 0.0
  %5548 = vmatprep.subr.mxu0 0.0
  %5549 = vmatpush1.msra.mxu0 0.0
  %5550 = vmatprep.subr.mxu0 0.0
  %5551 = vmatpush1.msra.mxu0 0.0
  %5552 = vmatprep.subr.mxu0 0.0
  %5553 = vmatpush1.msra.mxu0 0.0
  %5554 = vmatprep.subr.mxu0 0.0
  %5555 = vmatpush1.msra.mxu0 0.0
  %5556 = vmatprep.mubr.f32.mxu0 0.0
  %5557 = vmatmul.mubr.f32.gmra.mrb[0].mxu0 %v5490
  %v5558 = vpop.f32.mrb[0].mxu0
  %v5559 = vadd.f32 0.0, %v5558
  %v5560 = vpop.f32.mrb[0].mxu0
  %5561 = vdwg.mxu0
  %v5562 = vadd.f32 %v5487, %v5559
  %v5563 = vxor.u32 %v5562, 2147483648
  %v5564 = vmul.f32 %v5563, 1.442695
  %v5565 = vpow.pop %v5564
  %v5566 = vadd.f32 %v5565, 1.0
  %v5567 = vrcp.pop %v5566
  %v5568 = vmul.f32 1.0, %v5567
  %v5569 = vtanh.pop %v5562
  %v5570 = vmul.f32 %v5568, %v5307
  %5572 = vrot.lane.b32.xlu0 %v5569, 64
  %v5573 = vpop.permute.xlu0 %5572
  %v5575 = vmul.f32 %v5568, %v5573
  %5577 = vrot.lane.b32.xlu0 %v5575, 32
  %v5578 = vpop.permute.xlu0 %5577
  %v5580 = vadd.f32 %v5570, %v5578
  %v5581 = vtanh.pop %v5580
  %5583 = vrot.lane.b32.xlu0 %v5581, 64
  %v5584 = vpop.permute.xlu0 %5583
  %v5586 = vmul.f32 %v5568, %v5584
  %5588 = vrot.lane.b32.xlu0 %v5586, 32
  %v5589 = vpop.permute.xlu0 %5588
  %5591 = vst.msk [vmem:[#allocation3 + $0x11] sm:$0x1] %vm949, %v5589
  %v5592 = vld [vmem:[#allocation2 + $0x12] sm:$0x1]
  %5593 = vmatprep.subr.mxu0 0.0
  %5594 = vmatpush1.msra.mxu0 %v31
  %5595 = vmatprep.subr.mxu0 0.0
  %5596 = vmatpush1.msra.mxu0 %v32
  %5597 = vmatprep.subr.mxu0 0.0
  %5598 = vmatpush1.msra.mxu0 %v33
  %5599 = vmatprep.subr.mxu0 0.0
  %5600 = vmatpush1.msra.mxu0 %v34
  %5601 = vmatprep.subr.mxu0 0.0
  %5602 = vmatpush1.msra.mxu0 0.0
  %5603 = vmatprep.subr.mxu0 0.0
  %5604 = vmatpush1.msra.mxu0 0.0
  %5605 = vmatprep.subr.mxu0 0.0
  %5606 = vmatpush1.msra.mxu0 0.0
  %5607 = vmatprep.subr.mxu0 0.0
  %5608 = vmatpush1.msra.mxu0 0.0
  %5609 = vmatprep.subr.mxu0 0.0
  %5610 = vmatpush1.msra.mxu0 0.0
  %5611 = vmatprep.subr.mxu0 0.0
  %5612 = vmatpush1.msra.mxu0 0.0
  %5613 = vmatprep.subr.mxu0 0.0
  %5614 = vmatpush1.msra.mxu0 0.0
  %5615 = vmatprep.subr.mxu0 0.0
  %5616 = vmatpush1.msra.mxu0 0.0
  %5617 = vmatprep.subr.mxu0 0.0
  %5618 = vmatpush1.msra.mxu0 0.0
  %5619 = vmatprep.subr.mxu0 0.0
  %5620 = vmatpush1.msra.mxu0 0.0
  %5621 = vmatprep.subr.mxu0 0.0
  %5622 = vmatpush1.msra.mxu0 0.0
  %5623 = vmatprep.subr.mxu0 0.0
  %5624 = vmatpush1.msra.mxu0 0.0
  %5625 = vmatprep.subr.mxu0 0.0
  %5626 = vmatpush1.msra.mxu0 0.0
  %5627 = vmatprep.subr.mxu0 0.0
  %5628 = vmatpush1.msra.mxu0 0.0
  %5629 = vmatprep.subr.mxu0 0.0
  %5630 = vmatpush1.msra.mxu0 0.0
  %5631 = vmatprep.subr.mxu0 0.0
  %5632 = vmatpush1.msra.mxu0 0.0
  %5633 = vmatprep.subr.mxu0 0.0
  %5634 = vmatpush1.msra.mxu0 0.0
  %5635 = vmatprep.subr.mxu0 0.0
  %5636 = vmatpush1.msra.mxu0 0.0
  %5637 = vmatprep.subr.mxu0 0.0
  %5638 = vmatpush1.msra.mxu0 0.0
  %5639 = vmatprep.subr.mxu0 0.0
  %5640 = vmatpush1.msra.mxu0 0.0
  %5641 = vmatprep.subr.mxu0 0.0
  %5642 = vmatpush1.msra.mxu0 0.0
  %5643 = vmatprep.subr.mxu0 0.0
  %5644 = vmatpush1.msra.mxu0 0.0
  %5645 = vmatprep.subr.mxu0 0.0
  %5646 = vmatpush1.msra.mxu0 0.0
  %5647 = vmatprep.subr.mxu0 0.0
  %5648 = vmatpush1.msra.mxu0 0.0
  %5649 = vmatprep.subr.mxu0 0.0
  %5650 = vmatpush1.msra.mxu0 0.0
  %5651 = vmatprep.subr.mxu0 0.0
  %5652 = vmatpush1.msra.mxu0 0.0
  %5653 = vmatprep.subr.mxu0 0.0
  %5654 = vmatpush1.msra.mxu0 0.0
  %5655 = vmatprep.subr.mxu0 0.0
  %5656 = vmatpush1.msra.mxu0 0.0
  %5657 = vmatprep.mubr.f32.mxu0 0.0
  %5658 = vmatmul.mubr.f32.gmra.mrb[0].mxu0 %v5418
  %v5659 = vpop.f32.mrb[0].mxu0
  %v5660 = vadd.f32 0.0, %v5659
  %v5661 = vpop.f32.mrb[0].mxu0
  %5662 = vdwg.mxu0
  %v5663 = vadd.f32 %v5592, %v5660
  %v5664 = vxor.u32 %v5663, 2147483648
  %v5665 = vmul.f32 %v5664, 1.442695
  %v5666 = vpow.pop %v5665
  %v5667 = vadd.f32 %v5666, 1.0
  %v5668 = vrcp.pop %v5667
  %v5669 = vmul.f32 1.0, %v5668
  %v5670 = vtanh.pop %v5663
  %v5671 = vmul.f32 %v5669, %v5408
  %5673 = vrot.lane.b32.xlu0 %v5670, 64
  %v5674 = vpop.permute.xlu0 %5673
  %v5676 = vmul.f32 %v5669, %v5674
  %5678 = vrot.lane.b32.xlu0 %v5676, 32
  %v5679 = vpop.permute.xlu0 %5678
  %v5681 = vadd.f32 %v5671, %v5679
  %v5682 = vtanh.pop %v5681
  %5684 = vrot.lane.b32.xlu0 %v5682, 64
  %v5685 = vpop.permute.xlu0 %5684
  %v5687 = vmul.f32 %v5669, %v5685
  %5689 = vrot.lane.b32.xlu0 %v5687, 32
  %v5690 = vpop.permute.xlu0 %5689
  %v5691 = vsel %vm576, %v5690, 0
  %5693 = vmatprep.subr.mxu0 0.0
  %5694 = vmatpush1.msra.mxu0 %v35
  %5695 = vmatprep.subr.mxu0 0.0
  %5696 = vmatpush1.msra.mxu0 %v36
  %5697 = vmatprep.subr.mxu0 0.0
  %5698 = vmatpush1.msra.mxu0 %v37
  %5699 = vmatprep.subr.mxu0 0.0
  %5700 = vmatpush1.msra.mxu0 %v38
  %5701 = vmatprep.subr.mxu0 0.0
  %5702 = vmatpush1.msra.mxu0 0.0
  %5703 = vmatprep.subr.mxu0 0.0
  %5704 = vmatpush1.msra.mxu0 0.0
  %5705 = vmatprep.subr.mxu0 0.0
  %5706 = vmatpush1.msra.mxu0 0.0
  %5707 = vmatprep.subr.mxu0 0.0
  %5708 = vmatpush1.msra.mxu0 0.0
  %5709 = vmatprep.subr.mxu0 0.0
  %5710 = vmatpush1.msra.mxu0 0.0
  %5711 = vmatprep.subr.mxu0 0.0
  %5712 = vmatpush1.msra.mxu0 0.0
  %5713 = vmatprep.subr.mxu0 0.0
  %5714 = vmatpush1.msra.mxu0 0.0
  %5715 = vmatprep.subr.mxu0 0.0
  %5716 = vmatpush1.msra.mxu0 0.0
  %5717 = vmatprep.subr.mxu0 0.0
  %5718 = vmatpush1.msra.mxu0 0.0
  %5719 = vmatprep.subr.mxu0 0.0
  %5720 = vmatpush1.msra.mxu0 0.0
  %5721 = vmatprep.subr.mxu0 0.0
  %5722 = vmatpush1.msra.mxu0 0.0
  %5723 = vmatprep.subr.mxu0 0.0
  %5724 = vmatpush1.msra.mxu0 0.0
  %5725 = vmatprep.subr.mxu0 0.0
  %5726 = vmatpush1.msra.mxu0 0.0
  %5727 = vmatprep.subr.mxu0 0.0
  %5728 = vmatpush1.msra.mxu0 0.0
  %5729 = vmatprep.subr.mxu0 0.0
  %5730 = vmatpush1.msra.mxu0 0.0
  %5731 = vmatprep.subr.mxu0 0.0
  %5732 = vmatpush1.msra.mxu0 0.0
  %5733 = vmatprep.subr.mxu0 0.0
  %5734 = vmatpush1.msra.mxu0 0.0
  %5735 = vmatprep.subr.mxu0 0.0
  %5736 = vmatpush1.msra.mxu0 0.0
  %5737 = vmatprep.subr.mxu0 0.0
  %5738 = vmatpush1.msra.mxu0 0.0
  %5739 = vmatprep.subr.mxu0 0.0
  %5740 = vmatpush1.msra.mxu0 0.0
  %5741 = vmatprep.subr.mxu0 0.0
  %5742 = vmatpush1.msra.mxu0 0.0
  %5743 = vmatprep.subr.mxu0 0.0
  %5744 = vmatpush1.msra.mxu0 0.0
  %5745 = vmatprep.subr.mxu0 0.0
  %5746 = vmatpush1.msra.mxu0 0.0
  %5747 = vmatprep.subr.mxu0 0.0
  %5748 = vmatpush1.msra.mxu0 0.0
  %5749 = vmatprep.subr.mxu0 0.0
  %5750 = vmatpush1.msra.mxu0 0.0
  %5751 = vmatprep.subr.mxu0 0.0
  %5752 = vmatpush1.msra.mxu0 0.0
  %5753 = vmatprep.subr.mxu0 0.0
  %5754 = vmatpush1.msra.mxu0 0.0
  %5755 = vmatprep.subr.mxu0 0.0
  %5756 = vmatpush1.msra.mxu0 0.0
  %5757 = vmatprep.mubr.f32.mxu0 0.0
  %5758 = vmatmul.mubr.f32.gmra.mrb[0].mxu0 %v5691
  %v5759 = vpop.f32.mrb[0].mxu0
  %v5760 = vadd.f32 %v24, %v5759
  %v5761 = vpop.f32.mrb[0].mxu0
  %5762 = vdwg.mxu0
  %v5763 = vsel %vm576, %v5589, 0
  %5765 = vmatprep.subr.mxu0 0.0
  %5766 = vmatpush1.msra.mxu0 %v39
  %5767 = vmatprep.subr.mxu0 0.0
  %5768 = vmatpush1.msra.mxu0 %v40
  %5769 = vmatprep.subr.mxu0 0.0
  %5770 = vmatpush1.msra.mxu0 %v41
  %5771 = vmatprep.subr.mxu0 0.0
  %5772 = vmatpush1.msra.mxu0 %v42
  %5773 = vmatprep.subr.mxu0 0.0
  %5774 = vmatpush1.msra.mxu0 0.0
  %5775 = vmatprep.subr.mxu0 0.0
  %5776 = vmatpush1.msra.mxu0 0.0
  %5777 = vmatprep.subr.mxu0 0.0
  %5778 = vmatpush1.msra.mxu0 0.0
  %5779 = vmatprep.subr.mxu0 0.0
  %5780 = vmatpush1.msra.mxu0 0.0
  %5781 = vmatprep.subr.mxu0 0.0
  %5782 = vmatpush1.msra.mxu0 0.0
  %5783 = vmatprep.subr.mxu0 0.0
  %5784 = vmatpush1.msra.mxu0 0.0
  %5785 = vmatprep.subr.mxu0 0.0
  %5786 = vmatpush1.msra.mxu0 0.0
  %5787 = vmatprep.subr.mxu0 0.0
  %5788 = vmatpush1.msra.mxu0 0.0
  %5789 = vmatprep.subr.mxu0 0.0
  %5790 = vmatpush1.msra.mxu0 0.0
  %5791 = vmatprep.subr.mxu0 0.0
  %5792 = vmatpush1.msra.mxu0 0.0
  %5793 = vmatprep.subr.mxu0 0.0
  %5794 = vmatpush1.msra.mxu0 0.0
  %5795 = vmatprep.subr.mxu0 0.0
  %5796 = vmatpush1.msra.mxu0 0.0
  %5797 = vmatprep.subr.mxu0 0.0
  %5798 = vmatpush1.msra.mxu0 0.0
  %5799 = vmatprep.subr.mxu0 0.0
  %5800 = vmatpush1.msra.mxu0 0.0
  %5801 = vmatprep.subr.mxu0 0.0
  %5802 = vmatpush1.msra.mxu0 0.0
  %5803 = vmatprep.subr.mxu0 0.0
  %5804 = vmatpush1.msra.mxu0 0.0
  %5805 = vmatprep.subr.mxu0 0.0
  %5806 = vmatpush1.msra.mxu0 0.0
  %5807 = vmatprep.subr.mxu0 0.0
  %5808 = vmatpush1.msra.mxu0 0.0
  %5809 = vmatprep.subr.mxu0 0.0
  %5810 = vmatpush1.msra.mxu0 0.0
  %5811 = vmatprep.subr.mxu0 0.0
  %5812 = vmatpush1.msra.mxu0 0.0
  %5813 = vmatprep.subr.mxu0 0.0
  %5814 = vmatpush1.msra.mxu0 0.0
  %5815 = vmatprep.subr.mxu0 0.0
  %5816 = vmatpush1.msra.mxu0 0.0
  %5817 = vmatprep.subr.mxu0 0.0
  %5818 = vmatpush1.msra.mxu0 0.0
  %5819 = vmatprep.subr.mxu0 0.0
  %5820 = vmatpush1.msra.mxu0 0.0
  %5821 = vmatprep.subr.mxu0 0.0
  %5822 = vmatpush1.msra.mxu0 0.0
  %5823 = vmatprep.subr.mxu0 0.0
  %5824 = vmatpush1.msra.mxu0 0.0
  %5825 = vmatprep.subr.mxu0 0.0
  %5826 = vmatpush1.msra.mxu0 0.0
  %5827 = vmatprep.subr.mxu0 0.0
  %5828 = vmatpush1.msra.mxu0 0.0
  %5829 = vmatprep.mubr.f32.mxu0 0.0
  %5830 = vmatmul.mubr.f32.gmra.mrb[0].mxu0 %v5763
  %v5831 = vpop.f32.mrb[0].mxu0
  %v5832 = vadd.f32 0.0, %v5831
  %v5833 = vpop.f32.mrb[0].mxu0
  %5834 = vdwg.mxu0
  %v5835 = vadd.f32 %v5760, %v5832
  %v5836 = vxor.u32 %v5835, 2147483648
  %v5837 = vmul.f32 %v5836, 1.442695
  %v5838 = vpow.pop %v5837
  %v5839 = vadd.f32 %v5838, 1.0
  %v5840 = vrcp.pop %v5839
  %v5841 = vmul.f32 1.0, %v5840
  %v5842 = vtanh.pop %v5835
  %v5843 = vmul.f32 %v5841, %v5580
  %5845 = vrot.lane.b32.xlu0 %v5842, 64
  %v5846 = vpop.permute.xlu0 %5845
  %v5848 = vmul.f32 %v5841, %v5846
  %5850 = vrot.lane.b32.xlu0 %v5848, 32
  %v5851 = vpop.permute.xlu0 %5850
  %v5853 = vadd.f32 %v5843, %v5851
  %v5854 = vtanh.pop %v5853
  %5856 = vrot.lane.b32.xlu0 %v5854, 64
  %v5857 = vpop.permute.xlu0 %5856
  %v5859 = vmul.f32 %v5841, %v5857
  %5861 = vrot.lane.b32.xlu0 %v5859, 32
  %v5862 = vpop.permute.xlu0 %5861
  %5864 = vst.msk [vmem:[#allocation3 + $0x12] sm:$0x1] %vm949, %v5862
  %v5865 = vld [vmem:[#allocation2 + $0x13] sm:$0x1]
  %5866 = vmatprep.subr.mxu0 0.0
  %5867 = vmatpush1.msra.mxu0 %v31
  %5868 = vmatprep.subr.mxu0 0.0
  %5869 = vmatpush1.msra.mxu0 %v32
  %5870 = vmatprep.subr.mxu0 0.0
  %5871 = vmatpush1.msra.mxu0 %v33
  %5872 = vmatprep.subr.mxu0 0.0
  %5873 = vmatpush1.msra.mxu0 %v34
  %5874 = vmatprep.subr.mxu0 0.0
  %5875 = vmatpush1.msra.mxu0 0.0
  %5876 = vmatprep.subr.mxu0 0.0
  %5877 = vmatpush1.msra.mxu0 0.0
  %5878 = vmatprep.subr.mxu0 0.0
  %5879 = vmatpush1.msra.mxu0 0.0
  %5880 = vmatprep.subr.mxu0 0.0
  %5881 = vmatpush1.msra.mxu0 0.0
  %5882 = vmatprep.subr.mxu0 0.0
  %5883 = vmatpush1.msra.mxu0 0.0
  %5884 = vmatprep.subr.mxu0 0.0
  %5885 = vmatpush1.msra.mxu0 0.0
  %5886 = vmatprep.subr.mxu0 0.0
  %5887 = vmatpush1.msra.mxu0 0.0
  %5888 = vmatprep.subr.mxu0 0.0
  %5889 = vmatpush1.msra.mxu0 0.0
  %5890 = vmatprep.subr.mxu0 0.0
  %5891 = vmatpush1.msra.mxu0 0.0
  %5892 = vmatprep.subr.mxu0 0.0
  %5893 = vmatpush1.msra.mxu0 0.0
  %5894 = vmatprep.subr.mxu0 0.0
  %5895 = vmatpush1.msra.mxu0 0.0
  %5896 = vmatprep.subr.mxu0 0.0
  %5897 = vmatpush1.msra.mxu0 0.0
  %5898 = vmatprep.subr.mxu0 0.0
  %5899 = vmatpush1.msra.mxu0 0.0
  %5900 = vmatprep.subr.mxu0 0.0
  %5901 = vmatpush1.msra.mxu0 0.0
  %5902 = vmatprep.subr.mxu0 0.0
  %5903 = vmatpush1.msra.mxu0 0.0
  %5904 = vmatprep.subr.mxu0 0.0
  %5905 = vmatpush1.msra.mxu0 0.0
  %5906 = vmatprep.subr.mxu0 0.0
  %5907 = vmatpush1.msra.mxu0 0.0
  %5908 = vmatprep.subr.mxu0 0.0
  %5909 = vmatpush1.msra.mxu0 0.0
  %5910 = vmatprep.subr.mxu0 0.0
  %5911 = vmatpush1.msra.mxu0 0.0
  %5912 = vmatprep.subr.mxu0 0.0
  %5913 = vmatpush1.msra.mxu0 0.0
  %5914 = vmatprep.subr.mxu0 0.0
  %5915 = vmatpush1.msra.mxu0 0.0
  %5916 = vmatprep.subr.mxu0 0.0
  %5917 = vmatpush1.msra.mxu0 0.0
  %5918 = vmatprep.subr.mxu0 0.0
  %5919 = vmatpush1.msra.mxu0 0.0
  %5920 = vmatprep.subr.mxu0 0.0
  %5921 = vmatpush1.msra.mxu0 0.0
  %5922 = vmatprep.subr.mxu0 0.0
  %5923 = vmatpush1.msra.mxu0 0.0
  %5924 = vmatprep.subr.mxu0 0.0
  %5925 = vmatpush1.msra.mxu0 0.0
  %5926 = vmatprep.subr.mxu0 0.0
  %5927 = vmatpush1.msra.mxu0 0.0
  %5928 = vmatprep.subr.mxu0 0.0
  %5929 = vmatpush1.msra.mxu0 0.0
  %5930 = vmatprep.mubr.f32.mxu0 0.0
  %5931 = vmatmul.mubr.f32.gmra.mrb[0].mxu0 %v5691
  %v5932 = vpop.f32.mrb[0].mxu0
  %v5933 = vadd.f32 0.0, %v5932
  %v5934 = vpop.f32.mrb[0].mxu0
  %5935 = vdwg.mxu0
  %v5936 = vadd.f32 %v5865, %v5933
  %v5937 = vxor.u32 %v5936, 2147483648
  %v5938 = vmul.f32 %v5937, 1.442695
  %v5939 = vpow.pop %v5938
  %v5940 = vadd.f32 %v5939, 1.0
  %v5941 = vrcp.pop %v5940
  %v5942 = vmul.f32 1.0, %v5941
  %v5943 = vtanh.pop %v5936
  %v5944 = vmul.f32 %v5942, %v5681
  %5946 = vrot.lane.b32.xlu0 %v5943, 64
  %v5947 = vpop.permute.xlu0 %5946
  %v5949 = vmul.f32 %v5942, %v5947
  %5951 = vrot.lane.b32.xlu0 %v5949, 32
  %v5952 = vpop.permute.xlu0 %5951
  %v5954 = vadd.f32 %v5944, %v5952
  %v5955 = vtanh.pop %v5954
  %5957 = vrot.lane.b32.xlu0 %v5955, 64
  %v5958 = vpop.permute.xlu0 %5957
  %v5960 = vmul.f32 %v5942, %v5958
  %5962 = vrot.lane.b32.xlu0 %v5960, 32
  %v5963 = vpop.permute.xlu0 %5962
  %v5964 = vsel %vm576, %v5963, 0
  %5966 = vmatprep.subr.mxu0 0.0
  %5967 = vmatpush1.msra.mxu0 %v35
  %5968 = vmatprep.subr.mxu0 0.0
  %5969 = vmatpush1.msra.mxu0 %v36
  %5970 = vmatprep.subr.mxu0 0.0
  %5971 = vmatpush1.msra.mxu0 %v37
  %5972 = vmatprep.subr.mxu0 0.0
  %5973 = vmatpush1.msra.mxu0 %v38
  %5974 = vmatprep.subr.mxu0 0.0
  %5975 = vmatpush1.msra.mxu0 0.0
  %5976 = vmatprep.subr.mxu0 0.0
  %5977 = vmatpush1.msra.mxu0 0.0
  %5978 = vmatprep.subr.mxu0 0.0
  %5979 = vmatpush1.msra.mxu0 0.0
  %5980 = vmatprep.subr.mxu0 0.0
  %5981 = vmatpush1.msra.mxu0 0.0
  %5982 = vmatprep.subr.mxu0 0.0
  %5983 = vmatpush1.msra.mxu0 0.0
  %5984 = vmatprep.subr.mxu0 0.0
  %5985 = vmatpush1.msra.mxu0 0.0
  %5986 = vmatprep.subr.mxu0 0.0
  %5987 = vmatpush1.msra.mxu0 0.0
  %5988 = vmatprep.subr.mxu0 0.0
  %5989 = vmatpush1.msra.mxu0 0.0
  %5990 = vmatprep.subr.mxu0 0.0
  %5991 = vmatpush1.msra.mxu0 0.0
  %5992 = vmatprep.subr.mxu0 0.0
  %5993 = vmatpush1.msra.mxu0 0.0
  %5994 = vmatprep.subr.mxu0 0.0
  %5995 = vmatpush1.msra.mxu0 0.0
  %5996 = vmatprep.subr.mxu0 0.0
  %5997 = vmatpush1.msra.mxu0 0.0
  %5998 = vmatprep.subr.mxu0 0.0
  %5999 = vmatpush1.msra.mxu0 0.0
  %6000 = vmatprep.subr.mxu0 0.0
  %6001 = vmatpush1.msra.mxu0 0.0
  %6002 = vmatprep.subr.mxu0 0.0
  %6003 = vmatpush1.msra.mxu0 0.0
  %6004 = vmatprep.subr.mxu0 0.0
  %6005 = vmatpush1.msra.mxu0 0.0
  %6006 = vmatprep.subr.mxu0 0.0
  %6007 = vmatpush1.msra.mxu0 0.0
  %6008 = vmatprep.subr.mxu0 0.0
  %6009 = vmatpush1.msra.mxu0 0.0
  %6010 = vmatprep.subr.mxu0 0.0
  %6011 = vmatpush1.msra.mxu0 0.0
  %6012 = vmatprep.subr.mxu0 0.0
  %6013 = vmatpush1.msra.mxu0 0.0
  %6014 = vmatprep.subr.mxu0 0.0
  %6015 = vmatpush1.msra.mxu0 0.0
  %6016 = vmatprep.subr.mxu0 0.0
  %6017 = vmatpush1.msra.mxu0 0.0
  %6018 = vmatprep.subr.mxu0 0.0
  %6019 = vmatpush1.msra.mxu0 0.0
  %6020 = vmatprep.subr.mxu0 0.0
  %6021 = vmatpush1.msra.mxu0 0.0
  %6022 = vmatprep.subr.mxu0 0.0
  %6023 = vmatpush1.msra.mxu0 0.0
  %6024 = vmatprep.subr.mxu0 0.0
  %6025 = vmatpush1.msra.mxu0 0.0
  %6026 = vmatprep.subr.mxu0 0.0
  %6027 = vmatpush1.msra.mxu0 0.0
  %6028 = vmatprep.subr.mxu0 0.0
  %6029 = vmatpush1.msra.mxu0 0.0
  %6030 = vmatprep.mubr.f32.mxu0 0.0
  %6031 = vmatmul.mubr.f32.gmra.mrb[0].mxu0 %v5964
  %v6032 = vpop.f32.mrb[0].mxu0
  %v6033 = vadd.f32 %v24, %v6032
  %v6034 = vpop.f32.mrb[0].mxu0
  %6035 = vdwg.mxu0
  %v6036 = vsel %vm576, %v5862, 0
  %6038 = vmatprep.subr.mxu0 0.0
  %6039 = vmatpush1.msra.mxu0 %v39
  %6040 = vmatprep.subr.mxu0 0.0
  %6041 = vmatpush1.msra.mxu0 %v40
  %6042 = vmatprep.subr.mxu0 0.0
  %6043 = vmatpush1.msra.mxu0 %v41
  %6044 = vmatprep.subr.mxu0 0.0
  %6045 = vmatpush1.msra.mxu0 %v42
  %6046 = vmatprep.subr.mxu0 0.0
  %6047 = vmatpush1.msra.mxu0 0.0
  %6048 = vmatprep.subr.mxu0 0.0
  %6049 = vmatpush1.msra.mxu0 0.0
  %6050 = vmatprep.subr.mxu0 0.0
  %6051 = vmatpush1.msra.mxu0 0.0
  %6052 = vmatprep.subr.mxu0 0.0
  %6053 = vmatpush1.msra.mxu0 0.0
  %6054 = vmatprep.subr.mxu0 0.0
  %6055 = vmatpush1.msra.mxu0 0.0
  %6056 = vmatprep.subr.mxu0 0.0
  %6057 = vmatpush1.msra.mxu0 0.0
  %6058 = vmatprep.subr.mxu0 0.0
  %6059 = vmatpush1.msra.mxu0 0.0
  %6060 = vmatprep.subr.mxu0 0.0
  %6061 = vmatpush1.msra.mxu0 0.0
  %6062 = vmatprep.subr.mxu0 0.0
  %6063 = vmatpush1.msra.mxu0 0.0
  %6064 = vmatprep.subr.mxu0 0.0
  %6065 = vmatpush1.msra.mxu0 0.0
  %6066 = vmatprep.subr.mxu0 0.0
  %6067 = vmatpush1.msra.mxu0 0.0
  %6068 = vmatprep.subr.mxu0 0.0
  %6069 = vmatpush1.msra.mxu0 0.0
  %6070 = vmatprep.subr.mxu0 0.0
  %6071 = vmatpush1.msra.mxu0 0.0
  %6072 = vmatprep.subr.mxu0 0.0
  %6073 = vmatpush1.msra.mxu0 0.0
  %6074 = vmatprep.subr.mxu0 0.0
  %6075 = vmatpush1.msra.mxu0 0.0
  %6076 = vmatprep.subr.mxu0 0.0
  %6077 = vmatpush1.msra.mxu0 0.0
  %6078 = vmatprep.subr.mxu0 0.0
  %6079 = vmatpush1.msra.mxu0 0.0
  %6080 = vmatprep.subr.mxu0 0.0
  %6081 = vmatpush1.msra.mxu0 0.0
  %6082 = vmatprep.subr.mxu0 0.0
  %6083 = vmatpush1.msra.mxu0 0.0
  %6084 = vmatprep.subr.mxu0 0.0
  %6085 = vmatpush1.msra.mxu0 0.0
  %6086 = vmatprep.subr.mxu0 0.0
  %6087 = vmatpush1.msra.mxu0 0.0
  %6088 = vmatprep.subr.mxu0 0.0
  %6089 = vmatpush1.msra.mxu0 0.0
  %6090 = vmatprep.subr.mxu0 0.0
  %6091 = vmatpush1.msra.mxu0 0.0
  %6092 = vmatprep.subr.mxu0 0.0
  %6093 = vmatpush1.msra.mxu0 0.0
  %6094 = vmatprep.subr.mxu0 0.0
  %6095 = vmatpush1.msra.mxu0 0.0
  %6096 = vmatprep.subr.mxu0 0.0
  %6097 = vmatpush1.msra.mxu0 0.0
  %6098 = vmatprep.subr.mxu0 0.0
  %6099 = vmatpush1.msra.mxu0 0.0
  %6100 = vmatprep.subr.mxu0 0.0
  %6101 = vmatpush1.msra.mxu0 0.0
  %6102 = vmatprep.mubr.f32.mxu0 0.0
  %6103 = vmatmul.mubr.f32.gmra.mrb[0].mxu0 %v6036
  %v6104 = vpop.f32.mrb[0].mxu0
  %v6105 = vadd.f32 0.0, %v6104
  %v6106 = vpop.f32.mrb[0].mxu0
  %6107 = vdwg.mxu0
  %v6108 = vadd.f32 %v6033, %v6105
  %v6109 = vxor.u32 %v6108, 2147483648
  %v6110 = vmul.f32 %v6109, 1.442695
  %v6111 = vpow.pop %v6110
  %v6112 = vadd.f32 %v6111, 1.0
  %v6113 = vrcp.pop %v6112
  %v6114 = vmul.f32 1.0, %v6113
  %v6115 = vtanh.pop %v6108
  %v6116 = vmul.f32 %v6114, %v5853
  %6118 = vrot.lane.b32.xlu0 %v6115, 64
  %v6119 = vpop.permute.xlu0 %6118
  %v6121 = vmul.f32 %v6114, %v6119
  %6123 = vrot.lane.b32.xlu0 %v6121, 32
  %v6124 = vpop.permute.xlu0 %6123
  %v6126 = vadd.f32 %v6116, %v6124
  %v6127 = vtanh.pop %v6126
  %6129 = vrot.lane.b32.xlu0 %v6127, 64
  %v6130 = vpop.permute.xlu0 %6129
  %v6132 = vmul.f32 %v6114, %v6130
  %6134 = vrot.lane.b32.xlu0 %v6132, 32
  %v6135 = vpop.permute.xlu0 %6134
  %6137 = vst.msk [vmem:[#allocation3 + $0x13] sm:$0x1] %vm949, %v6135
  %v6138 = vld [vmem:[#allocation2 + $0x14] sm:$0x1]
  %6139 = vmatprep.subr.mxu0 0.0
  %6140 = vmatpush1.msra.mxu0 %v31
  %6141 = vmatprep.subr.mxu0 0.0
  %6142 = vmatpush1.msra.mxu0 %v32
  %6143 = vmatprep.subr.mxu0 0.0
  %6144 = vmatpush1.msra.mxu0 %v33
  %6145 = vmatprep.subr.mxu0 0.0
  %6146 = vmatpush1.msra.mxu0 %v34
  %6147 = vmatprep.subr.mxu0 0.0
  %6148 = vmatpush1.msra.mxu0 0.0
  %6149 = vmatprep.subr.mxu0 0.0
  %6150 = vmatpush1.msra.mxu0 0.0
  %6151 = vmatprep.subr.mxu0 0.0
  %6152 = vmatpush1.msra.mxu0 0.0
  %6153 = vmatprep.subr.mxu0 0.0
  %6154 = vmatpush1.msra.mxu0 0.0
  %6155 = vmatprep.subr.mxu0 0.0
  %6156 = vmatpush1.msra.mxu0 0.0
  %6157 = vmatprep.subr.mxu0 0.0
  %6158 = vmatpush1.msra.mxu0 0.0
  %6159 = vmatprep.subr.mxu0 0.0
  %6160 = vmatpush1.msra.mxu0 0.0
  %6161 = vmatprep.subr.mxu0 0.0
  %6162 = vmatpush1.msra.mxu0 0.0
  %6163 = vmatprep.subr.mxu0 0.0
  %6164 = vmatpush1.msra.mxu0 0.0
  %6165 = vmatprep.subr.mxu0 0.0
  %6166 = vmatpush1.msra.mxu0 0.0
  %6167 = vmatprep.subr.mxu0 0.0
  %6168 = vmatpush1.msra.mxu0 0.0
  %6169 = vmatprep.subr.mxu0 0.0
  %6170 = vmatpush1.msra.mxu0 0.0
  %6171 = vmatprep.subr.mxu0 0.0
  %6172 = vmatpush1.msra.mxu0 0.0
  %6173 = vmatprep.subr.mxu0 0.0
  %6174 = vmatpush1.msra.mxu0 0.0
  %6175 = vmatprep.subr.mxu0 0.0
  %6176 = vmatpush1.msra.mxu0 0.0
  %6177 = vmatprep.subr.mxu0 0.0
  %6178 = vmatpush1.msra.mxu0 0.0
  %6179 = vmatprep.subr.mxu0 0.0
  %6180 = vmatpush1.msra.mxu0 0.0
  %6181 = vmatprep.subr.mxu0 0.0
  %6182 = vmatpush1.msra.mxu0 0.0
  %6183 = vmatprep.subr.mxu0 0.0
  %6184 = vmatpush1.msra.mxu0 0.0
  %6185 = vmatprep.subr.mxu0 0.0
  %6186 = vmatpush1.msra.mxu0 0.0
  %6187 = vmatprep.subr.mxu0 0.0
  %6188 = vmatpush1.msra.mxu0 0.0
  %6189 = vmatprep.subr.mxu0 0.0
  %6190 = vmatpush1.msra.mxu0 0.0
  %6191 = vmatprep.subr.mxu0 0.0
  %6192 = vmatpush1.msra.mxu0 0.0
  %6193 = vmatprep.subr.mxu0 0.0
  %6194 = vmatpush1.msra.mxu0 0.0
  %6195 = vmatprep.subr.mxu0 0.0
  %6196 = vmatpush1.msra.mxu0 0.0
  %6197 = vmatprep.subr.mxu0 0.0
  %6198 = vmatpush1.msra.mxu0 0.0
  %6199 = vmatprep.subr.mxu0 0.0
  %6200 = vmatpush1.msra.mxu0 0.0
  %6201 = vmatprep.subr.mxu0 0.0
  %6202 = vmatpush1.msra.mxu0 0.0
  %6203 = vmatprep.mubr.f32.mxu0 0.0
  %6204 = vmatmul.mubr.f32.gmra.mrb[0].mxu0 %v5964
  %v6205 = vpop.f32.mrb[0].mxu0
  %v6206 = vadd.f32 0.0, %v6205
  %v6207 = vpop.f32.mrb[0].mxu0
  %6208 = vdwg.mxu0
  %v6209 = vadd.f32 %v6138, %v6206
  %v6210 = vxor.u32 %v6209, 2147483648
  %v6211 = vmul.f32 %v6210, 1.442695
  %v6212 = vpow.pop %v6211
  %v6213 = vadd.f32 %v6212, 1.0
  %v6214 = vrcp.pop %v6213
  %v6215 = vmul.f32 1.0, %v6214
  %v6216 = vtanh.pop %v6209
  %v6217 = vmul.f32 %v6215, %v5954
  %6219 = vrot.lane.b32.xlu0 %v6216, 64
  %v6220 = vpop.permute.xlu0 %6219
  %v6222 = vmul.f32 %v6215, %v6220
  %6224 = vrot.lane.b32.xlu0 %v6222, 32
  %v6225 = vpop.permute.xlu0 %6224
  %v6227 = vadd.f32 %v6217, %v6225
  %v6228 = vtanh.pop %v6227
  %6230 = vrot.lane.b32.xlu0 %v6228, 64
  %v6231 = vpop.permute.xlu0 %6230
  %v6233 = vmul.f32 %v6215, %v6231
  %6235 = vrot.lane.b32.xlu0 %v6233, 32
  %v6236 = vpop.permute.xlu0 %6235
  %v6237 = vsel %vm576, %v6236, 0
  %6239 = vmatprep.subr.mxu0 0.0
  %6240 = vmatpush1.msra.mxu0 %v35
  %6241 = vmatprep.subr.mxu0 0.0
  %6242 = vmatpush1.msra.mxu0 %v36
  %6243 = vmatprep.subr.mxu0 0.0
  %6244 = vmatpush1.msra.mxu0 %v37
  %6245 = vmatprep.subr.mxu0 0.0
  %6246 = vmatpush1.msra.mxu0 %v38
  %6247 = vmatprep.subr.mxu0 0.0
  %6248 = vmatpush1.msra.mxu0 0.0
  %6249 = vmatprep.subr.mxu0 0.0
  %6250 = vmatpush1.msra.mxu0 0.0
  %6251 = vmatprep.subr.mxu0 0.0
  %6252 = vmatpush1.msra.mxu0 0.0
  %6253 = vmatprep.subr.mxu0 0.0
  %6254 = vmatpush1.msra.mxu0 0.0
  %6255 = vmatprep.subr.mxu0 0.0
  %6256 = vmatpush1.msra.mxu0 0.0
  %6257 = vmatprep.subr.mxu0 0.0
  %6258 = vmatpush1.msra.mxu0 0.0
  %6259 = vmatprep.subr.mxu0 0.0
  %6260 = vmatpush1.msra.mxu0 0.0
  %6261 = vmatprep.subr.mxu0 0.0
  %6262 = vmatpush1.msra.mxu0 0.0
  %6263 = vmatprep.subr.mxu0 0.0
  %6264 = vmatpush1.msra.mxu0 0.0
  %6265 = vmatprep.subr.mxu0 0.0
  %6266 = vmatpush1.msra.mxu0 0.0
  %6267 = vmatprep.subr.mxu0 0.0
  %6268 = vmatpush1.msra.mxu0 0.0
  %6269 = vmatprep.subr.mxu0 0.0
  %6270 = vmatpush1.msra.mxu0 0.0
  %6271 = vmatprep.subr.mxu0 0.0
  %6272 = vmatpush1.msra.mxu0 0.0
  %6273 = vmatprep.subr.mxu0 0.0
  %6274 = vmatpush1.msra.mxu0 0.0
  %6275 = vmatprep.subr.mxu0 0.0
  %6276 = vmatpush1.msra.mxu0 0.0
  %6277 = vmatprep.subr.mxu0 0.0
  %6278 = vmatpush1.msra.mxu0 0.0
  %6279 = vmatprep.subr.mxu0 0.0
  %6280 = vmatpush1.msra.mxu0 0.0
  %6281 = vmatprep.subr.mxu0 0.0
  %6282 = vmatpush1.msra.mxu0 0.0
  %6283 = vmatprep.subr.mxu0 0.0
  %6284 = vmatpush1.msra.mxu0 0.0
  %6285 = vmatprep.subr.mxu0 0.0
  %6286 = vmatpush1.msra.mxu0 0.0
  %6287 = vmatprep.subr.mxu0 0.0
  %6288 = vmatpush1.msra.mxu0 0.0
  %6289 = vmatprep.subr.mxu0 0.0
  %6290 = vmatpush1.msra.mxu0 0.0
  %6291 = vmatprep.subr.mxu0 0.0
  %6292 = vmatpush1.msra.mxu0 0.0
  %6293 = vmatprep.subr.mxu0 0.0
  %6294 = vmatpush1.msra.mxu0 0.0
  %6295 = vmatprep.subr.mxu0 0.0
  %6296 = vmatpush1.msra.mxu0 0.0
  %6297 = vmatprep.subr.mxu0 0.0
  %6298 = vmatpush1.msra.mxu0 0.0
  %6299 = vmatprep.subr.mxu0 0.0
  %6300 = vmatpush1.msra.mxu0 0.0
  %6301 = vmatprep.subr.mxu0 0.0
  %6302 = vmatpush1.msra.mxu0 0.0
  %6303 = vmatprep.mubr.f32.mxu0 0.0
  %6304 = vmatmul.mubr.f32.gmra.mrb[0].mxu0 %v6237
  %v6305 = vpop.f32.mrb[0].mxu0
  %v6306 = vadd.f32 %v24, %v6305
  %v6307 = vpop.f32.mrb[0].mxu0
  %6308 = vdwg.mxu0
  %v6309 = vsel %vm576, %v6135, 0
  %6311 = vmatprep.subr.mxu0 0.0
  %6312 = vmatpush1.msra.mxu0 %v39
  %6313 = vmatprep.subr.mxu0 0.0
  %6314 = vmatpush1.msra.mxu0 %v40
  %6315 = vmatprep.subr.mxu0 0.0
  %6316 = vmatpush1.msra.mxu0 %v41
  %6317 = vmatprep.subr.mxu0 0.0
  %6318 = vmatpush1.msra.mxu0 %v42
  %6319 = vmatprep.subr.mxu0 0.0
  %6320 = vmatpush1.msra.mxu0 0.0
  %6321 = vmatprep.subr.mxu0 0.0
  %6322 = vmatpush1.msra.mxu0 0.0
  %6323 = vmatprep.subr.mxu0 0.0
  %6324 = vmatpush1.msra.mxu0 0.0
  %6325 = vmatprep.subr.mxu0 0.0
  %6326 = vmatpush1.msra.mxu0 0.0
  %6327 = vmatprep.subr.mxu0 0.0
  %6328 = vmatpush1.msra.mxu0 0.0
  %6329 = vmatprep.subr.mxu0 0.0
  %6330 = vmatpush1.msra.mxu0 0.0
  %6331 = vmatprep.subr.mxu0 0.0
  %6332 = vmatpush1.msra.mxu0 0.0
  %6333 = vmatprep.subr.mxu0 0.0
  %6334 = vmatpush1.msra.mxu0 0.0
  %6335 = vmatprep.subr.mxu0 0.0
  %6336 = vmatpush1.msra.mxu0 0.0
  %6337 = vmatprep.subr.mxu0 0.0
  %6338 = vmatpush1.msra.mxu0 0.0
  %6339 = vmatprep.subr.mxu0 0.0
  %6340 = vmatpush1.msra.mxu0 0.0
  %6341 = vmatprep.subr.mxu0 0.0
  %6342 = vmatpush1.msra.mxu0 0.0
  %6343 = vmatprep.subr.mxu0 0.0
  %6344 = vmatpush1.msra.mxu0 0.0
  %6345 = vmatprep.subr.mxu0 0.0
  %6346 = vmatpush1.msra.mxu0 0.0
  %6347 = vmatprep.subr.mxu0 0.0
  %6348 = vmatpush1.msra.mxu0 0.0
  %6349 = vmatprep.subr.mxu0 0.0
  %6350 = vmatpush1.msra.mxu0 0.0
  %6351 = vmatprep.subr.mxu0 0.0
  %6352 = vmatpush1.msra.mxu0 0.0
  %6353 = vmatprep.subr.mxu0 0.0
  %6354 = vmatpush1.msra.mxu0 0.0
  %6355 = vmatprep.subr.mxu0 0.0
  %6356 = vmatpush1.msra.mxu0 0.0
  %6357 = vmatprep.subr.mxu0 0.0
  %6358 = vmatpush1.msra.mxu0 0.0
  %6359 = vmatprep.subr.mxu0 0.0
  %6360 = vmatpush1.msra.mxu0 0.0
  %6361 = vmatprep.subr.mxu0 0.0
  %6362 = vmatpush1.msra.mxu0 0.0
  %6363 = vmatprep.subr.mxu0 0.0
  %6364 = vmatpush1.msra.mxu0 0.0
  %6365 = vmatprep.subr.mxu0 0.0
  %6366 = vmatpush1.msra.mxu0 0.0
  %6367 = vmatprep.subr.mxu0 0.0
  %6368 = vmatpush1.msra.mxu0 0.0
  %6369 = vmatprep.subr.mxu0 0.0
  %6370 = vmatpush1.msra.mxu0 0.0
  %6371 = vmatprep.subr.mxu0 0.0
  %6372 = vmatpush1.msra.mxu0 0.0
  %6373 = vmatprep.subr.mxu0 0.0
  %6374 = vmatpush1.msra.mxu0 0.0
  %6375 = vmatprep.mubr.f32.mxu0 0.0
  %6376 = vmatmul.mubr.f32.gmra.mrb[0].mxu0 %v6309
  %v6377 = vpop.f32.mrb[0].mxu0
  %v6378 = vadd.f32 0.0, %v6377
  %v6379 = vpop.f32.mrb[0].mxu0
  %6380 = vdwg.mxu0
  %v6381 = vadd.f32 %v6306, %v6378
  %v6382 = vxor.u32 %v6381, 2147483648
  %v6383 = vmul.f32 %v6382, 1.442695
  %v6384 = vpow.pop %v6383
  %v6385 = vadd.f32 %v6384, 1.0
  %v6386 = vrcp.pop %v6385
  %v6387 = vmul.f32 1.0, %v6386
  %v6388 = vtanh.pop %v6381
  %v6389 = vmul.f32 %v6387, %v6126
  %6391 = vrot.lane.b32.xlu0 %v6388, 64
  %v6392 = vpop.permute.xlu0 %6391
  %v6394 = vmul.f32 %v6387, %v6392
  %6396 = vrot.lane.b32.xlu0 %v6394, 32
  %v6397 = vpop.permute.xlu0 %6396
  %v6399 = vadd.f32 %v6389, %v6397
  %v6400 = vtanh.pop %v6399
  %6402 = vrot.lane.b32.xlu0 %v6400, 64
  %v6403 = vpop.permute.xlu0 %6402
  %v6405 = vmul.f32 %v6387, %v6403
  %6407 = vrot.lane.b32.xlu0 %v6405, 32
  %v6408 = vpop.permute.xlu0 %6407
  %6410 = vst.msk [vmem:[#allocation3 + $0x14] sm:$0x1] %vm949, %v6408
  %v6411 = vld [vmem:[#allocation2 + $0x15] sm:$0x1]
  %6412 = vmatprep.subr.mxu0 0.0
  %6413 = vmatpush1.msra.mxu0 %v31
  %6414 = vmatprep.subr.mxu0 0.0
  %6415 = vmatpush1.msra.mxu0 %v32
  %6416 = vmatprep.subr.mxu0 0.0
  %6417 = vmatpush1.msra.mxu0 %v33
  %6418 = vmatprep.subr.mxu0 0.0
  %6419 = vmatpush1.msra.mxu0 %v34
  %6420 = vmatprep.subr.mxu0 0.0
  %6421 = vmatpush1.msra.mxu0 0.0
  %6422 = vmatprep.subr.mxu0 0.0
  %6423 = vmatpush1.msra.mxu0 0.0
  %6424 = vmatprep.subr.mxu0 0.0
  %6425 = vmatpush1.msra.mxu0 0.0
  %6426 = vmatprep.subr.mxu0 0.0
  %6427 = vmatpush1.msra.mxu0 0.0
  %6428 = vmatprep.subr.mxu0 0.0
  %6429 = vmatpush1.msra.mxu0 0.0
  %6430 = vmatprep.subr.mxu0 0.0
  %6431 = vmatpush1.msra.mxu0 0.0
  %6432 = vmatprep.subr.mxu0 0.0
  %6433 = vmatpush1.msra.mxu0 0.0
  %6434 = vmatprep.subr.mxu0 0.0
  %6435 = vmatpush1.msra.mxu0 0.0
  %6436 = vmatprep.subr.mxu0 0.0
  %6437 = vmatpush1.msra.mxu0 0.0
  %6438 = vmatprep.subr.mxu0 0.0
  %6439 = vmatpush1.msra.mxu0 0.0
  %6440 = vmatprep.subr.mxu0 0.0
  %6441 = vmatpush1.msra.mxu0 0.0
  %6442 = vmatprep.subr.mxu0 0.0
  %6443 = vmatpush1.msra.mxu0 0.0
  %6444 = vmatprep.subr.mxu0 0.0
  %6445 = vmatpush1.msra.mxu0 0.0
  %6446 = vmatprep.subr.mxu0 0.0
  %6447 = vmatpush1.msra.mxu0 0.0
  %6448 = vmatprep.subr.mxu0 0.0
  %6449 = vmatpush1.msra.mxu0 0.0
  %6450 = vmatprep.subr.mxu0 0.0
  %6451 = vmatpush1.msra.mxu0 0.0
  %6452 = vmatprep.subr.mxu0 0.0
  %6453 = vmatpush1.msra.mxu0 0.0
  %6454 = vmatprep.subr.mxu0 0.0
  %6455 = vmatpush1.msra.mxu0 0.0
  %6456 = vmatprep.subr.mxu0 0.0
  %6457 = vmatpush1.msra.mxu0 0.0
  %6458 = vmatprep.subr.mxu0 0.0
  %6459 = vmatpush1.msra.mxu0 0.0
  %6460 = vmatprep.subr.mxu0 0.0
  %6461 = vmatpush1.msra.mxu0 0.0
  %6462 = vmatprep.subr.mxu0 0.0
  %6463 = vmatpush1.msra.mxu0 0.0
  %6464 = vmatprep.subr.mxu0 0.0
  %6465 = vmatpush1.msra.mxu0 0.0
  %6466 = vmatprep.subr.mxu0 0.0
  %6467 = vmatpush1.msra.mxu0 0.0
  %6468 = vmatprep.subr.mxu0 0.0
  %6469 = vmatpush1.msra.mxu0 0.0
  %6470 = vmatprep.subr.mxu0 0.0
  %6471 = vmatpush1.msra.mxu0 0.0
  %6472 = vmatprep.subr.mxu0 0.0
  %6473 = vmatpush1.msra.mxu0 0.0
  %6474 = vmatprep.subr.mxu0 0.0
  %6475 = vmatpush1.msra.mxu0 0.0
  %6476 = vmatprep.mubr.f32.mxu0 0.0
  %6477 = vmatmul.mubr.f32.gmra.mrb[0].mxu0 %v6237
  %v6478 = vpop.f32.mrb[0].mxu0
  %v6479 = vadd.f32 0.0, %v6478
  %v6480 = vpop.f32.mrb[0].mxu0
  %6481 = vdwg.mxu0
  %v6482 = vadd.f32 %v6411, %v6479
  %v6483 = vxor.u32 %v6482, 2147483648
  %v6484 = vmul.f32 %v6483, 1.442695
  %v6485 = vpow.pop %v6484
  %v6486 = vadd.f32 %v6485, 1.0
  %v6487 = vrcp.pop %v6486
  %v6488 = vmul.f32 1.0, %v6487
  %v6489 = vtanh.pop %v6482
  %v6490 = vmul.f32 %v6488, %v6227
  %6492 = vrot.lane.b32.xlu0 %v6489, 64
  %v6493 = vpop.permute.xlu0 %6492
  %v6495 = vmul.f32 %v6488, %v6493
  %6497 = vrot.lane.b32.xlu0 %v6495, 32
  %v6498 = vpop.permute.xlu0 %6497
  %v6500 = vadd.f32 %v6490, %v6498
  %v6501 = vtanh.pop %v6500
  %6503 = vrot.lane.b32.xlu0 %v6501, 64
  %v6504 = vpop.permute.xlu0 %6503
  %v6506 = vmul.f32 %v6488, %v6504
  %6508 = vrot.lane.b32.xlu0 %v6506, 32
  %v6509 = vpop.permute.xlu0 %6508
  %v6510 = vsel %vm576, %v6509, 0
  %6512 = vmatprep.subr.mxu0 0.0
  %6513 = vmatpush1.msra.mxu0 %v35
  %6514 = vmatprep.subr.mxu0 0.0
  %6515 = vmatpush1.msra.mxu0 %v36
  %6516 = vmatprep.subr.mxu0 0.0
  %6517 = vmatpush1.msra.mxu0 %v37
  %6518 = vmatprep.subr.mxu0 0.0
  %6519 = vmatpush1.msra.mxu0 %v38
  %6520 = vmatprep.subr.mxu0 0.0
  %6521 = vmatpush1.msra.mxu0 0.0
  %6522 = vmatprep.subr.mxu0 0.0
  %6523 = vmatpush1.msra.mxu0 0.0
  %6524 = vmatprep.subr.mxu0 0.0
  %6525 = vmatpush1.msra.mxu0 0.0
  %6526 = vmatprep.subr.mxu0 0.0
  %6527 = vmatpush1.msra.mxu0 0.0
  %6528 = vmatprep.subr.mxu0 0.0
  %6529 = vmatpush1.msra.mxu0 0.0
  %6530 = vmatprep.subr.mxu0 0.0
  %6531 = vmatpush1.msra.mxu0 0.0
  %6532 = vmatprep.subr.mxu0 0.0
  %6533 = vmatpush1.msra.mxu0 0.0
  %6534 = vmatprep.subr.mxu0 0.0
  %6535 = vmatpush1.msra.mxu0 0.0
  %6536 = vmatprep.subr.mxu0 0.0
  %6537 = vmatpush1.msra.mxu0 0.0
  %6538 = vmatprep.subr.mxu0 0.0
  %6539 = vmatpush1.msra.mxu0 0.0
  %6540 = vmatprep.subr.mxu0 0.0
  %6541 = vmatpush1.msra.mxu0 0.0
  %6542 = vmatprep.subr.mxu0 0.0
  %6543 = vmatpush1.msra.mxu0 0.0
  %6544 = vmatprep.subr.mxu0 0.0
  %6545 = vmatpush1.msra.mxu0 0.0
  %6546 = vmatprep.subr.mxu0 0.0
  %6547 = vmatpush1.msra.mxu0 0.0
  %6548 = vmatprep.subr.mxu0 0.0
  %6549 = vmatpush1.msra.mxu0 0.0
  %6550 = vmatprep.subr.mxu0 0.0
  %6551 = vmatpush1.msra.mxu0 0.0
  %6552 = vmatprep.subr.mxu0 0.0
  %6553 = vmatpush1.msra.mxu0 0.0
  %6554 = vmatprep.subr.mxu0 0.0
  %6555 = vmatpush1.msra.mxu0 0.0
  %6556 = vmatprep.subr.mxu0 0.0
  %6557 = vmatpush1.msra.mxu0 0.0
  %6558 = vmatprep.subr.mxu0 0.0
  %6559 = vmatpush1.msra.mxu0 0.0
  %6560 = vmatprep.subr.mxu0 0.0
  %6561 = vmatpush1.msra.mxu0 0.0
  %6562 = vmatprep.subr.mxu0 0.0
  %6563 = vmatpush1.msra.mxu0 0.0
  %6564 = vmatprep.subr.mxu0 0.0
  %6565 = vmatpush1.msra.mxu0 0.0
  %6566 = vmatprep.subr.mxu0 0.0
  %6567 = vmatpush1.msra.mxu0 0.0
  %6568 = vmatprep.subr.mxu0 0.0
  %6569 = vmatpush1.msra.mxu0 0.0
  %6570 = vmatprep.subr.mxu0 0.0
  %6571 = vmatpush1.msra.mxu0 0.0
  %6572 = vmatprep.subr.mxu0 0.0
  %6573 = vmatpush1.msra.mxu0 0.0
  %6574 = vmatprep.subr.mxu0 0.0
  %6575 = vmatpush1.msra.mxu0 0.0
  %6576 = vmatprep.mubr.f32.mxu0 0.0
  %6577 = vmatmul.mubr.f32.gmra.mrb[0].mxu0 %v6510
  %v6578 = vpop.f32.mrb[0].mxu0
  %v6579 = vadd.f32 %v24, %v6578
  %v6580 = vpop.f32.mrb[0].mxu0
  %6581 = vdwg.mxu0
  %v6582 = vsel %vm576, %v6408, 0
  %6584 = vmatprep.subr.mxu0 0.0
  %6585 = vmatpush1.msra.mxu0 %v39
  %6586 = vmatprep.subr.mxu0 0.0
  %6587 = vmatpush1.msra.mxu0 %v40
  %6588 = vmatprep.subr.mxu0 0.0
  %6589 = vmatpush1.msra.mxu0 %v41
  %6590 = vmatprep.subr.mxu0 0.0
  %6591 = vmatpush1.msra.mxu0 %v42
  %6592 = vmatprep.subr.mxu0 0.0
  %6593 = vmatpush1.msra.mxu0 0.0
  %6594 = vmatprep.subr.mxu0 0.0
  %6595 = vmatpush1.msra.mxu0 0.0
  %6596 = vmatprep.subr.mxu0 0.0
  %6597 = vmatpush1.msra.mxu0 0.0
  %6598 = vmatprep.subr.mxu0 0.0
  %6599 = vmatpush1.msra.mxu0 0.0
  %6600 = vmatprep.subr.mxu0 0.0
  %6601 = vmatpush1.msra.mxu0 0.0
  %6602 = vmatprep.subr.mxu0 0.0
  %6603 = vmatpush1.msra.mxu0 0.0
  %6604 = vmatprep.subr.mxu0 0.0
  %6605 = vmatpush1.msra.mxu0 0.0
  %6606 = vmatprep.subr.mxu0 0.0
  %6607 = vmatpush1.msra.mxu0 0.0
  %6608 = vmatprep.subr.mxu0 0.0
  %6609 = vmatpush1.msra.mxu0 0.0
  %6610 = vmatprep.subr.mxu0 0.0
  %6611 = vmatpush1.msra.mxu0 0.0
  %6612 = vmatprep.subr.mxu0 0.0
  %6613 = vmatpush1.msra.mxu0 0.0
  %6614 = vmatprep.subr.mxu0 0.0
  %6615 = vmatpush1.msra.mxu0 0.0
  %6616 = vmatprep.subr.mxu0 0.0
  %6617 = vmatpush1.msra.mxu0 0.0
  %6618 = vmatprep.subr.mxu0 0.0
  %6619 = vmatpush1.msra.mxu0 0.0
  %6620 = vmatprep.subr.mxu0 0.0
  %6621 = vmatpush1.msra.mxu0 0.0
  %6622 = vmatprep.subr.mxu0 0.0
  %6623 = vmatpush1.msra.mxu0 0.0
  %6624 = vmatprep.subr.mxu0 0.0
  %6625 = vmatpush1.msra.mxu0 0.0
  %6626 = vmatprep.subr.mxu0 0.0
  %6627 = vmatpush1.msra.mxu0 0.0
  %6628 = vmatprep.subr.mxu0 0.0
  %6629 = vmatpush1.msra.mxu0 0.0
  %6630 = vmatprep.subr.mxu0 0.0
  %6631 = vmatpush1.msra.mxu0 0.0
  %6632 = vmatprep.subr.mxu0 0.0
  %6633 = vmatpush1.msra.mxu0 0.0
  %6634 = vmatprep.subr.mxu0 0.0
  %6635 = vmatpush1.msra.mxu0 0.0
  %6636 = vmatprep.subr.mxu0 0.0
  %6637 = vmatpush1.msra.mxu0 0.0
  %6638 = vmatprep.subr.mxu0 0.0
  %6639 = vmatpush1.msra.mxu0 0.0
  %6640 = vmatprep.subr.mxu0 0.0
  %6641 = vmatpush1.msra.mxu0 0.0
  %6642 = vmatprep.subr.mxu0 0.0
  %6643 = vmatpush1.msra.mxu0 0.0
  %6644 = vmatprep.subr.mxu0 0.0
  %6645 = vmatpush1.msra.mxu0 0.0
  %6646 = vmatprep.subr.mxu0 0.0
  %6647 = vmatpush1.msra.mxu0 0.0
  %6648 = vmatprep.mubr.f32.mxu0 0.0
  %6649 = vmatmul.mubr.f32.gmra.mrb[0].mxu0 %v6582
  %v6650 = vpop.f32.mrb[0].mxu0
  %v6651 = vadd.f32 0.0, %v6650
  %v6652 = vpop.f32.mrb[0].mxu0
  %6653 = vdwg.mxu0
  %v6654 = vadd.f32 %v6579, %v6651
  %v6655 = vxor.u32 %v6654, 2147483648
  %v6656 = vmul.f32 %v6655, 1.442695
  %v6657 = vpow.pop %v6656
  %v6658 = vadd.f32 %v6657, 1.0
  %v6659 = vrcp.pop %v6658
  %v6660 = vmul.f32 1.0, %v6659
  %v6661 = vtanh.pop %v6654
  %v6662 = vmul.f32 %v6660, %v6399
  %6664 = vrot.lane.b32.xlu0 %v6661, 64
  %v6665 = vpop.permute.xlu0 %6664
  %v6667 = vmul.f32 %v6660, %v6665
  %6669 = vrot.lane.b32.xlu0 %v6667, 32
  %v6670 = vpop.permute.xlu0 %6669
  %v6672 = vadd.f32 %v6662, %v6670
  %v6673 = vtanh.pop %v6672
  %6675 = vrot.lane.b32.xlu0 %v6673, 64
  %v6676 = vpop.permute.xlu0 %6675
  %v6678 = vmul.f32 %v6660, %v6676
  %6680 = vrot.lane.b32.xlu0 %v6678, 32
  %v6681 = vpop.permute.xlu0 %6680
  %6683 = vst.msk [vmem:[#allocation3 + $0x15] sm:$0x1] %vm949, %v6681
  %v6684 = vld [vmem:[#allocation2 + $0x16] sm:$0x1]
  %6685 = vmatprep.subr.mxu0 0.0
  %6686 = vmatpush1.msra.mxu0 %v31
  %6687 = vmatprep.subr.mxu0 0.0
  %6688 = vmatpush1.msra.mxu0 %v32
  %6689 = vmatprep.subr.mxu0 0.0
  %6690 = vmatpush1.msra.mxu0 %v33
  %6691 = vmatprep.subr.mxu0 0.0
  %6692 = vmatpush1.msra.mxu0 %v34
  %6693 = vmatprep.subr.mxu0 0.0
  %6694 = vmatpush1.msra.mxu0 0.0
  %6695 = vmatprep.subr.mxu0 0.0
  %6696 = vmatpush1.msra.mxu0 0.0
  %6697 = vmatprep.subr.mxu0 0.0
  %6698 = vmatpush1.msra.mxu0 0.0
  %6699 = vmatprep.subr.mxu0 0.0
  %6700 = vmatpush1.msra.mxu0 0.0
  %6701 = vmatprep.subr.mxu0 0.0
  %6702 = vmatpush1.msra.mxu0 0.0
  %6703 = vmatprep.subr.mxu0 0.0
  %6704 = vmatpush1.msra.mxu0 0.0
  %6705 = vmatprep.subr.mxu0 0.0
  %6706 = vmatpush1.msra.mxu0 0.0
  %6707 = vmatprep.subr.mxu0 0.0
  %6708 = vmatpush1.msra.mxu0 0.0
  %6709 = vmatprep.subr.mxu0 0.0
  %6710 = vmatpush1.msra.mxu0 0.0
  %6711 = vmatprep.subr.mxu0 0.0
  %6712 = vmatpush1.msra.mxu0 0.0
  %6713 = vmatprep.subr.mxu0 0.0
  %6714 = vmatpush1.msra.mxu0 0.0
  %6715 = vmatprep.subr.mxu0 0.0
  %6716 = vmatpush1.msra.mxu0 0.0
  %6717 = vmatprep.subr.mxu0 0.0
  %6718 = vmatpush1.msra.mxu0 0.0
  %6719 = vmatprep.subr.mxu0 0.0
  %6720 = vmatpush1.msra.mxu0 0.0
  %6721 = vmatprep.subr.mxu0 0.0
  %6722 = vmatpush1.msra.mxu0 0.0
  %6723 = vmatprep.subr.mxu0 0.0
  %6724 = vmatpush1.msra.mxu0 0.0
  %6725 = vmatprep.subr.mxu0 0.0
  %6726 = vmatpush1.msra.mxu0 0.0
  %6727 = vmatprep.subr.mxu0 0.0
  %6728 = vmatpush1.msra.mxu0 0.0
  %6729 = vmatprep.subr.mxu0 0.0
  %6730 = vmatpush1.msra.mxu0 0.0
  %6731 = vmatprep.subr.mxu0 0.0
  %6732 = vmatpush1.msra.mxu0 0.0
  %6733 = vmatprep.subr.mxu0 0.0
  %6734 = vmatpush1.msra.mxu0 0.0
  %6735 = vmatprep.subr.mxu0 0.0
  %6736 = vmatpush1.msra.mxu0 0.0
  %6737 = vmatprep.subr.mxu0 0.0
  %6738 = vmatpush1.msra.mxu0 0.0
  %6739 = vmatprep.subr.mxu0 0.0
  %6740 = vmatpush1.msra.mxu0 0.0
  %6741 = vmatprep.subr.mxu0 0.0
  %6742 = vmatpush1.msra.mxu0 0.0
  %6743 = vmatprep.subr.mxu0 0.0
  %6744 = vmatpush1.msra.mxu0 0.0
  %6745 = vmatprep.subr.mxu0 0.0
  %6746 = vmatpush1.msra.mxu0 0.0
  %6747 = vmatprep.subr.mxu0 0.0
  %6748 = vmatpush1.msra.mxu0 0.0
  %6749 = vmatprep.mubr.f32.mxu0 0.0
  %6750 = vmatmul.mubr.f32.gmra.mrb[0].mxu0 %v6510
  %v6751 = vpop.f32.mrb[0].mxu0
  %v6752 = vadd.f32 0.0, %v6751
  %v6753 = vpop.f32.mrb[0].mxu0
  %6754 = vdwg.mxu0
  %v6755 = vadd.f32 %v6684, %v6752
  %v6756 = vxor.u32 %v6755, 2147483648
  %v6757 = vmul.f32 %v6756, 1.442695
  %v6758 = vpow.pop %v6757
  %v6759 = vadd.f32 %v6758, 1.0
  %v6760 = vrcp.pop %v6759
  %v6761 = vmul.f32 1.0, %v6760
  %v6762 = vtanh.pop %v6755
  %v6763 = vmul.f32 %v6761, %v6500
  %6765 = vrot.lane.b32.xlu0 %v6762, 64
  %v6766 = vpop.permute.xlu0 %6765
  %v6768 = vmul.f32 %v6761, %v6766
  %6770 = vrot.lane.b32.xlu0 %v6768, 32
  %v6771 = vpop.permute.xlu0 %6770
  %v6773 = vadd.f32 %v6763, %v6771
  %v6774 = vtanh.pop %v6773
  %6776 = vrot.lane.b32.xlu0 %v6774, 64
  %v6777 = vpop.permute.xlu0 %6776
  %v6779 = vmul.f32 %v6761, %v6777
  %6781 = vrot.lane.b32.xlu0 %v6779, 32
  %v6782 = vpop.permute.xlu0 %6781
  %v6783 = vsel %vm576, %v6782, 0
  %6785 = vmatprep.subr.mxu0 0.0
  %6786 = vmatpush1.msra.mxu0 %v35
  %6787 = vmatprep.subr.mxu0 0.0
  %6788 = vmatpush1.msra.mxu0 %v36
  %6789 = vmatprep.subr.mxu0 0.0
  %6790 = vmatpush1.msra.mxu0 %v37
  %6791 = vmatprep.subr.mxu0 0.0
  %6792 = vmatpush1.msra.mxu0 %v38
  %6793 = vmatprep.subr.mxu0 0.0
  %6794 = vmatpush1.msra.mxu0 0.0
  %6795 = vmatprep.subr.mxu0 0.0
  %6796 = vmatpush1.msra.mxu0 0.0
  %6797 = vmatprep.subr.mxu0 0.0
  %6798 = vmatpush1.msra.mxu0 0.0
  %6799 = vmatprep.subr.mxu0 0.0
  %6800 = vmatpush1.msra.mxu0 0.0
  %6801 = vmatprep.subr.mxu0 0.0
  %6802 = vmatpush1.msra.mxu0 0.0
  %6803 = vmatprep.subr.mxu0 0.0
  %6804 = vmatpush1.msra.mxu0 0.0
  %6805 = vmatprep.subr.mxu0 0.0
  %6806 = vmatpush1.msra.mxu0 0.0
  %6807 = vmatprep.subr.mxu0 0.0
  %6808 = vmatpush1.msra.mxu0 0.0
  %6809 = vmatprep.subr.mxu0 0.0
  %6810 = vmatpush1.msra.mxu0 0.0
  %6811 = vmatprep.subr.mxu0 0.0
  %6812 = vmatpush1.msra.mxu0 0.0
  %6813 = vmatprep.subr.mxu0 0.0
  %6814 = vmatpush1.msra.mxu0 0.0
  %6815 = vmatprep.subr.mxu0 0.0
  %6816 = vmatpush1.msra.mxu0 0.0
  %6817 = vmatprep.subr.mxu0 0.0
  %6818 = vmatpush1.msra.mxu0 0.0
  %6819 = vmatprep.subr.mxu0 0.0
  %6820 = vmatpush1.msra.mxu0 0.0
  %6821 = vmatprep.subr.mxu0 0.0
  %6822 = vmatpush1.msra.mxu0 0.0
  %6823 = vmatprep.subr.mxu0 0.0
  %6824 = vmatpush1.msra.mxu0 0.0
  %6825 = vmatprep.subr.mxu0 0.0
  %6826 = vmatpush1.msra.mxu0 0.0
  %6827 = vmatprep.subr.mxu0 0.0
  %6828 = vmatpush1.msra.mxu0 0.0
  %6829 = vmatprep.subr.mxu0 0.0
  %6830 = vmatpush1.msra.mxu0 0.0
  %6831 = vmatprep.subr.mxu0 0.0
  %6832 = vmatpush1.msra.mxu0 0.0
  %6833 = vmatprep.subr.mxu0 0.0
  %6834 = vmatpush1.msra.mxu0 0.0
  %6835 = vmatprep.subr.mxu0 0.0
  %6836 = vmatpush1.msra.mxu0 0.0
  %6837 = vmatprep.subr.mxu0 0.0
  %6838 = vmatpush1.msra.mxu0 0.0
  %6839 = vmatprep.subr.mxu0 0.0
  %6840 = vmatpush1.msra.mxu0 0.0
  %6841 = vmatprep.subr.mxu0 0.0
  %6842 = vmatpush1.msra.mxu0 0.0
  %6843 = vmatprep.subr.mxu0 0.0
  %6844 = vmatpush1.msra.mxu0 0.0
  %6845 = vmatprep.subr.mxu0 0.0
  %6846 = vmatpush1.msra.mxu0 0.0
  %6847 = vmatprep.subr.mxu0 0.0
  %6848 = vmatpush1.msra.mxu0 0.0
  %6849 = vmatprep.mubr.f32.mxu0 0.0
  %6850 = vmatmul.mubr.f32.gmra.mrb[0].mxu0 %v6783
  %v6851 = vpop.f32.mrb[0].mxu0
  %v6852 = vadd.f32 %v24, %v6851
  %v6853 = vpop.f32.mrb[0].mxu0
  %6854 = vdwg.mxu0
  %v6855 = vsel %vm576, %v6681, 0
  %6857 = vmatprep.subr.mxu0 0.0
  %6858 = vmatpush1.msra.mxu0 %v39
  %6859 = vmatprep.subr.mxu0 0.0
  %6860 = vmatpush1.msra.mxu0 %v40
  %6861 = vmatprep.subr.mxu0 0.0
  %6862 = vmatpush1.msra.mxu0 %v41
  %6863 = vmatprep.subr.mxu0 0.0
  %6864 = vmatpush1.msra.mxu0 %v42
  %6865 = vmatprep.subr.mxu0 0.0
  %6866 = vmatpush1.msra.mxu0 0.0
  %6867 = vmatprep.subr.mxu0 0.0
  %6868 = vmatpush1.msra.mxu0 0.0
  %6869 = vmatprep.subr.mxu0 0.0
  %6870 = vmatpush1.msra.mxu0 0.0
  %6871 = vmatprep.subr.mxu0 0.0
  %6872 = vmatpush1.msra.mxu0 0.0
  %6873 = vmatprep.subr.mxu0 0.0
  %6874 = vmatpush1.msra.mxu0 0.0
  %6875 = vmatprep.subr.mxu0 0.0
  %6876 = vmatpush1.msra.mxu0 0.0
  %6877 = vmatprep.subr.mxu0 0.0
  %6878 = vmatpush1.msra.mxu0 0.0
  %6879 = vmatprep.subr.mxu0 0.0
  %6880 = vmatpush1.msra.mxu0 0.0
  %6881 = vmatprep.subr.mxu0 0.0
  %6882 = vmatpush1.msra.mxu0 0.0
  %6883 = vmatprep.subr.mxu0 0.0
  %6884 = vmatpush1.msra.mxu0 0.0
  %6885 = vmatprep.subr.mxu0 0.0
  %6886 = vmatpush1.msra.mxu0 0.0
  %6887 = vmatprep.subr.mxu0 0.0
  %6888 = vmatpush1.msra.mxu0 0.0
  %6889 = vmatprep.subr.mxu0 0.0
  %6890 = vmatpush1.msra.mxu0 0.0
  %6891 = vmatprep.subr.mxu0 0.0
  %6892 = vmatpush1.msra.mxu0 0.0
  %6893 = vmatprep.subr.mxu0 0.0
  %6894 = vmatpush1.msra.mxu0 0.0
  %6895 = vmatprep.subr.mxu0 0.0
  %6896 = vmatpush1.msra.mxu0 0.0
  %6897 = vmatprep.subr.mxu0 0.0
  %6898 = vmatpush1.msra.mxu0 0.0
  %6899 = vmatprep.subr.mxu0 0.0
  %6900 = vmatpush1.msra.mxu0 0.0
  %6901 = vmatprep.subr.mxu0 0.0
  %6902 = vmatpush1.msra.mxu0 0.0
  %6903 = vmatprep.subr.mxu0 0.0
  %6904 = vmatpush1.msra.mxu0 0.0
  %6905 = vmatprep.subr.mxu0 0.0
  %6906 = vmatpush1.msra.mxu0 0.0
  %6907 = vmatprep.subr.mxu0 0.0
  %6908 = vmatpush1.msra.mxu0 0.0
  %6909 = vmatprep.subr.mxu0 0.0
  %6910 = vmatpush1.msra.mxu0 0.0
  %6911 = vmatprep.subr.mxu0 0.0
  %6912 = vmatpush1.msra.mxu0 0.0
  %6913 = vmatprep.subr.mxu0 0.0
  %6914 = vmatpush1.msra.mxu0 0.0
  %6915 = vmatprep.subr.mxu0 0.0
  %6916 = vmatpush1.msra.mxu0 0.0
  %6917 = vmatprep.subr.mxu0 0.0
  %6918 = vmatpush1.msra.mxu0 0.0
  %6919 = vmatprep.subr.mxu0 0.0
  %6920 = vmatpush1.msra.mxu0 0.0
  %6921 = vmatprep.mubr.f32.mxu0 0.0
  %6922 = vmatmul.mubr.f32.gmra.mrb[0].mxu0 %v6855
  %v6923 = vpop.f32.mrb[0].mxu0
  %v6924 = vadd.f32 0.0, %v6923
  %v6925 = vpop.f32.mrb[0].mxu0
  %6926 = vdwg.mxu0
  %v6927 = vadd.f32 %v6852, %v6924
  %v6928 = vxor.u32 %v6927, 2147483648
  %v6929 = vmul.f32 %v6928, 1.442695
  %v6930 = vpow.pop %v6929
  %v6931 = vadd.f32 %v6930, 1.0
  %v6932 = vrcp.pop %v6931
  %v6933 = vmul.f32 1.0, %v6932
  %v6934 = vtanh.pop %v6927
  %v6935 = vmul.f32 %v6933, %v6672
  %6937 = vrot.lane.b32.xlu0 %v6934, 64
  %v6938 = vpop.permute.xlu0 %6937
  %v6940 = vmul.f32 %v6933, %v6938
  %6942 = vrot.lane.b32.xlu0 %v6940, 32
  %v6943 = vpop.permute.xlu0 %6942
  %v6945 = vadd.f32 %v6935, %v6943
  %v6946 = vtanh.pop %v6945
  %6948 = vrot.lane.b32.xlu0 %v6946, 64
  %v6949 = vpop.permute.xlu0 %6948
  %v6951 = vmul.f32 %v6933, %v6949
  %6953 = vrot.lane.b32.xlu0 %v6951, 32
  %v6954 = vpop.permute.xlu0 %6953
  %6956 = vst.msk [vmem:[#allocation3 + $0x16] sm:$0x1] %vm949, %v6954
  %v6957 = vld [vmem:[#allocation2 + $0x17] sm:$0x1]
  %6958 = vmatprep.subr.mxu0 0.0
  %6959 = vmatpush1.msra.mxu0 %v31
  %6960 = vmatprep.subr.mxu0 0.0
  %6961 = vmatpush1.msra.mxu0 %v32
  %6962 = vmatprep.subr.mxu0 0.0
  %6963 = vmatpush1.msra.mxu0 %v33
  %6964 = vmatprep.subr.mxu0 0.0
  %6965 = vmatpush1.msra.mxu0 %v34
  %6966 = vmatprep.subr.mxu0 0.0
  %6967 = vmatpush1.msra.mxu0 0.0
  %6968 = vmatprep.subr.mxu0 0.0
  %6969 = vmatpush1.msra.mxu0 0.0
  %6970 = vmatprep.subr.mxu0 0.0
  %6971 = vmatpush1.msra.mxu0 0.0
  %6972 = vmatprep.subr.mxu0 0.0
  %6973 = vmatpush1.msra.mxu0 0.0
  %6974 = vmatprep.subr.mxu0 0.0
  %6975 = vmatpush1.msra.mxu0 0.0
  %6976 = vmatprep.subr.mxu0 0.0
  %6977 = vmatpush1.msra.mxu0 0.0
  %6978 = vmatprep.subr.mxu0 0.0
  %6979 = vmatpush1.msra.mxu0 0.0
  %6980 = vmatprep.subr.mxu0 0.0
  %6981 = vmatpush1.msra.mxu0 0.0
  %6982 = vmatprep.subr.mxu0 0.0
  %6983 = vmatpush1.msra.mxu0 0.0
  %6984 = vmatprep.subr.mxu0 0.0
  %6985 = vmatpush1.msra.mxu0 0.0
  %6986 = vmatprep.subr.mxu0 0.0
  %6987 = vmatpush1.msra.mxu0 0.0
  %6988 = vmatprep.subr.mxu0 0.0
  %6989 = vmatpush1.msra.mxu0 0.0
  %6990 = vmatprep.subr.mxu0 0.0
  %6991 = vmatpush1.msra.mxu0 0.0
  %6992 = vmatprep.subr.mxu0 0.0
  %6993 = vmatpush1.msra.mxu0 0.0
  %6994 = vmatprep.subr.mxu0 0.0
  %6995 = vmatpush1.msra.mxu0 0.0
  %6996 = vmatprep.subr.mxu0 0.0
  %6997 = vmatpush1.msra.mxu0 0.0
  %6998 = vmatprep.subr.mxu0 0.0
  %6999 = vmatpush1.msra.mxu0 0.0
  %7000 = vmatprep.subr.mxu0 0.0
  %7001 = vmatpush1.msra.mxu0 0.0
  %7002 = vmatprep.subr.mxu0 0.0
  %7003 = vmatpush1.msra.mxu0 0.0
  %7004 = vmatprep.subr.mxu0 0.0
  %7005 = vmatpush1.msra.mxu0 0.0
  %7006 = vmatprep.subr.mxu0 0.0
  %7007 = vmatpush1.msra.mxu0 0.0
  %7008 = vmatprep.subr.mxu0 0.0
  %7009 = vmatpush1.msra.mxu0 0.0
  %7010 = vmatprep.subr.mxu0 0.0
  %7011 = vmatpush1.msra.mxu0 0.0
  %7012 = vmatprep.subr.mxu0 0.0
  %7013 = vmatpush1.msra.mxu0 0.0
  %7014 = vmatprep.subr.mxu0 0.0
  %7015 = vmatpush1.msra.mxu0 0.0
  %7016 = vmatprep.subr.mxu0 0.0
  %7017 = vmatpush1.msra.mxu0 0.0
  %7018 = vmatprep.subr.mxu0 0.0
  %7019 = vmatpush1.msra.mxu0 0.0
  %7020 = vmatprep.subr.mxu0 0.0
  %7021 = vmatpush1.msra.mxu0 0.0
  %7022 = vmatprep.mubr.f32.mxu0 0.0
  %7023 = vmatmul.mubr.f32.gmra.mrb[0].mxu0 %v6783
  %v7024 = vpop.f32.mrb[0].mxu0
  %v7025 = vadd.f32 0.0, %v7024
  %v7026 = vpop.f32.mrb[0].mxu0
  %7027 = vdwg.mxu0
  %v7028 = vadd.f32 %v6957, %v7025
  %v7029 = vxor.u32 %v7028, 2147483648
  %v7030 = vmul.f32 %v7029, 1.442695
  %v7031 = vpow.pop %v7030
  %v7032 = vadd.f32 %v7031, 1.0
  %v7033 = vrcp.pop %v7032
  %v7034 = vmul.f32 1.0, %v7033
  %v7035 = vtanh.pop %v7028
  %v7036 = vmul.f32 %v7034, %v6773
  %7038 = vrot.lane.b32.xlu0 %v7035, 64
  %v7039 = vpop.permute.xlu0 %7038
  %v7041 = vmul.f32 %v7034, %v7039
  %7043 = vrot.lane.b32.xlu0 %v7041, 32
  %v7044 = vpop.permute.xlu0 %7043
  %v7046 = vadd.f32 %v7036, %v7044
  %v7047 = vtanh.pop %v7046
  %7049 = vrot.lane.b32.xlu0 %v7047, 64
  %v7050 = vpop.permute.xlu0 %7049
  %v7052 = vmul.f32 %v7034, %v7050
  %7054 = vrot.lane.b32.xlu0 %v7052, 32
  %v7055 = vpop.permute.xlu0 %7054
  %v7056 = vsel %vm576, %v7055, 0
  %7058 = vmatprep.subr.mxu0 0.0
  %7059 = vmatpush1.msra.mxu0 %v35
  %7060 = vmatprep.subr.mxu0 0.0
  %7061 = vmatpush1.msra.mxu0 %v36
  %7062 = vmatprep.subr.mxu0 0.0
  %7063 = vmatpush1.msra.mxu0 %v37
  %7064 = vmatprep.subr.mxu0 0.0
  %7065 = vmatpush1.msra.mxu0 %v38
  %7066 = vmatprep.subr.mxu0 0.0
  %7067 = vmatpush1.msra.mxu0 0.0
  %7068 = vmatprep.subr.mxu0 0.0
  %7069 = vmatpush1.msra.mxu0 0.0
  %7070 = vmatprep.subr.mxu0 0.0
  %7071 = vmatpush1.msra.mxu0 0.0
  %7072 = vmatprep.subr.mxu0 0.0
  %7073 = vmatpush1.msra.mxu0 0.0
  %7074 = vmatprep.subr.mxu0 0.0
  %7075 = vmatpush1.msra.mxu0 0.0
  %7076 = vmatprep.subr.mxu0 0.0
  %7077 = vmatpush1.msra.mxu0 0.0
  %7078 = vmatprep.subr.mxu0 0.0
  %7079 = vmatpush1.msra.mxu0 0.0
  %7080 = vmatprep.subr.mxu0 0.0
  %7081 = vmatpush1.msra.mxu0 0.0
  %7082 = vmatprep.subr.mxu0 0.0
  %7083 = vmatpush1.msra.mxu0 0.0
  %7084 = vmatprep.subr.mxu0 0.0
  %7085 = vmatpush1.msra.mxu0 0.0
  %7086 = vmatprep.subr.mxu0 0.0
  %7087 = vmatpush1.msra.mxu0 0.0
  %7088 = vmatprep.subr.mxu0 0.0
  %7089 = vmatpush1.msra.mxu0 0.0
  %7090 = vmatprep.subr.mxu0 0.0
  %7091 = vmatpush1.msra.mxu0 0.0
  %7092 = vmatprep.subr.mxu0 0.0
  %7093 = vmatpush1.msra.mxu0 0.0
  %7094 = vmatprep.subr.mxu0 0.0
  %7095 = vmatpush1.msra.mxu0 0.0
  %7096 = vmatprep.subr.mxu0 0.0
  %7097 = vmatpush1.msra.mxu0 0.0
  %7098 = vmatprep.subr.mxu0 0.0
  %7099 = vmatpush1.msra.mxu0 0.0
  %7100 = vmatprep.subr.mxu0 0.0
  %7101 = vmatpush1.msra.mxu0 0.0
  %7102 = vmatprep.subr.mxu0 0.0
  %7103 = vmatpush1.msra.mxu0 0.0
  %7104 = vmatprep.subr.mxu0 0.0
  %7105 = vmatpush1.msra.mxu0 0.0
  %7106 = vmatprep.subr.mxu0 0.0
  %7107 = vmatpush1.msra.mxu0 0.0
  %7108 = vmatprep.subr.mxu0 0.0
  %7109 = vmatpush1.msra.mxu0 0.0
  %7110 = vmatprep.subr.mxu0 0.0
  %7111 = vmatpush1.msra.mxu0 0.0
  %7112 = vmatprep.subr.mxu0 0.0
  %7113 = vmatpush1.msra.mxu0 0.0
  %7114 = vmatprep.subr.mxu0 0.0
  %7115 = vmatpush1.msra.mxu0 0.0
  %7116 = vmatprep.subr.mxu0 0.0
  %7117 = vmatpush1.msra.mxu0 0.0
  %7118 = vmatprep.subr.mxu0 0.0
  %7119 = vmatpush1.msra.mxu0 0.0
  %7120 = vmatprep.subr.mxu0 0.0
  %7121 = vmatpush1.msra.mxu0 0.0
  %7122 = vmatprep.mubr.f32.mxu0 0.0
  %7123 = vmatmul.mubr.f32.gmra.mrb[0].mxu0 %v7056
  %v7124 = vpop.f32.mrb[0].mxu0
  %v7125 = vadd.f32 %v24, %v7124
  %v7126 = vpop.f32.mrb[0].mxu0
  %7127 = vdwg.mxu0
  %v7128 = vsel %vm576, %v6954, 0
  %7130 = vmatprep.subr.mxu0 0.0
  %7131 = vmatpush1.msra.mxu0 %v39
  %7132 = vmatprep.subr.mxu0 0.0
  %7133 = vmatpush1.msra.mxu0 %v40
  %7134 = vmatprep.subr.mxu0 0.0
  %7135 = vmatpush1.msra.mxu0 %v41
  %7136 = vmatprep.subr.mxu0 0.0
  %7137 = vmatpush1.msra.mxu0 %v42
  %7138 = vmatprep.subr.mxu0 0.0
  %7139 = vmatpush1.msra.mxu0 0.0
  %7140 = vmatprep.subr.mxu0 0.0
  %7141 = vmatpush1.msra.mxu0 0.0
  %7142 = vmatprep.subr.mxu0 0.0
  %7143 = vmatpush1.msra.mxu0 0.0
  %7144 = vmatprep.subr.mxu0 0.0
  %7145 = vmatpush1.msra.mxu0 0.0
  %7146 = vmatprep.subr.mxu0 0.0
  %7147 = vmatpush1.msra.mxu0 0.0
  %7148 = vmatprep.subr.mxu0 0.0
  %7149 = vmatpush1.msra.mxu0 0.0
  %7150 = vmatprep.subr.mxu0 0.0
  %7151 = vmatpush1.msra.mxu0 0.0
  %7152 = vmatprep.subr.mxu0 0.0
  %7153 = vmatpush1.msra.mxu0 0.0
  %7154 = vmatprep.subr.mxu0 0.0
  %7155 = vmatpush1.msra.mxu0 0.0
  %7156 = vmatprep.subr.mxu0 0.0
  %7157 = vmatpush1.msra.mxu0 0.0
  %7158 = vmatprep.subr.mxu0 0.0
  %7159 = vmatpush1.msra.mxu0 0.0
  %7160 = vmatprep.subr.mxu0 0.0
  %7161 = vmatpush1.msra.mxu0 0.0
  %7162 = vmatprep.subr.mxu0 0.0
  %7163 = vmatpush1.msra.mxu0 0.0
  %7164 = vmatprep.subr.mxu0 0.0
  %7165 = vmatpush1.msra.mxu0 0.0
  %7166 = vmatprep.subr.mxu0 0.0
  %7167 = vmatpush1.msra.mxu0 0.0
  %7168 = vmatprep.subr.mxu0 0.0
  %7169 = vmatpush1.msra.mxu0 0.0
  %7170 = vmatprep.subr.mxu0 0.0
  %7171 = vmatpush1.msra.mxu0 0.0
  %7172 = vmatprep.subr.mxu0 0.0
  %7173 = vmatpush1.msra.mxu0 0.0
  %7174 = vmatprep.subr.mxu0 0.0
  %7175 = vmatpush1.msra.mxu0 0.0
  %7176 = vmatprep.subr.mxu0 0.0
  %7177 = vmatpush1.msra.mxu0 0.0
  %7178 = vmatprep.subr.mxu0 0.0
  %7179 = vmatpush1.msra.mxu0 0.0
  %7180 = vmatprep.subr.mxu0 0.0
  %7181 = vmatpush1.msra.mxu0 0.0
  %7182 = vmatprep.subr.mxu0 0.0
  %7183 = vmatpush1.msra.mxu0 0.0
  %7184 = vmatprep.subr.mxu0 0.0
  %7185 = vmatpush1.msra.mxu0 0.0
  %7186 = vmatprep.subr.mxu0 0.0
  %7187 = vmatpush1.msra.mxu0 0.0
  %7188 = vmatprep.subr.mxu0 0.0
  %7189 = vmatpush1.msra.mxu0 0.0
  %7190 = vmatprep.subr.mxu0 0.0
  %7191 = vmatpush1.msra.mxu0 0.0
  %7192 = vmatprep.subr.mxu0 0.0
  %7193 = vmatpush1.msra.mxu0 0.0
  %7194 = vmatprep.mubr.f32.mxu0 0.0
  %7195 = vmatmul.mubr.f32.gmra.mrb[0].mxu0 %v7128
  %v7196 = vpop.f32.mrb[0].mxu0
  %v7197 = vadd.f32 0.0, %v7196
  %v7198 = vpop.f32.mrb[0].mxu0
  %7199 = vdwg.mxu0
  %v7200 = vadd.f32 %v7125, %v7197
  %v7201 = vxor.u32 %v7200, 2147483648
  %v7202 = vmul.f32 %v7201, 1.442695
  %v7203 = vpow.pop %v7202
  %v7204 = vadd.f32 %v7203, 1.0
  %v7205 = vrcp.pop %v7204
  %v7206 = vmul.f32 1.0, %v7205
  %v7207 = vtanh.pop %v7200
  %v7208 = vmul.f32 %v7206, %v6945
  %7210 = vrot.lane.b32.xlu0 %v7207, 64
  %v7211 = vpop.permute.xlu0 %7210
  %v7213 = vmul.f32 %v7206, %v7211
  %7215 = vrot.lane.b32.xlu0 %v7213, 32
  %v7216 = vpop.permute.xlu0 %7215
  %v7218 = vadd.f32 %v7208, %v7216
  %v7219 = vtanh.pop %v7218
  %7221 = vrot.lane.b32.xlu0 %v7219, 64
  %v7222 = vpop.permute.xlu0 %7221
  %v7224 = vmul.f32 %v7206, %v7222
  %7226 = vrot.lane.b32.xlu0 %v7224, 32
  %v7227 = vpop.permute.xlu0 %7226
  %7229 = vst.msk [vmem:[#allocation3 + $0x17] sm:$0x1] %vm949, %v7227
  %v7230 = vld [vmem:[#allocation3] sm:$0xff]
  %v7231 = vld [vmem:[#allocation3 + $0x8] sm:$0xff]
  %v7232 = vld [vmem:[#allocation3 + $0x10] sm:$0xff]
  %v7233 = vlaneseq
  %v7234 = vshrl.u32 %v7233, 7
  %v7235 = vsub.s32 0, %v7234
  %v7236 = vrot.slane %v25, %v7235
  %v7238 = vsel %vm576, %v7230, 0
  %v7241 = vsel %vm576, %v7231, 0
  %v7244 = vsel %vm576, %v7232, 0
  %7246 = vmatprep.subr.mxu0 0.0
  %7247 = vmatpush1.msra.mxu0 %v43
  %7248 = vmatprep.subr.mxu0 0.0
  %7249 = vmatpush1.msra.mxu0 %v44
  %7250 = vmatprep.subr.mxu0 0.0
  %7251 = vmatpush1.msra.mxu0 %v45
  %7252 = vmatprep.subr.mxu0 0.0
  %7253 = vmatpush1.msra.mxu0 %v46
  %7254 = vmatprep.subr.mxu0 0.0
  %7255 = vmatpush1.msra.mxu0 0.0
  %7256 = vmatprep.subr.mxu0 0.0
  %7257 = vmatpush1.msra.mxu0 0.0
  %7258 = vmatprep.subr.mxu0 0.0
  %7259 = vmatpush1.msra.mxu0 0.0
  %7260 = vmatprep.subr.mxu0 0.0
  %7261 = vmatpush1.msra.mxu0 0.0
  %7262 = vmatprep.subr.mxu0 0.0
  %7263 = vmatpush1.msra.mxu0 0.0
  %7264 = vmatprep.subr.mxu0 0.0
  %7265 = vmatpush1.msra.mxu0 0.0
  %7266 = vmatprep.subr.mxu0 0.0
  %7267 = vmatpush1.msra.mxu0 0.0
  %7268 = vmatprep.subr.mxu0 0.0
  %7269 = vmatpush1.msra.mxu0 0.0
  %7270 = vmatprep.subr.mxu0 0.0
  %7271 = vmatpush1.msra.mxu0 0.0
  %7272 = vmatprep.subr.mxu0 0.0
  %7273 = vmatpush1.msra.mxu0 0.0
  %7274 = vmatprep.subr.mxu0 0.0
  %7275 = vmatpush1.msra.mxu0 0.0
  %7276 = vmatprep.subr.mxu0 0.0
  %7277 = vmatpush1.msra.mxu0 0.0
  %7278 = vmatprep.subr.mxu0 0.0
  %7279 = vmatpush1.msra.mxu0 0.0
  %7280 = vmatprep.subr.mxu0 0.0
  %7281 = vmatpush1.msra.mxu0 0.0
  %7282 = vmatprep.subr.mxu0 0.0
  %7283 = vmatpush1.msra.mxu0 0.0
  %7284 = vmatprep.subr.mxu0 0.0
  %7285 = vmatpush1.msra.mxu0 0.0
  %7286 = vmatprep.subr.mxu0 0.0
  %7287 = vmatpush1.msra.mxu0 0.0
  %7288 = vmatprep.subr.mxu0 0.0
  %7289 = vmatpush1.msra.mxu0 0.0
  %7290 = vmatprep.subr.mxu0 0.0
  %7291 = vmatpush1.msra.mxu0 0.0
  %7292 = vmatprep.subr.mxu0 0.0
  %7293 = vmatpush1.msra.mxu0 0.0
  %7294 = vmatprep.subr.mxu0 0.0
  %7295 = vmatpush1.msra.mxu0 0.0
  %7296 = vmatprep.subr.mxu0 0.0
  %7297 = vmatpush1.msra.mxu0 0.0
  %7298 = vmatprep.subr.mxu0 0.0
  %7299 = vmatpush1.msra.mxu0 0.0
  %7300 = vmatprep.subr.mxu0 0.0
  %7301 = vmatpush1.msra.mxu0 0.0
  %7302 = vmatprep.subr.mxu0 0.0
  %7303 = vmatpush1.msra.mxu0 0.0
  %7304 = vmatprep.subr.mxu0 0.0
  %7305 = vmatpush1.msra.mxu0 0.0
  %7306 = vmatprep.subr.mxu0 0.0
  %7307 = vmatpush1.msra.mxu0 0.0
  %7308 = vmatprep.subr.mxu0 0.0
  %7309 = vmatpush1.msra.mxu0 0.0
  %7310 = vmatprep.mubr.f32.mxu0 0.0
  %7311 = vmatmul.mubr.f32.gmra.mrb[0].mxu0 %v7238
  %v7312 = vpop.f32.mrb[0].mxu0
  %v7313 = vadd.f32 %v7236, %v7312
  %v7314 = vpop.f32.mrb[0].mxu0
  %7315 = vmatprep.mubr.f32.mxu0 0.0
  %7316 = vmatmul.mubr.f32.gmra.mrb[0].mxu0 %v7241
  %v7317 = vpop.f32.mrb[0].mxu0
  %v7318 = vadd.f32 %v7236, %v7317
  %v7319 = vpop.f32.mrb[0].mxu0
  %7320 = vmatprep.mubr.f32.mxu0 0.0
  %7321 = vmatmul.mubr.f32.gmra.mrb[0].mxu0 %v7244
  %v7322 = vpop.f32.mrb[0].mxu0
  %v7323 = vadd.f32 %v7236, %v7322
  %v7324 = vpop.f32.mrb[0].mxu0
  %7325 = vdwg.mxu0
  %v7326 = vmax.f32 %v7313, 0.0
  %v7327 = vmax.f32 %v7318, 0.0
  %v7328 = vmax.f32 %v7323, 0.0
  %v7329 = vlaneseq
  %v7330 = vshrl.u32 %v7329, 7
  %v7331 = vsub.s32 0, %v7330
  %v7332 = vrot.slane %v26, %v7331
  %v7334 = vsel %vm73, %v7326, 0
  %v7337 = vsel %vm73, %v7327, 0
  %v7340 = vsel %vm73, %v7328, 0
  %7342 = vmatprep.subr.mxu0 0.0
  %7343 = vmatpush1.msra.mxu0 %v47
  %7344 = vmatprep.subr.mxu0 0.0
  %7345 = vmatpush1.msra.mxu0 %v48
  %7346 = vmatprep.subr.mxu0 0.0
  %7347 = vmatpush1.msra.mxu0 0.0
  %7348 = vmatprep.subr.mxu0 0.0
  %7349 = vmatpush1.msra.mxu0 0.0
  %7350 = vmatprep.subr.mxu0 0.0
  %7351 = vmatpush1.msra.mxu0 0.0
  %7352 = vmatprep.subr.mxu0 0.0
  %7353 = vmatpush1.msra.mxu0 0.0
  %7354 = vmatprep.subr.mxu0 0.0
  %7355 = vmatpush1.msra.mxu0 0.0
  %7356 = vmatprep.subr.mxu0 0.0
  %7357 = vmatpush1.msra.mxu0 0.0
  %7358 = vmatprep.subr.mxu0 0.0
  %7359 = vmatpush1.msra.mxu0 0.0
  %7360 = vmatprep.subr.mxu0 0.0
  %7361 = vmatpush1.msra.mxu0 0.0
  %7362 = vmatprep.subr.mxu0 0.0
  %7363 = vmatpush1.msra.mxu0 0.0
  %7364 = vmatprep.subr.mxu0 0.0
  %7365 = vmatpush1.msra.mxu0 0.0
  %7366 = vmatprep.subr.mxu0 0.0
  %7367 = vmatpush1.msra.mxu0 0.0
  %7368 = vmatprep.subr.mxu0 0.0
  %7369 = vmatpush1.msra.mxu0 0.0
  %7370 = vmatprep.subr.mxu0 0.0
  %7371 = vmatpush1.msra.mxu0 0.0
  %7372 = vmatprep.subr.mxu0 0.0
  %7373 = vmatpush1.msra.mxu0 0.0
  %7374 = vmatprep.subr.mxu0 0.0
  %7375 = vmatpush1.msra.mxu0 0.0
  %7376 = vmatprep.subr.mxu0 0.0
  %7377 = vmatpush1.msra.mxu0 0.0
  %7378 = vmatprep.subr.mxu0 0.0
  %7379 = vmatpush1.msra.mxu0 0.0
  %7380 = vmatprep.subr.mxu0 0.0
  %7381 = vmatpush1.msra.mxu0 0.0
  %7382 = vmatprep.subr.mxu0 0.0
  %7383 = vmatpush1.msra.mxu0 0.0
  %7384 = vmatprep.subr.mxu0 0.0
  %7385 = vmatpush1.msra.mxu0 0.0
  %7386 = vmatprep.subr.mxu0 0.0
  %7387 = vmatpush1.msra.mxu0 0.0
  %7388 = vmatprep.subr.mxu0 0.0
  %7389 = vmatpush1.msra.mxu0 0.0
  %7390 = vmatprep.subr.mxu0 0.0
  %7391 = vmatpush1.msra.mxu0 0.0
  %7392 = vmatprep.subr.mxu0 0.0
  %7393 = vmatpush1.msra.mxu0 0.0
  %7394 = vmatprep.subr.mxu0 0.0
  %7395 = vmatpush1.msra.mxu0 0.0
  %7396 = vmatprep.subr.mxu0 0.0
  %7397 = vmatpush1.msra.mxu0 0.0
  %7398 = vmatprep.subr.mxu0 0.0
  %7399 = vmatpush1.msra.mxu0 0.0
  %7400 = vmatprep.subr.mxu0 0.0
  %7401 = vmatpush1.msra.mxu0 0.0
  %7402 = vmatprep.subr.mxu0 0.0
  %7403 = vmatpush1.msra.mxu0 0.0
  %7404 = vmatprep.subr.mxu0 0.0
  %7405 = vmatpush1.msra.mxu0 0.0
  %7406 = vmatprep.mubr.f32.mxu0 0.0
  %7407 = vmatmul.mubr.f32.gmra.mrb[0].mxu0 %v7334
  %v7408 = vpop.f32.mrb[0].mxu0
  %v7409 = vadd.f32 %v7332, %v7408
  %v7410 = vpop.f32.mrb[0].mxu0
  %7411 = vmatprep.mubr.f32.mxu0 0.0
  %7412 = vmatmul.mubr.f32.gmra.mrb[0].mxu0 %v7337
  %v7413 = vpop.f32.mrb[0].mxu0
  %v7414 = vadd.f32 %v7332, %v7413
  %v7415 = vpop.f32.mrb[0].mxu0
  %7416 = vmatprep.mubr.f32.mxu0 0.0
  %7417 = vmatmul.mubr.f32.gmra.mrb[0].mxu0 %v7340
  %v7418 = vpop.f32.mrb[0].mxu0
  %v7419 = vadd.f32 %v7332, %v7418
  %v7420 = vpop.f32.mrb[0].mxu0
  %7421 = vdwg.mxu0
  %vm7422 = vcmask 7168
  %7423 = vst.msk [vmem:[%s5] sm:$0xff] %vm7422, %v7409
  %7424 = vst.msk [vmem:[%s5 + $0x8] sm:$0xff] %vm7422, %v7414
  %7425 = vst.msk [vmem:[%s5 + $0x10] sm:$0xff] %vm7422, %v7419
  // Predicated region
  $region22: #{edge_gcn_lstm_forward.1} parent=0 // pred_check
    _
  $region23: #{edge_gcn_lstm_forward.1} parent=0 // pred_check_branch
    %7427 = sbr.rel (0) target = $region25
  $region24: #{edge_gcn_lstm_forward.1} parent=0 // pred_region
    _
  $region25: #{edge_gcn_lstm_forward.1} parent=0 // pred_fallthru
    _
  // Predicated region
  $region26: #{edge_gcn_lstm_forward.1} parent=0 // pred_check
    _
  $region27: #{edge_gcn_lstm_forward.1} parent=0 // pred_check_branch
    %7429 = sbr.rel (0) target = $region29
  $region28: #{edge_gcn_lstm_forward.1} parent=0 // pred_region
    _
  $region29: #{edge_gcn_lstm_forward.1} parent=0 // pred_fallthru
    _

</llo_original>
